<compile_context>
chip_gen: v6e
topology: v6e:2x2x1
jax: 0.10.0
libtpu: 0.0.40
codegen_flags: <defaults>
</compile_context>

<pallas_src>
import functools

import jax
import jax.numpy as jnp
from jax import lax
from jax.experimental import pallas as pl
from jax.experimental.pallas import tpu as pltpu


# ------------------------------ kernel ------------------------------------- #

def _pad_axis(x, axis, pad, nb=1):
    """Zero-pad `pad` logical positions on both ends of `axis`.

    For the lane-interleaved W axis (axis=2, W-major / sample-minor) one
    logical position is `nb` lanes wide.  Never executed for padding == 0
    (the module default).
    # TODO(synk): for padding > 0, replace this concatenate with masked edge
    # taps or a pre-sized VMEM scratch written via slice stores to avoid the
    # per-channel full-volume relayout copy.
    """
    if pad == 0:
        return x
    width = pad * (nb if axis == 2 else 1)
    zshape = list(x.shape)
    zshape[axis] = width
    z = jnp.zeros(tuple(zshape), x.dtype)
    return jnp.concatenate([z, x, z], axis=axis)


def _conv1d_stage(load_in, store_out, w_ref, b_ref, *,
                  axis, K, stride, pad, cin, cout, out_len, nb):
    """1-D conv along `axis` of per-channel (D, H, W*nb) volumes.

    axis: 0 = D (leading axis, free slices), 1 = H (sublane slices),
          2 = W (lane axis, W-major / sample-minor interleave: tap k is an
          exact lane slice at offset k*nb -- no cross-sample contamination).

    `co` is outermost so only ONE accumulator volume is live at a time; the
    channel/tap contraction is unrolled into VPU multiply-adds with scalar
    weights broadcast from SMEM (w_ref is flat with layout [k, ci, co]).
    """
    for co in range(cout):
        acc = None
        for ci in range(cin):
            x = _pad_axis(load_in(ci), axis, pad, nb)
            for k in range(K):
                if axis == 2:
                    ulen = x.shape[2] // nb - K + 1      # unstrided out length
                    slab = lax.slice_in_dim(x, k * nb, (k + ulen) * nb, axis=2)
                else:
                    slab = lax.slice_in_dim(
                        x, k, k + (out_len - 1) * stride + 1,
                        stride=stride, axis=axis)
                w = w_ref[(k * cin + ci) * cout + co]
                acc = (w * slab) if acc is None else (acc + w * slab)
        if axis == 2 and stride != 1:
            # Rare path (stride along W != 1): unstrided accumulate above,
            # then subsample once.  Never traced for the default stride.
            d0, d1, _ = acc.shape
            ulen = acc.shape[2] // nb
            acc = acc.reshape(d0, d1, ulen, nb)
            acc = lax.slice_in_dim(acc, 0, (out_len - 1) * stride + 1,
                                   stride=stride, axis=2)
            acc = acc.reshape(d0, d1, out_len * nb)
        store_out(co, acc + b_ref[co])


def fused_c3d_kernel(x_ref, wv_ref, bv_ref, wh_ref, bh_ref, wt_ref, bt_ref,
                     o_ref, sv_ref, sh_ref, *,
                     cin, cout, nb, v_cfg, h_cfg, t_cfg):
    """Fused v -> h -> t for one block of Nb batch samples.

    x_ref : (C, D, H, W*Nb)          lane axis = (w, sample) interleaved
    sv_ref: (C, D, H, Wout*Nb)       v-stage output (f32 scratch)
    sh_ref: (C, D, Hout, Wout*Nb)    h-stage output (f32 scratch)
    o_ref : (Cout, Dout, Hout, Wout*Nb)
    """
    kv, s_v, p_v, w_out = v_cfg     # conv along W
    kh, s_h, p_h, h_out = h_cfg     # conv along H
    kt, s_t, p_t, d_out = t_cfg     # conv along D

    def load_x(ci):
        return x_ref[ci].astype(jnp.float32)

    def load_sv(ci):
        return sv_ref[ci]

    def load_sh(ci):
        return sh_ref[ci]

    def store_sv(co, a):
        sv_ref[co] = a

    def store_sh(co, a):
        sh_ref[co] = a

    def store_o(co, a):
        o_ref[co] = a.astype(o_ref.dtype)

    # v stage: conv along W (lane axis), Cin -> Cin (1x1x1 folded in).
    _conv1d_stage(load_x, store_sv, wv_ref, bv_ref, axis=2, K=kv,
                  stride=s_v, pad=p_v, cin=cin, cout=cin,
                  out_len=w_out, nb=nb)
    # h stage: conv along H (sublane axis), Cin -> Cin (1x1x1 folded in).
    _conv1d_stage(load_sv, store_sh, wh_ref, bh_ref, axis=1, K=kh,
                  stride=s_h, pad=p_h, cin=cin, cout=cin,
                  out_len=h_out, nb=nb)
    # t stage: conv along D (leading axis), Cin -> Cout, writes the output.
    _conv1d_stage(load_sh, store_o, wt_ref, bt_ref, axis=0, K=kt,
                  stride=s_t, pad=p_t, cin=cin, cout=cout,
                  out_len=d_out, nb=nb)


# --------------------------- sizing heuristics ------------------------------ #

def _vmem_capacity_bytes():
    try:
        info = pltpu.get_tpu_info()
        cap = getattr(info, "vmem_capacity_bytes", None)
        if cap:
            return int(cap)
    except Exception:
        pass
    return 64 << 20          # conservative: v7x physical VMEM per TensorCore


def _tile_padded_bytes(shape, itemsize=4):
    """Bytes of a VMEM buffer including (8, 128) tile padding."""
    sub = -(-shape[-2] // 8) * 8
    lane = -(-shape[-1] // 128) * 128
    lead = 1
    for d in shape[:-2]:
        lead *= d
    return lead * sub * lane * itemsize


def _step_vmem_bytes(C, cout, D, H, W, Dout, Hout, Wout, nb):
    blk_in = _tile_padded_bytes((C, D, H, W * nb))
    blk_out = _tile_padded_bytes((cout, Dout, Hout, Wout * nb))
    s_v = _tile_padded_bytes((C, D, H, Wout * nb))
    s_h = _tile_padded_bytes((C, D, Hout, Wout * nb))
    # double-buffered I/O blocks + single-buffered scratch + live-value margin
    return 2 * blk_in + 2 * blk_out + s_v + s_h + (4 << 20)


def _pick_nb(N, C, cout, D, H, W, Dout, Hout, Wout, vmem_budget):
    # Target >=128 lanes on the interleaved (W, sample) axis.
    target = max(1, -(-128 // W))
    nb = min(N, target)
    while N % nb:
        nb -= 1
    # Prefer >=2 parallel grid steps (v7x has 2 TensorCores) when that still
    # leaves a reasonably dense lane axis; lane density wins otherwise.
    if N // nb < 2 and N >= 2:
        cand = nb - 1
        while cand >= 1 and N % cand:
            cand -= 1
        if cand >= 1 and W * cand >= 64:
            nb = cand
    # Shrink until the per-step working set fits the VMEM budget.
    while nb > 1 and _step_vmem_bytes(C, cout, D, H, W,
                                      Dout, Hout, Wout, nb) > vmem_budget:
        cand = nb - 1
        while N % cand:
            cand -= 1
        nb = cand
    return nb


# ------------------------------ wrapper ------------------------------------ #

def replace_c3d_forward(x, p, stride=(1, 1, 1), padding=(0, 0, 0)):
    """x: (N, C, D, H, W) float32 -> (N, out_c, Dout, Hout, Wout)."""
    N, C, D, H, W = x.shape
    kW = p["v_w1"].shape[0]
    kH = p["h_w1"].shape[0]
    kD, _, out_c = p["t_w"].shape
    sD, sW, sH = int(stride[0]), int(stride[1]), int(stride[2])
    pD, pW, pH = int(padding[0]), int(padding[1]), int(padding[2])

    hi = jax.lax.Precision.HIGHEST
    # Fold the 1x1x1 pointwise convs into the preceding 1-D conv weights.
    wv = jnp.einsum("kim,mo->kio", p["v_w1"], p["v_w2"], precision=hi)
    bv = jnp.einsum("m,mo->o", p["v_b1"].reshape(-1), p["v_w2"],
                    precision=hi) + p["v_b2"].reshape(-1)
    wh = jnp.einsum("kim,mo->kio", p["h_w1"], p["h_w2"], precision=hi)
    bh = jnp.einsum("m,mo->o", p["h_b1"].reshape(-1), p["h_w2"],
                    precision=hi) + p["h_b2"].reshape(-1)
    wt = p["t_w"]
    bt = p["t_b"].reshape(-1)

    Wout = (W + 2 * pW - kW) // sW + 1
    Hout = (H + 2 * pH - kH) // sH + 1
    Dout = (D + 2 * pD - kD) // sD + 1

    cap = _vmem_capacity_bytes()
    nb = _pick_nb(N, C, out_c, D, H, W, Dout, Hout, Wout,
                  vmem_budget=int(0.6 * cap))
    NB = N // nb
    WL = W * nb
    WoutL = Wout * nb

    # Host-side layout plumbing: interleave the sample sub-batch into the W
    # axis (lane index = w*nb + j), so the kernel sees a lane-dense last axis.
    x5 = x.reshape(NB, nb, C, D, H, W)
    x5 = jnp.transpose(x5, (0, 2, 3, 4, 5, 1)).reshape(NB, C, D, H, WL)

    kern = functools.partial(
        fused_c3d_kernel, cin=C, cout=out_c, nb=nb,
        v_cfg=(kW, sW, pW, Wout),
        h_cfg=(kH, sH, pH, Hout),
        t_cfg=(kD, sD, pD, Dout))

    step_bytes = _step_vmem_bytes(C, out_c, D, H, W, Dout, Hout, Wout, nb)
    vmem_limit = int(min(cap * 7 // 8, max(2 * step_bytes, 32 << 20)))

    out = pl.pallas_call(
        kern,
        out_shape=jax.ShapeDtypeStruct((NB, out_c, Dout, Hout, WoutL),
                                       x.dtype),
        grid=(NB,),
        in_specs=[pl.BlockSpec((None, C, D, H, WL),
                               lambda b: (b, 0, 0, 0, 0))]
        + [pl.BlockSpec(memory_space=pltpu.MemorySpace.SMEM)
           for _ in range(6)],
        out_specs=pl.BlockSpec((None, out_c, Dout, Hout, WoutL),
                               lambda b: (b, 0, 0, 0, 0)),
        scratch_shapes=[pltpu.VMEM((C, D, H, WoutL), jnp.float32),
                        pltpu.VMEM((C, D, Hout, WoutL), jnp.float32)],
        compiler_params=pltpu.CompilerParams(
            dimension_semantics=("parallel",),
            vmem_limit_bytes=vmem_limit),
    )(x5, wv.reshape(-1), bv, wh.reshape(-1), bh, wt.reshape(-1), bt)

    # De-interleave the sample sub-batch back out of the lane axis.
    out = out.reshape(NB, out_c, Dout, Hout, Wout, nb)
    out = jnp.transpose(out, (0, 5, 1, 2, 3, 4))
    return out.reshape(N, out_c, Dout, Hout, Wout)


# --------------------------- pure-JAX reference ----------------------------- #

def ref_forward(x, p, stride, padding):
    dn = ("NCDHW", "OIDHW", "NCDHW")

    def conv(x, w_oidhw, b, strides, pads):
        y = lax.conv_general_dilated(x, w_oidhw, window_strides=strides,
                                     padding=[(q, q) for q in pads],
                                     dimension_numbers=dn)
        return y + b.reshape(1, -1, 1, 1, 1)

    kW, in_c, out_c = p["v_w1"].shape
    kH = p["h_w1"].shape[0]
    kD = p["t_w"].shape[0]
    # v
    w = jnp.transpose(p["v_w1"], (2, 1, 0)).reshape(out_c, in_c, 1, 1, kW)
    x = conv(x, w, p["v_b1"].reshape(-1), (1, 1, stride[1]), (0, 0, padding[1]))
    w = jnp.transpose(p["v_w2"], (1, 0)).reshape(in_c, out_c, 1, 1, 1)
    x = conv(x, w, p["v_b2"].reshape(-1), (1, 1, 1), (0, 0, 0))
    # h
    w = jnp.transpose(p["h_w1"], (2, 1, 0)).reshape(out_c, in_c, 1, kH, 1)
    x = conv(x, w, p["h_b1"].reshape(-1), (1, stride[2], 1), (0, padding[2], 0))
    w = jnp.transpose(p["h_w2"], (1, 0)).reshape(in_c, out_c, 1, 1, 1)
    x = conv(x, w, p["h_b2"].reshape(-1), (1, 1, 1), (0, 0, 0))
    # t
    w = jnp.transpose(p["t_w"], (2, 1, 0)).reshape(out_c, in_c, kD, 1, 1)
    x = conv(x, w, p["t_b"].reshape(-1), (stride[0], 1, 1), (padding[0], 0, 0))
    return x


# --------------------------------- main ------------------------------------ #

if __name__ == "__main__":
    in_c, out_c = 4, 8
    N, D, H, W = 2, 8, 8, 8
    ks = (3, 3, 3)
    st = (1, 1, 1)
    pad = (0, 0, 0)

    key = jax.random.PRNGKey(0)
    keys = jax.random.split(key, 11)

    def init(k, shape, fan_in):
        bound = 1.0 / (fan_in ** 0.5)
        return jax.random.uniform(k, shape, jnp.float32, -bound, bound)

    params = {
        # conv weights stored as (K, Cin, Cout); biases as (1, Cout)
        "v_w1": init(keys[0], (ks[1], in_c, out_c), in_c * ks[1]),
        "v_b1": init(keys[1], (1, out_c), in_c * ks[1]),
        "v_w2": init(keys[2], (out_c, in_c), out_c),
        "v_b2": init(keys[3], (1, in_c), out_c),
        "h_w1": init(keys[4], (ks[2], in_c, out_c), in_c * ks[2]),
        "h_b1": init(keys[5], (1, out_c), in_c * ks[2]),
        "h_w2": init(keys[6], (out_c, in_c), out_c),
        "h_b2": init(keys[7], (1, in_c), out_c),
        "t_w": init(keys[8], (ks[0], in_c, out_c), in_c * ks[0]),
        "t_b": init(keys[9], (1, out_c), in_c * ks[0]),
    }

    x = jax.random.normal(keys[10], (N, in_c, D, H, W), jnp.float32)

    out = replace_c3d_forward(x, params, stride=st, padding=pad)
    out = jax.block_until_ready(out)

    ref = ref_forward(x, params, st, pad)
    assert out.shape == (N, out_c, D - 2, H - 2, W - 2), out.shape
    # Tolerance allows for the algebraic fold of the 1x1x1 convs into the
    # 1-D conv weights (different summation order than the reference).
    err = float(jnp.max(jnp.abs(out - ref)))
    assert jnp.allclose(out, ref, atol=1e-3, rtol=1e-3), err

    print("KERNEL_OK")
</pallas_src>

<mosaic_0001>
module attributes {stable_mosaic.version = 11 : i64} {
  func.func @fused_c3d_kernel(%arg0: i32, %arg1: memref<1x4x8x8x16xf32, #tpu.memory_space<vmem>>, %arg2: memref<48xf32, #tpu.memory_space<smem>>, %arg3: memref<4xf32, #tpu.memory_space<smem>>, %arg4: memref<48xf32, #tpu.memory_space<smem>>, %arg5: memref<4xf32, #tpu.memory_space<smem>>, %arg6: memref<96xf32, #tpu.memory_space<smem>>, %arg7: memref<8xf32, #tpu.memory_space<smem>>, %arg8: memref<1x8x6x6x12xf32, #tpu.memory_space<vmem>>, %arg9: memref<4x8x8x12xf32, #tpu.memory_space<vmem>>, %arg10: memref<4x8x6x12xf32, #tpu.memory_space<vmem>>) attributes {dimension_semantics = [#tpu.dimension_semantics<parallel>], iteration_bounds = array<i64: 1>, scalar_prefetch = 0 : i64, scratch_operands = 2 : i64, tpu.core_type = #tpu.core_type<tc>, window_params = [{transform_indices = @transform_0, window_bounds = array<i64: 1, 4, 8, 8, 16>}, {transform_indices = @transform_1, window_bounds = array<i64: 48>}, {transform_indices = @transform_2, window_bounds = array<i64: 4>}, {transform_indices = @transform_3, window_bounds = array<i64: 48>}, {transform_indices = @transform_4, window_bounds = array<i64: 4>}, {transform_indices = @transform_5, window_bounds = array<i64: 96>}, {transform_indices = @transform_6, window_bounds = array<i64: 8>}, {transform_indices = @transform_7, window_bounds = array<i64: 1, 8, 6, 6, 12>}]} {
    %c0 = arith.constant 0 : index
    %c0_0 = arith.constant 0 : index
    %c0_1 = arith.constant 0 : index
    %c0_2 = arith.constant 0 : index
    %c0_3 = arith.constant 0 : index
    %0 = vector.load %arg1[%c0, %c0_0, %c0_1, %c0_2, %c0_3] : memref<1x4x8x8x16xf32, #tpu.memory_space<vmem>>, vector<1x1x8x8x16xf32>
    %1 = vector.shape_cast %0 : vector<1x1x8x8x16xf32> to vector<8x8x16xf32>
    %2 = vector.extract_strided_slice %1 {offsets = [0, 0, 0], sizes = [8, 8, 12], strides = [1, 1, 1]} : vector<8x8x16xf32> to vector<8x8x12xf32>
    %c0_4 = arith.constant 0 : index
    %3 = memref.load %arg2[%c0_4] : memref<48xf32, #tpu.memory_space<smem>>
    %4 = vector.broadcast %3 : f32 to vector<8x8x12xf32>
    %5 = arith.mulf %4, %2 : vector<8x8x12xf32>
    %6 = vector.extract_strided_slice %1 {offsets = [0, 0, 2], sizes = [8, 8, 12], strides = [1, 1, 1]} : vector<8x8x16xf32> to vector<8x8x12xf32>
    %c16 = arith.constant 16 : index
    %7 = memref.load %arg2[%c16] : memref<48xf32, #tpu.memory_space<smem>>
    %8 = vector.broadcast %7 : f32 to vector<8x8x12xf32>
    %9 = arith.mulf %8, %6 : vector<8x8x12xf32>
    %10 = arith.addf %5, %9 : vector<8x8x12xf32>
    %11 = vector.extract_strided_slice %1 {offsets = [0, 0, 4], sizes = [8, 8, 12], strides = [1, 1, 1]} : vector<8x8x16xf32> to vector<8x8x12xf32>
    %c32 = arith.constant 32 : index
    %12 = memref.load %arg2[%c32] : memref<48xf32, #tpu.memory_space<smem>>
    %13 = vector.broadcast %12 : f32 to vector<8x8x12xf32>
    %14 = arith.mulf %13, %11 : vector<8x8x12xf32>
    %15 = arith.addf %10, %14 : vector<8x8x12xf32>
    %c0_5 = arith.constant 0 : index
    %c1 = arith.constant 1 : index
    %c0_6 = arith.constant 0 : index
    %c0_7 = arith.constant 0 : index
    %c0_8 = arith.constant 0 : index
    %16 = vector.load %arg1[%c0_5, %c1, %c0_6, %c0_7, %c0_8] : memref<1x4x8x8x16xf32, #tpu.memory_space<vmem>>, vector<1x1x8x8x16xf32>
    %17 = vector.shape_cast %16 : vector<1x1x8x8x16xf32> to vector<8x8x16xf32>
    %18 = vector.extract_strided_slice %17 {offsets = [0, 0, 0], sizes = [8, 8, 12], strides = [1, 1, 1]} : vector<8x8x16xf32> to vector<8x8x12xf32>
    %c4 = arith.constant 4 : index
    %19 = memref.load %arg2[%c4] : memref<48xf32, #tpu.memory_space<smem>>
    %20 = vector.broadcast %19 : f32 to vector<8x8x12xf32>
    %21 = arith.mulf %20, %18 : vector<8x8x12xf32>
    %22 = arith.addf %15, %21 : vector<8x8x12xf32>
    %23 = vector.extract_strided_slice %17 {offsets = [0, 0, 2], sizes = [8, 8, 12], strides = [1, 1, 1]} : vector<8x8x16xf32> to vector<8x8x12xf32>
    %c20 = arith.constant 20 : index
    %24 = memref.load %arg2[%c20] : memref<48xf32, #tpu.memory_space<smem>>
    %25 = vector.broadcast %24 : f32 to vector<8x8x12xf32>
    %26 = arith.mulf %25, %23 : vector<8x8x12xf32>
    %27 = arith.addf %22, %26 : vector<8x8x12xf32>
    %28 = vector.extract_strided_slice %17 {offsets = [0, 0, 4], sizes = [8, 8, 12], strides = [1, 1, 1]} : vector<8x8x16xf32> to vector<8x8x12xf32>
    %c36 = arith.constant 36 : index
    %29 = memref.load %arg2[%c36] : memref<48xf32, #tpu.memory_space<smem>>
    %30 = vector.broadcast %29 : f32 to vector<8x8x12xf32>
    %31 = arith.mulf %30, %28 : vector<8x8x12xf32>
    %32 = arith.addf %27, %31 : vector<8x8x12xf32>
    %c0_9 = arith.constant 0 : index
    %c2 = arith.constant 2 : index
    %c0_10 = arith.constant 0 : index
    %c0_11 = arith.constant 0 : index
    %c0_12 = arith.constant 0 : index
    %33 = vector.load %arg1[%c0_9, %c2, %c0_10, %c0_11, %c0_12] : memref<1x4x8x8x16xf32, #tpu.memory_space<vmem>>, vector<1x1x8x8x16xf32>
    %34 = vector.shape_cast %33 : vector<1x1x8x8x16xf32> to vector<8x8x16xf32>
    %35 = vector.extract_strided_slice %34 {offsets = [0, 0, 0], sizes = [8, 8, 12], strides = [1, 1, 1]} : vector<8x8x16xf32> to vector<8x8x12xf32>
    %c8 = arith.constant 8 : index
    %36 = memref.load %arg2[%c8] : memref<48xf32, #tpu.memory_space<smem>>
    %37 = vector.broadcast %36 : f32 to vector<8x8x12xf32>
    %38 = arith.mulf %37, %35 : vector<8x8x12xf32>
    %39 = arith.addf %32, %38 : vector<8x8x12xf32>
    %40 = vector.extract_strided_slice %34 {offsets = [0, 0, 2], sizes = [8, 8, 12], strides = [1, 1, 1]} : vector<8x8x16xf32> to vector<8x8x12xf32>
    %c24 = arith.constant 24 : index
    %41 = memref.load %arg2[%c24] : memref<48xf32, #tpu.memory_space<smem>>
    %42 = vector.broadcast %41 : f32 to vector<8x8x12xf32>
    %43 = arith.mulf %42, %40 : vector<8x8x12xf32>
    %44 = arith.addf %39, %43 : vector<8x8x12xf32>
    %45 = vector.extract_strided_slice %34 {offsets = [0, 0, 4], sizes = [8, 8, 12], strides = [1, 1, 1]} : vector<8x8x16xf32> to vector<8x8x12xf32>
    %c40 = arith.constant 40 : index
    %46 = memref.load %arg2[%c40] : memref<48xf32, #tpu.memory_space<smem>>
    %47 = vector.broadcast %46 : f32 to vector<8x8x12xf32>
    %48 = arith.mulf %47, %45 : vector<8x8x12xf32>
    %49 = arith.addf %44, %48 : vector<8x8x12xf32>
    %c0_13 = arith.constant 0 : index
    %c3 = arith.constant 3 : index
    %c0_14 = arith.constant 0 : index
    %c0_15 = arith.constant 0 : index
    %c0_16 = arith.constant 0 : index
    %50 = vector.load %arg1[%c0_13, %c3, %c0_14, %c0_15, %c0_16] : memref<1x4x8x8x16xf32, #tpu.memory_space<vmem>>, vector<1x1x8x8x16xf32>
    %51 = vector.shape_cast %50 : vector<1x1x8x8x16xf32> to vector<8x8x16xf32>
    %52 = vector.extract_strided_slice %51 {offsets = [0, 0, 0], sizes = [8, 8, 12], strides = [1, 1, 1]} : vector<8x8x16xf32> to vector<8x8x12xf32>
    %c12 = arith.constant 12 : index
    %53 = memref.load %arg2[%c12] : memref<48xf32, #tpu.memory_space<smem>>
    %54 = vector.broadcast %53 : f32 to vector<8x8x12xf32>
    %55 = arith.mulf %54, %52 : vector<8x8x12xf32>
    %56 = arith.addf %49, %55 : vector<8x8x12xf32>
    %57 = vector.extract_strided_slice %51 {offsets = [0, 0, 2], sizes = [8, 8, 12], strides = [1, 1, 1]} : vector<8x8x16xf32> to vector<8x8x12xf32>
    %c28 = arith.constant 28 : index
    %58 = memref.load %arg2[%c28] : memref<48xf32, #tpu.memory_space<smem>>
    %59 = vector.broadcast %58 : f32 to vector<8x8x12xf32>
    %60 = arith.mulf %59, %57 : vector<8x8x12xf32>
    %61 = arith.addf %56, %60 : vector<8x8x12xf32>
    %62 = vector.extract_strided_slice %51 {offsets = [0, 0, 4], sizes = [8, 8, 12], strides = [1, 1, 1]} : vector<8x8x16xf32> to vector<8x8x12xf32>
    %c44 = arith.constant 44 : index
    %63 = memref.load %arg2[%c44] : memref<48xf32, #tpu.memory_space<smem>>
    %64 = vector.broadcast %63 : f32 to vector<8x8x12xf32>
    %65 = arith.mulf %64, %62 : vector<8x8x12xf32>
    %66 = arith.addf %61, %65 : vector<8x8x12xf32>
    %c0_17 = arith.constant 0 : index
    %67 = memref.load %arg3[%c0_17] : memref<4xf32, #tpu.memory_space<smem>>
    %68 = vector.broadcast %67 : f32 to vector<8x8x12xf32>
    %69 = arith.addf %66, %68 : vector<8x8x12xf32>
    %c0_18 = arith.constant 0 : index
    %c0_19 = arith.constant 0 : index
    %c0_20 = arith.constant 0 : index
    %c0_21 = arith.constant 0 : index
    %70 = vector.load %arg9[%c0_18, %c0_19, %c0_20, %c0_21] : memref<4x8x8x12xf32, #tpu.memory_space<vmem>>, vector<1x8x8x12xf32>
    %71 = vector.shape_cast %70 : vector<1x8x8x12xf32> to vector<8x8x12xf32>
    %72 = vector.shape_cast %69 : vector<8x8x12xf32> to vector<1x8x8x12xf32>
    tpu.vector_store %arg9[%c0_18, %c0_19, %c0_20, %c0_21], %72 {strides = array<i32>} : memref<4x8x8x12xf32, #tpu.memory_space<vmem>>, vector<1x8x8x12xf32>,
    %c0_22 = arith.constant 0 : index
    %c0_23 = arith.constant 0 : index
    %c0_24 = arith.constant 0 : index
    %c0_25 = arith.constant 0 : index
    %c0_26 = arith.constant 0 : index
    %73 = vector.load %arg1[%c0_22, %c0_23, %c0_24, %c0_25, %c0_26] : memref<1x4x8x8x16xf32, #tpu.memory_space<vmem>>, vector<1x1x8x8x16xf32>
    %74 = vector.shape_cast %73 : vector<1x1x8x8x16xf32> to vector<8x8x16xf32>
    %75 = vector.extract_strided_slice %74 {offsets = [0, 0, 0], sizes = [8, 8, 12], strides = [1, 1, 1]} : vector<8x8x16xf32> to vector<8x8x12xf32>
    %c1_27 = arith.constant 1 : index
    %76 = memref.load %arg2[%c1_27] : memref<48xf32, #tpu.memory_space<smem>>
    %77 = vector.broadcast %76 : f32 to vector<8x8x12xf32>
    %78 = arith.mulf %77, %75 : vector<8x8x12xf32>
    %79 = vector.extract_strided_slice %74 {offsets = [0, 0, 2], sizes = [8, 8, 12], strides = [1, 1, 1]} : vector<8x8x16xf32> to vector<8x8x12xf32>
    %c17 = arith.constant 17 : index
    %80 = memref.load %arg2[%c17] : memref<48xf32, #tpu.memory_space<smem>>
    %81 = vector.broadcast %80 : f32 to vector<8x8x12xf32>
    %82 = arith.mulf %81, %79 : vector<8x8x12xf32>
    %83 = arith.addf %78, %82 : vector<8x8x12xf32>
    %84 = vector.extract_strided_slice %74 {offsets = [0, 0, 4], sizes = [8, 8, 12], strides = [1, 1, 1]} : vector<8x8x16xf32> to vector<8x8x12xf32>
    %c33 = arith.constant 33 : index
    %85 = memref.load %arg2[%c33] : memref<48xf32, #tpu.memory_space<smem>>
    %86 = vector.broadcast %85 : f32 to vector<8x8x12xf32>
    %87 = arith.mulf %86, %84 : vector<8x8x12xf32>
    %88 = arith.addf %83, %87 : vector<8x8x12xf32>
    %c0_28 = arith.constant 0 : index
    %c1_29 = arith.constant 1 : index
    %c0_30 = arith.constant 0 : index
    %c0_31 = arith.constant 0 : index
    %c0_32 = arith.constant 0 : index
    %89 = vector.load %arg1[%c0_28, %c1_29, %c0_30, %c0_31, %c0_32] : memref<1x4x8x8x16xf32, #tpu.memory_space<vmem>>, vector<1x1x8x8x16xf32>
    %90 = vector.shape_cast %89 : vector<1x1x8x8x16xf32> to vector<8x8x16xf32>
    %91 = vector.extract_strided_slice %90 {offsets = [0, 0, 0], sizes = [8, 8, 12], strides = [1, 1, 1]} : vector<8x8x16xf32> to vector<8x8x12xf32>
    %c5 = arith.constant 5 : index
    %92 = memref.load %arg2[%c5] : memref<48xf32, #tpu.memory_space<smem>>
    %93 = vector.broadcast %92 : f32 to vector<8x8x12xf32>
    %94 = arith.mulf %93, %91 : vector<8x8x12xf32>
    %95 = arith.addf %88, %94 : vector<8x8x12xf32>
    %96 = vector.extract_strided_slice %90 {offsets = [0, 0, 2], sizes = [8, 8, 12], strides = [1, 1, 1]} : vector<8x8x16xf32> to vector<8x8x12xf32>
    %c21 = arith.constant 21 : index
    %97 = memref.load %arg2[%c21] : memref<48xf32, #tpu.memory_space<smem>>
    %98 = vector.broadcast %97 : f32 to vector<8x8x12xf32>
    %99 = arith.mulf %98, %96 : vector<8x8x12xf32>
    %100 = arith.addf %95, %99 : vector<8x8x12xf32>
    %101 = vector.extract_strided_slice %90 {offsets = [0, 0, 4], sizes = [8, 8, 12], strides = [1, 1, 1]} : vector<8x8x16xf32> to vector<8x8x12xf32>
    %c37 = arith.constant 37 : index
    %102 = memref.load %arg2[%c37] : memref<48xf32, #tpu.memory_space<smem>>
    %103 = vector.broadcast %102 : f32 to vector<8x8x12xf32>
    %104 = arith.mulf %103, %101 : vector<8x8x12xf32>
    %105 = arith.addf %100, %104 : vector<8x8x12xf32>
    %c0_33 = arith.constant 0 : index
    %c2_34 = arith.constant 2 : index
    %c0_35 = arith.constant 0 : index
    %c0_36 = arith.constant 0 : index
    %c0_37 = arith.constant 0 : index
    %106 = vector.load %arg1[%c0_33, %c2_34, %c0_35, %c0_36, %c0_37] : memref<1x4x8x8x16xf32, #tpu.memory_space<vmem>>, vector<1x1x8x8x16xf32>
    %107 = vector.shape_cast %106 : vector<1x1x8x8x16xf32> to vector<8x8x16xf32>
    %108 = vector.extract_strided_slice %107 {offsets = [0, 0, 0], sizes = [8, 8, 12], strides = [1, 1, 1]} : vector<8x8x16xf32> to vector<8x8x12xf32>
    %c9 = arith.constant 9 : index
    %109 = memref.load %arg2[%c9] : memref<48xf32, #tpu.memory_space<smem>>
    %110 = vector.broadcast %109 : f32 to vector<8x8x12xf32>
    %111 = arith.mulf %110, %108 : vector<8x8x12xf32>
    %112 = arith.addf %105, %111 : vector<8x8x12xf32>
    %113 = vector.extract_strided_slice %107 {offsets = [0, 0, 2], sizes = [8, 8, 12], strides = [1, 1, 1]} : vector<8x8x16xf32> to vector<8x8x12xf32>
    %c25 = arith.constant 25 : index
    %114 = memref.load %arg2[%c25] : memref<48xf32, #tpu.memory_space<smem>>
    %115 = vector.broadcast %114 : f32 to vector<8x8x12xf32>
    %116 = arith.mulf %115, %113 : vector<8x8x12xf32>
    %117 = arith.addf %112, %116 : vector<8x8x12xf32>
    %118 = vector.extract_strided_slice %107 {offsets = [0, 0, 4], sizes = [8, 8, 12], strides = [1, 1, 1]} : vector<8x8x16xf32> to vector<8x8x12xf32>
    %c41 = arith.constant 41 : index
    %119 = memref.load %arg2[%c41] : memref<48xf32, #tpu.memory_space<smem>>
    %120 = vector.broadcast %119 : f32 to vector<8x8x12xf32>
    %121 = arith.mulf %120, %118 : vector<8x8x12xf32>
    %122 = arith.addf %117, %121 : vector<8x8x12xf32>
    %c0_38 = arith.constant 0 : index
    %c3_39 = arith.constant 3 : index
    %c0_40 = arith.constant 0 : index
    %c0_41 = arith.constant 0 : index
    %c0_42 = arith.constant 0 : index
    %123 = vector.load %arg1[%c0_38, %c3_39, %c0_40, %c0_41, %c0_42] : memref<1x4x8x8x16xf32, #tpu.memory_space<vmem>>, vector<1x1x8x8x16xf32>
    %124 = vector.shape_cast %123 : vector<1x1x8x8x16xf32> to vector<8x8x16xf32>
    %125 = vector.extract_strided_slice %124 {offsets = [0, 0, 0], sizes = [8, 8, 12], strides = [1, 1, 1]} : vector<8x8x16xf32> to vector<8x8x12xf32>
    %c13 = arith.constant 13 : index
    %126 = memref.load %arg2[%c13] : memref<48xf32, #tpu.memory_space<smem>>
    %127 = vector.broadcast %126 : f32 to vector<8x8x12xf32>
    %128 = arith.mulf %127, %125 : vector<8x8x12xf32>
    %129 = arith.addf %122, %128 : vector<8x8x12xf32>
    %130 = vector.extract_strided_slice %124 {offsets = [0, 0, 2], sizes = [8, 8, 12], strides = [1, 1, 1]} : vector<8x8x16xf32> to vector<8x8x12xf32>
    %c29 = arith.constant 29 : index
    %131 = memref.load %arg2[%c29] : memref<48xf32, #tpu.memory_space<smem>>
    %132 = vector.broadcast %131 : f32 to vector<8x8x12xf32>
    %133 = arith.mulf %132, %130 : vector<8x8x12xf32>
    %134 = arith.addf %129, %133 : vector<8x8x12xf32>
    %135 = vector.extract_strided_slice %124 {offsets = [0, 0, 4], sizes = [8, 8, 12], strides = [1, 1, 1]} : vector<8x8x16xf32> to vector<8x8x12xf32>
    %c45 = arith.constant 45 : index
    %136 = memref.load %arg2[%c45] : memref<48xf32, #tpu.memory_space<smem>>
    %137 = vector.broadcast %136 : f32 to vector<8x8x12xf32>
    %138 = arith.mulf %137, %135 : vector<8x8x12xf32>
    %139 = arith.addf %134, %138 : vector<8x8x12xf32>
    %c1_43 = arith.constant 1 : index
    %140 = memref.load %arg3[%c1_43] : memref<4xf32, #tpu.memory_space<smem>>
    %141 = vector.broadcast %140 : f32 to vector<8x8x12xf32>
    %142 = arith.addf %139, %141 : vector<8x8x12xf32>
    %c1_44 = arith.constant 1 : index
    %c0_45 = arith.constant 0 : index
    %c0_46 = arith.constant 0 : index
    %c0_47 = arith.constant 0 : index
    %143 = vector.load %arg9[%c1_44, %c0_45, %c0_46, %c0_47] : memref<4x8x8x12xf32, #tpu.memory_space<vmem>>, vector<1x8x8x12xf32>
    %144 = vector.shape_cast %143 : vector<1x8x8x12xf32> to vector<8x8x12xf32>
    %145 = vector.shape_cast %142 : vector<8x8x12xf32> to vector<1x8x8x12xf32>
    tpu.vector_store %arg9[%c1_44, %c0_45, %c0_46, %c0_47], %145 {strides = array<i32>} : memref<4x8x8x12xf32, #tpu.memory_space<vmem>>, vector<1x8x8x12xf32>,
    %c0_48 = arith.constant 0 : index
    %c0_49 = arith.constant 0 : index
    %c0_50 = arith.constant 0 : index
    %c0_51 = arith.constant 0 : index
    %c0_52 = arith.constant 0 : index
    %146 = vector.load %arg1[%c0_48, %c0_49, %c0_50, %c0_51, %c0_52] : memref<1x4x8x8x16xf32, #tpu.memory_space<vmem>>, vector<1x1x8x8x16xf32>
    %147 = vector.shape_cast %146 : vector<1x1x8x8x16xf32> to vector<8x8x16xf32>
    %148 = vector.extract_strided_slice %147 {offsets = [0, 0, 0], sizes = [8, 8, 12], strides = [1, 1, 1]} : vector<8x8x16xf32> to vector<8x8x12xf32>
    %c2_53 = arith.constant 2 : index
    %149 = memref.load %arg2[%c2_53] : memref<48xf32, #tpu.memory_space<smem>>
    %150 = vector.broadcast %149 : f32 to vector<8x8x12xf32>
    %151 = arith.mulf %150, %148 : vector<8x8x12xf32>
    %152 = vector.extract_strided_slice %147 {offsets = [0, 0, 2], sizes = [8, 8, 12], strides = [1, 1, 1]} : vector<8x8x16xf32> to vector<8x8x12xf32>
    %c18 = arith.constant 18 : index
    %153 = memref.load %arg2[%c18] : memref<48xf32, #tpu.memory_space<smem>>
    %154 = vector.broadcast %153 : f32 to vector<8x8x12xf32>
    %155 = arith.mulf %154, %152 : vector<8x8x12xf32>
    %156 = arith.addf %151, %155 : vector<8x8x12xf32>
    %157 = vector.extract_strided_slice %147 {offsets = [0, 0, 4], sizes = [8, 8, 12], strides = [1, 1, 1]} : vector<8x8x16xf32> to vector<8x8x12xf32>
    %c34 = arith.constant 34 : index
    %158 = memref.load %arg2[%c34] : memref<48xf32, #tpu.memory_space<smem>>
    %159 = vector.broadcast %158 : f32 to vector<8x8x12xf32>
    %160 = arith.mulf %159, %157 : vector<8x8x12xf32>
    %161 = arith.addf %156, %160 : vector<8x8x12xf32>
    %c0_54 = arith.constant 0 : index
    %c1_55 = arith.constant 1 : index
    %c0_56 = arith.constant 0 : index
    %c0_57 = arith.constant 0 : index
    %c0_58 = arith.constant 0 : index
    %162 = vector.load %arg1[%c0_54, %c1_55, %c0_56, %c0_57, %c0_58] : memref<1x4x8x8x16xf32, #tpu.memory_space<vmem>>, vector<1x1x8x8x16xf32>
    %163 = vector.shape_cast %162 : vector<1x1x8x8x16xf32> to vector<8x8x16xf32>
    %164 = vector.extract_strided_slice %163 {offsets = [0, 0, 0], sizes = [8, 8, 12], strides = [1, 1, 1]} : vector<8x8x16xf32> to vector<8x8x12xf32>
    %c6 = arith.constant 6 : index
    %165 = memref.load %arg2[%c6] : memref<48xf32, #tpu.memory_space<smem>>
    %166 = vector.broadcast %165 : f32 to vector<8x8x12xf32>
    %167 = arith.mulf %166, %164 : vector<8x8x12xf32>
    %168 = arith.addf %161, %167 : vector<8x8x12xf32>
    %169 = vector.extract_strided_slice %163 {offsets = [0, 0, 2], sizes = [8, 8, 12], strides = [1, 1, 1]} : vector<8x8x16xf32> to vector<8x8x12xf32>
    %c22 = arith.constant 22 : index
    %170 = memref.load %arg2[%c22] : memref<48xf32, #tpu.memory_space<smem>>
    %171 = vector.broadcast %170 : f32 to vector<8x8x12xf32>
    %172 = arith.mulf %171, %169 : vector<8x8x12xf32>
    %173 = arith.addf %168, %172 : vector<8x8x12xf32>
    %174 = vector.extract_strided_slice %163 {offsets = [0, 0, 4], sizes = [8, 8, 12], strides = [1, 1, 1]} : vector<8x8x16xf32> to vector<8x8x12xf32>
    %c38 = arith.constant 38 : index
    %175 = memref.load %arg2[%c38] : memref<48xf32, #tpu.memory_space<smem>>
    %176 = vector.broadcast %175 : f32 to vector<8x8x12xf32>
    %177 = arith.mulf %176, %174 : vector<8x8x12xf32>
    %178 = arith.addf %173, %177 : vector<8x8x12xf32>
    %c0_59 = arith.constant 0 : index
    %c2_60 = arith.constant 2 : index
    %c0_61 = arith.constant 0 : index
    %c0_62 = arith.constant 0 : index
    %c0_63 = arith.constant 0 : index
    %179 = vector.load %arg1[%c0_59, %c2_60, %c0_61, %c0_62, %c0_63] : memref<1x4x8x8x16xf32, #tpu.memory_space<vmem>>, vector<1x1x8x8x16xf32>
    %180 = vector.shape_cast %179 : vector<1x1x8x8x16xf32> to vector<8x8x16xf32>
    %181 = vector.extract_strided_slice %180 {offsets = [0, 0, 0], sizes = [8, 8, 12], strides = [1, 1, 1]} : vector<8x8x16xf32> to vector<8x8x12xf32>
    %c10 = arith.constant 10 : index
    %182 = memref.load %arg2[%c10] : memref<48xf32, #tpu.memory_space<smem>>
    %183 = vector.broadcast %182 : f32 to vector<8x8x12xf32>
    %184 = arith.mulf %183, %181 : vector<8x8x12xf32>
    %185 = arith.addf %178, %184 : vector<8x8x12xf32>
    %186 = vector.extract_strided_slice %180 {offsets = [0, 0, 2], sizes = [8, 8, 12], strides = [1, 1, 1]} : vector<8x8x16xf32> to vector<8x8x12xf32>
    %c26 = arith.constant 26 : index
    %187 = memref.load %arg2[%c26] : memref<48xf32, #tpu.memory_space<smem>>
    %188 = vector.broadcast %187 : f32 to vector<8x8x12xf32>
    %189 = arith.mulf %188, %186 : vector<8x8x12xf32>
    %190 = arith.addf %185, %189 : vector<8x8x12xf32>
    %191 = vector.extract_strided_slice %180 {offsets = [0, 0, 4], sizes = [8, 8, 12], strides = [1, 1, 1]} : vector<8x8x16xf32> to vector<8x8x12xf32>
    %c42 = arith.constant 42 : index
    %192 = memref.load %arg2[%c42] : memref<48xf32, #tpu.memory_space<smem>>
    %193 = vector.broadcast %192 : f32 to vector<8x8x12xf32>
    %194 = arith.mulf %193, %191 : vector<8x8x12xf32>
    %195 = arith.addf %190, %194 : vector<8x8x12xf32>
    %c0_64 = arith.constant 0 : index
    %c3_65 = arith.constant 3 : index
    %c0_66 = arith.constant 0 : index
    %c0_67 = arith.constant 0 : index
    %c0_68 = arith.constant 0 : index
    %196 = vector.load %arg1[%c0_64, %c3_65, %c0_66, %c0_67, %c0_68] : memref<1x4x8x8x16xf32, #tpu.memory_space<vmem>>, vector<1x1x8x8x16xf32>
    %197 = vector.shape_cast %196 : vector<1x1x8x8x16xf32> to vector<8x8x16xf32>
    %198 = vector.extract_strided_slice %197 {offsets = [0, 0, 0], sizes = [8, 8, 12], strides = [1, 1, 1]} : vector<8x8x16xf32> to vector<8x8x12xf32>
    %c14 = arith.constant 14 : index
    %199 = memref.load %arg2[%c14] : memref<48xf32, #tpu.memory_space<smem>>
    %200 = vector.broadcast %199 : f32 to vector<8x8x12xf32>
    %201 = arith.mulf %200, %198 : vector<8x8x12xf32>
    %202 = arith.addf %195, %201 : vector<8x8x12xf32>
    %203 = vector.extract_strided_slice %197 {offsets = [0, 0, 2], sizes = [8, 8, 12], strides = [1, 1, 1]} : vector<8x8x16xf32> to vector<8x8x12xf32>
    %c30 = arith.constant 30 : index
    %204 = memref.load %arg2[%c30] : memref<48xf32, #tpu.memory_space<smem>>
    %205 = vector.broadcast %204 : f32 to vector<8x8x12xf32>
    %206 = arith.mulf %205, %203 : vector<8x8x12xf32>
    %207 = arith.addf %202, %206 : vector<8x8x12xf32>
    %208 = vector.extract_strided_slice %197 {offsets = [0, 0, 4], sizes = [8, 8, 12], strides = [1, 1, 1]} : vector<8x8x16xf32> to vector<8x8x12xf32>
    %c46 = arith.constant 46 : index
    %209 = memref.load %arg2[%c46] : memref<48xf32, #tpu.memory_space<smem>>
    %210 = vector.broadcast %209 : f32 to vector<8x8x12xf32>
    %211 = arith.mulf %210, %208 : vector<8x8x12xf32>
    %212 = arith.addf %207, %211 : vector<8x8x12xf32>
    %c2_69 = arith.constant 2 : index
    %213 = memref.load %arg3[%c2_69] : memref<4xf32, #tpu.memory_space<smem>>
    %214 = vector.broadcast %213 : f32 to vector<8x8x12xf32>
    %215 = arith.addf %212, %214 : vector<8x8x12xf32>
    %c2_70 = arith.constant 2 : index
    %c0_71 = arith.constant 0 : index
    %c0_72 = arith.constant 0 : index
    %c0_73 = arith.constant 0 : index
    %216 = vector.load %arg9[%c2_70, %c0_71, %c0_72, %c0_73] : memref<4x8x8x12xf32, #tpu.memory_space<vmem>>, vector<1x8x8x12xf32>
    %217 = vector.shape_cast %216 : vector<1x8x8x12xf32> to vector<8x8x12xf32>
    %218 = vector.shape_cast %215 : vector<8x8x12xf32> to vector<1x8x8x12xf32>
    tpu.vector_store %arg9[%c2_70, %c0_71, %c0_72, %c0_73], %218 {strides = array<i32>} : memref<4x8x8x12xf32, #tpu.memory_space<vmem>>, vector<1x8x8x12xf32>,
    %c0_74 = arith.constant 0 : index
    %c0_75 = arith.constant 0 : index
    %c0_76 = arith.constant 0 : index
    %c0_77 = arith.constant 0 : index
    %c0_78 = arith.constant 0 : index
    %219 = vector.load %arg1[%c0_74, %c0_75, %c0_76, %c0_77, %c0_78] : memref<1x4x8x8x16xf32, #tpu.memory_space<vmem>>, vector<1x1x8x8x16xf32>
    %220 = vector.shape_cast %219 : vector<1x1x8x8x16xf32> to vector<8x8x16xf32>
    %221 = vector.extract_strided_slice %220 {offsets = [0, 0, 0], sizes = [8, 8, 12], strides = [1, 1, 1]} : vector<8x8x16xf32> to vector<8x8x12xf32>
    %c3_79 = arith.constant 3 : index
    %222 = memref.load %arg2[%c3_79] : memref<48xf32, #tpu.memory_space<smem>>
    %223 = vector.broadcast %222 : f32 to vector<8x8x12xf32>
    %224 = arith.mulf %223, %221 : vector<8x8x12xf32>
    %225 = vector.extract_strided_slice %220 {offsets = [0, 0, 2], sizes = [8, 8, 12], strides = [1, 1, 1]} : vector<8x8x16xf32> to vector<8x8x12xf32>
    %c19 = arith.constant 19 : index
    %226 = memref.load %arg2[%c19] : memref<48xf32, #tpu.memory_space<smem>>
    %227 = vector.broadcast %226 : f32 to vector<8x8x12xf32>
    %228 = arith.mulf %227, %225 : vector<8x8x12xf32>
    %229 = arith.addf %224, %228 : vector<8x8x12xf32>
    %230 = vector.extract_strided_slice %220 {offsets = [0, 0, 4], sizes = [8, 8, 12], strides = [1, 1, 1]} : vector<8x8x16xf32> to vector<8x8x12xf32>
    %c35 = arith.constant 35 : index
    %231 = memref.load %arg2[%c35] : memref<48xf32, #tpu.memory_space<smem>>
    %232 = vector.broadcast %231 : f32 to vector<8x8x12xf32>
    %233 = arith.mulf %232, %230 : vector<8x8x12xf32>
    %234 = arith.addf %229, %233 : vector<8x8x12xf32>
    %c0_80 = arith.constant 0 : index
    %c1_81 = arith.constant 1 : index
    %c0_82 = arith.constant 0 : index
    %c0_83 = arith.constant 0 : index
    %c0_84 = arith.constant 0 : index
    %235 = vector.load %arg1[%c0_80, %c1_81, %c0_82, %c0_83, %c0_84] : memref<1x4x8x8x16xf32, #tpu.memory_space<vmem>>, vector<1x1x8x8x16xf32>
    %236 = vector.shape_cast %235 : vector<1x1x8x8x16xf32> to vector<8x8x16xf32>
    %237 = vector.extract_strided_slice %236 {offsets = [0, 0, 0], sizes = [8, 8, 12], strides = [1, 1, 1]} : vector<8x8x16xf32> to vector<8x8x12xf32>
    %c7 = arith.constant 7 : index
    %238 = memref.load %arg2[%c7] : memref<48xf32, #tpu.memory_space<smem>>
    %239 = vector.broadcast %238 : f32 to vector<8x8x12xf32>
    %240 = arith.mulf %239, %237 : vector<8x8x12xf32>
    %241 = arith.addf %234, %240 : vector<8x8x12xf32>
    %242 = vector.extract_strided_slice %236 {offsets = [0, 0, 2], sizes = [8, 8, 12], strides = [1, 1, 1]} : vector<8x8x16xf32> to vector<8x8x12xf32>
    %c23 = arith.constant 23 : index
    %243 = memref.load %arg2[%c23] : memref<48xf32, #tpu.memory_space<smem>>
    %244 = vector.broadcast %243 : f32 to vector<8x8x12xf32>
    %245 = arith.mulf %244, %242 : vector<8x8x12xf32>
    %246 = arith.addf %241, %245 : vector<8x8x12xf32>
    %247 = vector.extract_strided_slice %236 {offsets = [0, 0, 4], sizes = [8, 8, 12], strides = [1, 1, 1]} : vector<8x8x16xf32> to vector<8x8x12xf32>
    %c39 = arith.constant 39 : index
    %248 = memref.load %arg2[%c39] : memref<48xf32, #tpu.memory_space<smem>>
    %249 = vector.broadcast %248 : f32 to vector<8x8x12xf32>
    %250 = arith.mulf %249, %247 : vector<8x8x12xf32>
    %251 = arith.addf %246, %250 : vector<8x8x12xf32>
    %c0_85 = arith.constant 0 : index
    %c2_86 = arith.constant 2 : index
    %c0_87 = arith.constant 0 : index
    %c0_88 = arith.constant 0 : index
    %c0_89 = arith.constant 0 : index
    %252 = vector.load %arg1[%c0_85, %c2_86, %c0_87, %c0_88, %c0_89] : memref<1x4x8x8x16xf32, #tpu.memory_space<vmem>>, vector<1x1x8x8x16xf32>
    %253 = vector.shape_cast %252 : vector<1x1x8x8x16xf32> to vector<8x8x16xf32>
    %254 = vector.extract_strided_slice %253 {offsets = [0, 0, 0], sizes = [8, 8, 12], strides = [1, 1, 1]} : vector<8x8x16xf32> to vector<8x8x12xf32>
    %c11 = arith.constant 11 : index
    %255 = memref.load %arg2[%c11] : memref<48xf32, #tpu.memory_space<smem>>
    %256 = vector.broadcast %255 : f32 to vector<8x8x12xf32>
    %257 = arith.mulf %256, %254 : vector<8x8x12xf32>
    %258 = arith.addf %251, %257 : vector<8x8x12xf32>
    %259 = vector.extract_strided_slice %253 {offsets = [0, 0, 2], sizes = [8, 8, 12], strides = [1, 1, 1]} : vector<8x8x16xf32> to vector<8x8x12xf32>
    %c27 = arith.constant 27 : index
    %260 = memref.load %arg2[%c27] : memref<48xf32, #tpu.memory_space<smem>>
    %261 = vector.broadcast %260 : f32 to vector<8x8x12xf32>
    %262 = arith.mulf %261, %259 : vector<8x8x12xf32>
    %263 = arith.addf %258, %262 : vector<8x8x12xf32>
    %264 = vector.extract_strided_slice %253 {offsets = [0, 0, 4], sizes = [8, 8, 12], strides = [1, 1, 1]} : vector<8x8x16xf32> to vector<8x8x12xf32>
    %c43 = arith.constant 43 : index
    %265 = memref.load %arg2[%c43] : memref<48xf32, #tpu.memory_space<smem>>
    %266 = vector.broadcast %265 : f32 to vector<8x8x12xf32>
    %267 = arith.mulf %266, %264 : vector<8x8x12xf32>
    %268 = arith.addf %263, %267 : vector<8x8x12xf32>
    %c0_90 = arith.constant 0 : index
    %c3_91 = arith.constant 3 : index
    %c0_92 = arith.constant 0 : index
    %c0_93 = arith.constant 0 : index
    %c0_94 = arith.constant 0 : index
    %269 = vector.load %arg1[%c0_90, %c3_91, %c0_92, %c0_93, %c0_94] : memref<1x4x8x8x16xf32, #tpu.memory_space<vmem>>, vector<1x1x8x8x16xf32>
    %270 = vector.shape_cast %269 : vector<1x1x8x8x16xf32> to vector<8x8x16xf32>
    %271 = vector.extract_strided_slice %270 {offsets = [0, 0, 0], sizes = [8, 8, 12], strides = [1, 1, 1]} : vector<8x8x16xf32> to vector<8x8x12xf32>
    %c15 = arith.constant 15 : index
    %272 = memref.load %arg2[%c15] : memref<48xf32, #tpu.memory_space<smem>>
    %273 = vector.broadcast %272 : f32 to vector<8x8x12xf32>
    %274 = arith.mulf %273, %271 : vector<8x8x12xf32>
    %275 = arith.addf %268, %274 : vector<8x8x12xf32>
    %276 = vector.extract_strided_slice %270 {offsets = [0, 0, 2], sizes = [8, 8, 12], strides = [1, 1, 1]} : vector<8x8x16xf32> to vector<8x8x12xf32>
    %c31 = arith.constant 31 : index
    %277 = memref.load %arg2[%c31] : memref<48xf32, #tpu.memory_space<smem>>
    %278 = vector.broadcast %277 : f32 to vector<8x8x12xf32>
    %279 = arith.mulf %278, %276 : vector<8x8x12xf32>
    %280 = arith.addf %275, %279 : vector<8x8x12xf32>
    %281 = vector.extract_strided_slice %270 {offsets = [0, 0, 4], sizes = [8, 8, 12], strides = [1, 1, 1]} : vector<8x8x16xf32> to vector<8x8x12xf32>
    %c47 = arith.constant 47 : index
    %282 = memref.load %arg2[%c47] : memref<48xf32, #tpu.memory_space<smem>>
    %283 = vector.broadcast %282 : f32 to vector<8x8x12xf32>
    %284 = arith.mulf %283, %281 : vector<8x8x12xf32>
    %285 = arith.addf %280, %284 : vector<8x8x12xf32>
    %c3_95 = arith.constant 3 : index
    %286 = memref.load %arg3[%c3_95] : memref<4xf32, #tpu.memory_space<smem>>
    %287 = vector.broadcast %286 : f32 to vector<8x8x12xf32>
    %288 = arith.addf %285, %287 : vector<8x8x12xf32>
    %c3_96 = arith.constant 3 : index
    %c0_97 = arith.constant 0 : index
    %c0_98 = arith.constant 0 : index
    %c0_99 = arith.constant 0 : index
    %289 = vector.load %arg9[%c3_96, %c0_97, %c0_98, %c0_99] : memref<4x8x8x12xf32, #tpu.memory_space<vmem>>, vector<1x8x8x12xf32>
    %290 = vector.shape_cast %289 : vector<1x8x8x12xf32> to vector<8x8x12xf32>
    %291 = vector.shape_cast %288 : vector<8x8x12xf32> to vector<1x8x8x12xf32>
    tpu.vector_store %arg9[%c3_96, %c0_97, %c0_98, %c0_99], %291 {strides = array<i32>} : memref<4x8x8x12xf32, #tpu.memory_space<vmem>>, vector<1x8x8x12xf32>,
    %c0_100 = arith.constant 0 : index
    %c0_101 = arith.constant 0 : index
    %c0_102 = arith.constant 0 : index
    %c0_103 = arith.constant 0 : index
    %292 = vector.load %arg9[%c0_100, %c0_101, %c0_102, %c0_103] : memref<4x8x8x12xf32, #tpu.memory_space<vmem>>, vector<1x8x8x12xf32>
    %293 = vector.shape_cast %292 : vector<1x8x8x12xf32> to vector<8x8x12xf32>
    %294 = vector.extract_strided_slice %293 {offsets = [0, 0, 0], sizes = [8, 6, 12], strides = [1, 1, 1]} : vector<8x8x12xf32> to vector<8x6x12xf32>
    %c0_104 = arith.constant 0 : index
    %295 = memref.load %arg4[%c0_104] : memref<48xf32, #tpu.memory_space<smem>>
    %296 = vector.broadcast %295 : f32 to vector<8x6x12xf32>
    %297 = arith.mulf %296, %294 : vector<8x6x12xf32>
    %298 = vector.extract_strided_slice %293 {offsets = [0, 1, 0], sizes = [8, 6, 12], strides = [1, 1, 1]} : vector<8x8x12xf32> to vector<8x6x12xf32>
    %c16_105 = arith.constant 16 : index
    %299 = memref.load %arg4[%c16_105] : memref<48xf32, #tpu.memory_space<smem>>
    %300 = vector.broadcast %299 : f32 to vector<8x6x12xf32>
    %301 = arith.mulf %300, %298 : vector<8x6x12xf32>
    %302 = arith.addf %297, %301 : vector<8x6x12xf32>
    %303 = vector.extract_strided_slice %293 {offsets = [0, 2, 0], sizes = [8, 6, 12], strides = [1, 1, 1]} : vector<8x8x12xf32> to vector<8x6x12xf32>
    %c32_106 = arith.constant 32 : index
    %304 = memref.load %arg4[%c32_106] : memref<48xf32, #tpu.memory_space<smem>>
    %305 = vector.broadcast %304 : f32 to vector<8x6x12xf32>
    %306 = arith.mulf %305, %303 : vector<8x6x12xf32>
    %307 = arith.addf %302, %306 : vector<8x6x12xf32>
    %c1_107 = arith.constant 1 : index
    %c0_108 = arith.constant 0 : index
    %c0_109 = arith.constant 0 : index
    %c0_110 = arith.constant 0 : index
    %308 = vector.load %arg9[%c1_107, %c0_108, %c0_109, %c0_110] : memref<4x8x8x12xf32, #tpu.memory_space<vmem>>, vector<1x8x8x12xf32>
    %309 = vector.shape_cast %308 : vector<1x8x8x12xf32> to vector<8x8x12xf32>
    %310 = vector.extract_strided_slice %309 {offsets = [0, 0, 0], sizes = [8, 6, 12], strides = [1, 1, 1]} : vector<8x8x12xf32> to vector<8x6x12xf32>
    %c4_111 = arith.constant 4 : index
    %311 = memref.load %arg4[%c4_111] : memref<48xf32, #tpu.memory_space<smem>>
    %312 = vector.broadcast %311 : f32 to vector<8x6x12xf32>
    %313 = arith.mulf %312, %310 : vector<8x6x12xf32>
    %314 = arith.addf %307, %313 : vector<8x6x12xf32>
    %315 = vector.extract_strided_slice %309 {offsets = [0, 1, 0], sizes = [8, 6, 12], strides = [1, 1, 1]} : vector<8x8x12xf32> to vector<8x6x12xf32>
    %c20_112 = arith.constant 20 : index
    %316 = memref.load %arg4[%c20_112] : memref<48xf32, #tpu.memory_space<smem>>
    %317 = vector.broadcast %316 : f32 to vector<8x6x12xf32>
    %318 = arith.mulf %317, %315 : vector<8x6x12xf32>
    %319 = arith.addf %314, %318 : vector<8x6x12xf32>
    %320 = vector.extract_strided_slice %309 {offsets = [0, 2, 0], sizes = [8, 6, 12], strides = [1, 1, 1]} : vector<8x8x12xf32> to vector<8x6x12xf32>
    %c36_113 = arith.constant 36 : index
    %321 = memref.load %arg4[%c36_113] : memref<48xf32, #tpu.memory_space<smem>>
    %322 = vector.broadcast %321 : f32 to vector<8x6x12xf32>
    %323 = arith.mulf %322, %320 : vector<8x6x12xf32>
    %324 = arith.addf %319, %323 : vector<8x6x12xf32>
    %c2_114 = arith.constant 2 : index
    %c0_115 = arith.constant 0 : index
    %c0_116 = arith.constant 0 : index
    %c0_117 = arith.constant 0 : index
    %325 = vector.load %arg9[%c2_114, %c0_115, %c0_116, %c0_117] : memref<4x8x8x12xf32, #tpu.memory_space<vmem>>, vector<1x8x8x12xf32>
    %326 = vector.shape_cast %325 : vector<1x8x8x12xf32> to vector<8x8x12xf32>
    %327 = vector.extract_strided_slice %326 {offsets = [0, 0, 0], sizes = [8, 6, 12], strides = [1, 1, 1]} : vector<8x8x12xf32> to vector<8x6x12xf32>
    %c8_118 = arith.constant 8 : index
    %328 = memref.load %arg4[%c8_118] : memref<48xf32, #tpu.memory_space<smem>>
    %329 = vector.broadcast %328 : f32 to vector<8x6x12xf32>
    %330 = arith.mulf %329, %327 : vector<8x6x12xf32>
    %331 = arith.addf %324, %330 : vector<8x6x12xf32>
    %332 = vector.extract_strided_slice %326 {offsets = [0, 1, 0], sizes = [8, 6, 12], strides = [1, 1, 1]} : vector<8x8x12xf32> to vector<8x6x12xf32>
    %c24_119 = arith.constant 24 : index
    %333 = memref.load %arg4[%c24_119] : memref<48xf32, #tpu.memory_space<smem>>
    %334 = vector.broadcast %333 : f32 to vector<8x6x12xf32>
    %335 = arith.mulf %334, %332 : vector<8x6x12xf32>
    %336 = arith.addf %331, %335 : vector<8x6x12xf32>
    %337 = vector.extract_strided_slice %326 {offsets = [0, 2, 0], sizes = [8, 6, 12], strides = [1, 1, 1]} : vector<8x8x12xf32> to vector<8x6x12xf32>
    %c40_120 = arith.constant 40 : index
    %338 = memref.load %arg4[%c40_120] : memref<48xf32, #tpu.memory_space<smem>>
    %339 = vector.broadcast %338 : f32 to vector<8x6x12xf32>
    %340 = arith.mulf %339, %337 : vector<8x6x12xf32>
    %341 = arith.addf %336, %340 : vector<8x6x12xf32>
    %c3_121 = arith.constant 3 : index
    %c0_122 = arith.constant 0 : index
    %c0_123 = arith.constant 0 : index
    %c0_124 = arith.constant 0 : index
    %342 = vector.load %arg9[%c3_121, %c0_122, %c0_123, %c0_124] : memref<4x8x8x12xf32, #tpu.memory_space<vmem>>, vector<1x8x8x12xf32>
    %343 = vector.shape_cast %342 : vector<1x8x8x12xf32> to vector<8x8x12xf32>
    %344 = vector.extract_strided_slice %343 {offsets = [0, 0, 0], sizes = [8, 6, 12], strides = [1, 1, 1]} : vector<8x8x12xf32> to vector<8x6x12xf32>
    %c12_125 = arith.constant 12 : index
    %345 = memref.load %arg4[%c12_125] : memref<48xf32, #tpu.memory_space<smem>>
    %346 = vector.broadcast %345 : f32 to vector<8x6x12xf32>
    %347 = arith.mulf %346, %344 : vector<8x6x12xf32>
    %348 = arith.addf %341, %347 : vector<8x6x12xf32>
    %349 = vector.extract_strided_slice %343 {offsets = [0, 1, 0], sizes = [8, 6, 12], strides = [1, 1, 1]} : vector<8x8x12xf32> to vector<8x6x12xf32>
    %c28_126 = arith.constant 28 : index
    %350 = memref.load %arg4[%c28_126] : memref<48xf32, #tpu.memory_space<smem>>
    %351 = vector.broadcast %350 : f32 to vector<8x6x12xf32>
    %352 = arith.mulf %351, %349 : vector<8x6x12xf32>
    %353 = arith.addf %348, %352 : vector<8x6x12xf32>
    %354 = vector.extract_strided_slice %343 {offsets = [0, 2, 0], sizes = [8, 6, 12], strides = [1, 1, 1]} : vector<8x8x12xf32> to vector<8x6x12xf32>
    %c44_127 = arith.constant 44 : index
    %355 = memref.load %arg4[%c44_127] : memref<48xf32, #tpu.memory_space<smem>>
    %356 = vector.broadcast %355 : f32 to vector<8x6x12xf32>
    %357 = arith.mulf %356, %354 : vector<8x6x12xf32>
    %358 = arith.addf %353, %357 : vector<8x6x12xf32>
    %c0_128 = arith.constant 0 : index
    %359 = memref.load %arg5[%c0_128] : memref<4xf32, #tpu.memory_space<smem>>
    %360 = vector.broadcast %359 : f32 to vector<8x6x12xf32>
    %361 = arith.addf %358, %360 : vector<8x6x12xf32>
    %c0_129 = arith.constant 0 : index
    %c0_130 = arith.constant 0 : index
    %c0_131 = arith.constant 0 : index
    %c0_132 = arith.constant 0 : index
    %362 = vector.load %arg10[%c0_129, %c0_130, %c0_131, %c0_132] : memref<4x8x6x12xf32, #tpu.memory_space<vmem>>, vector<1x8x6x12xf32>
    %363 = vector.shape_cast %362 : vector<1x8x6x12xf32> to vector<8x6x12xf32>
    %364 = vector.shape_cast %361 : vector<8x6x12xf32> to vector<1x8x6x12xf32>
    tpu.vector_store %arg10[%c0_129, %c0_130, %c0_131, %c0_132], %364 {strides = array<i32>} : memref<4x8x6x12xf32, #tpu.memory_space<vmem>>, vector<1x8x6x12xf32>,
    %c0_133 = arith.constant 0 : index
    %c0_134 = arith.constant 0 : index
    %c0_135 = arith.constant 0 : index
    %c0_136 = arith.constant 0 : index
    %365 = vector.load %arg9[%c0_133, %c0_134, %c0_135, %c0_136] : memref<4x8x8x12xf32, #tpu.memory_space<vmem>>, vector<1x8x8x12xf32>
    %366 = vector.shape_cast %365 : vector<1x8x8x12xf32> to vector<8x8x12xf32>
    %367 = vector.extract_strided_slice %366 {offsets = [0, 0, 0], sizes = [8, 6, 12], strides = [1, 1, 1]} : vector<8x8x12xf32> to vector<8x6x12xf32>
    %c1_137 = arith.constant 1 : index
    %368 = memref.load %arg4[%c1_137] : memref<48xf32, #tpu.memory_space<smem>>
    %369 = vector.broadcast %368 : f32 to vector<8x6x12xf32>
    %370 = arith.mulf %369, %367 : vector<8x6x12xf32>
    %371 = vector.extract_strided_slice %366 {offsets = [0, 1, 0], sizes = [8, 6, 12], strides = [1, 1, 1]} : vector<8x8x12xf32> to vector<8x6x12xf32>
    %c17_138 = arith.constant 17 : index
    %372 = memref.load %arg4[%c17_138] : memref<48xf32, #tpu.memory_space<smem>>
    %373 = vector.broadcast %372 : f32 to vector<8x6x12xf32>
    %374 = arith.mulf %373, %371 : vector<8x6x12xf32>
    %375 = arith.addf %370, %374 : vector<8x6x12xf32>
    %376 = vector.extract_strided_slice %366 {offsets = [0, 2, 0], sizes = [8, 6, 12], strides = [1, 1, 1]} : vector<8x8x12xf32> to vector<8x6x12xf32>
    %c33_139 = arith.constant 33 : index
    %377 = memref.load %arg4[%c33_139] : memref<48xf32, #tpu.memory_space<smem>>
    %378 = vector.broadcast %377 : f32 to vector<8x6x12xf32>
    %379 = arith.mulf %378, %376 : vector<8x6x12xf32>
    %380 = arith.addf %375, %379 : vector<8x6x12xf32>
    %c1_140 = arith.constant 1 : index
    %c0_141 = arith.constant 0 : index
    %c0_142 = arith.constant 0 : index
    %c0_143 = arith.constant 0 : index
    %381 = vector.load %arg9[%c1_140, %c0_141, %c0_142, %c0_143] : memref<4x8x8x12xf32, #tpu.memory_space<vmem>>, vector<1x8x8x12xf32>
    %382 = vector.shape_cast %381 : vector<1x8x8x12xf32> to vector<8x8x12xf32>
    %383 = vector.extract_strided_slice %382 {offsets = [0, 0, 0], sizes = [8, 6, 12], strides = [1, 1, 1]} : vector<8x8x12xf32> to vector<8x6x12xf32>
    %c5_144 = arith.constant 5 : index
    %384 = memref.load %arg4[%c5_144] : memref<48xf32, #tpu.memory_space<smem>>
    %385 = vector.broadcast %384 : f32 to vector<8x6x12xf32>
    %386 = arith.mulf %385, %383 : vector<8x6x12xf32>
    %387 = arith.addf %380, %386 : vector<8x6x12xf32>
    %388 = vector.extract_strided_slice %382 {offsets = [0, 1, 0], sizes = [8, 6, 12], strides = [1, 1, 1]} : vector<8x8x12xf32> to vector<8x6x12xf32>
    %c21_145 = arith.constant 21 : index
    %389 = memref.load %arg4[%c21_145] : memref<48xf32, #tpu.memory_space<smem>>
    %390 = vector.broadcast %389 : f32 to vector<8x6x12xf32>
    %391 = arith.mulf %390, %388 : vector<8x6x12xf32>
    %392 = arith.addf %387, %391 : vector<8x6x12xf32>
    %393 = vector.extract_strided_slice %382 {offsets = [0, 2, 0], sizes = [8, 6, 12], strides = [1, 1, 1]} : vector<8x8x12xf32> to vector<8x6x12xf32>
    %c37_146 = arith.constant 37 : index
    %394 = memref.load %arg4[%c37_146] : memref<48xf32, #tpu.memory_space<smem>>
    %395 = vector.broadcast %394 : f32 to vector<8x6x12xf32>
    %396 = arith.mulf %395, %393 : vector<8x6x12xf32>
    %397 = arith.addf %392, %396 : vector<8x6x12xf32>
    %c2_147 = arith.constant 2 : index
    %c0_148 = arith.constant 0 : index
    %c0_149 = arith.constant 0 : index
    %c0_150 = arith.constant 0 : index
    %398 = vector.load %arg9[%c2_147, %c0_148, %c0_149, %c0_150] : memref<4x8x8x12xf32, #tpu.memory_space<vmem>>, vector<1x8x8x12xf32>
    %399 = vector.shape_cast %398 : vector<1x8x8x12xf32> to vector<8x8x12xf32>
    %400 = vector.extract_strided_slice %399 {offsets = [0, 0, 0], sizes = [8, 6, 12], strides = [1, 1, 1]} : vector<8x8x12xf32> to vector<8x6x12xf32>
    %c9_151 = arith.constant 9 : index
    %401 = memref.load %arg4[%c9_151] : memref<48xf32, #tpu.memory_space<smem>>
    %402 = vector.broadcast %401 : f32 to vector<8x6x12xf32>
    %403 = arith.mulf %402, %400 : vector<8x6x12xf32>
    %404 = arith.addf %397, %403 : vector<8x6x12xf32>
    %405 = vector.extract_strided_slice %399 {offsets = [0, 1, 0], sizes = [8, 6, 12], strides = [1, 1, 1]} : vector<8x8x12xf32> to vector<8x6x12xf32>
    %c25_152 = arith.constant 25 : index
    %406 = memref.load %arg4[%c25_152] : memref<48xf32, #tpu.memory_space<smem>>
    %407 = vector.broadcast %406 : f32 to vector<8x6x12xf32>
    %408 = arith.mulf %407, %405 : vector<8x6x12xf32>
    %409 = arith.addf %404, %408 : vector<8x6x12xf32>
    %410 = vector.extract_strided_slice %399 {offsets = [0, 2, 0], sizes = [8, 6, 12], strides = [1, 1, 1]} : vector<8x8x12xf32> to vector<8x6x12xf32>
    %c41_153 = arith.constant 41 : index
    %411 = memref.load %arg4[%c41_153] : memref<48xf32, #tpu.memory_space<smem>>
    %412 = vector.broadcast %411 : f32 to vector<8x6x12xf32>
    %413 = arith.mulf %412, %410 : vector<8x6x12xf32>
    %414 = arith.addf %409, %413 : vector<8x6x12xf32>
    %c3_154 = arith.constant 3 : index
    %c0_155 = arith.constant 0 : index
    %c0_156 = arith.constant 0 : index
    %c0_157 = arith.constant 0 : index
    %415 = vector.load %arg9[%c3_154, %c0_155, %c0_156, %c0_157] : memref<4x8x8x12xf32, #tpu.memory_space<vmem>>, vector<1x8x8x12xf32>
    %416 = vector.shape_cast %415 : vector<1x8x8x12xf32> to vector<8x8x12xf32>
    %417 = vector.extract_strided_slice %416 {offsets = [0, 0, 0], sizes = [8, 6, 12], strides = [1, 1, 1]} : vector<8x8x12xf32> to vector<8x6x12xf32>
    %c13_158 = arith.constant 13 : index
    %418 = memref.load %arg4[%c13_158] : memref<48xf32, #tpu.memory_space<smem>>
    %419 = vector.broadcast %418 : f32 to vector<8x6x12xf32>
    %420 = arith.mulf %419, %417 : vector<8x6x12xf32>
    %421 = arith.addf %414, %420 : vector<8x6x12xf32>
    %422 = vector.extract_strided_slice %416 {offsets = [0, 1, 0], sizes = [8, 6, 12], strides = [1, 1, 1]} : vector<8x8x12xf32> to vector<8x6x12xf32>
    %c29_159 = arith.constant 29 : index
    %423 = memref.load %arg4[%c29_159] : memref<48xf32, #tpu.memory_space<smem>>
    %424 = vector.broadcast %423 : f32 to vector<8x6x12xf32>
    %425 = arith.mulf %424, %422 : vector<8x6x12xf32>
    %426 = arith.addf %421, %425 : vector<8x6x12xf32>
    %427 = vector.extract_strided_slice %416 {offsets = [0, 2, 0], sizes = [8, 6, 12], strides = [1, 1, 1]} : vector<8x8x12xf32> to vector<8x6x12xf32>
    %c45_160 = arith.constant 45 : index
    %428 = memref.load %arg4[%c45_160] : memref<48xf32, #tpu.memory_space<smem>>
    %429 = vector.broadcast %428 : f32 to vector<8x6x12xf32>
    %430 = arith.mulf %429, %427 : vector<8x6x12xf32>
    %431 = arith.addf %426, %430 : vector<8x6x12xf32>
    %c1_161 = arith.constant 1 : index
    %432 = memref.load %arg5[%c1_161] : memref<4xf32, #tpu.memory_space<smem>>
    %433 = vector.broadcast %432 : f32 to vector<8x6x12xf32>
    %434 = arith.addf %431, %433 : vector<8x6x12xf32>
    %c1_162 = arith.constant 1 : index
    %c0_163 = arith.constant 0 : index
    %c0_164 = arith.constant 0 : index
    %c0_165 = arith.constant 0 : index
    %435 = vector.load %arg10[%c1_162, %c0_163, %c0_164, %c0_165] : memref<4x8x6x12xf32, #tpu.memory_space<vmem>>, vector<1x8x6x12xf32>
    %436 = vector.shape_cast %435 : vector<1x8x6x12xf32> to vector<8x6x12xf32>
    %437 = vector.shape_cast %434 : vector<8x6x12xf32> to vector<1x8x6x12xf32>
    tpu.vector_store %arg10[%c1_162, %c0_163, %c0_164, %c0_165], %437 {strides = array<i32>} : memref<4x8x6x12xf32, #tpu.memory_space<vmem>>, vector<1x8x6x12xf32>,
    %c0_166 = arith.constant 0 : index
    %c0_167 = arith.constant 0 : index
    %c0_168 = arith.constant 0 : index
    %c0_169 = arith.constant 0 : index
    %438 = vector.load %arg9[%c0_166, %c0_167, %c0_168, %c0_169] : memref<4x8x8x12xf32, #tpu.memory_space<vmem>>, vector<1x8x8x12xf32>
    %439 = vector.shape_cast %438 : vector<1x8x8x12xf32> to vector<8x8x12xf32>
    %440 = vector.extract_strided_slice %439 {offsets = [0, 0, 0], sizes = [8, 6, 12], strides = [1, 1, 1]} : vector<8x8x12xf32> to vector<8x6x12xf32>
    %c2_170 = arith.constant 2 : index
    %441 = memref.load %arg4[%c2_170] : memref<48xf32, #tpu.memory_space<smem>>
    %442 = vector.broadcast %441 : f32 to vector<8x6x12xf32>
    %443 = arith.mulf %442, %440 : vector<8x6x12xf32>
    %444 = vector.extract_strided_slice %439 {offsets = [0, 1, 0], sizes = [8, 6, 12], strides = [1, 1, 1]} : vector<8x8x12xf32> to vector<8x6x12xf32>
    %c18_171 = arith.constant 18 : index
    %445 = memref.load %arg4[%c18_171] : memref<48xf32, #tpu.memory_space<smem>>
    %446 = vector.broadcast %445 : f32 to vector<8x6x12xf32>
    %447 = arith.mulf %446, %444 : vector<8x6x12xf32>
    %448 = arith.addf %443, %447 : vector<8x6x12xf32>
    %449 = vector.extract_strided_slice %439 {offsets = [0, 2, 0], sizes = [8, 6, 12], strides = [1, 1, 1]} : vector<8x8x12xf32> to vector<8x6x12xf32>
    %c34_172 = arith.constant 34 : index
    %450 = memref.load %arg4[%c34_172] : memref<48xf32, #tpu.memory_space<smem>>
    %451 = vector.broadcast %450 : f32 to vector<8x6x12xf32>
    %452 = arith.mulf %451, %449 : vector<8x6x12xf32>
    %453 = arith.addf %448, %452 : vector<8x6x12xf32>
    %c1_173 = arith.constant 1 : index
    %c0_174 = arith.constant 0 : index
    %c0_175 = arith.constant 0 : index
    %c0_176 = arith.constant 0 : index
    %454 = vector.load %arg9[%c1_173, %c0_174, %c0_175, %c0_176] : memref<4x8x8x12xf32, #tpu.memory_space<vmem>>, vector<1x8x8x12xf32>
    %455 = vector.shape_cast %454 : vector<1x8x8x12xf32> to vector<8x8x12xf32>
    %456 = vector.extract_strided_slice %455 {offsets = [0, 0, 0], sizes = [8, 6, 12], strides = [1, 1, 1]} : vector<8x8x12xf32> to vector<8x6x12xf32>
    %c6_177 = arith.constant 6 : index
    %457 = memref.load %arg4[%c6_177] : memref<48xf32, #tpu.memory_space<smem>>
    %458 = vector.broadcast %457 : f32 to vector<8x6x12xf32>
    %459 = arith.mulf %458, %456 : vector<8x6x12xf32>
    %460 = arith.addf %453, %459 : vector<8x6x12xf32>
    %461 = vector.extract_strided_slice %455 {offsets = [0, 1, 0], sizes = [8, 6, 12], strides = [1, 1, 1]} : vector<8x8x12xf32> to vector<8x6x12xf32>
    %c22_178 = arith.constant 22 : index
    %462 = memref.load %arg4[%c22_178] : memref<48xf32, #tpu.memory_space<smem>>
    %463 = vector.broadcast %462 : f32 to vector<8x6x12xf32>
    %464 = arith.mulf %463, %461 : vector<8x6x12xf32>
    %465 = arith.addf %460, %464 : vector<8x6x12xf32>
    %466 = vector.extract_strided_slice %455 {offsets = [0, 2, 0], sizes = [8, 6, 12], strides = [1, 1, 1]} : vector<8x8x12xf32> to vector<8x6x12xf32>
    %c38_179 = arith.constant 38 : index
    %467 = memref.load %arg4[%c38_179] : memref<48xf32, #tpu.memory_space<smem>>
    %468 = vector.broadcast %467 : f32 to vector<8x6x12xf32>
    %469 = arith.mulf %468, %466 : vector<8x6x12xf32>
    %470 = arith.addf %465, %469 : vector<8x6x12xf32>
    %c2_180 = arith.constant 2 : index
    %c0_181 = arith.constant 0 : index
    %c0_182 = arith.constant 0 : index
    %c0_183 = arith.constant 0 : index
    %471 = vector.load %arg9[%c2_180, %c0_181, %c0_182, %c0_183] : memref<4x8x8x12xf32, #tpu.memory_space<vmem>>, vector<1x8x8x12xf32>
    %472 = vector.shape_cast %471 : vector<1x8x8x12xf32> to vector<8x8x12xf32>
    %473 = vector.extract_strided_slice %472 {offsets = [0, 0, 0], sizes = [8, 6, 12], strides = [1, 1, 1]} : vector<8x8x12xf32> to vector<8x6x12xf32>
    %c10_184 = arith.constant 10 : index
    %474 = memref.load %arg4[%c10_184] : memref<48xf32, #tpu.memory_space<smem>>
    %475 = vector.broadcast %474 : f32 to vector<8x6x12xf32>
    %476 = arith.mulf %475, %473 : vector<8x6x12xf32>
    %477 = arith.addf %470, %476 : vector<8x6x12xf32>
    %478 = vector.extract_strided_slice %472 {offsets = [0, 1, 0], sizes = [8, 6, 12], strides = [1, 1, 1]} : vector<8x8x12xf32> to vector<8x6x12xf32>
    %c26_185 = arith.constant 26 : index
    %479 = memref.load %arg4[%c26_185] : memref<48xf32, #tpu.memory_space<smem>>
    %480 = vector.broadcast %479 : f32 to vector<8x6x12xf32>
    %481 = arith.mulf %480, %478 : vector<8x6x12xf32>
    %482 = arith.addf %477, %481 : vector<8x6x12xf32>
    %483 = vector.extract_strided_slice %472 {offsets = [0, 2, 0], sizes = [8, 6, 12], strides = [1, 1, 1]} : vector<8x8x12xf32> to vector<8x6x12xf32>
    %c42_186 = arith.constant 42 : index
    %484 = memref.load %arg4[%c42_186] : memref<48xf32, #tpu.memory_space<smem>>
    %485 = vector.broadcast %484 : f32 to vector<8x6x12xf32>
    %486 = arith.mulf %485, %483 : vector<8x6x12xf32>
    %487 = arith.addf %482, %486 : vector<8x6x12xf32>
    %c3_187 = arith.constant 3 : index
    %c0_188 = arith.constant 0 : index
    %c0_189 = arith.constant 0 : index
    %c0_190 = arith.constant 0 : index
    %488 = vector.load %arg9[%c3_187, %c0_188, %c0_189, %c0_190] : memref<4x8x8x12xf32, #tpu.memory_space<vmem>>, vector<1x8x8x12xf32>
    %489 = vector.shape_cast %488 : vector<1x8x8x12xf32> to vector<8x8x12xf32>
    %490 = vector.extract_strided_slice %489 {offsets = [0, 0, 0], sizes = [8, 6, 12], strides = [1, 1, 1]} : vector<8x8x12xf32> to vector<8x6x12xf32>
    %c14_191 = arith.constant 14 : index
    %491 = memref.load %arg4[%c14_191] : memref<48xf32, #tpu.memory_space<smem>>
    %492 = vector.broadcast %491 : f32 to vector<8x6x12xf32>
    %493 = arith.mulf %492, %490 : vector<8x6x12xf32>
    %494 = arith.addf %487, %493 : vector<8x6x12xf32>
    %495 = vector.extract_strided_slice %489 {offsets = [0, 1, 0], sizes = [8, 6, 12], strides = [1, 1, 1]} : vector<8x8x12xf32> to vector<8x6x12xf32>
    %c30_192 = arith.constant 30 : index
    %496 = memref.load %arg4[%c30_192] : memref<48xf32, #tpu.memory_space<smem>>
    %497 = vector.broadcast %496 : f32 to vector<8x6x12xf32>
    %498 = arith.mulf %497, %495 : vector<8x6x12xf32>
    %499 = arith.addf %494, %498 : vector<8x6x12xf32>
    %500 = vector.extract_strided_slice %489 {offsets = [0, 2, 0], sizes = [8, 6, 12], strides = [1, 1, 1]} : vector<8x8x12xf32> to vector<8x6x12xf32>
    %c46_193 = arith.constant 46 : index
    %501 = memref.load %arg4[%c46_193] : memref<48xf32, #tpu.memory_space<smem>>
    %502 = vector.broadcast %501 : f32 to vector<8x6x12xf32>
    %503 = arith.mulf %502, %500 : vector<8x6x12xf32>
    %504 = arith.addf %499, %503 : vector<8x6x12xf32>
    %c2_194 = arith.constant 2 : index
    %505 = memref.load %arg5[%c2_194] : memref<4xf32, #tpu.memory_space<smem>>
    %506 = vector.broadcast %505 : f32 to vector<8x6x12xf32>
    %507 = arith.addf %504, %506 : vector<8x6x12xf32>
    %c2_195 = arith.constant 2 : index
    %c0_196 = arith.constant 0 : index
    %c0_197 = arith.constant 0 : index
    %c0_198 = arith.constant 0 : index
    %508 = vector.load %arg10[%c2_195, %c0_196, %c0_197, %c0_198] : memref<4x8x6x12xf32, #tpu.memory_space<vmem>>, vector<1x8x6x12xf32>
    %509 = vector.shape_cast %508 : vector<1x8x6x12xf32> to vector<8x6x12xf32>
    %510 = vector.shape_cast %507 : vector<8x6x12xf32> to vector<1x8x6x12xf32>
    tpu.vector_store %arg10[%c2_195, %c0_196, %c0_197, %c0_198], %510 {strides = array<i32>} : memref<4x8x6x12xf32, #tpu.memory_space<vmem>>, vector<1x8x6x12xf32>,
    %c0_199 = arith.constant 0 : index
    %c0_200 = arith.constant 0 : index
    %c0_201 = arith.constant 0 : index
    %c0_202 = arith.constant 0 : index
    %511 = vector.load %arg9[%c0_199, %c0_200, %c0_201, %c0_202] : memref<4x8x8x12xf32, #tpu.memory_space<vmem>>, vector<1x8x8x12xf32>
    %512 = vector.shape_cast %511 : vector<1x8x8x12xf32> to vector<8x8x12xf32>
    %513 = vector.extract_strided_slice %512 {offsets = [0, 0, 0], sizes = [8, 6, 12], strides = [1, 1, 1]} : vector<8x8x12xf32> to vector<8x6x12xf32>
    %c3_203 = arith.constant 3 : index
    %514 = memref.load %arg4[%c3_203] : memref<48xf32, #tpu.memory_space<smem>>
    %515 = vector.broadcast %514 : f32 to vector<8x6x12xf32>
    %516 = arith.mulf %515, %513 : vector<8x6x12xf32>
    %517 = vector.extract_strided_slice %512 {offsets = [0, 1, 0], sizes = [8, 6, 12], strides = [1, 1, 1]} : vector<8x8x12xf32> to vector<8x6x12xf32>
    %c19_204 = arith.constant 19 : index
    %518 = memref.load %arg4[%c19_204] : memref<48xf32, #tpu.memory_space<smem>>
    %519 = vector.broadcast %518 : f32 to vector<8x6x12xf32>
    %520 = arith.mulf %519, %517 : vector<8x6x12xf32>
    %521 = arith.addf %516, %520 : vector<8x6x12xf32>
    %522 = vector.extract_strided_slice %512 {offsets = [0, 2, 0], sizes = [8, 6, 12], strides = [1, 1, 1]} : vector<8x8x12xf32> to vector<8x6x12xf32>
    %c35_205 = arith.constant 35 : index
    %523 = memref.load %arg4[%c35_205] : memref<48xf32, #tpu.memory_space<smem>>
    %524 = vector.broadcast %523 : f32 to vector<8x6x12xf32>
    %525 = arith.mulf %524, %522 : vector<8x6x12xf32>
    %526 = arith.addf %521, %525 : vector<8x6x12xf32>
    %c1_206 = arith.constant 1 : index
    %c0_207 = arith.constant 0 : index
    %c0_208 = arith.constant 0 : index
    %c0_209 = arith.constant 0 : index
    %527 = vector.load %arg9[%c1_206, %c0_207, %c0_208, %c0_209] : memref<4x8x8x12xf32, #tpu.memory_space<vmem>>, vector<1x8x8x12xf32>
    %528 = vector.shape_cast %527 : vector<1x8x8x12xf32> to vector<8x8x12xf32>
    %529 = vector.extract_strided_slice %528 {offsets = [0, 0, 0], sizes = [8, 6, 12], strides = [1, 1, 1]} : vector<8x8x12xf32> to vector<8x6x12xf32>
    %c7_210 = arith.constant 7 : index
    %530 = memref.load %arg4[%c7_210] : memref<48xf32, #tpu.memory_space<smem>>
    %531 = vector.broadcast %530 : f32 to vector<8x6x12xf32>
    %532 = arith.mulf %531, %529 : vector<8x6x12xf32>
    %533 = arith.addf %526, %532 : vector<8x6x12xf32>
    %534 = vector.extract_strided_slice %528 {offsets = [0, 1, 0], sizes = [8, 6, 12], strides = [1, 1, 1]} : vector<8x8x12xf32> to vector<8x6x12xf32>
    %c23_211 = arith.constant 23 : index
    %535 = memref.load %arg4[%c23_211] : memref<48xf32, #tpu.memory_space<smem>>
    %536 = vector.broadcast %535 : f32 to vector<8x6x12xf32>
    %537 = arith.mulf %536, %534 : vector<8x6x12xf32>
    %538 = arith.addf %533, %537 : vector<8x6x12xf32>
    %539 = vector.extract_strided_slice %528 {offsets = [0, 2, 0], sizes = [8, 6, 12], strides = [1, 1, 1]} : vector<8x8x12xf32> to vector<8x6x12xf32>
    %c39_212 = arith.constant 39 : index
    %540 = memref.load %arg4[%c39_212] : memref<48xf32, #tpu.memory_space<smem>>
    %541 = vector.broadcast %540 : f32 to vector<8x6x12xf32>
    %542 = arith.mulf %541, %539 : vector<8x6x12xf32>
    %543 = arith.addf %538, %542 : vector<8x6x12xf32>
    %c2_213 = arith.constant 2 : index
    %c0_214 = arith.constant 0 : index
    %c0_215 = arith.constant 0 : index
    %c0_216 = arith.constant 0 : index
    %544 = vector.load %arg9[%c2_213, %c0_214, %c0_215, %c0_216] : memref<4x8x8x12xf32, #tpu.memory_space<vmem>>, vector<1x8x8x12xf32>
    %545 = vector.shape_cast %544 : vector<1x8x8x12xf32> to vector<8x8x12xf32>
    %546 = vector.extract_strided_slice %545 {offsets = [0, 0, 0], sizes = [8, 6, 12], strides = [1, 1, 1]} : vector<8x8x12xf32> to vector<8x6x12xf32>
    %c11_217 = arith.constant 11 : index
    %547 = memref.load %arg4[%c11_217] : memref<48xf32, #tpu.memory_space<smem>>
    %548 = vector.broadcast %547 : f32 to vector<8x6x12xf32>
    %549 = arith.mulf %548, %546 : vector<8x6x12xf32>
    %550 = arith.addf %543, %549 : vector<8x6x12xf32>
    %551 = vector.extract_strided_slice %545 {offsets = [0, 1, 0], sizes = [8, 6, 12], strides = [1, 1, 1]} : vector<8x8x12xf32> to vector<8x6x12xf32>
    %c27_218 = arith.constant 27 : index
    %552 = memref.load %arg4[%c27_218] : memref<48xf32, #tpu.memory_space<smem>>
    %553 = vector.broadcast %552 : f32 to vector<8x6x12xf32>
    %554 = arith.mulf %553, %551 : vector<8x6x12xf32>
    %555 = arith.addf %550, %554 : vector<8x6x12xf32>
    %556 = vector.extract_strided_slice %545 {offsets = [0, 2, 0], sizes = [8, 6, 12], strides = [1, 1, 1]} : vector<8x8x12xf32> to vector<8x6x12xf32>
    %c43_219 = arith.constant 43 : index
    %557 = memref.load %arg4[%c43_219] : memref<48xf32, #tpu.memory_space<smem>>
    %558 = vector.broadcast %557 : f32 to vector<8x6x12xf32>
    %559 = arith.mulf %558, %556 : vector<8x6x12xf32>
    %560 = arith.addf %555, %559 : vector<8x6x12xf32>
    %c3_220 = arith.constant 3 : index
    %c0_221 = arith.constant 0 : index
    %c0_222 = arith.constant 0 : index
    %c0_223 = arith.constant 0 : index
    %561 = vector.load %arg9[%c3_220, %c0_221, %c0_222, %c0_223] : memref<4x8x8x12xf32, #tpu.memory_space<vmem>>, vector<1x8x8x12xf32>
    %562 = vector.shape_cast %561 : vector<1x8x8x12xf32> to vector<8x8x12xf32>
    %563 = vector.extract_strided_slice %562 {offsets = [0, 0, 0], sizes = [8, 6, 12], strides = [1, 1, 1]} : vector<8x8x12xf32> to vector<8x6x12xf32>
    %c15_224 = arith.constant 15 : index
    %564 = memref.load %arg4[%c15_224] : memref<48xf32, #tpu.memory_space<smem>>
    %565 = vector.broadcast %564 : f32 to vector<8x6x12xf32>
    %566 = arith.mulf %565, %563 : vector<8x6x12xf32>
    %567 = arith.addf %560, %566 : vector<8x6x12xf32>
    %568 = vector.extract_strided_slice %562 {offsets = [0, 1, 0], sizes = [8, 6, 12], strides = [1, 1, 1]} : vector<8x8x12xf32> to vector<8x6x12xf32>
    %c31_225 = arith.constant 31 : index
    %569 = memref.load %arg4[%c31_225] : memref<48xf32, #tpu.memory_space<smem>>
    %570 = vector.broadcast %569 : f32 to vector<8x6x12xf32>
    %571 = arith.mulf %570, %568 : vector<8x6x12xf32>
    %572 = arith.addf %567, %571 : vector<8x6x12xf32>
    %573 = vector.extract_strided_slice %562 {offsets = [0, 2, 0], sizes = [8, 6, 12], strides = [1, 1, 1]} : vector<8x8x12xf32> to vector<8x6x12xf32>
    %c47_226 = arith.constant 47 : index
    %574 = memref.load %arg4[%c47_226] : memref<48xf32, #tpu.memory_space<smem>>
    %575 = vector.broadcast %574 : f32 to vector<8x6x12xf32>
    %576 = arith.mulf %575, %573 : vector<8x6x12xf32>
    %577 = arith.addf %572, %576 : vector<8x6x12xf32>
    %c3_227 = arith.constant 3 : index
    %578 = memref.load %arg5[%c3_227] : memref<4xf32, #tpu.memory_space<smem>>
    %579 = vector.broadcast %578 : f32 to vector<8x6x12xf32>
    %580 = arith.addf %577, %579 : vector<8x6x12xf32>
    %c3_228 = arith.constant 3 : index
    %c0_229 = arith.constant 0 : index
    %c0_230 = arith.constant 0 : index
    %c0_231 = arith.constant 0 : index
    %581 = vector.load %arg10[%c3_228, %c0_229, %c0_230, %c0_231] : memref<4x8x6x12xf32, #tpu.memory_space<vmem>>, vector<1x8x6x12xf32>
    %582 = vector.shape_cast %581 : vector<1x8x6x12xf32> to vector<8x6x12xf32>
    %583 = vector.shape_cast %580 : vector<8x6x12xf32> to vector<1x8x6x12xf32>
    tpu.vector_store %arg10[%c3_228, %c0_229, %c0_230, %c0_231], %583 {strides = array<i32>} : memref<4x8x6x12xf32, #tpu.memory_space<vmem>>, vector<1x8x6x12xf32>,
    %c0_232 = arith.constant 0 : index
    %c0_233 = arith.constant 0 : index
    %c0_234 = arith.constant 0 : index
    %c0_235 = arith.constant 0 : index
    %584 = vector.load %arg10[%c0_232, %c0_233, %c0_234, %c0_235] : memref<4x8x6x12xf32, #tpu.memory_space<vmem>>, vector<1x8x6x12xf32>
    %585 = vector.shape_cast %584 : vector<1x8x6x12xf32> to vector<8x6x12xf32>
    %586 = vector.extract_strided_slice %585 {offsets = [0, 0, 0], sizes = [6, 6, 12], strides = [1, 1, 1]} : vector<8x6x12xf32> to vector<6x6x12xf32>
    %c0_236 = arith.constant 0 : index
    %587 = memref.load %arg6[%c0_236] : memref<96xf32, #tpu.memory_space<smem>>
    %588 = vector.broadcast %587 : f32 to vector<6x6x12xf32>
    %589 = arith.mulf %588, %586 : vector<6x6x12xf32>
    %590 = vector.extract_strided_slice %585 {offsets = [1, 0, 0], sizes = [6, 6, 12], strides = [1, 1, 1]} : vector<8x6x12xf32> to vector<6x6x12xf32>
    %c32_237 = arith.constant 32 : index
    %591 = memref.load %arg6[%c32_237] : memref<96xf32, #tpu.memory_space<smem>>
    %592 = vector.broadcast %591 : f32 to vector<6x6x12xf32>
    %593 = arith.mulf %592, %590 : vector<6x6x12xf32>
    %594 = arith.addf %589, %593 : vector<6x6x12xf32>
    %595 = vector.extract_strided_slice %585 {offsets = [2, 0, 0], sizes = [6, 6, 12], strides = [1, 1, 1]} : vector<8x6x12xf32> to vector<6x6x12xf32>
    %c64 = arith.constant 64 : index
    %596 = memref.load %arg6[%c64] : memref<96xf32, #tpu.memory_space<smem>>
    %597 = vector.broadcast %596 : f32 to vector<6x6x12xf32>
    %598 = arith.mulf %597, %595 : vector<6x6x12xf32>
    %599 = arith.addf %594, %598 : vector<6x6x12xf32>
    %c1_238 = arith.constant 1 : index
    %c0_239 = arith.constant 0 : index
    %c0_240 = arith.constant 0 : index
    %c0_241 = arith.constant 0 : index
    %600 = vector.load %arg10[%c1_238, %c0_239, %c0_240, %c0_241] : memref<4x8x6x12xf32, #tpu.memory_space<vmem>>, vector<1x8x6x12xf32>
    %601 = vector.shape_cast %600 : vector<1x8x6x12xf32> to vector<8x6x12xf32>
    %602 = vector.extract_strided_slice %601 {offsets = [0, 0, 0], sizes = [6, 6, 12], strides = [1, 1, 1]} : vector<8x6x12xf32> to vector<6x6x12xf32>
    %c8_242 = arith.constant 8 : index
    %603 = memref.load %arg6[%c8_242] : memref<96xf32, #tpu.memory_space<smem>>
    %604 = vector.broadcast %603 : f32 to vector<6x6x12xf32>
    %605 = arith.mulf %604, %602 : vector<6x6x12xf32>
    %606 = arith.addf %599, %605 : vector<6x6x12xf32>
    %607 = vector.extract_strided_slice %601 {offsets = [1, 0, 0], sizes = [6, 6, 12], strides = [1, 1, 1]} : vector<8x6x12xf32> to vector<6x6x12xf32>
    %c40_243 = arith.constant 40 : index
    %608 = memref.load %arg6[%c40_243] : memref<96xf32, #tpu.memory_space<smem>>
    %609 = vector.broadcast %608 : f32 to vector<6x6x12xf32>
    %610 = arith.mulf %609, %607 : vector<6x6x12xf32>
    %611 = arith.addf %606, %610 : vector<6x6x12xf32>
    %612 = vector.extract_strided_slice %601 {offsets = [2, 0, 0], sizes = [6, 6, 12], strides = [1, 1, 1]} : vector<8x6x12xf32> to vector<6x6x12xf32>
    %c72 = arith.constant 72 : index
    %613 = memref.load %arg6[%c72] : memref<96xf32, #tpu.memory_space<smem>>
    %614 = vector.broadcast %613 : f32 to vector<6x6x12xf32>
    %615 = arith.mulf %614, %612 : vector<6x6x12xf32>
    %616 = arith.addf %611, %615 : vector<6x6x12xf32>
    %c2_244 = arith.constant 2 : index
    %c0_245 = arith.constant 0 : index
    %c0_246 = arith.constant 0 : index
    %c0_247 = arith.constant 0 : index
    %617 = vector.load %arg10[%c2_244, %c0_245, %c0_246, %c0_247] : memref<4x8x6x12xf32, #tpu.memory_space<vmem>>, vector<1x8x6x12xf32>
    %618 = vector.shape_cast %617 : vector<1x8x6x12xf32> to vector<8x6x12xf32>
    %619 = vector.extract_strided_slice %618 {offsets = [0, 0, 0], sizes = [6, 6, 12], strides = [1, 1, 1]} : vector<8x6x12xf32> to vector<6x6x12xf32>
    %c16_248 = arith.constant 16 : index
    %620 = memref.load %arg6[%c16_248] : memref<96xf32, #tpu.memory_space<smem>>
    %621 = vector.broadcast %620 : f32 to vector<6x6x12xf32>
    %622 = arith.mulf %621, %619 : vector<6x6x12xf32>
    %623 = arith.addf %616, %622 : vector<6x6x12xf32>
    %624 = vector.extract_strided_slice %618 {offsets = [1, 0, 0], sizes = [6, 6, 12], strides = [1, 1, 1]} : vector<8x6x12xf32> to vector<6x6x12xf32>
    %c48 = arith.constant 48 : index
    %625 = memref.load %arg6[%c48] : memref<96xf32, #tpu.memory_space<smem>>
    %626 = vector.broadcast %625 : f32 to vector<6x6x12xf32>
    %627 = arith.mulf %626, %624 : vector<6x6x12xf32>
    %628 = arith.addf %623, %627 : vector<6x6x12xf32>
    %629 = vector.extract_strided_slice %618 {offsets = [2, 0, 0], sizes = [6, 6, 12], strides = [1, 1, 1]} : vector<8x6x12xf32> to vector<6x6x12xf32>
    %c80 = arith.constant 80 : index
    %630 = memref.load %arg6[%c80] : memref<96xf32, #tpu.memory_space<smem>>
    %631 = vector.broadcast %630 : f32 to vector<6x6x12xf32>
    %632 = arith.mulf %631, %629 : vector<6x6x12xf32>
    %633 = arith.addf %628, %632 : vector<6x6x12xf32>
    %c3_249 = arith.constant 3 : index
    %c0_250 = arith.constant 0 : index
    %c0_251 = arith.constant 0 : index
    %c0_252 = arith.constant 0 : index
    %634 = vector.load %arg10[%c3_249, %c0_250, %c0_251, %c0_252] : memref<4x8x6x12xf32, #tpu.memory_space<vmem>>, vector<1x8x6x12xf32>
    %635 = vector.shape_cast %634 : vector<1x8x6x12xf32> to vector<8x6x12xf32>
    %636 = vector.extract_strided_slice %635 {offsets = [0, 0, 0], sizes = [6, 6, 12], strides = [1, 1, 1]} : vector<8x6x12xf32> to vector<6x6x12xf32>
    %c24_253 = arith.constant 24 : index
    %637 = memref.load %arg6[%c24_253] : memref<96xf32, #tpu.memory_space<smem>>
    %638 = vector.broadcast %637 : f32 to vector<6x6x12xf32>
    %639 = arith.mulf %638, %636 : vector<6x6x12xf32>
    %640 = arith.addf %633, %639 : vector<6x6x12xf32>
    %641 = vector.extract_strided_slice %635 {offsets = [1, 0, 0], sizes = [6, 6, 12], strides = [1, 1, 1]} : vector<8x6x12xf32> to vector<6x6x12xf32>
    %c56 = arith.constant 56 : index
    %642 = memref.load %arg6[%c56] : memref<96xf32, #tpu.memory_space<smem>>
    %643 = vector.broadcast %642 : f32 to vector<6x6x12xf32>
    %644 = arith.mulf %643, %641 : vector<6x6x12xf32>
    %645 = arith.addf %640, %644 : vector<6x6x12xf32>
    %646 = vector.extract_strided_slice %635 {offsets = [2, 0, 0], sizes = [6, 6, 12], strides = [1, 1, 1]} : vector<8x6x12xf32> to vector<6x6x12xf32>
    %c88 = arith.constant 88 : index
    %647 = memref.load %arg6[%c88] : memref<96xf32, #tpu.memory_space<smem>>
    %648 = vector.broadcast %647 : f32 to vector<6x6x12xf32>
    %649 = arith.mulf %648, %646 : vector<6x6x12xf32>
    %650 = arith.addf %645, %649 : vector<6x6x12xf32>
    %c0_254 = arith.constant 0 : index
    %651 = memref.load %arg7[%c0_254] : memref<8xf32, #tpu.memory_space<smem>>
    %652 = vector.broadcast %651 : f32 to vector<6x6x12xf32>
    %653 = arith.addf %650, %652 : vector<6x6x12xf32>
    %c0_255 = arith.constant 0 : index
    %c0_256 = arith.constant 0 : index
    %c0_257 = arith.constant 0 : index
    %c0_258 = arith.constant 0 : index
    %c0_259 = arith.constant 0 : index
    %654 = vector.load %arg8[%c0_255, %c0_256, %c0_257, %c0_258, %c0_259] : memref<1x8x6x6x12xf32, #tpu.memory_space<vmem>>, vector<1x1x6x6x12xf32>
    %655 = vector.shape_cast %654 : vector<1x1x6x6x12xf32> to vector<6x6x12xf32>
    %656 = vector.shape_cast %653 : vector<6x6x12xf32> to vector<1x1x6x6x12xf32>
    tpu.vector_store %arg8[%c0_255, %c0_256, %c0_257, %c0_258, %c0_259], %656 {strides = array<i32>} : memref<1x8x6x6x12xf32, #tpu.memory_space<vmem>>, vector<1x1x6x6x12xf32>,
    %c0_260 = arith.constant 0 : index
    %c0_261 = arith.constant 0 : index
    %c0_262 = arith.constant 0 : index
    %c0_263 = arith.constant 0 : index
    %657 = vector.load %arg10[%c0_260, %c0_261, %c0_262, %c0_263] : memref<4x8x6x12xf32, #tpu.memory_space<vmem>>, vector<1x8x6x12xf32>
    %658 = vector.shape_cast %657 : vector<1x8x6x12xf32> to vector<8x6x12xf32>
    %659 = vector.extract_strided_slice %658 {offsets = [0, 0, 0], sizes = [6, 6, 12], strides = [1, 1, 1]} : vector<8x6x12xf32> to vector<6x6x12xf32>
    %c1_264 = arith.constant 1 : index
    %660 = memref.load %arg6[%c1_264] : memref<96xf32, #tpu.memory_space<smem>>
    %661 = vector.broadcast %660 : f32 to vector<6x6x12xf32>
    %662 = arith.mulf %661, %659 : vector<6x6x12xf32>
    %663 = vector.extract_strided_slice %658 {offsets = [1, 0, 0], sizes = [6, 6, 12], strides = [1, 1, 1]} : vector<8x6x12xf32> to vector<6x6x12xf32>
    %c33_265 = arith.constant 33 : index
    %664 = memref.load %arg6[%c33_265] : memref<96xf32, #tpu.memory_space<smem>>
    %665 = vector.broadcast %664 : f32 to vector<6x6x12xf32>
    %666 = arith.mulf %665, %663 : vector<6x6x12xf32>
    %667 = arith.addf %662, %666 : vector<6x6x12xf32>
    %668 = vector.extract_strided_slice %658 {offsets = [2, 0, 0], sizes = [6, 6, 12], strides = [1, 1, 1]} : vector<8x6x12xf32> to vector<6x6x12xf32>
    %c65 = arith.constant 65 : index
    %669 = memref.load %arg6[%c65] : memref<96xf32, #tpu.memory_space<smem>>
    %670 = vector.broadcast %669 : f32 to vector<6x6x12xf32>
    %671 = arith.mulf %670, %668 : vector<6x6x12xf32>
    %672 = arith.addf %667, %671 : vector<6x6x12xf32>
    %c1_266 = arith.constant 1 : index
    %c0_267 = arith.constant 0 : index
    %c0_268 = arith.constant 0 : index
    %c0_269 = arith.constant 0 : index
    %673 = vector.load %arg10[%c1_266, %c0_267, %c0_268, %c0_269] : memref<4x8x6x12xf32, #tpu.memory_space<vmem>>, vector<1x8x6x12xf32>
    %674 = vector.shape_cast %673 : vector<1x8x6x12xf32> to vector<8x6x12xf32>
    %675 = vector.extract_strided_slice %674 {offsets = [0, 0, 0], sizes = [6, 6, 12], strides = [1, 1, 1]} : vector<8x6x12xf32> to vector<6x6x12xf32>
    %c9_270 = arith.constant 9 : index
    %676 = memref.load %arg6[%c9_270] : memref<96xf32, #tpu.memory_space<smem>>
    %677 = vector.broadcast %676 : f32 to vector<6x6x12xf32>
    %678 = arith.mulf %677, %675 : vector<6x6x12xf32>
    %679 = arith.addf %672, %678 : vector<6x6x12xf32>
    %680 = vector.extract_strided_slice %674 {offsets = [1, 0, 0], sizes = [6, 6, 12], strides = [1, 1, 1]} : vector<8x6x12xf32> to vector<6x6x12xf32>
    %c41_271 = arith.constant 41 : index
    %681 = memref.load %arg6[%c41_271] : memref<96xf32, #tpu.memory_space<smem>>
    %682 = vector.broadcast %681 : f32 to vector<6x6x12xf32>
    %683 = arith.mulf %682, %680 : vector<6x6x12xf32>
    %684 = arith.addf %679, %683 : vector<6x6x12xf32>
    %685 = vector.extract_strided_slice %674 {offsets = [2, 0, 0], sizes = [6, 6, 12], strides = [1, 1, 1]} : vector<8x6x12xf32> to vector<6x6x12xf32>
    %c73 = arith.constant 73 : index
    %686 = memref.load %arg6[%c73] : memref<96xf32, #tpu.memory_space<smem>>
    %687 = vector.broadcast %686 : f32 to vector<6x6x12xf32>
    %688 = arith.mulf %687, %685 : vector<6x6x12xf32>
    %689 = arith.addf %684, %688 : vector<6x6x12xf32>
    %c2_272 = arith.constant 2 : index
    %c0_273 = arith.constant 0 : index
    %c0_274 = arith.constant 0 : index
    %c0_275 = arith.constant 0 : index
    %690 = vector.load %arg10[%c2_272, %c0_273, %c0_274, %c0_275] : memref<4x8x6x12xf32, #tpu.memory_space<vmem>>, vector<1x8x6x12xf32>
    %691 = vector.shape_cast %690 : vector<1x8x6x12xf32> to vector<8x6x12xf32>
    %692 = vector.extract_strided_slice %691 {offsets = [0, 0, 0], sizes = [6, 6, 12], strides = [1, 1, 1]} : vector<8x6x12xf32> to vector<6x6x12xf32>
    %c17_276 = arith.constant 17 : index
    %693 = memref.load %arg6[%c17_276] : memref<96xf32, #tpu.memory_space<smem>>
    %694 = vector.broadcast %693 : f32 to vector<6x6x12xf32>
    %695 = arith.mulf %694, %692 : vector<6x6x12xf32>
    %696 = arith.addf %689, %695 : vector<6x6x12xf32>
    %697 = vector.extract_strided_slice %691 {offsets = [1, 0, 0], sizes = [6, 6, 12], strides = [1, 1, 1]} : vector<8x6x12xf32> to vector<6x6x12xf32>
    %c49 = arith.constant 49 : index
    %698 = memref.load %arg6[%c49] : memref<96xf32, #tpu.memory_space<smem>>
    %699 = vector.broadcast %698 : f32 to vector<6x6x12xf32>
    %700 = arith.mulf %699, %697 : vector<6x6x12xf32>
    %701 = arith.addf %696, %700 : vector<6x6x12xf32>
    %702 = vector.extract_strided_slice %691 {offsets = [2, 0, 0], sizes = [6, 6, 12], strides = [1, 1, 1]} : vector<8x6x12xf32> to vector<6x6x12xf32>
    %c81 = arith.constant 81 : index
    %703 = memref.load %arg6[%c81] : memref<96xf32, #tpu.memory_space<smem>>
    %704 = vector.broadcast %703 : f32 to vector<6x6x12xf32>
    %705 = arith.mulf %704, %702 : vector<6x6x12xf32>
    %706 = arith.addf %701, %705 : vector<6x6x12xf32>
    %c3_277 = arith.constant 3 : index
    %c0_278 = arith.constant 0 : index
    %c0_279 = arith.constant 0 : index
    %c0_280 = arith.constant 0 : index
    %707 = vector.load %arg10[%c3_277, %c0_278, %c0_279, %c0_280] : memref<4x8x6x12xf32, #tpu.memory_space<vmem>>, vector<1x8x6x12xf32>
    %708 = vector.shape_cast %707 : vector<1x8x6x12xf32> to vector<8x6x12xf32>
    %709 = vector.extract_strided_slice %708 {offsets = [0, 0, 0], sizes = [6, 6, 12], strides = [1, 1, 1]} : vector<8x6x12xf32> to vector<6x6x12xf32>
    %c25_281 = arith.constant 25 : index
    %710 = memref.load %arg6[%c25_281] : memref<96xf32, #tpu.memory_space<smem>>
    %711 = vector.broadcast %710 : f32 to vector<6x6x12xf32>
    %712 = arith.mulf %711, %709 : vector<6x6x12xf32>
    %713 = arith.addf %706, %712 : vector<6x6x12xf32>
    %714 = vector.extract_strided_slice %708 {offsets = [1, 0, 0], sizes = [6, 6, 12], strides = [1, 1, 1]} : vector<8x6x12xf32> to vector<6x6x12xf32>
    %c57 = arith.constant 57 : index
    %715 = memref.load %arg6[%c57] : memref<96xf32, #tpu.memory_space<smem>>
    %716 = vector.broadcast %715 : f32 to vector<6x6x12xf32>
    %717 = arith.mulf %716, %714 : vector<6x6x12xf32>
    %718 = arith.addf %713, %717 : vector<6x6x12xf32>
    %719 = vector.extract_strided_slice %708 {offsets = [2, 0, 0], sizes = [6, 6, 12], strides = [1, 1, 1]} : vector<8x6x12xf32> to vector<6x6x12xf32>
    %c89 = arith.constant 89 : index
    %720 = memref.load %arg6[%c89] : memref<96xf32, #tpu.memory_space<smem>>
    %721 = vector.broadcast %720 : f32 to vector<6x6x12xf32>
    %722 = arith.mulf %721, %719 : vector<6x6x12xf32>
    %723 = arith.addf %718, %722 : vector<6x6x12xf32>
    %c1_282 = arith.constant 1 : index
    %724 = memref.load %arg7[%c1_282] : memref<8xf32, #tpu.memory_space<smem>>
    %725 = vector.broadcast %724 : f32 to vector<6x6x12xf32>
    %726 = arith.addf %723, %725 : vector<6x6x12xf32>
    %c0_283 = arith.constant 0 : index
    %c1_284 = arith.constant 1 : index
    %c0_285 = arith.constant 0 : index
    %c0_286 = arith.constant 0 : index
    %c0_287 = arith.constant 0 : index
    %727 = vector.load %arg8[%c0_283, %c1_284, %c0_285, %c0_286, %c0_287] : memref<1x8x6x6x12xf32, #tpu.memory_space<vmem>>, vector<1x1x6x6x12xf32>
    %728 = vector.shape_cast %727 : vector<1x1x6x6x12xf32> to vector<6x6x12xf32>
    %729 = vector.shape_cast %726 : vector<6x6x12xf32> to vector<1x1x6x6x12xf32>
    tpu.vector_store %arg8[%c0_283, %c1_284, %c0_285, %c0_286, %c0_287], %729 {strides = array<i32>} : memref<1x8x6x6x12xf32, #tpu.memory_space<vmem>>, vector<1x1x6x6x12xf32>,
    %c0_288 = arith.constant 0 : index
    %c0_289 = arith.constant 0 : index
    %c0_290 = arith.constant 0 : index
    %c0_291 = arith.constant 0 : index
    %730 = vector.load %arg10[%c0_288, %c0_289, %c0_290, %c0_291] : memref<4x8x6x12xf32, #tpu.memory_space<vmem>>, vector<1x8x6x12xf32>
    %731 = vector.shape_cast %730 : vector<1x8x6x12xf32> to vector<8x6x12xf32>
    %732 = vector.extract_strided_slice %731 {offsets = [0, 0, 0], sizes = [6, 6, 12], strides = [1, 1, 1]} : vector<8x6x12xf32> to vector<6x6x12xf32>
    %c2_292 = arith.constant 2 : index
    %733 = memref.load %arg6[%c2_292] : memref<96xf32, #tpu.memory_space<smem>>
    %734 = vector.broadcast %733 : f32 to vector<6x6x12xf32>
    %735 = arith.mulf %734, %732 : vector<6x6x12xf32>
    %736 = vector.extract_strided_slice %731 {offsets = [1, 0, 0], sizes = [6, 6, 12], strides = [1, 1, 1]} : vector<8x6x12xf32> to vector<6x6x12xf32>
    %c34_293 = arith.constant 34 : index
    %737 = memref.load %arg6[%c34_293] : memref<96xf32, #tpu.memory_space<smem>>
    %738 = vector.broadcast %737 : f32 to vector<6x6x12xf32>
    %739 = arith.mulf %738, %736 : vector<6x6x12xf32>
    %740 = arith.addf %735, %739 : vector<6x6x12xf32>
    %741 = vector.extract_strided_slice %731 {offsets = [2, 0, 0], sizes = [6, 6, 12], strides = [1, 1, 1]} : vector<8x6x12xf32> to vector<6x6x12xf32>
    %c66 = arith.constant 66 : index
    %742 = memref.load %arg6[%c66] : memref<96xf32, #tpu.memory_space<smem>>
    %743 = vector.broadcast %742 : f32 to vector<6x6x12xf32>
    %744 = arith.mulf %743, %741 : vector<6x6x12xf32>
    %745 = arith.addf %740, %744 : vector<6x6x12xf32>
    %c1_294 = arith.constant 1 : index
    %c0_295 = arith.constant 0 : index
    %c0_296 = arith.constant 0 : index
    %c0_297 = arith.constant 0 : index
    %746 = vector.load %arg10[%c1_294, %c0_295, %c0_296, %c0_297] : memref<4x8x6x12xf32, #tpu.memory_space<vmem>>, vector<1x8x6x12xf32>
    %747 = vector.shape_cast %746 : vector<1x8x6x12xf32> to vector<8x6x12xf32>
    %748 = vector.extract_strided_slice %747 {offsets = [0, 0, 0], sizes = [6, 6, 12], strides = [1, 1, 1]} : vector<8x6x12xf32> to vector<6x6x12xf32>
    %c10_298 = arith.constant 10 : index
    %749 = memref.load %arg6[%c10_298] : memref<96xf32, #tpu.memory_space<smem>>
    %750 = vector.broadcast %749 : f32 to vector<6x6x12xf32>
    %751 = arith.mulf %750, %748 : vector<6x6x12xf32>
    %752 = arith.addf %745, %751 : vector<6x6x12xf32>
    %753 = vector.extract_strided_slice %747 {offsets = [1, 0, 0], sizes = [6, 6, 12], strides = [1, 1, 1]} : vector<8x6x12xf32> to vector<6x6x12xf32>
    %c42_299 = arith.constant 42 : index
    %754 = memref.load %arg6[%c42_299] : memref<96xf32, #tpu.memory_space<smem>>
    %755 = vector.broadcast %754 : f32 to vector<6x6x12xf32>
    %756 = arith.mulf %755, %753 : vector<6x6x12xf32>
    %757 = arith.addf %752, %756 : vector<6x6x12xf32>
    %758 = vector.extract_strided_slice %747 {offsets = [2, 0, 0], sizes = [6, 6, 12], strides = [1, 1, 1]} : vector<8x6x12xf32> to vector<6x6x12xf32>
    %c74 = arith.constant 74 : index
    %759 = memref.load %arg6[%c74] : memref<96xf32, #tpu.memory_space<smem>>
    %760 = vector.broadcast %759 : f32 to vector<6x6x12xf32>
    %761 = arith.mulf %760, %758 : vector<6x6x12xf32>
    %762 = arith.addf %757, %761 : vector<6x6x12xf32>
    %c2_300 = arith.constant 2 : index
    %c0_301 = arith.constant 0 : index
    %c0_302 = arith.constant 0 : index
    %c0_303 = arith.constant 0 : index
    %763 = vector.load %arg10[%c2_300, %c0_301, %c0_302, %c0_303] : memref<4x8x6x12xf32, #tpu.memory_space<vmem>>, vector<1x8x6x12xf32>
    %764 = vector.shape_cast %763 : vector<1x8x6x12xf32> to vector<8x6x12xf32>
    %765 = vector.extract_strided_slice %764 {offsets = [0, 0, 0], sizes = [6, 6, 12], strides = [1, 1, 1]} : vector<8x6x12xf32> to vector<6x6x12xf32>
    %c18_304 = arith.constant 18 : index
    %766 = memref.load %arg6[%c18_304] : memref<96xf32, #tpu.memory_space<smem>>
    %767 = vector.broadcast %766 : f32 to vector<6x6x12xf32>
    %768 = arith.mulf %767, %765 : vector<6x6x12xf32>
    %769 = arith.addf %762, %768 : vector<6x6x12xf32>
    %770 = vector.extract_strided_slice %764 {offsets = [1, 0, 0], sizes = [6, 6, 12], strides = [1, 1, 1]} : vector<8x6x12xf32> to vector<6x6x12xf32>
    %c50 = arith.constant 50 : index
    %771 = memref.load %arg6[%c50] : memref<96xf32, #tpu.memory_space<smem>>
    %772 = vector.broadcast %771 : f32 to vector<6x6x12xf32>
    %773 = arith.mulf %772, %770 : vector<6x6x12xf32>
    %774 = arith.addf %769, %773 : vector<6x6x12xf32>
    %775 = vector.extract_strided_slice %764 {offsets = [2, 0, 0], sizes = [6, 6, 12], strides = [1, 1, 1]} : vector<8x6x12xf32> to vector<6x6x12xf32>
    %c82 = arith.constant 82 : index
    %776 = memref.load %arg6[%c82] : memref<96xf32, #tpu.memory_space<smem>>
    %777 = vector.broadcast %776 : f32 to vector<6x6x12xf32>
    %778 = arith.mulf %777, %775 : vector<6x6x12xf32>
    %779 = arith.addf %774, %778 : vector<6x6x12xf32>
    %c3_305 = arith.constant 3 : index
    %c0_306 = arith.constant 0 : index
    %c0_307 = arith.constant 0 : index
    %c0_308 = arith.constant 0 : index
    %780 = vector.load %arg10[%c3_305, %c0_306, %c0_307, %c0_308] : memref<4x8x6x12xf32, #tpu.memory_space<vmem>>, vector<1x8x6x12xf32>
    %781 = vector.shape_cast %780 : vector<1x8x6x12xf32> to vector<8x6x12xf32>
    %782 = vector.extract_strided_slice %781 {offsets = [0, 0, 0], sizes = [6, 6, 12], strides = [1, 1, 1]} : vector<8x6x12xf32> to vector<6x6x12xf32>
    %c26_309 = arith.constant 26 : index
    %783 = memref.load %arg6[%c26_309] : memref<96xf32, #tpu.memory_space<smem>>
    %784 = vector.broadcast %783 : f32 to vector<6x6x12xf32>
    %785 = arith.mulf %784, %782 : vector<6x6x12xf32>
    %786 = arith.addf %779, %785 : vector<6x6x12xf32>
    %787 = vector.extract_strided_slice %781 {offsets = [1, 0, 0], sizes = [6, 6, 12], strides = [1, 1, 1]} : vector<8x6x12xf32> to vector<6x6x12xf32>
    %c58 = arith.constant 58 : index
    %788 = memref.load %arg6[%c58] : memref<96xf32, #tpu.memory_space<smem>>
    %789 = vector.broadcast %788 : f32 to vector<6x6x12xf32>
    %790 = arith.mulf %789, %787 : vector<6x6x12xf32>
    %791 = arith.addf %786, %790 : vector<6x6x12xf32>
    %792 = vector.extract_strided_slice %781 {offsets = [2, 0, 0], sizes = [6, 6, 12], strides = [1, 1, 1]} : vector<8x6x12xf32> to vector<6x6x12xf32>
    %c90 = arith.constant 90 : index
    %793 = memref.load %arg6[%c90] : memref<96xf32, #tpu.memory_space<smem>>
    %794 = vector.broadcast %793 : f32 to vector<6x6x12xf32>
    %795 = arith.mulf %794, %792 : vector<6x6x12xf32>
    %796 = arith.addf %791, %795 : vector<6x6x12xf32>
    %c2_310 = arith.constant 2 : index
    %797 = memref.load %arg7[%c2_310] : memref<8xf32, #tpu.memory_space<smem>>
    %798 = vector.broadcast %797 : f32 to vector<6x6x12xf32>
    %799 = arith.addf %796, %798 : vector<6x6x12xf32>
    %c0_311 = arith.constant 0 : index
    %c2_312 = arith.constant 2 : index
    %c0_313 = arith.constant 0 : index
    %c0_314 = arith.constant 0 : index
    %c0_315 = arith.constant 0 : index
    %800 = vector.load %arg8[%c0_311, %c2_312, %c0_313, %c0_314, %c0_315] : memref<1x8x6x6x12xf32, #tpu.memory_space<vmem>>, vector<1x1x6x6x12xf32>
    %801 = vector.shape_cast %800 : vector<1x1x6x6x12xf32> to vector<6x6x12xf32>
    %802 = vector.shape_cast %799 : vector<6x6x12xf32> to vector<1x1x6x6x12xf32>
    tpu.vector_store %arg8[%c0_311, %c2_312, %c0_313, %c0_314, %c0_315], %802 {strides = array<i32>} : memref<1x8x6x6x12xf32, #tpu.memory_space<vmem>>, vector<1x1x6x6x12xf32>,
    %c0_316 = arith.constant 0 : index
    %c0_317 = arith.constant 0 : index
    %c0_318 = arith.constant 0 : index
    %c0_319 = arith.constant 0 : index
    %803 = vector.load %arg10[%c0_316, %c0_317, %c0_318, %c0_319] : memref<4x8x6x12xf32, #tpu.memory_space<vmem>>, vector<1x8x6x12xf32>
    %804 = vector.shape_cast %803 : vector<1x8x6x12xf32> to vector<8x6x12xf32>
    %805 = vector.extract_strided_slice %804 {offsets = [0, 0, 0], sizes = [6, 6, 12], strides = [1, 1, 1]} : vector<8x6x12xf32> to vector<6x6x12xf32>
    %c3_320 = arith.constant 3 : index
    %806 = memref.load %arg6[%c3_320] : memref<96xf32, #tpu.memory_space<smem>>
    %807 = vector.broadcast %806 : f32 to vector<6x6x12xf32>
    %808 = arith.mulf %807, %805 : vector<6x6x12xf32>
    %809 = vector.extract_strided_slice %804 {offsets = [1, 0, 0], sizes = [6, 6, 12], strides = [1, 1, 1]} : vector<8x6x12xf32> to vector<6x6x12xf32>
    %c35_321 = arith.constant 35 : index
    %810 = memref.load %arg6[%c35_321] : memref<96xf32, #tpu.memory_space<smem>>
    %811 = vector.broadcast %810 : f32 to vector<6x6x12xf32>
    %812 = arith.mulf %811, %809 : vector<6x6x12xf32>
    %813 = arith.addf %808, %812 : vector<6x6x12xf32>
    %814 = vector.extract_strided_slice %804 {offsets = [2, 0, 0], sizes = [6, 6, 12], strides = [1, 1, 1]} : vector<8x6x12xf32> to vector<6x6x12xf32>
    %c67 = arith.constant 67 : index
    %815 = memref.load %arg6[%c67] : memref<96xf32, #tpu.memory_space<smem>>
    %816 = vector.broadcast %815 : f32 to vector<6x6x12xf32>
    %817 = arith.mulf %816, %814 : vector<6x6x12xf32>
    %818 = arith.addf %813, %817 : vector<6x6x12xf32>
    %c1_322 = arith.constant 1 : index
    %c0_323 = arith.constant 0 : index
    %c0_324 = arith.constant 0 : index
    %c0_325 = arith.constant 0 : index
    %819 = vector.load %arg10[%c1_322, %c0_323, %c0_324, %c0_325] : memref<4x8x6x12xf32, #tpu.memory_space<vmem>>, vector<1x8x6x12xf32>
    %820 = vector.shape_cast %819 : vector<1x8x6x12xf32> to vector<8x6x12xf32>
    %821 = vector.extract_strided_slice %820 {offsets = [0, 0, 0], sizes = [6, 6, 12], strides = [1, 1, 1]} : vector<8x6x12xf32> to vector<6x6x12xf32>
    %c11_326 = arith.constant 11 : index
    %822 = memref.load %arg6[%c11_326] : memref<96xf32, #tpu.memory_space<smem>>
    %823 = vector.broadcast %822 : f32 to vector<6x6x12xf32>
    %824 = arith.mulf %823, %821 : vector<6x6x12xf32>
    %825 = arith.addf %818, %824 : vector<6x6x12xf32>
    %826 = vector.extract_strided_slice %820 {offsets = [1, 0, 0], sizes = [6, 6, 12], strides = [1, 1, 1]} : vector<8x6x12xf32> to vector<6x6x12xf32>
    %c43_327 = arith.constant 43 : index
    %827 = memref.load %arg6[%c43_327] : memref<96xf32, #tpu.memory_space<smem>>
    %828 = vector.broadcast %827 : f32 to vector<6x6x12xf32>
    %829 = arith.mulf %828, %826 : vector<6x6x12xf32>
    %830 = arith.addf %825, %829 : vector<6x6x12xf32>
    %831 = vector.extract_strided_slice %820 {offsets = [2, 0, 0], sizes = [6, 6, 12], strides = [1, 1, 1]} : vector<8x6x12xf32> to vector<6x6x12xf32>
    %c75 = arith.constant 75 : index
    %832 = memref.load %arg6[%c75] : memref<96xf32, #tpu.memory_space<smem>>
    %833 = vector.broadcast %832 : f32 to vector<6x6x12xf32>
    %834 = arith.mulf %833, %831 : vector<6x6x12xf32>
    %835 = arith.addf %830, %834 : vector<6x6x12xf32>
    %c2_328 = arith.constant 2 : index
    %c0_329 = arith.constant 0 : index
    %c0_330 = arith.constant 0 : index
    %c0_331 = arith.constant 0 : index
    %836 = vector.load %arg10[%c2_328, %c0_329, %c0_330, %c0_331] : memref<4x8x6x12xf32, #tpu.memory_space<vmem>>, vector<1x8x6x12xf32>
    %837 = vector.shape_cast %836 : vector<1x8x6x12xf32> to vector<8x6x12xf32>
    %838 = vector.extract_strided_slice %837 {offsets = [0, 0, 0], sizes = [6, 6, 12], strides = [1, 1, 1]} : vector<8x6x12xf32> to vector<6x6x12xf32>
    %c19_332 = arith.constant 19 : index
    %839 = memref.load %arg6[%c19_332] : memref<96xf32, #tpu.memory_space<smem>>
    %840 = vector.broadcast %839 : f32 to vector<6x6x12xf32>
    %841 = arith.mulf %840, %838 : vector<6x6x12xf32>
    %842 = arith.addf %835, %841 : vector<6x6x12xf32>
    %843 = vector.extract_strided_slice %837 {offsets = [1, 0, 0], sizes = [6, 6, 12], strides = [1, 1, 1]} : vector<8x6x12xf32> to vector<6x6x12xf32>
    %c51 = arith.constant 51 : index
    %844 = memref.load %arg6[%c51] : memref<96xf32, #tpu.memory_space<smem>>
    %845 = vector.broadcast %844 : f32 to vector<6x6x12xf32>
    %846 = arith.mulf %845, %843 : vector<6x6x12xf32>
    %847 = arith.addf %842, %846 : vector<6x6x12xf32>
    %848 = vector.extract_strided_slice %837 {offsets = [2, 0, 0], sizes = [6, 6, 12], strides = [1, 1, 1]} : vector<8x6x12xf32> to vector<6x6x12xf32>
    %c83 = arith.constant 83 : index
    %849 = memref.load %arg6[%c83] : memref<96xf32, #tpu.memory_space<smem>>
    %850 = vector.broadcast %849 : f32 to vector<6x6x12xf32>
    %851 = arith.mulf %850, %848 : vector<6x6x12xf32>
    %852 = arith.addf %847, %851 : vector<6x6x12xf32>
    %c3_333 = arith.constant 3 : index
    %c0_334 = arith.constant 0 : index
    %c0_335 = arith.constant 0 : index
    %c0_336 = arith.constant 0 : index
    %853 = vector.load %arg10[%c3_333, %c0_334, %c0_335, %c0_336] : memref<4x8x6x12xf32, #tpu.memory_space<vmem>>, vector<1x8x6x12xf32>
    %854 = vector.shape_cast %853 : vector<1x8x6x12xf32> to vector<8x6x12xf32>
    %855 = vector.extract_strided_slice %854 {offsets = [0, 0, 0], sizes = [6, 6, 12], strides = [1, 1, 1]} : vector<8x6x12xf32> to vector<6x6x12xf32>
    %c27_337 = arith.constant 27 : index
    %856 = memref.load %arg6[%c27_337] : memref<96xf32, #tpu.memory_space<smem>>
    %857 = vector.broadcast %856 : f32 to vector<6x6x12xf32>
    %858 = arith.mulf %857, %855 : vector<6x6x12xf32>
    %859 = arith.addf %852, %858 : vector<6x6x12xf32>
    %860 = vector.extract_strided_slice %854 {offsets = [1, 0, 0], sizes = [6, 6, 12], strides = [1, 1, 1]} : vector<8x6x12xf32> to vector<6x6x12xf32>
    %c59 = arith.constant 59 : index
    %861 = memref.load %arg6[%c59] : memref<96xf32, #tpu.memory_space<smem>>
    %862 = vector.broadcast %861 : f32 to vector<6x6x12xf32>
    %863 = arith.mulf %862, %860 : vector<6x6x12xf32>
    %864 = arith.addf %859, %863 : vector<6x6x12xf32>
    %865 = vector.extract_strided_slice %854 {offsets = [2, 0, 0], sizes = [6, 6, 12], strides = [1, 1, 1]} : vector<8x6x12xf32> to vector<6x6x12xf32>
    %c91 = arith.constant 91 : index
    %866 = memref.load %arg6[%c91] : memref<96xf32, #tpu.memory_space<smem>>
    %867 = vector.broadcast %866 : f32 to vector<6x6x12xf32>
    %868 = arith.mulf %867, %865 : vector<6x6x12xf32>
    %869 = arith.addf %864, %868 : vector<6x6x12xf32>
    %c3_338 = arith.constant 3 : index
    %870 = memref.load %arg7[%c3_338] : memref<8xf32, #tpu.memory_space<smem>>
    %871 = vector.broadcast %870 : f32 to vector<6x6x12xf32>
    %872 = arith.addf %869, %871 : vector<6x6x12xf32>
    %c0_339 = arith.constant 0 : index
    %c3_340 = arith.constant 3 : index
    %c0_341 = arith.constant 0 : index
    %c0_342 = arith.constant 0 : index
    %c0_343 = arith.constant 0 : index
    %873 = vector.load %arg8[%c0_339, %c3_340, %c0_341, %c0_342, %c0_343] : memref<1x8x6x6x12xf32, #tpu.memory_space<vmem>>, vector<1x1x6x6x12xf32>
    %874 = vector.shape_cast %873 : vector<1x1x6x6x12xf32> to vector<6x6x12xf32>
    %875 = vector.shape_cast %872 : vector<6x6x12xf32> to vector<1x1x6x6x12xf32>
    tpu.vector_store %arg8[%c0_339, %c3_340, %c0_341, %c0_342, %c0_343], %875 {strides = array<i32>} : memref<1x8x6x6x12xf32, #tpu.memory_space<vmem>>, vector<1x1x6x6x12xf32>,
    %c0_344 = arith.constant 0 : index
    %c0_345 = arith.constant 0 : index
    %c0_346 = arith.constant 0 : index
    %c0_347 = arith.constant 0 : index
    %876 = vector.load %arg10[%c0_344, %c0_345, %c0_346, %c0_347] : memref<4x8x6x12xf32, #tpu.memory_space<vmem>>, vector<1x8x6x12xf32>
    %877 = vector.shape_cast %876 : vector<1x8x6x12xf32> to vector<8x6x12xf32>
    %878 = vector.extract_strided_slice %877 {offsets = [0, 0, 0], sizes = [6, 6, 12], strides = [1, 1, 1]} : vector<8x6x12xf32> to vector<6x6x12xf32>
    %c4_348 = arith.constant 4 : index
    %879 = memref.load %arg6[%c4_348] : memref<96xf32, #tpu.memory_space<smem>>
    %880 = vector.broadcast %879 : f32 to vector<6x6x12xf32>
    %881 = arith.mulf %880, %878 : vector<6x6x12xf32>
    %882 = vector.extract_strided_slice %877 {offsets = [1, 0, 0], sizes = [6, 6, 12], strides = [1, 1, 1]} : vector<8x6x12xf32> to vector<6x6x12xf32>
    %c36_349 = arith.constant 36 : index
    %883 = memref.load %arg6[%c36_349] : memref<96xf32, #tpu.memory_space<smem>>
    %884 = vector.broadcast %883 : f32 to vector<6x6x12xf32>
    %885 = arith.mulf %884, %882 : vector<6x6x12xf32>
    %886 = arith.addf %881, %885 : vector<6x6x12xf32>
    %887 = vector.extract_strided_slice %877 {offsets = [2, 0, 0], sizes = [6, 6, 12], strides = [1, 1, 1]} : vector<8x6x12xf32> to vector<6x6x12xf32>
    %c68 = arith.constant 68 : index
    %888 = memref.load %arg6[%c68] : memref<96xf32, #tpu.memory_space<smem>>
    %889 = vector.broadcast %888 : f32 to vector<6x6x12xf32>
    %890 = arith.mulf %889, %887 : vector<6x6x12xf32>
    %891 = arith.addf %886, %890 : vector<6x6x12xf32>
    %c1_350 = arith.constant 1 : index
    %c0_351 = arith.constant 0 : index
    %c0_352 = arith.constant 0 : index
    %c0_353 = arith.constant 0 : index
    %892 = vector.load %arg10[%c1_350, %c0_351, %c0_352, %c0_353] : memref<4x8x6x12xf32, #tpu.memory_space<vmem>>, vector<1x8x6x12xf32>
    %893 = vector.shape_cast %892 : vector<1x8x6x12xf32> to vector<8x6x12xf32>
    %894 = vector.extract_strided_slice %893 {offsets = [0, 0, 0], sizes = [6, 6, 12], strides = [1, 1, 1]} : vector<8x6x12xf32> to vector<6x6x12xf32>
    %c12_354 = arith.constant 12 : index
    %895 = memref.load %arg6[%c12_354] : memref<96xf32, #tpu.memory_space<smem>>
    %896 = vector.broadcast %895 : f32 to vector<6x6x12xf32>
    %897 = arith.mulf %896, %894 : vector<6x6x12xf32>
    %898 = arith.addf %891, %897 : vector<6x6x12xf32>
    %899 = vector.extract_strided_slice %893 {offsets = [1, 0, 0], sizes = [6, 6, 12], strides = [1, 1, 1]} : vector<8x6x12xf32> to vector<6x6x12xf32>
    %c44_355 = arith.constant 44 : index
    %900 = memref.load %arg6[%c44_355] : memref<96xf32, #tpu.memory_space<smem>>
    %901 = vector.broadcast %900 : f32 to vector<6x6x12xf32>
    %902 = arith.mulf %901, %899 : vector<6x6x12xf32>
    %903 = arith.addf %898, %902 : vector<6x6x12xf32>
    %904 = vector.extract_strided_slice %893 {offsets = [2, 0, 0], sizes = [6, 6, 12], strides = [1, 1, 1]} : vector<8x6x12xf32> to vector<6x6x12xf32>
    %c76 = arith.constant 76 : index
    %905 = memref.load %arg6[%c76] : memref<96xf32, #tpu.memory_space<smem>>
    %906 = vector.broadcast %905 : f32 to vector<6x6x12xf32>
    %907 = arith.mulf %906, %904 : vector<6x6x12xf32>
    %908 = arith.addf %903, %907 : vector<6x6x12xf32>
    %c2_356 = arith.constant 2 : index
    %c0_357 = arith.constant 0 : index
    %c0_358 = arith.constant 0 : index
    %c0_359 = arith.constant 0 : index
    %909 = vector.load %arg10[%c2_356, %c0_357, %c0_358, %c0_359] : memref<4x8x6x12xf32, #tpu.memory_space<vmem>>, vector<1x8x6x12xf32>
    %910 = vector.shape_cast %909 : vector<1x8x6x12xf32> to vector<8x6x12xf32>
    %911 = vector.extract_strided_slice %910 {offsets = [0, 0, 0], sizes = [6, 6, 12], strides = [1, 1, 1]} : vector<8x6x12xf32> to vector<6x6x12xf32>
    %c20_360 = arith.constant 20 : index
    %912 = memref.load %arg6[%c20_360] : memref<96xf32, #tpu.memory_space<smem>>
    %913 = vector.broadcast %912 : f32 to vector<6x6x12xf32>
    %914 = arith.mulf %913, %911 : vector<6x6x12xf32>
    %915 = arith.addf %908, %914 : vector<6x6x12xf32>
    %916 = vector.extract_strided_slice %910 {offsets = [1, 0, 0], sizes = [6, 6, 12], strides = [1, 1, 1]} : vector<8x6x12xf32> to vector<6x6x12xf32>
    %c52 = arith.constant 52 : index
    %917 = memref.load %arg6[%c52] : memref<96xf32, #tpu.memory_space<smem>>
    %918 = vector.broadcast %917 : f32 to vector<6x6x12xf32>
    %919 = arith.mulf %918, %916 : vector<6x6x12xf32>
    %920 = arith.addf %915, %919 : vector<6x6x12xf32>
    %921 = vector.extract_strided_slice %910 {offsets = [2, 0, 0], sizes = [6, 6, 12], strides = [1, 1, 1]} : vector<8x6x12xf32> to vector<6x6x12xf32>
    %c84 = arith.constant 84 : index
    %922 = memref.load %arg6[%c84] : memref<96xf32, #tpu.memory_space<smem>>
    %923 = vector.broadcast %922 : f32 to vector<6x6x12xf32>
    %924 = arith.mulf %923, %921 : vector<6x6x12xf32>
    %925 = arith.addf %920, %924 : vector<6x6x12xf32>
    %c3_361 = arith.constant 3 : index
    %c0_362 = arith.constant 0 : index
    %c0_363 = arith.constant 0 : index
    %c0_364 = arith.constant 0 : index
    %926 = vector.load %arg10[%c3_361, %c0_362, %c0_363, %c0_364] : memref<4x8x6x12xf32, #tpu.memory_space<vmem>>, vector<1x8x6x12xf32>
    %927 = vector.shape_cast %926 : vector<1x8x6x12xf32> to vector<8x6x12xf32>
    %928 = vector.extract_strided_slice %927 {offsets = [0, 0, 0], sizes = [6, 6, 12], strides = [1, 1, 1]} : vector<8x6x12xf32> to vector<6x6x12xf32>
    %c28_365 = arith.constant 28 : index
    %929 = memref.load %arg6[%c28_365] : memref<96xf32, #tpu.memory_space<smem>>
    %930 = vector.broadcast %929 : f32 to vector<6x6x12xf32>
    %931 = arith.mulf %930, %928 : vector<6x6x12xf32>
    %932 = arith.addf %925, %931 : vector<6x6x12xf32>
    %933 = vector.extract_strided_slice %927 {offsets = [1, 0, 0], sizes = [6, 6, 12], strides = [1, 1, 1]} : vector<8x6x12xf32> to vector<6x6x12xf32>
    %c60 = arith.constant 60 : index
    %934 = memref.load %arg6[%c60] : memref<96xf32, #tpu.memory_space<smem>>
    %935 = vector.broadcast %934 : f32 to vector<6x6x12xf32>
    %936 = arith.mulf %935, %933 : vector<6x6x12xf32>
    %937 = arith.addf %932, %936 : vector<6x6x12xf32>
    %938 = vector.extract_strided_slice %927 {offsets = [2, 0, 0], sizes = [6, 6, 12], strides = [1, 1, 1]} : vector<8x6x12xf32> to vector<6x6x12xf32>
    %c92 = arith.constant 92 : index
    %939 = memref.load %arg6[%c92] : memref<96xf32, #tpu.memory_space<smem>>
    %940 = vector.broadcast %939 : f32 to vector<6x6x12xf32>
    %941 = arith.mulf %940, %938 : vector<6x6x12xf32>
    %942 = arith.addf %937, %941 : vector<6x6x12xf32>
    %c4_366 = arith.constant 4 : index
    %943 = memref.load %arg7[%c4_366] : memref<8xf32, #tpu.memory_space<smem>>
    %944 = vector.broadcast %943 : f32 to vector<6x6x12xf32>
    %945 = arith.addf %942, %944 : vector<6x6x12xf32>
    %c0_367 = arith.constant 0 : index
    %c4_368 = arith.constant 4 : index
    %c0_369 = arith.constant 0 : index
    %c0_370 = arith.constant 0 : index
    %c0_371 = arith.constant 0 : index
    %946 = vector.load %arg8[%c0_367, %c4_368, %c0_369, %c0_370, %c0_371] : memref<1x8x6x6x12xf32, #tpu.memory_space<vmem>>, vector<1x1x6x6x12xf32>
    %947 = vector.shape_cast %946 : vector<1x1x6x6x12xf32> to vector<6x6x12xf32>
    %948 = vector.shape_cast %945 : vector<6x6x12xf32> to vector<1x1x6x6x12xf32>
    tpu.vector_store %arg8[%c0_367, %c4_368, %c0_369, %c0_370, %c0_371], %948 {strides = array<i32>} : memref<1x8x6x6x12xf32, #tpu.memory_space<vmem>>, vector<1x1x6x6x12xf32>,
    %c0_372 = arith.constant 0 : index
    %c0_373 = arith.constant 0 : index
    %c0_374 = arith.constant 0 : index
    %c0_375 = arith.constant 0 : index
    %949 = vector.load %arg10[%c0_372, %c0_373, %c0_374, %c0_375] : memref<4x8x6x12xf32, #tpu.memory_space<vmem>>, vector<1x8x6x12xf32>
    %950 = vector.shape_cast %949 : vector<1x8x6x12xf32> to vector<8x6x12xf32>
    %951 = vector.extract_strided_slice %950 {offsets = [0, 0, 0], sizes = [6, 6, 12], strides = [1, 1, 1]} : vector<8x6x12xf32> to vector<6x6x12xf32>
    %c5_376 = arith.constant 5 : index
    %952 = memref.load %arg6[%c5_376] : memref<96xf32, #tpu.memory_space<smem>>
    %953 = vector.broadcast %952 : f32 to vector<6x6x12xf32>
    %954 = arith.mulf %953, %951 : vector<6x6x12xf32>
    %955 = vector.extract_strided_slice %950 {offsets = [1, 0, 0], sizes = [6, 6, 12], strides = [1, 1, 1]} : vector<8x6x12xf32> to vector<6x6x12xf32>
    %c37_377 = arith.constant 37 : index
    %956 = memref.load %arg6[%c37_377] : memref<96xf32, #tpu.memory_space<smem>>
    %957 = vector.broadcast %956 : f32 to vector<6x6x12xf32>
    %958 = arith.mulf %957, %955 : vector<6x6x12xf32>
    %959 = arith.addf %954, %958 : vector<6x6x12xf32>
    %960 = vector.extract_strided_slice %950 {offsets = [2, 0, 0], sizes = [6, 6, 12], strides = [1, 1, 1]} : vector<8x6x12xf32> to vector<6x6x12xf32>
    %c69 = arith.constant 69 : index
    %961 = memref.load %arg6[%c69] : memref<96xf32, #tpu.memory_space<smem>>
    %962 = vector.broadcast %961 : f32 to vector<6x6x12xf32>
    %963 = arith.mulf %962, %960 : vector<6x6x12xf32>
    %964 = arith.addf %959, %963 : vector<6x6x12xf32>
    %c1_378 = arith.constant 1 : index
    %c0_379 = arith.constant 0 : index
    %c0_380 = arith.constant 0 : index
    %c0_381 = arith.constant 0 : index
    %965 = vector.load %arg10[%c1_378, %c0_379, %c0_380, %c0_381] : memref<4x8x6x12xf32, #tpu.memory_space<vmem>>, vector<1x8x6x12xf32>
    %966 = vector.shape_cast %965 : vector<1x8x6x12xf32> to vector<8x6x12xf32>
    %967 = vector.extract_strided_slice %966 {offsets = [0, 0, 0], sizes = [6, 6, 12], strides = [1, 1, 1]} : vector<8x6x12xf32> to vector<6x6x12xf32>
    %c13_382 = arith.constant 13 : index
    %968 = memref.load %arg6[%c13_382] : memref<96xf32, #tpu.memory_space<smem>>
    %969 = vector.broadcast %968 : f32 to vector<6x6x12xf32>
    %970 = arith.mulf %969, %967 : vector<6x6x12xf32>
    %971 = arith.addf %964, %970 : vector<6x6x12xf32>
    %972 = vector.extract_strided_slice %966 {offsets = [1, 0, 0], sizes = [6, 6, 12], strides = [1, 1, 1]} : vector<8x6x12xf32> to vector<6x6x12xf32>
    %c45_383 = arith.constant 45 : index
    %973 = memref.load %arg6[%c45_383] : memref<96xf32, #tpu.memory_space<smem>>
    %974 = vector.broadcast %973 : f32 to vector<6x6x12xf32>
    %975 = arith.mulf %974, %972 : vector<6x6x12xf32>
    %976 = arith.addf %971, %975 : vector<6x6x12xf32>
    %977 = vector.extract_strided_slice %966 {offsets = [2, 0, 0], sizes = [6, 6, 12], strides = [1, 1, 1]} : vector<8x6x12xf32> to vector<6x6x12xf32>
    %c77 = arith.constant 77 : index
    %978 = memref.load %arg6[%c77] : memref<96xf32, #tpu.memory_space<smem>>
    %979 = vector.broadcast %978 : f32 to vector<6x6x12xf32>
    %980 = arith.mulf %979, %977 : vector<6x6x12xf32>
    %981 = arith.addf %976, %980 : vector<6x6x12xf32>
    %c2_384 = arith.constant 2 : index
    %c0_385 = arith.constant 0 : index
    %c0_386 = arith.constant 0 : index
    %c0_387 = arith.constant 0 : index
    %982 = vector.load %arg10[%c2_384, %c0_385, %c0_386, %c0_387] : memref<4x8x6x12xf32, #tpu.memory_space<vmem>>, vector<1x8x6x12xf32>
    %983 = vector.shape_cast %982 : vector<1x8x6x12xf32> to vector<8x6x12xf32>
    %984 = vector.extract_strided_slice %983 {offsets = [0, 0, 0], sizes = [6, 6, 12], strides = [1, 1, 1]} : vector<8x6x12xf32> to vector<6x6x12xf32>
    %c21_388 = arith.constant 21 : index
    %985 = memref.load %arg6[%c21_388] : memref<96xf32, #tpu.memory_space<smem>>
    %986 = vector.broadcast %985 : f32 to vector<6x6x12xf32>
    %987 = arith.mulf %986, %984 : vector<6x6x12xf32>
    %988 = arith.addf %981, %987 : vector<6x6x12xf32>
    %989 = vector.extract_strided_slice %983 {offsets = [1, 0, 0], sizes = [6, 6, 12], strides = [1, 1, 1]} : vector<8x6x12xf32> to vector<6x6x12xf32>
    %c53 = arith.constant 53 : index
    %990 = memref.load %arg6[%c53] : memref<96xf32, #tpu.memory_space<smem>>
    %991 = vector.broadcast %990 : f32 to vector<6x6x12xf32>
    %992 = arith.mulf %991, %989 : vector<6x6x12xf32>
    %993 = arith.addf %988, %992 : vector<6x6x12xf32>
    %994 = vector.extract_strided_slice %983 {offsets = [2, 0, 0], sizes = [6, 6, 12], strides = [1, 1, 1]} : vector<8x6x12xf32> to vector<6x6x12xf32>
    %c85 = arith.constant 85 : index
    %995 = memref.load %arg6[%c85] : memref<96xf32, #tpu.memory_space<smem>>
    %996 = vector.broadcast %995 : f32 to vector<6x6x12xf32>
    %997 = arith.mulf %996, %994 : vector<6x6x12xf32>
    %998 = arith.addf %993, %997 : vector<6x6x12xf32>
    %c3_389 = arith.constant 3 : index
    %c0_390 = arith.constant 0 : index
    %c0_391 = arith.constant 0 : index
    %c0_392 = arith.constant 0 : index
    %999 = vector.load %arg10[%c3_389, %c0_390, %c0_391, %c0_392] : memref<4x8x6x12xf32, #tpu.memory_space<vmem>>, vector<1x8x6x12xf32>
    %1000 = vector.shape_cast %999 : vector<1x8x6x12xf32> to vector<8x6x12xf32>
    %1001 = vector.extract_strided_slice %1000 {offsets = [0, 0, 0], sizes = [6, 6, 12], strides = [1, 1, 1]} : vector<8x6x12xf32> to vector<6x6x12xf32>
    %c29_393 = arith.constant 29 : index
    %1002 = memref.load %arg6[%c29_393] : memref<96xf32, #tpu.memory_space<smem>>
    %1003 = vector.broadcast %1002 : f32 to vector<6x6x12xf32>
    %1004 = arith.mulf %1003, %1001 : vector<6x6x12xf32>
    %1005 = arith.addf %998, %1004 : vector<6x6x12xf32>
    %1006 = vector.extract_strided_slice %1000 {offsets = [1, 0, 0], sizes = [6, 6, 12], strides = [1, 1, 1]} : vector<8x6x12xf32> to vector<6x6x12xf32>
    %c61 = arith.constant 61 : index
    %1007 = memref.load %arg6[%c61] : memref<96xf32, #tpu.memory_space<smem>>
    %1008 = vector.broadcast %1007 : f32 to vector<6x6x12xf32>
    %1009 = arith.mulf %1008, %1006 : vector<6x6x12xf32>
    %1010 = arith.addf %1005, %1009 : vector<6x6x12xf32>
    %1011 = vector.extract_strided_slice %1000 {offsets = [2, 0, 0], sizes = [6, 6, 12], strides = [1, 1, 1]} : vector<8x6x12xf32> to vector<6x6x12xf32>
    %c93 = arith.constant 93 : index
    %1012 = memref.load %arg6[%c93] : memref<96xf32, #tpu.memory_space<smem>>
    %1013 = vector.broadcast %1012 : f32 to vector<6x6x12xf32>
    %1014 = arith.mulf %1013, %1011 : vector<6x6x12xf32>
    %1015 = arith.addf %1010, %1014 : vector<6x6x12xf32>
    %c5_394 = arith.constant 5 : index
    %1016 = memref.load %arg7[%c5_394] : memref<8xf32, #tpu.memory_space<smem>>
    %1017 = vector.broadcast %1016 : f32 to vector<6x6x12xf32>
    %1018 = arith.addf %1015, %1017 : vector<6x6x12xf32>
    %c0_395 = arith.constant 0 : index
    %c5_396 = arith.constant 5 : index
    %c0_397 = arith.constant 0 : index
    %c0_398 = arith.constant 0 : index
    %c0_399 = arith.constant 0 : index
    %1019 = vector.load %arg8[%c0_395, %c5_396, %c0_397, %c0_398, %c0_399] : memref<1x8x6x6x12xf32, #tpu.memory_space<vmem>>, vector<1x1x6x6x12xf32>
    %1020 = vector.shape_cast %1019 : vector<1x1x6x6x12xf32> to vector<6x6x12xf32>
    %1021 = vector.shape_cast %1018 : vector<6x6x12xf32> to vector<1x1x6x6x12xf32>
    tpu.vector_store %arg8[%c0_395, %c5_396, %c0_397, %c0_398, %c0_399], %1021 {strides = array<i32>} : memref<1x8x6x6x12xf32, #tpu.memory_space<vmem>>, vector<1x1x6x6x12xf32>,
    %c0_400 = arith.constant 0 : index
    %c0_401 = arith.constant 0 : index
    %c0_402 = arith.constant 0 : index
    %c0_403 = arith.constant 0 : index
    %1022 = vector.load %arg10[%c0_400, %c0_401, %c0_402, %c0_403] : memref<4x8x6x12xf32, #tpu.memory_space<vmem>>, vector<1x8x6x12xf32>
    %1023 = vector.shape_cast %1022 : vector<1x8x6x12xf32> to vector<8x6x12xf32>
    %1024 = vector.extract_strided_slice %1023 {offsets = [0, 0, 0], sizes = [6, 6, 12], strides = [1, 1, 1]} : vector<8x6x12xf32> to vector<6x6x12xf32>
    %c6_404 = arith.constant 6 : index
    %1025 = memref.load %arg6[%c6_404] : memref<96xf32, #tpu.memory_space<smem>>
    %1026 = vector.broadcast %1025 : f32 to vector<6x6x12xf32>
    %1027 = arith.mulf %1026, %1024 : vector<6x6x12xf32>
    %1028 = vector.extract_strided_slice %1023 {offsets = [1, 0, 0], sizes = [6, 6, 12], strides = [1, 1, 1]} : vector<8x6x12xf32> to vector<6x6x12xf32>
    %c38_405 = arith.constant 38 : index
    %1029 = memref.load %arg6[%c38_405] : memref<96xf32, #tpu.memory_space<smem>>
    %1030 = vector.broadcast %1029 : f32 to vector<6x6x12xf32>
    %1031 = arith.mulf %1030, %1028 : vector<6x6x12xf32>
    %1032 = arith.addf %1027, %1031 : vector<6x6x12xf32>
    %1033 = vector.extract_strided_slice %1023 {offsets = [2, 0, 0], sizes = [6, 6, 12], strides = [1, 1, 1]} : vector<8x6x12xf32> to vector<6x6x12xf32>
    %c70 = arith.constant 70 : index
    %1034 = memref.load %arg6[%c70] : memref<96xf32, #tpu.memory_space<smem>>
    %1035 = vector.broadcast %1034 : f32 to vector<6x6x12xf32>
    %1036 = arith.mulf %1035, %1033 : vector<6x6x12xf32>
    %1037 = arith.addf %1032, %1036 : vector<6x6x12xf32>
    %c1_406 = arith.constant 1 : index
    %c0_407 = arith.constant 0 : index
    %c0_408 = arith.constant 0 : index
    %c0_409 = arith.constant 0 : index
    %1038 = vector.load %arg10[%c1_406, %c0_407, %c0_408, %c0_409] : memref<4x8x6x12xf32, #tpu.memory_space<vmem>>, vector<1x8x6x12xf32>
    %1039 = vector.shape_cast %1038 : vector<1x8x6x12xf32> to vector<8x6x12xf32>
    %1040 = vector.extract_strided_slice %1039 {offsets = [0, 0, 0], sizes = [6, 6, 12], strides = [1, 1, 1]} : vector<8x6x12xf32> to vector<6x6x12xf32>
    %c14_410 = arith.constant 14 : index
    %1041 = memref.load %arg6[%c14_410] : memref<96xf32, #tpu.memory_space<smem>>
    %1042 = vector.broadcast %1041 : f32 to vector<6x6x12xf32>
    %1043 = arith.mulf %1042, %1040 : vector<6x6x12xf32>
    %1044 = arith.addf %1037, %1043 : vector<6x6x12xf32>
    %1045 = vector.extract_strided_slice %1039 {offsets = [1, 0, 0], sizes = [6, 6, 12], strides = [1, 1, 1]} : vector<8x6x12xf32> to vector<6x6x12xf32>
    %c46_411 = arith.constant 46 : index
    %1046 = memref.load %arg6[%c46_411] : memref<96xf32, #tpu.memory_space<smem>>
    %1047 = vector.broadcast %1046 : f32 to vector<6x6x12xf32>
    %1048 = arith.mulf %1047, %1045 : vector<6x6x12xf32>
    %1049 = arith.addf %1044, %1048 : vector<6x6x12xf32>
    %1050 = vector.extract_strided_slice %1039 {offsets = [2, 0, 0], sizes = [6, 6, 12], strides = [1, 1, 1]} : vector<8x6x12xf32> to vector<6x6x12xf32>
    %c78 = arith.constant 78 : index
    %1051 = memref.load %arg6[%c78] : memref<96xf32, #tpu.memory_space<smem>>
    %1052 = vector.broadcast %1051 : f32 to vector<6x6x12xf32>
    %1053 = arith.mulf %1052, %1050 : vector<6x6x12xf32>
    %1054 = arith.addf %1049, %1053 : vector<6x6x12xf32>
    %c2_412 = arith.constant 2 : index
    %c0_413 = arith.constant 0 : index
    %c0_414 = arith.constant 0 : index
    %c0_415 = arith.constant 0 : index
    %1055 = vector.load %arg10[%c2_412, %c0_413, %c0_414, %c0_415] : memref<4x8x6x12xf32, #tpu.memory_space<vmem>>, vector<1x8x6x12xf32>
    %1056 = vector.shape_cast %1055 : vector<1x8x6x12xf32> to vector<8x6x12xf32>
    %1057 = vector.extract_strided_slice %1056 {offsets = [0, 0, 0], sizes = [6, 6, 12], strides = [1, 1, 1]} : vector<8x6x12xf32> to vector<6x6x12xf32>
    %c22_416 = arith.constant 22 : index
    %1058 = memref.load %arg6[%c22_416] : memref<96xf32, #tpu.memory_space<smem>>
    %1059 = vector.broadcast %1058 : f32 to vector<6x6x12xf32>
    %1060 = arith.mulf %1059, %1057 : vector<6x6x12xf32>
    %1061 = arith.addf %1054, %1060 : vector<6x6x12xf32>
    %1062 = vector.extract_strided_slice %1056 {offsets = [1, 0, 0], sizes = [6, 6, 12], strides = [1, 1, 1]} : vector<8x6x12xf32> to vector<6x6x12xf32>
    %c54 = arith.constant 54 : index
    %1063 = memref.load %arg6[%c54] : memref<96xf32, #tpu.memory_space<smem>>
    %1064 = vector.broadcast %1063 : f32 to vector<6x6x12xf32>
    %1065 = arith.mulf %1064, %1062 : vector<6x6x12xf32>
    %1066 = arith.addf %1061, %1065 : vector<6x6x12xf32>
    %1067 = vector.extract_strided_slice %1056 {offsets = [2, 0, 0], sizes = [6, 6, 12], strides = [1, 1, 1]} : vector<8x6x12xf32> to vector<6x6x12xf32>
    %c86 = arith.constant 86 : index
    %1068 = memref.load %arg6[%c86] : memref<96xf32, #tpu.memory_space<smem>>
    %1069 = vector.broadcast %1068 : f32 to vector<6x6x12xf32>
    %1070 = arith.mulf %1069, %1067 : vector<6x6x12xf32>
    %1071 = arith.addf %1066, %1070 : vector<6x6x12xf32>
    %c3_417 = arith.constant 3 : index
    %c0_418 = arith.constant 0 : index
    %c0_419 = arith.constant 0 : index
    %c0_420 = arith.constant 0 : index
    %1072 = vector.load %arg10[%c3_417, %c0_418, %c0_419, %c0_420] : memref<4x8x6x12xf32, #tpu.memory_space<vmem>>, vector<1x8x6x12xf32>
    %1073 = vector.shape_cast %1072 : vector<1x8x6x12xf32> to vector<8x6x12xf32>
    %1074 = vector.extract_strided_slice %1073 {offsets = [0, 0, 0], sizes = [6, 6, 12], strides = [1, 1, 1]} : vector<8x6x12xf32> to vector<6x6x12xf32>
    %c30_421 = arith.constant 30 : index
    %1075 = memref.load %arg6[%c30_421] : memref<96xf32, #tpu.memory_space<smem>>
    %1076 = vector.broadcast %1075 : f32 to vector<6x6x12xf32>
    %1077 = arith.mulf %1076, %1074 : vector<6x6x12xf32>
    %1078 = arith.addf %1071, %1077 : vector<6x6x12xf32>
    %1079 = vector.extract_strided_slice %1073 {offsets = [1, 0, 0], sizes = [6, 6, 12], strides = [1, 1, 1]} : vector<8x6x12xf32> to vector<6x6x12xf32>
    %c62 = arith.constant 62 : index
    %1080 = memref.load %arg6[%c62] : memref<96xf32, #tpu.memory_space<smem>>
    %1081 = vector.broadcast %1080 : f32 to vector<6x6x12xf32>
    %1082 = arith.mulf %1081, %1079 : vector<6x6x12xf32>
    %1083 = arith.addf %1078, %1082 : vector<6x6x12xf32>
    %1084 = vector.extract_strided_slice %1073 {offsets = [2, 0, 0], sizes = [6, 6, 12], strides = [1, 1, 1]} : vector<8x6x12xf32> to vector<6x6x12xf32>
    %c94 = arith.constant 94 : index
    %1085 = memref.load %arg6[%c94] : memref<96xf32, #tpu.memory_space<smem>>
    %1086 = vector.broadcast %1085 : f32 to vector<6x6x12xf32>
    %1087 = arith.mulf %1086, %1084 : vector<6x6x12xf32>
    %1088 = arith.addf %1083, %1087 : vector<6x6x12xf32>
    %c6_422 = arith.constant 6 : index
    %1089 = memref.load %arg7[%c6_422] : memref<8xf32, #tpu.memory_space<smem>>
    %1090 = vector.broadcast %1089 : f32 to vector<6x6x12xf32>
    %1091 = arith.addf %1088, %1090 : vector<6x6x12xf32>
    %c0_423 = arith.constant 0 : index
    %c6_424 = arith.constant 6 : index
    %c0_425 = arith.constant 0 : index
    %c0_426 = arith.constant 0 : index
    %c0_427 = arith.constant 0 : index
    %1092 = vector.load %arg8[%c0_423, %c6_424, %c0_425, %c0_426, %c0_427] : memref<1x8x6x6x12xf32, #tpu.memory_space<vmem>>, vector<1x1x6x6x12xf32>
    %1093 = vector.shape_cast %1092 : vector<1x1x6x6x12xf32> to vector<6x6x12xf32>
    %1094 = vector.shape_cast %1091 : vector<6x6x12xf32> to vector<1x1x6x6x12xf32>
    tpu.vector_store %arg8[%c0_423, %c6_424, %c0_425, %c0_426, %c0_427], %1094 {strides = array<i32>} : memref<1x8x6x6x12xf32, #tpu.memory_space<vmem>>, vector<1x1x6x6x12xf32>,
    %c0_428 = arith.constant 0 : index
    %c0_429 = arith.constant 0 : index
    %c0_430 = arith.constant 0 : index
    %c0_431 = arith.constant 0 : index
    %1095 = vector.load %arg10[%c0_428, %c0_429, %c0_430, %c0_431] : memref<4x8x6x12xf32, #tpu.memory_space<vmem>>, vector<1x8x6x12xf32>
    %1096 = vector.shape_cast %1095 : vector<1x8x6x12xf32> to vector<8x6x12xf32>
    %1097 = vector.extract_strided_slice %1096 {offsets = [0, 0, 0], sizes = [6, 6, 12], strides = [1, 1, 1]} : vector<8x6x12xf32> to vector<6x6x12xf32>
    %c7_432 = arith.constant 7 : index
    %1098 = memref.load %arg6[%c7_432] : memref<96xf32, #tpu.memory_space<smem>>
    %1099 = vector.broadcast %1098 : f32 to vector<6x6x12xf32>
    %1100 = arith.mulf %1099, %1097 : vector<6x6x12xf32>
    %1101 = vector.extract_strided_slice %1096 {offsets = [1, 0, 0], sizes = [6, 6, 12], strides = [1, 1, 1]} : vector<8x6x12xf32> to vector<6x6x12xf32>
    %c39_433 = arith.constant 39 : index
    %1102 = memref.load %arg6[%c39_433] : memref<96xf32, #tpu.memory_space<smem>>
    %1103 = vector.broadcast %1102 : f32 to vector<6x6x12xf32>
    %1104 = arith.mulf %1103, %1101 : vector<6x6x12xf32>
    %1105 = arith.addf %1100, %1104 : vector<6x6x12xf32>
    %1106 = vector.extract_strided_slice %1096 {offsets = [2, 0, 0], sizes = [6, 6, 12], strides = [1, 1, 1]} : vector<8x6x12xf32> to vector<6x6x12xf32>
    %c71 = arith.constant 71 : index
    %1107 = memref.load %arg6[%c71] : memref<96xf32, #tpu.memory_space<smem>>
    %1108 = vector.broadcast %1107 : f32 to vector<6x6x12xf32>
    %1109 = arith.mulf %1108, %1106 : vector<6x6x12xf32>
    %1110 = arith.addf %1105, %1109 : vector<6x6x12xf32>
    %c1_434 = arith.constant 1 : index
    %c0_435 = arith.constant 0 : index
    %c0_436 = arith.constant 0 : index
    %c0_437 = arith.constant 0 : index
    %1111 = vector.load %arg10[%c1_434, %c0_435, %c0_436, %c0_437] : memref<4x8x6x12xf32, #tpu.memory_space<vmem>>, vector<1x8x6x12xf32>
    %1112 = vector.shape_cast %1111 : vector<1x8x6x12xf32> to vector<8x6x12xf32>
    %1113 = vector.extract_strided_slice %1112 {offsets = [0, 0, 0], sizes = [6, 6, 12], strides = [1, 1, 1]} : vector<8x6x12xf32> to vector<6x6x12xf32>
    %c15_438 = arith.constant 15 : index
    %1114 = memref.load %arg6[%c15_438] : memref<96xf32, #tpu.memory_space<smem>>
    %1115 = vector.broadcast %1114 : f32 to vector<6x6x12xf32>
    %1116 = arith.mulf %1115, %1113 : vector<6x6x12xf32>
    %1117 = arith.addf %1110, %1116 : vector<6x6x12xf32>
    %1118 = vector.extract_strided_slice %1112 {offsets = [1, 0, 0], sizes = [6, 6, 12], strides = [1, 1, 1]} : vector<8x6x12xf32> to vector<6x6x12xf32>
    %c47_439 = arith.constant 47 : index
    %1119 = memref.load %arg6[%c47_439] : memref<96xf32, #tpu.memory_space<smem>>
    %1120 = vector.broadcast %1119 : f32 to vector<6x6x12xf32>
    %1121 = arith.mulf %1120, %1118 : vector<6x6x12xf32>
    %1122 = arith.addf %1117, %1121 : vector<6x6x12xf32>
    %1123 = vector.extract_strided_slice %1112 {offsets = [2, 0, 0], sizes = [6, 6, 12], strides = [1, 1, 1]} : vector<8x6x12xf32> to vector<6x6x12xf32>
    %c79 = arith.constant 79 : index
    %1124 = memref.load %arg6[%c79] : memref<96xf32, #tpu.memory_space<smem>>
    %1125 = vector.broadcast %1124 : f32 to vector<6x6x12xf32>
    %1126 = arith.mulf %1125, %1123 : vector<6x6x12xf32>
    %1127 = arith.addf %1122, %1126 : vector<6x6x12xf32>
    %c2_440 = arith.constant 2 : index
    %c0_441 = arith.constant 0 : index
    %c0_442 = arith.constant 0 : index
    %c0_443 = arith.constant 0 : index
    %1128 = vector.load %arg10[%c2_440, %c0_441, %c0_442, %c0_443] : memref<4x8x6x12xf32, #tpu.memory_space<vmem>>, vector<1x8x6x12xf32>
    %1129 = vector.shape_cast %1128 : vector<1x8x6x12xf32> to vector<8x6x12xf32>
    %1130 = vector.extract_strided_slice %1129 {offsets = [0, 0, 0], sizes = [6, 6, 12], strides = [1, 1, 1]} : vector<8x6x12xf32> to vector<6x6x12xf32>
    %c23_444 = arith.constant 23 : index
    %1131 = memref.load %arg6[%c23_444] : memref<96xf32, #tpu.memory_space<smem>>
    %1132 = vector.broadcast %1131 : f32 to vector<6x6x12xf32>
    %1133 = arith.mulf %1132, %1130 : vector<6x6x12xf32>
    %1134 = arith.addf %1127, %1133 : vector<6x6x12xf32>
    %1135 = vector.extract_strided_slice %1129 {offsets = [1, 0, 0], sizes = [6, 6, 12], strides = [1, 1, 1]} : vector<8x6x12xf32> to vector<6x6x12xf32>
    %c55 = arith.constant 55 : index
    %1136 = memref.load %arg6[%c55] : memref<96xf32, #tpu.memory_space<smem>>
    %1137 = vector.broadcast %1136 : f32 to vector<6x6x12xf32>
    %1138 = arith.mulf %1137, %1135 : vector<6x6x12xf32>
    %1139 = arith.addf %1134, %1138 : vector<6x6x12xf32>
    %1140 = vector.extract_strided_slice %1129 {offsets = [2, 0, 0], sizes = [6, 6, 12], strides = [1, 1, 1]} : vector<8x6x12xf32> to vector<6x6x12xf32>
    %c87 = arith.constant 87 : index
    %1141 = memref.load %arg6[%c87] : memref<96xf32, #tpu.memory_space<smem>>
    %1142 = vector.broadcast %1141 : f32 to vector<6x6x12xf32>
    %1143 = arith.mulf %1142, %1140 : vector<6x6x12xf32>
    %1144 = arith.addf %1139, %1143 : vector<6x6x12xf32>
    %c3_445 = arith.constant 3 : index
    %c0_446 = arith.constant 0 : index
    %c0_447 = arith.constant 0 : index
    %c0_448 = arith.constant 0 : index
    %1145 = vector.load %arg10[%c3_445, %c0_446, %c0_447, %c0_448] : memref<4x8x6x12xf32, #tpu.memory_space<vmem>>, vector<1x8x6x12xf32>
    %1146 = vector.shape_cast %1145 : vector<1x8x6x12xf32> to vector<8x6x12xf32>
    %1147 = vector.extract_strided_slice %1146 {offsets = [0, 0, 0], sizes = [6, 6, 12], strides = [1, 1, 1]} : vector<8x6x12xf32> to vector<6x6x12xf32>
    %c31_449 = arith.constant 31 : index
    %1148 = memref.load %arg6[%c31_449] : memref<96xf32, #tpu.memory_space<smem>>
    %1149 = vector.broadcast %1148 : f32 to vector<6x6x12xf32>
    %1150 = arith.mulf %1149, %1147 : vector<6x6x12xf32>
    %1151 = arith.addf %1144, %1150 : vector<6x6x12xf32>
    %1152 = vector.extract_strided_slice %1146 {offsets = [1, 0, 0], sizes = [6, 6, 12], strides = [1, 1, 1]} : vector<8x6x12xf32> to vector<6x6x12xf32>
    %c63 = arith.constant 63 : index
    %1153 = memref.load %arg6[%c63] : memref<96xf32, #tpu.memory_space<smem>>
    %1154 = vector.broadcast %1153 : f32 to vector<6x6x12xf32>
    %1155 = arith.mulf %1154, %1152 : vector<6x6x12xf32>
    %1156 = arith.addf %1151, %1155 : vector<6x6x12xf32>
    %1157 = vector.extract_strided_slice %1146 {offsets = [2, 0, 0], sizes = [6, 6, 12], strides = [1, 1, 1]} : vector<8x6x12xf32> to vector<6x6x12xf32>
    %c95 = arith.constant 95 : index
    %1158 = memref.load %arg6[%c95] : memref<96xf32, #tpu.memory_space<smem>>
    %1159 = vector.broadcast %1158 : f32 to vector<6x6x12xf32>
    %1160 = arith.mulf %1159, %1157 : vector<6x6x12xf32>
    %1161 = arith.addf %1156, %1160 : vector<6x6x12xf32>
    %c7_450 = arith.constant 7 : index
    %1162 = memref.load %arg7[%c7_450] : memref<8xf32, #tpu.memory_space<smem>>
    %1163 = vector.broadcast %1162 : f32 to vector<6x6x12xf32>
    %1164 = arith.addf %1161, %1163 : vector<6x6x12xf32>
    %c0_451 = arith.constant 0 : index
    %c7_452 = arith.constant 7 : index
    %c0_453 = arith.constant 0 : index
    %c0_454 = arith.constant 0 : index
    %c0_455 = arith.constant 0 : index
    %1165 = vector.load %arg8[%c0_451, %c7_452, %c0_453, %c0_454, %c0_455] : memref<1x8x6x6x12xf32, #tpu.memory_space<vmem>>, vector<1x1x6x6x12xf32>
    %1166 = vector.shape_cast %1165 : vector<1x1x6x6x12xf32> to vector<6x6x12xf32>
    %1167 = vector.shape_cast %1164 : vector<6x6x12xf32> to vector<1x1x6x6x12xf32>
    tpu.vector_store %arg8[%c0_451, %c7_452, %c0_453, %c0_454, %c0_455], %1167 {strides = array<i32>} : memref<1x8x6x6x12xf32, #tpu.memory_space<vmem>>, vector<1x1x6x6x12xf32>,
    return
  }
  func.func @transform_0(%arg0: i32) -> (i32, i32, i32, i32, i32) {
    %c0_i32 = arith.constant 0 : i32
    %c0_i32_0 = arith.constant 0 : i32
    %c0_i32_1 = arith.constant 0 : i32
    %c0_i32_2 = arith.constant 0 : i32
    %c0_i32_3 = arith.constant 0 : i32
    return %arg0, %c0_i32, %c0_i32_0, %c0_i32_1, %c0_i32_2 : i32, i32, i32, i32, i32
  }
  func.func @transform_1(%arg0: i32) -> i32 {
    %c0_i32 = arith.constant 0 : i32
    %c0_i32_0 = arith.constant 0 : i32
    return %c0_i32 : i32
  }
  func.func @transform_2(%arg0: i32) -> i32 {
    %c0_i32 = arith.constant 0 : i32
    %c0_i32_0 = arith.constant 0 : i32
    return %c0_i32 : i32
  }
  func.func @transform_3(%arg0: i32) -> i32 {
    %c0_i32 = arith.constant 0 : i32
    %c0_i32_0 = arith.constant 0 : i32
    return %c0_i32 : i32
  }
  func.func @transform_4(%arg0: i32) -> i32 {
    %c0_i32 = arith.constant 0 : i32
    %c0_i32_0 = arith.constant 0 : i32
    return %c0_i32 : i32
  }
  func.func @transform_5(%arg0: i32) -> i32 {
    %c0_i32 = arith.constant 0 : i32
    %c0_i32_0 = arith.constant 0 : i32
    return %c0_i32 : i32
  }
  func.func @transform_6(%arg0: i32) -> i32 {
    %c0_i32 = arith.constant 0 : i32
    %c0_i32_0 = arith.constant 0 : i32
    return %c0_i32 : i32
  }
  func.func @transform_7(%arg0: i32) -> (i32, i32, i32, i32, i32) {
    %c0_i32 = arith.constant 0 : i32
    %c0_i32_0 = arith.constant 0 : i32
    %c0_i32_1 = arith.constant 0 : i32
    %c0_i32_2 = arith.constant 0 : i32
    %c0_i32_3 = arith.constant 0 : i32
    return %arg0, %c0_i32, %c0_i32_0, %c0_i32_1, %c0_i32_2 : i32, i32, i32, i32, i32
  }
}

</mosaic_0001>

<llo_original>
// kernel: tpu_custom_call.1
$region0: #{tpu_custom_call.1}
  #allocation0 [shape = 'u32[]', space=smem, size = 0x4, offset = 0x4, fixed_abs, tag = 'smem constant byte address 0x4 - core index']
  #allocation1 [shape = 'u32[144,128]{1,0:T(1,128)}', space=vmem, size = 0x12000, scoped, tag = 'internal scratch']
  #allocation2 [shape = 'f32[4,8,8,12]{3,2,1,0:T(8,128)}', space=vmem, size = 0x20000, scoped, tag = 'scratch operand']
  #allocation3 [shape = 'f32[4,8,6,12]{3,2,1,0:T(8,128)}', space=vmem, size = 0x20000, scoped, tag = 'scratch operand']
  %s0 = inlined_call_operand.hbm [shape: f32[1,4,8,8,16], index: 0, kind: input, shape index: {}]
  %s1 = inlined_call_operand.vmem [shape: f32[48], index: 1, kind: input, shape index: {}]
  %s2 = inlined_call_operand.vmem [shape: f32[4], index: 2, kind: input, shape index: {}]
  %s3 = inlined_call_operand.vmem [shape: f32[48], index: 3, kind: input, shape index: {}]
  %s4 = inlined_call_operand.vmem [shape: f32[4], index: 4, kind: input, shape index: {}]
  %s5 = inlined_call_operand.vmem [shape: f32[96], index: 5, kind: input, shape index: {}]
  %s6 = inlined_call_operand.vmem [shape: f32[8], index: 6, kind: input, shape index: {}]
  %s7 = inlined_call_operand.vmem [shape: f32[1,8,6,6,12], index: 7, kind: output, shape index: {}]
  %s8 = sld [smem:[#allocation0]]
  $region66: #{tpu_custom_call.1} parent=0
    _
  %s10 = ssub.s32 1, %s8
  %s11 = scalar_select 0, %s10, %s8
  $region1: #{tpu_custom_call.1} parent=0
    #allocation4 [shape = 'u8[131072]{0}', space=vmem, size = 0x20000, scoped, tag = 'input window, operand 0, single buffered']
    #allocation5 [shape = 's32[1]{0}', space=sflag, size = 0x4, scoped, tag = 'scoped memory for tpu_custom_call.1']
    #allocation6 [shape = 's32[1]{0}', space=sflag, size = 0x4, scoped, tag = 'scoped memory for tpu_custom_call.1']
    #allocation7 [shape = 'u8[512]{0}', space=smem, size = 0x200, scoped, tag = 'input window, operand 1, single buffered']
    #allocation8 [shape = 'u8[512]{0}', space=smem, size = 0x200, scoped, tag = 'input window, operand 2, single buffered']
    #allocation9 [shape = 's32[1]{0}', space=sflag, size = 0x4, scoped, tag = 'scoped memory for tpu_custom_call.1']
    #allocation10 [shape = 'u8[512]{0}', space=smem, size = 0x200, scoped, tag = 'input window, operand 3, single buffered']
    #allocation11 [shape = 'u8[512]{0}', space=smem, size = 0x200, scoped, tag = 'input window, operand 4, single buffered']
    #allocation12 [shape = 's32[1]{0}', space=sflag, size = 0x4, scoped, tag = 'scoped memory for tpu_custom_call.1']
    #allocation13 [shape = 'u8[512]{0}', space=smem, size = 0x200, scoped, tag = 'input window, operand 5, single buffered']
    #allocation14 [shape = 'u8[512]{0}', space=smem, size = 0x200, scoped, tag = 'input window, operand 6, single buffered']
    #allocation15 [shape = 's32[1]{0}', space=sflag, size = 0x4, scoped, tag = 'scoped memory for tpu_custom_call.1']
    %12 = vsyncpa [#allocation5], 0
    %13 = vsyncpa [#allocation6], 0
    %14 = vsyncpa [#allocation9], 0
    %15 = vsyncpa [#allocation12], 0
    %16 = vsyncpa [#allocation15], 0
    // Predicated region
    $region2: #{tpu_custom_call.1} parent=1 // pred_check
      _
    $region3: #{tpu_custom_call.1} parent=1 // pred_check_branch
      %18 = sbr.rel (0) target = $region5
    $region4: #{tpu_custom_call.1} parent=1 // pred_region
      %s20 = ssub.s32 4096, 4096
      %21 = vsyncadd [#allocation5], %s20
      %s22 = sshll.u32 [#allocation4], 4
      %s23 = int_to_ptr.vmem [resolvable:$true] %s22
      %28 = dma.hbm_to_vmem [thread:$0]  %s0, 4096, %s23, [#allocation5], 128, 128, 8
    $region5: #{tpu_custom_call.1} parent=1 // pred_fallthru
      _
    // Predicated region
    $region6: #{tpu_custom_call.1} parent=1 // pred_check
      _
    $region7: #{tpu_custom_call.1} parent=1 // pred_check_branch
      %30 = sbr.rel (0) target = $region9
    $region8: #{tpu_custom_call.1} parent=1 // pred_region
      %s32 = ssub.s32 16, 16
      %33 = vsyncadd [#allocation6], %s32
      %s35 = sshll.u32 %s1, 4
      %s36 = int_to_ptr.vmem [resolvable:$true] %s35
      %38 = dma.vmem_to_smem %s36, 16, [#allocation7], [#allocation6]
    $region9: #{tpu_custom_call.1} parent=1 // pred_fallthru
      _
    // Predicated region
    $region10: #{tpu_custom_call.1} parent=1 // pred_check
      _
    $region11: #{tpu_custom_call.1} parent=1 // pred_check_branch
      %40 = sbr.rel (0) target = $region13
    $region12: #{tpu_custom_call.1} parent=1 // pred_region
      %s42 = ssub.s32 16, 16
      %43 = vsyncadd [#allocation9], %s42
      %s45 = sshll.u32 %s2, 4
      %s46 = int_to_ptr.vmem [resolvable:$true] %s45
      %48 = dma.vmem_to_smem %s46, 16, [#allocation8], [#allocation9]
    $region13: #{tpu_custom_call.1} parent=1 // pred_fallthru
      _
    // Predicated region
    $region14: #{tpu_custom_call.1} parent=1 // pred_check
      _
    $region15: #{tpu_custom_call.1} parent=1 // pred_check_branch
      %50 = sbr.rel (0) target = $region17
    $region16: #{tpu_custom_call.1} parent=1 // pred_region
      %s52 = ssub.s32 16, 16
      %53 = vsyncadd [#allocation9], %s52
      %s55 = sshll.u32 %s3, 4
      %s56 = int_to_ptr.vmem [resolvable:$true] %s55
      %58 = dma.vmem_to_smem %s56, 16, [#allocation10], [#allocation9]
    $region17: #{tpu_custom_call.1} parent=1 // pred_fallthru
      _
    // Predicated region
    $region18: #{tpu_custom_call.1} parent=1 // pred_check
      _
    $region19: #{tpu_custom_call.1} parent=1 // pred_check_branch
      %60 = sbr.rel (0) target = $region21
    $region20: #{tpu_custom_call.1} parent=1 // pred_region
      %s62 = ssub.s32 16, 16
      %63 = vsyncadd [#allocation12], %s62
      %s65 = sshll.u32 %s4, 4
      %s66 = int_to_ptr.vmem [resolvable:$true] %s65
      %68 = dma.vmem_to_smem %s66, 16, [#allocation11], [#allocation12]
    $region21: #{tpu_custom_call.1} parent=1 // pred_fallthru
      _
    // Predicated region
    $region22: #{tpu_custom_call.1} parent=1 // pred_check
      _
    $region23: #{tpu_custom_call.1} parent=1 // pred_check_branch
      %70 = sbr.rel (0) target = $region25
    $region24: #{tpu_custom_call.1} parent=1 // pred_region
      %s72 = ssub.s32 16, 16
      %73 = vsyncadd [#allocation12], %s72
      %s75 = sshll.u32 %s5, 4
      %s76 = int_to_ptr.vmem [resolvable:$true] %s75
      %78 = dma.vmem_to_smem %s76, 16, [#allocation13], [#allocation12]
    $region25: #{tpu_custom_call.1} parent=1 // pred_fallthru
      _
    // Predicated region
    $region26: #{tpu_custom_call.1} parent=1 // pred_check
      _
    $region27: #{tpu_custom_call.1} parent=1 // pred_check_branch
      %80 = sbr.rel (0) target = $region29
    $region28: #{tpu_custom_call.1} parent=1 // pred_region
      %s82 = ssub.s32 16, 16
      %83 = vsyncadd [#allocation15], %s82
      %s85 = sshll.u32 %s6, 4
      %s86 = int_to_ptr.vmem [resolvable:$true] %s85
      %88 = dma.vmem_to_smem %s86, 16, [#allocation14], [#allocation15]
    $region29: #{tpu_custom_call.1} parent=1 // pred_fallthru
      _
    // Predicated region
    $region30: #{tpu_custom_call.1} parent=1 // pred_check
      _
    $region31: #{tpu_custom_call.1} parent=1 // pred_check_branch
      %90 = sbr.rel (0) target = $region33
    $region32: #{tpu_custom_call.1} parent=1 // pred_region
      %91 = dma.done [#allocation5], 4096
    $region33: #{tpu_custom_call.1} parent=1 // pred_fallthru
      _
    // Predicated region
    $region34: #{tpu_custom_call.1} parent=1 // pred_check
      _
    $region35: #{tpu_custom_call.1} parent=1 // pred_check_branch
      %93 = sbr.rel (0) target = $region37
    $region36: #{tpu_custom_call.1} parent=1 // pred_region
      %94 = dma.done [#allocation6], 16
    $region37: #{tpu_custom_call.1} parent=1 // pred_fallthru
      _
    // Predicated region
    $region38: #{tpu_custom_call.1} parent=1 // pred_check
      _
    $region39: #{tpu_custom_call.1} parent=1 // pred_check_branch
      %96 = sbr.rel (0) target = $region41
    $region40: #{tpu_custom_call.1} parent=1 // pred_region
      %97 = dma.done [#allocation9], 16
    $region41: #{tpu_custom_call.1} parent=1 // pred_fallthru
      _
    // Predicated region
    $region42: #{tpu_custom_call.1} parent=1 // pred_check
      _
    $region43: #{tpu_custom_call.1} parent=1 // pred_check_branch
      %99 = sbr.rel (0) target = $region45
    $region44: #{tpu_custom_call.1} parent=1 // pred_region
      %100 = dma.done [#allocation9], 16
    $region45: #{tpu_custom_call.1} parent=1 // pred_fallthru
      _
    // Predicated region
    $region46: #{tpu_custom_call.1} parent=1 // pred_check
      _
    $region47: #{tpu_custom_call.1} parent=1 // pred_check_branch
      %102 = sbr.rel (0) target = $region49
    $region48: #{tpu_custom_call.1} parent=1 // pred_region
      %103 = dma.done [#allocation12], 16
    $region49: #{tpu_custom_call.1} parent=1 // pred_fallthru
      _
    // Predicated region
    $region50: #{tpu_custom_call.1} parent=1 // pred_check
      _
    $region51: #{tpu_custom_call.1} parent=1 // pred_check_branch
      %105 = sbr.rel (0) target = $region53
    $region52: #{tpu_custom_call.1} parent=1 // pred_region
      %106 = dma.done [#allocation12], 16
    $region53: #{tpu_custom_call.1} parent=1 // pred_fallthru
      _
    // Predicated region
    $region54: #{tpu_custom_call.1} parent=1 // pred_check
      _
    $region55: #{tpu_custom_call.1} parent=1 // pred_check_branch
      %108 = sbr.rel (0) target = $region57
    $region56: #{tpu_custom_call.1} parent=1 // pred_region
      %109 = dma.done [#allocation15], 16
    $region57: #{tpu_custom_call.1} parent=1 // pred_fallthru
      _
    %110 = sfence
    %v111 = vld [vmem:[#allocation4] sm:$0xff]
    %v112 = vld [vmem:[#allocation4 + $0x8] sm:$0xff]
    %v113 = vld [vmem:[#allocation4 + $0x10] sm:$0xff]
    %v114 = vld [vmem:[#allocation4 + $0x18] sm:$0xff]
    %v115 = vld [vmem:[#allocation4 + $0x20] sm:$0xff]
    %v116 = vld [vmem:[#allocation4 + $0x28] sm:$0xff]
    %v117 = vld [vmem:[#allocation4 + $0x30] sm:$0xff]
    %v118 = vld [vmem:[#allocation4 + $0x38] sm:$0xff]
    %s119 = sld [smem:[#allocation7]]
    %v120 = vstv %s119
    %v121 = vmul.f32 %v120, %v111
    %v122 = vmul.f32 %v120, %v112
    %v123 = vmul.f32 %v120, %v113
    %v124 = vmul.f32 %v120, %v114
    %v125 = vmul.f32 %v120, %v115
    %v126 = vmul.f32 %v120, %v116
    %v127 = vmul.f32 %v120, %v117
    %v128 = vmul.f32 %v120, %v118
    %s129 = sld [smem:[#allocation7 + $0x10]]
    %v130 = vstv %s129
    %v131 = vmul.f32 %v130, %v111
    %v132 = vmul.f32 %v130, %v112
    %v133 = vmul.f32 %v130, %v113
    %v134 = vmul.f32 %v130, %v114
    %v135 = vmul.f32 %v130, %v115
    %v136 = vmul.f32 %v130, %v116
    %v137 = vmul.f32 %v130, %v117
    %v138 = vmul.f32 %v130, %v118
    %147 = vrot.lane.b32.xlu0 %v131, 126
    %v148 = vpop.permute.xlu0 %147
    %149 = vrot.lane.b32.xlu0 %v132, 126
    %v150 = vpop.permute.xlu0 %149
    %151 = vrot.lane.b32.xlu0 %v133, 126
    %v152 = vpop.permute.xlu0 %151
    %153 = vrot.lane.b32.xlu0 %v134, 126
    %v154 = vpop.permute.xlu0 %153
    %155 = vrot.lane.b32.xlu0 %v135, 126
    %v156 = vpop.permute.xlu0 %155
    %157 = vrot.lane.b32.xlu0 %v136, 126
    %v158 = vpop.permute.xlu0 %157
    %159 = vrot.lane.b32.xlu0 %v137, 126
    %v160 = vpop.permute.xlu0 %159
    %161 = vrot.lane.b32.xlu0 %v138, 126
    %v162 = vpop.permute.xlu0 %161
    %v171 = vadd.f32 %v121, %v148
    %v172 = vadd.f32 %v122, %v150
    %v173 = vadd.f32 %v123, %v152
    %v174 = vadd.f32 %v124, %v154
    %v175 = vadd.f32 %v125, %v156
    %v176 = vadd.f32 %v126, %v158
    %v177 = vadd.f32 %v127, %v160
    %v178 = vadd.f32 %v128, %v162
    %s179 = sld [smem:[#allocation7 + $0x20]]
    %v180 = vstv %s179
    %v181 = vmul.f32 %v180, %v111
    %v182 = vmul.f32 %v180, %v112
    %v183 = vmul.f32 %v180, %v113
    %v184 = vmul.f32 %v180, %v114
    %v185 = vmul.f32 %v180, %v115
    %v186 = vmul.f32 %v180, %v116
    %v187 = vmul.f32 %v180, %v117
    %v188 = vmul.f32 %v180, %v118
    %197 = vrot.lane.b32.xlu0 %v181, 124
    %v198 = vpop.permute.xlu0 %197
    %199 = vrot.lane.b32.xlu0 %v182, 124
    %v200 = vpop.permute.xlu0 %199
    %201 = vrot.lane.b32.xlu0 %v183, 124
    %v202 = vpop.permute.xlu0 %201
    %203 = vrot.lane.b32.xlu0 %v184, 124
    %v204 = vpop.permute.xlu0 %203
    %205 = vrot.lane.b32.xlu0 %v185, 124
    %v206 = vpop.permute.xlu0 %205
    %207 = vrot.lane.b32.xlu0 %v186, 124
    %v208 = vpop.permute.xlu0 %207
    %209 = vrot.lane.b32.xlu0 %v187, 124
    %v210 = vpop.permute.xlu0 %209
    %211 = vrot.lane.b32.xlu0 %v188, 124
    %v212 = vpop.permute.xlu0 %211
    %v221 = vadd.f32 %v171, %v198
    %v222 = vadd.f32 %v172, %v200
    %v223 = vadd.f32 %v173, %v202
    %v224 = vadd.f32 %v174, %v204
    %v225 = vadd.f32 %v175, %v206
    %v226 = vadd.f32 %v176, %v208
    %v227 = vadd.f32 %v177, %v210
    %v228 = vadd.f32 %v178, %v212
    %s229 = scalar_lea.vmem [#allocation4], 64
    %v230 = vld [vmem:[%s229] sm:$0xff]
    %v231 = vld [vmem:[%s229 + $0x8] sm:$0xff]
    %v232 = vld [vmem:[%s229 + $0x10] sm:$0xff]
    %v233 = vld [vmem:[%s229 + $0x18] sm:$0xff]
    %v234 = vld [vmem:[%s229 + $0x20] sm:$0xff]
    %v235 = vld [vmem:[%s229 + $0x28] sm:$0xff]
    %v236 = vld [vmem:[%s229 + $0x30] sm:$0xff]
    %v237 = vld [vmem:[%s229 + $0x38] sm:$0xff]
    %s238 = sld [smem:[#allocation7 + $0x4]]
    %v239 = vstv %s238
    %v240 = vmul.f32 %v239, %v230
    %v241 = vmul.f32 %v239, %v231
    %v242 = vmul.f32 %v239, %v232
    %v243 = vmul.f32 %v239, %v233
    %v244 = vmul.f32 %v239, %v234
    %v245 = vmul.f32 %v239, %v235
    %v246 = vmul.f32 %v239, %v236
    %v247 = vmul.f32 %v239, %v237
    %v248 = vadd.f32 %v221, %v240
    %v249 = vadd.f32 %v222, %v241
    %v250 = vadd.f32 %v223, %v242
    %v251 = vadd.f32 %v224, %v243
    %v252 = vadd.f32 %v225, %v244
    %v253 = vadd.f32 %v226, %v245
    %v254 = vadd.f32 %v227, %v246
    %v255 = vadd.f32 %v228, %v247
    %s256 = sld [smem:[#allocation7 + $0x14]]
    %v257 = vstv %s256
    %v258 = vmul.f32 %v257, %v230
    %v259 = vmul.f32 %v257, %v231
    %v260 = vmul.f32 %v257, %v232
    %v261 = vmul.f32 %v257, %v233
    %v262 = vmul.f32 %v257, %v234
    %v263 = vmul.f32 %v257, %v235
    %v264 = vmul.f32 %v257, %v236
    %v265 = vmul.f32 %v257, %v237
    %274 = vrot.lane.b32.xlu0 %v258, 126
    %v275 = vpop.permute.xlu0 %274
    %276 = vrot.lane.b32.xlu0 %v259, 126
    %v277 = vpop.permute.xlu0 %276
    %278 = vrot.lane.b32.xlu0 %v260, 126
    %v279 = vpop.permute.xlu0 %278
    %280 = vrot.lane.b32.xlu0 %v261, 126
    %v281 = vpop.permute.xlu0 %280
    %282 = vrot.lane.b32.xlu0 %v262, 126
    %v283 = vpop.permute.xlu0 %282
    %284 = vrot.lane.b32.xlu0 %v263, 126
    %v285 = vpop.permute.xlu0 %284
    %286 = vrot.lane.b32.xlu0 %v264, 126
    %v287 = vpop.permute.xlu0 %286
    %288 = vrot.lane.b32.xlu0 %v265, 126
    %v289 = vpop.permute.xlu0 %288
    %v298 = vadd.f32 %v248, %v275
    %v299 = vadd.f32 %v249, %v277
    %v300 = vadd.f32 %v250, %v279
    %v301 = vadd.f32 %v251, %v281
    %v302 = vadd.f32 %v252, %v283
    %v303 = vadd.f32 %v253, %v285
    %v304 = vadd.f32 %v254, %v287
    %v305 = vadd.f32 %v255, %v289
    %s306 = sld [smem:[#allocation7 + $0x24]]
    %v307 = vstv %s306
    %v308 = vmul.f32 %v307, %v230
    %v309 = vmul.f32 %v307, %v231
    %v310 = vmul.f32 %v307, %v232
    %v311 = vmul.f32 %v307, %v233
    %v312 = vmul.f32 %v307, %v234
    %v313 = vmul.f32 %v307, %v235
    %v314 = vmul.f32 %v307, %v236
    %v315 = vmul.f32 %v307, %v237
    %324 = vrot.lane.b32.xlu0 %v308, 124
    %v325 = vpop.permute.xlu0 %324
    %326 = vrot.lane.b32.xlu0 %v309, 124
    %v327 = vpop.permute.xlu0 %326
    %328 = vrot.lane.b32.xlu0 %v310, 124
    %v329 = vpop.permute.xlu0 %328
    %330 = vrot.lane.b32.xlu0 %v311, 124
    %v331 = vpop.permute.xlu0 %330
    %332 = vrot.lane.b32.xlu0 %v312, 124
    %v333 = vpop.permute.xlu0 %332
    %334 = vrot.lane.b32.xlu0 %v313, 124
    %v335 = vpop.permute.xlu0 %334
    %336 = vrot.lane.b32.xlu0 %v314, 124
    %v337 = vpop.permute.xlu0 %336
    %338 = vrot.lane.b32.xlu0 %v315, 124
    %v339 = vpop.permute.xlu0 %338
    %v348 = vadd.f32 %v298, %v325
    %v349 = vadd.f32 %v299, %v327
    %v350 = vadd.f32 %v300, %v329
    %v351 = vadd.f32 %v301, %v331
    %v352 = vadd.f32 %v302, %v333
    %v353 = vadd.f32 %v303, %v335
    %v354 = vadd.f32 %v304, %v337
    %v355 = vadd.f32 %v305, %v339
    %s356 = scalar_lea.vmem [#allocation4], 128
    %v357 = vld [vmem:[%s356] sm:$0xff]
    %v358 = vld [vmem:[%s356 + $0x8] sm:$0xff]
    %v359 = vld [vmem:[%s356 + $0x10] sm:$0xff]
    %v360 = vld [vmem:[%s356 + $0x18] sm:$0xff]
    %v361 = vld [vmem:[%s356 + $0x20] sm:$0xff]
    %v362 = vld [vmem:[%s356 + $0x28] sm:$0xff]
    %v363 = vld [vmem:[%s356 + $0x30] sm:$0xff]
    %v364 = vld [vmem:[%s356 + $0x38] sm:$0xff]
    %s365 = sld [smem:[#allocation7 + $0x8]]
    %v366 = vstv %s365
    %v367 = vmul.f32 %v366, %v357
    %v368 = vmul.f32 %v366, %v358
    %v369 = vmul.f32 %v366, %v359
    %v370 = vmul.f32 %v366, %v360
    %v371 = vmul.f32 %v366, %v361
    %v372 = vmul.f32 %v366, %v362
    %v373 = vmul.f32 %v366, %v363
    %v374 = vmul.f32 %v366, %v364
    %v375 = vadd.f32 %v348, %v367
    %v376 = vadd.f32 %v349, %v368
    %v377 = vadd.f32 %v350, %v369
    %v378 = vadd.f32 %v351, %v370
    %v379 = vadd.f32 %v352, %v371
    %v380 = vadd.f32 %v353, %v372
    %v381 = vadd.f32 %v354, %v373
    %v382 = vadd.f32 %v355, %v374
    %s383 = sld [smem:[#allocation7 + $0x18]]
    %v384 = vstv %s383
    %v385 = vmul.f32 %v384, %v357
    %v386 = vmul.f32 %v384, %v358
    %v387 = vmul.f32 %v384, %v359
    %v388 = vmul.f32 %v384, %v360
    %v389 = vmul.f32 %v384, %v361
    %v390 = vmul.f32 %v384, %v362
    %v391 = vmul.f32 %v384, %v363
    %v392 = vmul.f32 %v384, %v364
    %401 = vrot.lane.b32.xlu0 %v385, 126
    %v402 = vpop.permute.xlu0 %401
    %403 = vrot.lane.b32.xlu0 %v386, 126
    %v404 = vpop.permute.xlu0 %403
    %405 = vrot.lane.b32.xlu0 %v387, 126
    %v406 = vpop.permute.xlu0 %405
    %407 = vrot.lane.b32.xlu0 %v388, 126
    %v408 = vpop.permute.xlu0 %407
    %409 = vrot.lane.b32.xlu0 %v389, 126
    %v410 = vpop.permute.xlu0 %409
    %411 = vrot.lane.b32.xlu0 %v390, 126
    %v412 = vpop.permute.xlu0 %411
    %413 = vrot.lane.b32.xlu0 %v391, 126
    %v414 = vpop.permute.xlu0 %413
    %415 = vrot.lane.b32.xlu0 %v392, 126
    %v416 = vpop.permute.xlu0 %415
    %v425 = vadd.f32 %v375, %v402
    %v426 = vadd.f32 %v376, %v404
    %v427 = vadd.f32 %v377, %v406
    %v428 = vadd.f32 %v378, %v408
    %v429 = vadd.f32 %v379, %v410
    %v430 = vadd.f32 %v380, %v412
    %v431 = vadd.f32 %v381, %v414
    %v432 = vadd.f32 %v382, %v416
    %s433 = sld [smem:[#allocation7 + $0x28]]
    %v434 = vstv %s433
    %v435 = vmul.f32 %v434, %v357
    %v436 = vmul.f32 %v434, %v358
    %v437 = vmul.f32 %v434, %v359
    %v438 = vmul.f32 %v434, %v360
    %v439 = vmul.f32 %v434, %v361
    %v440 = vmul.f32 %v434, %v362
    %v441 = vmul.f32 %v434, %v363
    %v442 = vmul.f32 %v434, %v364
    %451 = vrot.lane.b32.xlu0 %v435, 124
    %v452 = vpop.permute.xlu0 %451
    %453 = vrot.lane.b32.xlu0 %v436, 124
    %v454 = vpop.permute.xlu0 %453
    %455 = vrot.lane.b32.xlu0 %v437, 124
    %v456 = vpop.permute.xlu0 %455
    %457 = vrot.lane.b32.xlu0 %v438, 124
    %v458 = vpop.permute.xlu0 %457
    %459 = vrot.lane.b32.xlu0 %v439, 124
    %v460 = vpop.permute.xlu0 %459
    %461 = vrot.lane.b32.xlu0 %v440, 124
    %v462 = vpop.permute.xlu0 %461
    %463 = vrot.lane.b32.xlu0 %v441, 124
    %v464 = vpop.permute.xlu0 %463
    %465 = vrot.lane.b32.xlu0 %v442, 124
    %v466 = vpop.permute.xlu0 %465
    %v475 = vadd.f32 %v425, %v452
    %v476 = vadd.f32 %v426, %v454
    %v477 = vadd.f32 %v427, %v456
    %v478 = vadd.f32 %v428, %v458
    %v479 = vadd.f32 %v429, %v460
    %v480 = vadd.f32 %v430, %v462
    %v481 = vadd.f32 %v431, %v464
    %v482 = vadd.f32 %v432, %v466
    %s483 = scalar_lea.vmem [#allocation4], 192
    %v484 = vld [vmem:[%s483] sm:$0xff]
    %v485 = vld [vmem:[%s483 + $0x8] sm:$0xff]
    %v486 = vld [vmem:[%s483 + $0x10] sm:$0xff]
    %v487 = vld [vmem:[%s483 + $0x18] sm:$0xff]
    %v488 = vld [vmem:[%s483 + $0x20] sm:$0xff]
    %v489 = vld [vmem:[%s483 + $0x28] sm:$0xff]
    %v490 = vld [vmem:[%s483 + $0x30] sm:$0xff]
    %v491 = vld [vmem:[%s483 + $0x38] sm:$0xff]
    %s492 = sld [smem:[#allocation7 + $0xc]]
    %v493 = vstv %s492
    %v494 = vmul.f32 %v493, %v484
    %v495 = vmul.f32 %v493, %v485
    %v496 = vmul.f32 %v493, %v486
    %v497 = vmul.f32 %v493, %v487
    %v498 = vmul.f32 %v493, %v488
    %v499 = vmul.f32 %v493, %v489
    %v500 = vmul.f32 %v493, %v490
    %v501 = vmul.f32 %v493, %v491
    %v502 = vadd.f32 %v475, %v494
    %v503 = vadd.f32 %v476, %v495
    %v504 = vadd.f32 %v477, %v496
    %v505 = vadd.f32 %v478, %v497
    %v506 = vadd.f32 %v479, %v498
    %v507 = vadd.f32 %v480, %v499
    %v508 = vadd.f32 %v481, %v500
    %v509 = vadd.f32 %v482, %v501
    %s510 = sld [smem:[#allocation7 + $0x1c]]
    %v511 = vstv %s510
    %v512 = vmul.f32 %v511, %v484
    %v513 = vmul.f32 %v511, %v485
    %v514 = vmul.f32 %v511, %v486
    %v515 = vmul.f32 %v511, %v487
    %v516 = vmul.f32 %v511, %v488
    %v517 = vmul.f32 %v511, %v489
    %v518 = vmul.f32 %v511, %v490
    %v519 = vmul.f32 %v511, %v491
    %528 = vrot.lane.b32.xlu0 %v512, 126
    %v529 = vpop.permute.xlu0 %528
    %530 = vrot.lane.b32.xlu0 %v513, 126
    %v531 = vpop.permute.xlu0 %530
    %532 = vrot.lane.b32.xlu0 %v514, 126
    %v533 = vpop.permute.xlu0 %532
    %534 = vrot.lane.b32.xlu0 %v515, 126
    %v535 = vpop.permute.xlu0 %534
    %536 = vrot.lane.b32.xlu0 %v516, 126
    %v537 = vpop.permute.xlu0 %536
    %538 = vrot.lane.b32.xlu0 %v517, 126
    %v539 = vpop.permute.xlu0 %538
    %540 = vrot.lane.b32.xlu0 %v518, 126
    %v541 = vpop.permute.xlu0 %540
    %542 = vrot.lane.b32.xlu0 %v519, 126
    %v543 = vpop.permute.xlu0 %542
    %v552 = vadd.f32 %v502, %v529
    %v553 = vadd.f32 %v503, %v531
    %v554 = vadd.f32 %v504, %v533
    %v555 = vadd.f32 %v505, %v535
    %v556 = vadd.f32 %v506, %v537
    %v557 = vadd.f32 %v507, %v539
    %v558 = vadd.f32 %v508, %v541
    %v559 = vadd.f32 %v509, %v543
    %s560 = sld [smem:[#allocation7 + $0x2c]]
    %v561 = vstv %s560
    %v562 = vmul.f32 %v561, %v484
    %v563 = vmul.f32 %v561, %v485
    %v564 = vmul.f32 %v561, %v486
    %v565 = vmul.f32 %v561, %v487
    %v566 = vmul.f32 %v561, %v488
    %v567 = vmul.f32 %v561, %v489
    %v568 = vmul.f32 %v561, %v490
    %v569 = vmul.f32 %v561, %v491
    %578 = vrot.lane.b32.xlu0 %v562, 124
    %v579 = vpop.permute.xlu0 %578
    %580 = vrot.lane.b32.xlu0 %v563, 124
    %v581 = vpop.permute.xlu0 %580
    %582 = vrot.lane.b32.xlu0 %v564, 124
    %v583 = vpop.permute.xlu0 %582
    %584 = vrot.lane.b32.xlu0 %v565, 124
    %v585 = vpop.permute.xlu0 %584
    %586 = vrot.lane.b32.xlu0 %v566, 124
    %v587 = vpop.permute.xlu0 %586
    %588 = vrot.lane.b32.xlu0 %v567, 124
    %v589 = vpop.permute.xlu0 %588
    %590 = vrot.lane.b32.xlu0 %v568, 124
    %v591 = vpop.permute.xlu0 %590
    %592 = vrot.lane.b32.xlu0 %v569, 124
    %v593 = vpop.permute.xlu0 %592
    %v602 = vadd.f32 %v552, %v579
    %v603 = vadd.f32 %v553, %v581
    %v604 = vadd.f32 %v554, %v583
    %v605 = vadd.f32 %v555, %v585
    %v606 = vadd.f32 %v556, %v587
    %v607 = vadd.f32 %v557, %v589
    %v608 = vadd.f32 %v558, %v591
    %v609 = vadd.f32 %v559, %v593
    %s610 = sld [smem:[#allocation8]]
    %v611 = vstv %s610
    %v612 = vadd.f32 %v602, %v611
    %v613 = vadd.f32 %v603, %v611
    %v614 = vadd.f32 %v604, %v611
    %v615 = vadd.f32 %v605, %v611
    %v616 = vadd.f32 %v606, %v611
    %v617 = vadd.f32 %v607, %v611
    %v618 = vadd.f32 %v608, %v611
    %v619 = vadd.f32 %v609, %v611
    %vm620 = vcmask 97280
    %621 = vst.msk [vmem:[#allocation2] sm:$0xff] %vm620, %v612
    %622 = vst.msk [vmem:[#allocation2 + $0x8] sm:$0xff] %vm620, %v613
    %623 = vst.msk [vmem:[#allocation2 + $0x10] sm:$0xff] %vm620, %v614
    %624 = vst.msk [vmem:[#allocation2 + $0x18] sm:$0xff] %vm620, %v615
    %625 = vst.msk [vmem:[#allocation2 + $0x20] sm:$0xff] %vm620, %v616
    %626 = vst.msk [vmem:[#allocation2 + $0x28] sm:$0xff] %vm620, %v617
    %627 = vst.msk [vmem:[#allocation2 + $0x30] sm:$0xff] %vm620, %v618
    %628 = vst.msk [vmem:[#allocation2 + $0x38] sm:$0xff] %vm620, %v619
    %v629 = vld [vmem:[#allocation4] sm:$0xff]
    %v630 = vld [vmem:[#allocation4 + $0x8] sm:$0xff]
    %v631 = vld [vmem:[#allocation4 + $0x10] sm:$0xff]
    %v632 = vld [vmem:[#allocation4 + $0x18] sm:$0xff]
    %v633 = vld [vmem:[#allocation4 + $0x20] sm:$0xff]
    %v634 = vld [vmem:[#allocation4 + $0x28] sm:$0xff]
    %v635 = vld [vmem:[#allocation4 + $0x30] sm:$0xff]
    %v636 = vld [vmem:[#allocation4 + $0x38] sm:$0xff]
    %s637 = sld [smem:[#allocation7 + $0x1]]
    %v638 = vstv %s637
    %v639 = vmul.f32 %v638, %v629
    %v640 = vmul.f32 %v638, %v630
    %v641 = vmul.f32 %v638, %v631
    %v642 = vmul.f32 %v638, %v632
    %v643 = vmul.f32 %v638, %v633
    %v644 = vmul.f32 %v638, %v634
    %v645 = vmul.f32 %v638, %v635
    %v646 = vmul.f32 %v638, %v636
    %s647 = sld [smem:[#allocation7 + $0x11]]
    %v648 = vstv %s647
    %v649 = vmul.f32 %v648, %v629
    %v650 = vmul.f32 %v648, %v630
    %v651 = vmul.f32 %v648, %v631
    %v652 = vmul.f32 %v648, %v632
    %v653 = vmul.f32 %v648, %v633
    %v654 = vmul.f32 %v648, %v634
    %v655 = vmul.f32 %v648, %v635
    %v656 = vmul.f32 %v648, %v636
    %665 = vrot.lane.b32.xlu0 %v649, 126
    %v666 = vpop.permute.xlu0 %665
    %667 = vrot.lane.b32.xlu0 %v650, 126
    %v668 = vpop.permute.xlu0 %667
    %669 = vrot.lane.b32.xlu0 %v651, 126
    %v670 = vpop.permute.xlu0 %669
    %671 = vrot.lane.b32.xlu0 %v652, 126
    %v672 = vpop.permute.xlu0 %671
    %673 = vrot.lane.b32.xlu0 %v653, 126
    %v674 = vpop.permute.xlu0 %673
    %675 = vrot.lane.b32.xlu0 %v654, 126
    %v676 = vpop.permute.xlu0 %675
    %677 = vrot.lane.b32.xlu0 %v655, 126
    %v678 = vpop.permute.xlu0 %677
    %679 = vrot.lane.b32.xlu0 %v656, 126
    %v680 = vpop.permute.xlu0 %679
    %v689 = vadd.f32 %v639, %v666
    %v690 = vadd.f32 %v640, %v668
    %v691 = vadd.f32 %v641, %v670
    %v692 = vadd.f32 %v642, %v672
    %v693 = vadd.f32 %v643, %v674
    %v694 = vadd.f32 %v644, %v676
    %v695 = vadd.f32 %v645, %v678
    %v696 = vadd.f32 %v646, %v680
    %s697 = sld [smem:[#allocation7 + $0x21]]
    %v698 = vstv %s697
    %v699 = vmul.f32 %v698, %v629
    %v700 = vmul.f32 %v698, %v630
    %v701 = vmul.f32 %v698, %v631
    %v702 = vmul.f32 %v698, %v632
    %v703 = vmul.f32 %v698, %v633
    %v704 = vmul.f32 %v698, %v634
    %v705 = vmul.f32 %v698, %v635
    %v706 = vmul.f32 %v698, %v636
    %715 = vrot.lane.b32.xlu0 %v699, 124
    %v716 = vpop.permute.xlu0 %715
    %717 = vrot.lane.b32.xlu0 %v700, 124
    %v718 = vpop.permute.xlu0 %717
    %719 = vrot.lane.b32.xlu0 %v701, 124
    %v720 = vpop.permute.xlu0 %719
    %721 = vrot.lane.b32.xlu0 %v702, 124
    %v722 = vpop.permute.xlu0 %721
    %723 = vrot.lane.b32.xlu0 %v703, 124
    %v724 = vpop.permute.xlu0 %723
    %725 = vrot.lane.b32.xlu0 %v704, 124
    %v726 = vpop.permute.xlu0 %725
    %727 = vrot.lane.b32.xlu0 %v705, 124
    %v728 = vpop.permute.xlu0 %727
    %729 = vrot.lane.b32.xlu0 %v706, 124
    %v730 = vpop.permute.xlu0 %729
    %v739 = vadd.f32 %v689, %v716
    %v740 = vadd.f32 %v690, %v718
    %v741 = vadd.f32 %v691, %v720
    %v742 = vadd.f32 %v692, %v722
    %v743 = vadd.f32 %v693, %v724
    %v744 = vadd.f32 %v694, %v726
    %v745 = vadd.f32 %v695, %v728
    %v746 = vadd.f32 %v696, %v730
    %v747 = vld [vmem:[%s229] sm:$0xff]
    %v748 = vld [vmem:[%s229 + $0x8] sm:$0xff]
    %v749 = vld [vmem:[%s229 + $0x10] sm:$0xff]
    %v750 = vld [vmem:[%s229 + $0x18] sm:$0xff]
    %v751 = vld [vmem:[%s229 + $0x20] sm:$0xff]
    %v752 = vld [vmem:[%s229 + $0x28] sm:$0xff]
    %v753 = vld [vmem:[%s229 + $0x30] sm:$0xff]
    %v754 = vld [vmem:[%s229 + $0x38] sm:$0xff]
    %s755 = sld [smem:[#allocation7 + $0x5]]
    %v756 = vstv %s755
    %v757 = vmul.f32 %v756, %v747
    %v758 = vmul.f32 %v756, %v748
    %v759 = vmul.f32 %v756, %v749
    %v760 = vmul.f32 %v756, %v750
    %v761 = vmul.f32 %v756, %v751
    %v762 = vmul.f32 %v756, %v752
    %v763 = vmul.f32 %v756, %v753
    %v764 = vmul.f32 %v756, %v754
    %v765 = vadd.f32 %v739, %v757
    %v766 = vadd.f32 %v740, %v758
    %v767 = vadd.f32 %v741, %v759
    %v768 = vadd.f32 %v742, %v760
    %v769 = vadd.f32 %v743, %v761
    %v770 = vadd.f32 %v744, %v762
    %v771 = vadd.f32 %v745, %v763
    %v772 = vadd.f32 %v746, %v764
    %s773 = sld [smem:[#allocation7 + $0x15]]
    %v774 = vstv %s773
    %v775 = vmul.f32 %v774, %v747
    %v776 = vmul.f32 %v774, %v748
    %v777 = vmul.f32 %v774, %v749
    %v778 = vmul.f32 %v774, %v750
    %v779 = vmul.f32 %v774, %v751
    %v780 = vmul.f32 %v774, %v752
    %v781 = vmul.f32 %v774, %v753
    %v782 = vmul.f32 %v774, %v754
    %791 = vrot.lane.b32.xlu0 %v775, 126
    %v792 = vpop.permute.xlu0 %791
    %793 = vrot.lane.b32.xlu0 %v776, 126
    %v794 = vpop.permute.xlu0 %793
    %795 = vrot.lane.b32.xlu0 %v777, 126
    %v796 = vpop.permute.xlu0 %795
    %797 = vrot.lane.b32.xlu0 %v778, 126
    %v798 = vpop.permute.xlu0 %797
    %799 = vrot.lane.b32.xlu0 %v779, 126
    %v800 = vpop.permute.xlu0 %799
    %801 = vrot.lane.b32.xlu0 %v780, 126
    %v802 = vpop.permute.xlu0 %801
    %803 = vrot.lane.b32.xlu0 %v781, 126
    %v804 = vpop.permute.xlu0 %803
    %805 = vrot.lane.b32.xlu0 %v782, 126
    %v806 = vpop.permute.xlu0 %805
    %v815 = vadd.f32 %v765, %v792
    %v816 = vadd.f32 %v766, %v794
    %v817 = vadd.f32 %v767, %v796
    %v818 = vadd.f32 %v768, %v798
    %v819 = vadd.f32 %v769, %v800
    %v820 = vadd.f32 %v770, %v802
    %v821 = vadd.f32 %v771, %v804
    %v822 = vadd.f32 %v772, %v806
    %s823 = sld [smem:[#allocation7 + $0x25]]
    %v824 = vstv %s823
    %v825 = vmul.f32 %v824, %v747
    %v826 = vmul.f32 %v824, %v748
    %v827 = vmul.f32 %v824, %v749
    %v828 = vmul.f32 %v824, %v750
    %v829 = vmul.f32 %v824, %v751
    %v830 = vmul.f32 %v824, %v752
    %v831 = vmul.f32 %v824, %v753
    %v832 = vmul.f32 %v824, %v754
    %841 = vrot.lane.b32.xlu0 %v825, 124
    %v842 = vpop.permute.xlu0 %841
    %843 = vrot.lane.b32.xlu0 %v826, 124
    %v844 = vpop.permute.xlu0 %843
    %845 = vrot.lane.b32.xlu0 %v827, 124
    %v846 = vpop.permute.xlu0 %845
    %847 = vrot.lane.b32.xlu0 %v828, 124
    %v848 = vpop.permute.xlu0 %847
    %849 = vrot.lane.b32.xlu0 %v829, 124
    %v850 = vpop.permute.xlu0 %849
    %851 = vrot.lane.b32.xlu0 %v830, 124
    %v852 = vpop.permute.xlu0 %851
    %853 = vrot.lane.b32.xlu0 %v831, 124
    %v854 = vpop.permute.xlu0 %853
    %855 = vrot.lane.b32.xlu0 %v832, 124
    %v856 = vpop.permute.xlu0 %855
    %v865 = vadd.f32 %v815, %v842
    %v866 = vadd.f32 %v816, %v844
    %v867 = vadd.f32 %v817, %v846
    %v868 = vadd.f32 %v818, %v848
    %v869 = vadd.f32 %v819, %v850
    %v870 = vadd.f32 %v820, %v852
    %v871 = vadd.f32 %v821, %v854
    %v872 = vadd.f32 %v822, %v856
    %v873 = vld [vmem:[%s356] sm:$0xff]
    %v874 = vld [vmem:[%s356 + $0x8] sm:$0xff]
    %v875 = vld [vmem:[%s356 + $0x10] sm:$0xff]
    %v876 = vld [vmem:[%s356 + $0x18] sm:$0xff]
    %v877 = vld [vmem:[%s356 + $0x20] sm:$0xff]
    %v878 = vld [vmem:[%s356 + $0x28] sm:$0xff]
    %v879 = vld [vmem:[%s356 + $0x30] sm:$0xff]
    %v880 = vld [vmem:[%s356 + $0x38] sm:$0xff]
    %s881 = sld [smem:[#allocation7 + $0x9]]
    %v882 = vstv %s881
    %v883 = vmul.f32 %v882, %v873
    %v884 = vmul.f32 %v882, %v874
    %v885 = vmul.f32 %v882, %v875
    %v886 = vmul.f32 %v882, %v876
    %v887 = vmul.f32 %v882, %v877
    %v888 = vmul.f32 %v882, %v878
    %v889 = vmul.f32 %v882, %v879
    %v890 = vmul.f32 %v882, %v880
    %v891 = vadd.f32 %v865, %v883
    %v892 = vadd.f32 %v866, %v884
    %v893 = vadd.f32 %v867, %v885
    %v894 = vadd.f32 %v868, %v886
    %v895 = vadd.f32 %v869, %v887
    %v896 = vadd.f32 %v870, %v888
    %v897 = vadd.f32 %v871, %v889
    %v898 = vadd.f32 %v872, %v890
    %s899 = sld [smem:[#allocation7 + $0x19]]
    %v900 = vstv %s899
    %v901 = vmul.f32 %v900, %v873
    %v902 = vmul.f32 %v900, %v874
    %v903 = vmul.f32 %v900, %v875
    %v904 = vmul.f32 %v900, %v876
    %v905 = vmul.f32 %v900, %v877
    %v906 = vmul.f32 %v900, %v878
    %v907 = vmul.f32 %v900, %v879
    %v908 = vmul.f32 %v900, %v880
    %917 = vrot.lane.b32.xlu0 %v901, 126
    %v918 = vpop.permute.xlu0 %917
    %919 = vrot.lane.b32.xlu0 %v902, 126
    %v920 = vpop.permute.xlu0 %919
    %921 = vrot.lane.b32.xlu0 %v903, 126
    %v922 = vpop.permute.xlu0 %921
    %923 = vrot.lane.b32.xlu0 %v904, 126
    %v924 = vpop.permute.xlu0 %923
    %925 = vrot.lane.b32.xlu0 %v905, 126
    %v926 = vpop.permute.xlu0 %925
    %927 = vrot.lane.b32.xlu0 %v906, 126
    %v928 = vpop.permute.xlu0 %927
    %929 = vrot.lane.b32.xlu0 %v907, 126
    %v930 = vpop.permute.xlu0 %929
    %931 = vrot.lane.b32.xlu0 %v908, 126
    %v932 = vpop.permute.xlu0 %931
    %v941 = vadd.f32 %v891, %v918
    %v942 = vadd.f32 %v892, %v920
    %v943 = vadd.f32 %v893, %v922
    %v944 = vadd.f32 %v894, %v924
    %v945 = vadd.f32 %v895, %v926
    %v946 = vadd.f32 %v896, %v928
    %v947 = vadd.f32 %v897, %v930
    %v948 = vadd.f32 %v898, %v932
    %s949 = sld [smem:[#allocation7 + $0x29]]
    %v950 = vstv %s949
    %v951 = vmul.f32 %v950, %v873
    %v952 = vmul.f32 %v950, %v874
    %v953 = vmul.f32 %v950, %v875
    %v954 = vmul.f32 %v950, %v876
    %v955 = vmul.f32 %v950, %v877
    %v956 = vmul.f32 %v950, %v878
    %v957 = vmul.f32 %v950, %v879
    %v958 = vmul.f32 %v950, %v880
    %967 = vrot.lane.b32.xlu0 %v951, 124
    %v968 = vpop.permute.xlu0 %967
    %969 = vrot.lane.b32.xlu0 %v952, 124
    %v970 = vpop.permute.xlu0 %969
    %971 = vrot.lane.b32.xlu0 %v953, 124
    %v972 = vpop.permute.xlu0 %971
    %973 = vrot.lane.b32.xlu0 %v954, 124
    %v974 = vpop.permute.xlu0 %973
    %975 = vrot.lane.b32.xlu0 %v955, 124
    %v976 = vpop.permute.xlu0 %975
    %977 = vrot.lane.b32.xlu0 %v956, 124
    %v978 = vpop.permute.xlu0 %977
    %979 = vrot.lane.b32.xlu0 %v957, 124
    %v980 = vpop.permute.xlu0 %979
    %981 = vrot.lane.b32.xlu0 %v958, 124
    %v982 = vpop.permute.xlu0 %981
    %v991 = vadd.f32 %v941, %v968
    %v992 = vadd.f32 %v942, %v970
    %v993 = vadd.f32 %v943, %v972
    %v994 = vadd.f32 %v944, %v974
    %v995 = vadd.f32 %v945, %v976
    %v996 = vadd.f32 %v946, %v978
    %v997 = vadd.f32 %v947, %v980
    %v998 = vadd.f32 %v948, %v982
    %v999 = vld [vmem:[%s483] sm:$0xff]
    %v1000 = vld [vmem:[%s483 + $0x8] sm:$0xff]
    %v1001 = vld [vmem:[%s483 + $0x10] sm:$0xff]
    %v1002 = vld [vmem:[%s483 + $0x18] sm:$0xff]
    %v1003 = vld [vmem:[%s483 + $0x20] sm:$0xff]
    %v1004 = vld [vmem:[%s483 + $0x28] sm:$0xff]
    %v1005 = vld [vmem:[%s483 + $0x30] sm:$0xff]
    %v1006 = vld [vmem:[%s483 + $0x38] sm:$0xff]
    %s1007 = sld [smem:[#allocation7 + $0xd]]
    %v1008 = vstv %s1007
    %v1009 = vmul.f32 %v1008, %v999
    %v1010 = vmul.f32 %v1008, %v1000
    %v1011 = vmul.f32 %v1008, %v1001
    %v1012 = vmul.f32 %v1008, %v1002
    %v1013 = vmul.f32 %v1008, %v1003
    %v1014 = vmul.f32 %v1008, %v1004
    %v1015 = vmul.f32 %v1008, %v1005
    %v1016 = vmul.f32 %v1008, %v1006
    %v1017 = vadd.f32 %v991, %v1009
    %v1018 = vadd.f32 %v992, %v1010
    %v1019 = vadd.f32 %v993, %v1011
    %v1020 = vadd.f32 %v994, %v1012
    %v1021 = vadd.f32 %v995, %v1013
    %v1022 = vadd.f32 %v996, %v1014
    %v1023 = vadd.f32 %v997, %v1015
    %v1024 = vadd.f32 %v998, %v1016
    %s1025 = sld [smem:[#allocation7 + $0x1d]]
    %v1026 = vstv %s1025
    %v1027 = vmul.f32 %v1026, %v999
    %v1028 = vmul.f32 %v1026, %v1000
    %v1029 = vmul.f32 %v1026, %v1001
    %v1030 = vmul.f32 %v1026, %v1002
    %v1031 = vmul.f32 %v1026, %v1003
    %v1032 = vmul.f32 %v1026, %v1004
    %v1033 = vmul.f32 %v1026, %v1005
    %v1034 = vmul.f32 %v1026, %v1006
    %1043 = vrot.lane.b32.xlu0 %v1027, 126
    %v1044 = vpop.permute.xlu0 %1043
    %1045 = vrot.lane.b32.xlu0 %v1028, 126
    %v1046 = vpop.permute.xlu0 %1045
    %1047 = vrot.lane.b32.xlu0 %v1029, 126
    %v1048 = vpop.permute.xlu0 %1047
    %1049 = vrot.lane.b32.xlu0 %v1030, 126
    %v1050 = vpop.permute.xlu0 %1049
    %1051 = vrot.lane.b32.xlu0 %v1031, 126
    %v1052 = vpop.permute.xlu0 %1051
    %1053 = vrot.lane.b32.xlu0 %v1032, 126
    %v1054 = vpop.permute.xlu0 %1053
    %1055 = vrot.lane.b32.xlu0 %v1033, 126
    %v1056 = vpop.permute.xlu0 %1055
    %1057 = vrot.lane.b32.xlu0 %v1034, 126
    %v1058 = vpop.permute.xlu0 %1057
    %v1067 = vadd.f32 %v1017, %v1044
    %v1068 = vadd.f32 %v1018, %v1046
    %v1069 = vadd.f32 %v1019, %v1048
    %v1070 = vadd.f32 %v1020, %v1050
    %v1071 = vadd.f32 %v1021, %v1052
    %v1072 = vadd.f32 %v1022, %v1054
    %v1073 = vadd.f32 %v1023, %v1056
    %v1074 = vadd.f32 %v1024, %v1058
    %s1075 = sld [smem:[#allocation7 + $0x2d]]
    %v1076 = vstv %s1075
    %v1077 = vmul.f32 %v1076, %v999
    %v1078 = vmul.f32 %v1076, %v1000
    %v1079 = vmul.f32 %v1076, %v1001
    %v1080 = vmul.f32 %v1076, %v1002
    %v1081 = vmul.f32 %v1076, %v1003
    %v1082 = vmul.f32 %v1076, %v1004
    %v1083 = vmul.f32 %v1076, %v1005
    %v1084 = vmul.f32 %v1076, %v1006
    %1093 = vrot.lane.b32.xlu0 %v1077, 124
    %v1094 = vpop.permute.xlu0 %1093
    %1095 = vrot.lane.b32.xlu0 %v1078, 124
    %v1096 = vpop.permute.xlu0 %1095
    %1097 = vrot.lane.b32.xlu0 %v1079, 124
    %v1098 = vpop.permute.xlu0 %1097
    %1099 = vrot.lane.b32.xlu0 %v1080, 124
    %v1100 = vpop.permute.xlu0 %1099
    %1101 = vrot.lane.b32.xlu0 %v1081, 124
    %v1102 = vpop.permute.xlu0 %1101
    %1103 = vrot.lane.b32.xlu0 %v1082, 124
    %v1104 = vpop.permute.xlu0 %1103
    %1105 = vrot.lane.b32.xlu0 %v1083, 124
    %v1106 = vpop.permute.xlu0 %1105
    %1107 = vrot.lane.b32.xlu0 %v1084, 124
    %v1108 = vpop.permute.xlu0 %1107
    %v1117 = vadd.f32 %v1067, %v1094
    %v1118 = vadd.f32 %v1068, %v1096
    %v1119 = vadd.f32 %v1069, %v1098
    %v1120 = vadd.f32 %v1070, %v1100
    %v1121 = vadd.f32 %v1071, %v1102
    %v1122 = vadd.f32 %v1072, %v1104
    %v1123 = vadd.f32 %v1073, %v1106
    %v1124 = vadd.f32 %v1074, %v1108
    %s1125 = sld [smem:[#allocation8 + $0x1]]
    %v1126 = vstv %s1125
    %v1127 = vadd.f32 %v1117, %v1126
    %v1128 = vadd.f32 %v1118, %v1126
    %v1129 = vadd.f32 %v1119, %v1126
    %v1130 = vadd.f32 %v1120, %v1126
    %v1131 = vadd.f32 %v1121, %v1126
    %v1132 = vadd.f32 %v1122, %v1126
    %v1133 = vadd.f32 %v1123, %v1126
    %v1134 = vadd.f32 %v1124, %v1126
    %s1135 = scalar_lea.vmem [#allocation2], 64
    %1136 = vst.msk [vmem:[%s1135] sm:$0xff] %vm620, %v1127
    %1137 = vst.msk [vmem:[%s1135 + $0x8] sm:$0xff] %vm620, %v1128
    %1138 = vst.msk [vmem:[%s1135 + $0x10] sm:$0xff] %vm620, %v1129
    %1139 = vst.msk [vmem:[%s1135 + $0x18] sm:$0xff] %vm620, %v1130
    %1140 = vst.msk [vmem:[%s1135 + $0x20] sm:$0xff] %vm620, %v1131
    %1141 = vst.msk [vmem:[%s1135 + $0x28] sm:$0xff] %vm620, %v1132
    %1142 = vst.msk [vmem:[%s1135 + $0x30] sm:$0xff] %vm620, %v1133
    %1143 = vst.msk [vmem:[%s1135 + $0x38] sm:$0xff] %vm620, %v1134
    %v1144 = vld [vmem:[#allocation4] sm:$0xff]
    %v1145 = vld [vmem:[#allocation4 + $0x8] sm:$0xff]
    %v1146 = vld [vmem:[#allocation4 + $0x10] sm:$0xff]
    %v1147 = vld [vmem:[#allocation4 + $0x18] sm:$0xff]
    %v1148 = vld [vmem:[#allocation4 + $0x20] sm:$0xff]
    %v1149 = vld [vmem:[#allocation4 + $0x28] sm:$0xff]
    %v1150 = vld [vmem:[#allocation4 + $0x30] sm:$0xff]
    %v1151 = vld [vmem:[#allocation4 + $0x38] sm:$0xff]
    %s1152 = sld [smem:[#allocation7 + $0x2]]
    %v1153 = vstv %s1152
    %v1154 = vmul.f32 %v1153, %v1144
    %v1155 = vmul.f32 %v1153, %v1145
    %v1156 = vmul.f32 %v1153, %v1146
    %v1157 = vmul.f32 %v1153, %v1147
    %v1158 = vmul.f32 %v1153, %v1148
    %v1159 = vmul.f32 %v1153, %v1149
    %v1160 = vmul.f32 %v1153, %v1150
    %v1161 = vmul.f32 %v1153, %v1151
    %s1162 = sld [smem:[#allocation7 + $0x12]]
    %v1163 = vstv %s1162
    %v1164 = vmul.f32 %v1163, %v1144
    %v1165 = vmul.f32 %v1163, %v1145
    %v1166 = vmul.f32 %v1163, %v1146
    %v1167 = vmul.f32 %v1163, %v1147
    %v1168 = vmul.f32 %v1163, %v1148
    %v1169 = vmul.f32 %v1163, %v1149
    %v1170 = vmul.f32 %v1163, %v1150
    %v1171 = vmul.f32 %v1163, %v1151
    %1180 = vrot.lane.b32.xlu0 %v1164, 126
    %v1181 = vpop.permute.xlu0 %1180
    %1182 = vrot.lane.b32.xlu0 %v1165, 126
    %v1183 = vpop.permute.xlu0 %1182
    %1184 = vrot.lane.b32.xlu0 %v1166, 126
    %v1185 = vpop.permute.xlu0 %1184
    %1186 = vrot.lane.b32.xlu0 %v1167, 126
    %v1187 = vpop.permute.xlu0 %1186
    %1188 = vrot.lane.b32.xlu0 %v1168, 126
    %v1189 = vpop.permute.xlu0 %1188
    %1190 = vrot.lane.b32.xlu0 %v1169, 126
    %v1191 = vpop.permute.xlu0 %1190
    %1192 = vrot.lane.b32.xlu0 %v1170, 126
    %v1193 = vpop.permute.xlu0 %1192
    %1194 = vrot.lane.b32.xlu0 %v1171, 126
    %v1195 = vpop.permute.xlu0 %1194
    %v1204 = vadd.f32 %v1154, %v1181
    %v1205 = vadd.f32 %v1155, %v1183
    %v1206 = vadd.f32 %v1156, %v1185
    %v1207 = vadd.f32 %v1157, %v1187
    %v1208 = vadd.f32 %v1158, %v1189
    %v1209 = vadd.f32 %v1159, %v1191
    %v1210 = vadd.f32 %v1160, %v1193
    %v1211 = vadd.f32 %v1161, %v1195
    %s1212 = sld [smem:[#allocation7 + $0x22]]
    %v1213 = vstv %s1212
    %v1214 = vmul.f32 %v1213, %v1144
    %v1215 = vmul.f32 %v1213, %v1145
    %v1216 = vmul.f32 %v1213, %v1146
    %v1217 = vmul.f32 %v1213, %v1147
    %v1218 = vmul.f32 %v1213, %v1148
    %v1219 = vmul.f32 %v1213, %v1149
    %v1220 = vmul.f32 %v1213, %v1150
    %v1221 = vmul.f32 %v1213, %v1151
    %1230 = vrot.lane.b32.xlu0 %v1214, 124
    %v1231 = vpop.permute.xlu0 %1230
    %1232 = vrot.lane.b32.xlu0 %v1215, 124
    %v1233 = vpop.permute.xlu0 %1232
    %1234 = vrot.lane.b32.xlu0 %v1216, 124
    %v1235 = vpop.permute.xlu0 %1234
    %1236 = vrot.lane.b32.xlu0 %v1217, 124
    %v1237 = vpop.permute.xlu0 %1236
    %1238 = vrot.lane.b32.xlu0 %v1218, 124
    %v1239 = vpop.permute.xlu0 %1238
    %1240 = vrot.lane.b32.xlu0 %v1219, 124
    %v1241 = vpop.permute.xlu0 %1240
    %1242 = vrot.lane.b32.xlu0 %v1220, 124
    %v1243 = vpop.permute.xlu0 %1242
    %1244 = vrot.lane.b32.xlu0 %v1221, 124
    %v1245 = vpop.permute.xlu0 %1244
    %v1254 = vadd.f32 %v1204, %v1231
    %v1255 = vadd.f32 %v1205, %v1233
    %v1256 = vadd.f32 %v1206, %v1235
    %v1257 = vadd.f32 %v1207, %v1237
    %v1258 = vadd.f32 %v1208, %v1239
    %v1259 = vadd.f32 %v1209, %v1241
    %v1260 = vadd.f32 %v1210, %v1243
    %v1261 = vadd.f32 %v1211, %v1245
    %v1262 = vld [vmem:[%s229] sm:$0xff]
    %v1263 = vld [vmem:[%s229 + $0x8] sm:$0xff]
    %v1264 = vld [vmem:[%s229 + $0x10] sm:$0xff]
    %v1265 = vld [vmem:[%s229 + $0x18] sm:$0xff]
    %v1266 = vld [vmem:[%s229 + $0x20] sm:$0xff]
    %v1267 = vld [vmem:[%s229 + $0x28] sm:$0xff]
    %v1268 = vld [vmem:[%s229 + $0x30] sm:$0xff]
    %v1269 = vld [vmem:[%s229 + $0x38] sm:$0xff]
    %s1270 = sld [smem:[#allocation7 + $0x6]]
    %v1271 = vstv %s1270
    %v1272 = vmul.f32 %v1271, %v1262
    %v1273 = vmul.f32 %v1271, %v1263
    %v1274 = vmul.f32 %v1271, %v1264
    %v1275 = vmul.f32 %v1271, %v1265
    %v1276 = vmul.f32 %v1271, %v1266
    %v1277 = vmul.f32 %v1271, %v1267
    %v1278 = vmul.f32 %v1271, %v1268
    %v1279 = vmul.f32 %v1271, %v1269
    %v1280 = vadd.f32 %v1254, %v1272
    %v1281 = vadd.f32 %v1255, %v1273
    %v1282 = vadd.f32 %v1256, %v1274
    %v1283 = vadd.f32 %v1257, %v1275
    %v1284 = vadd.f32 %v1258, %v1276
    %v1285 = vadd.f32 %v1259, %v1277
    %v1286 = vadd.f32 %v1260, %v1278
    %v1287 = vadd.f32 %v1261, %v1279
    %s1288 = sld [smem:[#allocation7 + $0x16]]
    %v1289 = vstv %s1288
    %v1290 = vmul.f32 %v1289, %v1262
    %v1291 = vmul.f32 %v1289, %v1263
    %v1292 = vmul.f32 %v1289, %v1264
    %v1293 = vmul.f32 %v1289, %v1265
    %v1294 = vmul.f32 %v1289, %v1266
    %v1295 = vmul.f32 %v1289, %v1267
    %v1296 = vmul.f32 %v1289, %v1268
    %v1297 = vmul.f32 %v1289, %v1269
    %1306 = vrot.lane.b32.xlu0 %v1290, 126
    %v1307 = vpop.permute.xlu0 %1306
    %1308 = vrot.lane.b32.xlu0 %v1291, 126
    %v1309 = vpop.permute.xlu0 %1308
    %1310 = vrot.lane.b32.xlu0 %v1292, 126
    %v1311 = vpop.permute.xlu0 %1310
    %1312 = vrot.lane.b32.xlu0 %v1293, 126
    %v1313 = vpop.permute.xlu0 %1312
    %1314 = vrot.lane.b32.xlu0 %v1294, 126
    %v1315 = vpop.permute.xlu0 %1314
    %1316 = vrot.lane.b32.xlu0 %v1295, 126
    %v1317 = vpop.permute.xlu0 %1316
    %1318 = vrot.lane.b32.xlu0 %v1296, 126
    %v1319 = vpop.permute.xlu0 %1318
    %1320 = vrot.lane.b32.xlu0 %v1297, 126
    %v1321 = vpop.permute.xlu0 %1320
    %v1330 = vadd.f32 %v1280, %v1307
    %v1331 = vadd.f32 %v1281, %v1309
    %v1332 = vadd.f32 %v1282, %v1311
    %v1333 = vadd.f32 %v1283, %v1313
    %v1334 = vadd.f32 %v1284, %v1315
    %v1335 = vadd.f32 %v1285, %v1317
    %v1336 = vadd.f32 %v1286, %v1319
    %v1337 = vadd.f32 %v1287, %v1321
    %s1338 = sld [smem:[#allocation7 + $0x26]]
    %v1339 = vstv %s1338
    %v1340 = vmul.f32 %v1339, %v1262
    %v1341 = vmul.f32 %v1339, %v1263
    %v1342 = vmul.f32 %v1339, %v1264
    %v1343 = vmul.f32 %v1339, %v1265
    %v1344 = vmul.f32 %v1339, %v1266
    %v1345 = vmul.f32 %v1339, %v1267
    %v1346 = vmul.f32 %v1339, %v1268
    %v1347 = vmul.f32 %v1339, %v1269
    %1356 = vrot.lane.b32.xlu0 %v1340, 124
    %v1357 = vpop.permute.xlu0 %1356
    %1358 = vrot.lane.b32.xlu0 %v1341, 124
    %v1359 = vpop.permute.xlu0 %1358
    %1360 = vrot.lane.b32.xlu0 %v1342, 124
    %v1361 = vpop.permute.xlu0 %1360
    %1362 = vrot.lane.b32.xlu0 %v1343, 124
    %v1363 = vpop.permute.xlu0 %1362
    %1364 = vrot.lane.b32.xlu0 %v1344, 124
    %v1365 = vpop.permute.xlu0 %1364
    %1366 = vrot.lane.b32.xlu0 %v1345, 124
    %v1367 = vpop.permute.xlu0 %1366
    %1368 = vrot.lane.b32.xlu0 %v1346, 124
    %v1369 = vpop.permute.xlu0 %1368
    %1370 = vrot.lane.b32.xlu0 %v1347, 124
    %v1371 = vpop.permute.xlu0 %1370
    %v1380 = vadd.f32 %v1330, %v1357
    %v1381 = vadd.f32 %v1331, %v1359
    %v1382 = vadd.f32 %v1332, %v1361
    %v1383 = vadd.f32 %v1333, %v1363
    %v1384 = vadd.f32 %v1334, %v1365
    %v1385 = vadd.f32 %v1335, %v1367
    %v1386 = vadd.f32 %v1336, %v1369
    %v1387 = vadd.f32 %v1337, %v1371
    %v1388 = vld [vmem:[%s356] sm:$0xff]
    %v1389 = vld [vmem:[%s356 + $0x8] sm:$0xff]
    %v1390 = vld [vmem:[%s356 + $0x10] sm:$0xff]
    %v1391 = vld [vmem:[%s356 + $0x18] sm:$0xff]
    %v1392 = vld [vmem:[%s356 + $0x20] sm:$0xff]
    %v1393 = vld [vmem:[%s356 + $0x28] sm:$0xff]
    %v1394 = vld [vmem:[%s356 + $0x30] sm:$0xff]
    %v1395 = vld [vmem:[%s356 + $0x38] sm:$0xff]
    %s1396 = sld [smem:[#allocation7 + $0xa]]
    %v1397 = vstv %s1396
    %v1398 = vmul.f32 %v1397, %v1388
    %v1399 = vmul.f32 %v1397, %v1389
    %v1400 = vmul.f32 %v1397, %v1390
    %v1401 = vmul.f32 %v1397, %v1391
    %v1402 = vmul.f32 %v1397, %v1392
    %v1403 = vmul.f32 %v1397, %v1393
    %v1404 = vmul.f32 %v1397, %v1394
    %v1405 = vmul.f32 %v1397, %v1395
    %v1406 = vadd.f32 %v1380, %v1398
    %v1407 = vadd.f32 %v1381, %v1399
    %v1408 = vadd.f32 %v1382, %v1400
    %v1409 = vadd.f32 %v1383, %v1401
    %v1410 = vadd.f32 %v1384, %v1402
    %v1411 = vadd.f32 %v1385, %v1403
    %v1412 = vadd.f32 %v1386, %v1404
    %v1413 = vadd.f32 %v1387, %v1405
    %s1414 = sld [smem:[#allocation7 + $0x1a]]
    %v1415 = vstv %s1414
    %v1416 = vmul.f32 %v1415, %v1388
    %v1417 = vmul.f32 %v1415, %v1389
    %v1418 = vmul.f32 %v1415, %v1390
    %v1419 = vmul.f32 %v1415, %v1391
    %v1420 = vmul.f32 %v1415, %v1392
    %v1421 = vmul.f32 %v1415, %v1393
    %v1422 = vmul.f32 %v1415, %v1394
    %v1423 = vmul.f32 %v1415, %v1395
    %1432 = vrot.lane.b32.xlu0 %v1416, 126
    %v1433 = vpop.permute.xlu0 %1432
    %1434 = vrot.lane.b32.xlu0 %v1417, 126
    %v1435 = vpop.permute.xlu0 %1434
    %1436 = vrot.lane.b32.xlu0 %v1418, 126
    %v1437 = vpop.permute.xlu0 %1436
    %1438 = vrot.lane.b32.xlu0 %v1419, 126
    %v1439 = vpop.permute.xlu0 %1438
    %1440 = vrot.lane.b32.xlu0 %v1420, 126
    %v1441 = vpop.permute.xlu0 %1440
    %1442 = vrot.lane.b32.xlu0 %v1421, 126
    %v1443 = vpop.permute.xlu0 %1442
    %1444 = vrot.lane.b32.xlu0 %v1422, 126
    %v1445 = vpop.permute.xlu0 %1444
    %1446 = vrot.lane.b32.xlu0 %v1423, 126
    %v1447 = vpop.permute.xlu0 %1446
    %v1456 = vadd.f32 %v1406, %v1433
    %v1457 = vadd.f32 %v1407, %v1435
    %v1458 = vadd.f32 %v1408, %v1437
    %v1459 = vadd.f32 %v1409, %v1439
    %v1460 = vadd.f32 %v1410, %v1441
    %v1461 = vadd.f32 %v1411, %v1443
    %v1462 = vadd.f32 %v1412, %v1445
    %v1463 = vadd.f32 %v1413, %v1447
    %s1464 = sld [smem:[#allocation7 + $0x2a]]
    %v1465 = vstv %s1464
    %v1466 = vmul.f32 %v1465, %v1388
    %v1467 = vmul.f32 %v1465, %v1389
    %v1468 = vmul.f32 %v1465, %v1390
    %v1469 = vmul.f32 %v1465, %v1391
    %v1470 = vmul.f32 %v1465, %v1392
    %v1471 = vmul.f32 %v1465, %v1393
    %v1472 = vmul.f32 %v1465, %v1394
    %v1473 = vmul.f32 %v1465, %v1395
    %1482 = vrot.lane.b32.xlu0 %v1466, 124
    %v1483 = vpop.permute.xlu0 %1482
    %1484 = vrot.lane.b32.xlu0 %v1467, 124
    %v1485 = vpop.permute.xlu0 %1484
    %1486 = vrot.lane.b32.xlu0 %v1468, 124
    %v1487 = vpop.permute.xlu0 %1486
    %1488 = vrot.lane.b32.xlu0 %v1469, 124
    %v1489 = vpop.permute.xlu0 %1488
    %1490 = vrot.lane.b32.xlu0 %v1470, 124
    %v1491 = vpop.permute.xlu0 %1490
    %1492 = vrot.lane.b32.xlu0 %v1471, 124
    %v1493 = vpop.permute.xlu0 %1492
    %1494 = vrot.lane.b32.xlu0 %v1472, 124
    %v1495 = vpop.permute.xlu0 %1494
    %1496 = vrot.lane.b32.xlu0 %v1473, 124
    %v1497 = vpop.permute.xlu0 %1496
    %v1506 = vadd.f32 %v1456, %v1483
    %v1507 = vadd.f32 %v1457, %v1485
    %v1508 = vadd.f32 %v1458, %v1487
    %v1509 = vadd.f32 %v1459, %v1489
    %v1510 = vadd.f32 %v1460, %v1491
    %v1511 = vadd.f32 %v1461, %v1493
    %v1512 = vadd.f32 %v1462, %v1495
    %v1513 = vadd.f32 %v1463, %v1497
    %v1514 = vld [vmem:[%s483] sm:$0xff]
    %v1515 = vld [vmem:[%s483 + $0x8] sm:$0xff]
    %v1516 = vld [vmem:[%s483 + $0x10] sm:$0xff]
    %v1517 = vld [vmem:[%s483 + $0x18] sm:$0xff]
    %v1518 = vld [vmem:[%s483 + $0x20] sm:$0xff]
    %v1519 = vld [vmem:[%s483 + $0x28] sm:$0xff]
    %v1520 = vld [vmem:[%s483 + $0x30] sm:$0xff]
    %v1521 = vld [vmem:[%s483 + $0x38] sm:$0xff]
    %s1522 = sld [smem:[#allocation7 + $0xe]]
    %v1523 = vstv %s1522
    %v1524 = vmul.f32 %v1523, %v1514
    %v1525 = vmul.f32 %v1523, %v1515
    %v1526 = vmul.f32 %v1523, %v1516
    %v1527 = vmul.f32 %v1523, %v1517
    %v1528 = vmul.f32 %v1523, %v1518
    %v1529 = vmul.f32 %v1523, %v1519
    %v1530 = vmul.f32 %v1523, %v1520
    %v1531 = vmul.f32 %v1523, %v1521
    %v1532 = vadd.f32 %v1506, %v1524
    %v1533 = vadd.f32 %v1507, %v1525
    %v1534 = vadd.f32 %v1508, %v1526
    %v1535 = vadd.f32 %v1509, %v1527
    %v1536 = vadd.f32 %v1510, %v1528
    %v1537 = vadd.f32 %v1511, %v1529
    %v1538 = vadd.f32 %v1512, %v1530
    %v1539 = vadd.f32 %v1513, %v1531
    %s1540 = sld [smem:[#allocation7 + $0x1e]]
    %v1541 = vstv %s1540
    %v1542 = vmul.f32 %v1541, %v1514
    %v1543 = vmul.f32 %v1541, %v1515
    %v1544 = vmul.f32 %v1541, %v1516
    %v1545 = vmul.f32 %v1541, %v1517
    %v1546 = vmul.f32 %v1541, %v1518
    %v1547 = vmul.f32 %v1541, %v1519
    %v1548 = vmul.f32 %v1541, %v1520
    %v1549 = vmul.f32 %v1541, %v1521
    %1558 = vrot.lane.b32.xlu0 %v1542, 126
    %v1559 = vpop.permute.xlu0 %1558
    %1560 = vrot.lane.b32.xlu0 %v1543, 126
    %v1561 = vpop.permute.xlu0 %1560
    %1562 = vrot.lane.b32.xlu0 %v1544, 126
    %v1563 = vpop.permute.xlu0 %1562
    %1564 = vrot.lane.b32.xlu0 %v1545, 126
    %v1565 = vpop.permute.xlu0 %1564
    %1566 = vrot.lane.b32.xlu0 %v1546, 126
    %v1567 = vpop.permute.xlu0 %1566
    %1568 = vrot.lane.b32.xlu0 %v1547, 126
    %v1569 = vpop.permute.xlu0 %1568
    %1570 = vrot.lane.b32.xlu0 %v1548, 126
    %v1571 = vpop.permute.xlu0 %1570
    %1572 = vrot.lane.b32.xlu0 %v1549, 126
    %v1573 = vpop.permute.xlu0 %1572
    %v1582 = vadd.f32 %v1532, %v1559
    %v1583 = vadd.f32 %v1533, %v1561
    %v1584 = vadd.f32 %v1534, %v1563
    %v1585 = vadd.f32 %v1535, %v1565
    %v1586 = vadd.f32 %v1536, %v1567
    %v1587 = vadd.f32 %v1537, %v1569
    %v1588 = vadd.f32 %v1538, %v1571
    %v1589 = vadd.f32 %v1539, %v1573
    %s1590 = sld [smem:[#allocation7 + $0x2e]]
    %v1591 = vstv %s1590
    %v1592 = vmul.f32 %v1591, %v1514
    %v1593 = vmul.f32 %v1591, %v1515
    %v1594 = vmul.f32 %v1591, %v1516
    %v1595 = vmul.f32 %v1591, %v1517
    %v1596 = vmul.f32 %v1591, %v1518
    %v1597 = vmul.f32 %v1591, %v1519
    %v1598 = vmul.f32 %v1591, %v1520
    %v1599 = vmul.f32 %v1591, %v1521
    %1608 = vrot.lane.b32.xlu0 %v1592, 124
    %v1609 = vpop.permute.xlu0 %1608
    %1610 = vrot.lane.b32.xlu0 %v1593, 124
    %v1611 = vpop.permute.xlu0 %1610
    %1612 = vrot.lane.b32.xlu0 %v1594, 124
    %v1613 = vpop.permute.xlu0 %1612
    %1614 = vrot.lane.b32.xlu0 %v1595, 124
    %v1615 = vpop.permute.xlu0 %1614
    %1616 = vrot.lane.b32.xlu0 %v1596, 124
    %v1617 = vpop.permute.xlu0 %1616
    %1618 = vrot.lane.b32.xlu0 %v1597, 124
    %v1619 = vpop.permute.xlu0 %1618
    %1620 = vrot.lane.b32.xlu0 %v1598, 124
    %v1621 = vpop.permute.xlu0 %1620
    %1622 = vrot.lane.b32.xlu0 %v1599, 124
    %v1623 = vpop.permute.xlu0 %1622
    %v1632 = vadd.f32 %v1582, %v1609
    %v1633 = vadd.f32 %v1583, %v1611
    %v1634 = vadd.f32 %v1584, %v1613
    %v1635 = vadd.f32 %v1585, %v1615
    %v1636 = vadd.f32 %v1586, %v1617
    %v1637 = vadd.f32 %v1587, %v1619
    %v1638 = vadd.f32 %v1588, %v1621
    %v1639 = vadd.f32 %v1589, %v1623
    %s1640 = sld [smem:[#allocation8 + $0x2]]
    %v1641 = vstv %s1640
    %v1642 = vadd.f32 %v1632, %v1641
    %v1643 = vadd.f32 %v1633, %v1641
    %v1644 = vadd.f32 %v1634, %v1641
    %v1645 = vadd.f32 %v1635, %v1641
    %v1646 = vadd.f32 %v1636, %v1641
    %v1647 = vadd.f32 %v1637, %v1641
    %v1648 = vadd.f32 %v1638, %v1641
    %v1649 = vadd.f32 %v1639, %v1641
    %s1650 = scalar_lea.vmem [#allocation2], 128
    %1651 = vst.msk [vmem:[%s1650] sm:$0xff] %vm620, %v1642
    %1652 = vst.msk [vmem:[%s1650 + $0x8] sm:$0xff] %vm620, %v1643
    %1653 = vst.msk [vmem:[%s1650 + $0x10] sm:$0xff] %vm620, %v1644
    %1654 = vst.msk [vmem:[%s1650 + $0x18] sm:$0xff] %vm620, %v1645
    %1655 = vst.msk [vmem:[%s1650 + $0x20] sm:$0xff] %vm620, %v1646
    %1656 = vst.msk [vmem:[%s1650 + $0x28] sm:$0xff] %vm620, %v1647
    %1657 = vst.msk [vmem:[%s1650 + $0x30] sm:$0xff] %vm620, %v1648
    %1658 = vst.msk [vmem:[%s1650 + $0x38] sm:$0xff] %vm620, %v1649
    %v1659 = vld [vmem:[#allocation4] sm:$0xff]
    %v1660 = vld [vmem:[#allocation4 + $0x8] sm:$0xff]
    %v1661 = vld [vmem:[#allocation4 + $0x10] sm:$0xff]
    %v1662 = vld [vmem:[#allocation4 + $0x18] sm:$0xff]
    %v1663 = vld [vmem:[#allocation4 + $0x20] sm:$0xff]
    %v1664 = vld [vmem:[#allocation4 + $0x28] sm:$0xff]
    %v1665 = vld [vmem:[#allocation4 + $0x30] sm:$0xff]
    %v1666 = vld [vmem:[#allocation4 + $0x38] sm:$0xff]
    %s1667 = sld [smem:[#allocation7 + $0x3]]
    %v1668 = vstv %s1667
    %v1669 = vmul.f32 %v1668, %v1659
    %v1670 = vmul.f32 %v1668, %v1660
    %v1671 = vmul.f32 %v1668, %v1661
    %v1672 = vmul.f32 %v1668, %v1662
    %v1673 = vmul.f32 %v1668, %v1663
    %v1674 = vmul.f32 %v1668, %v1664
    %v1675 = vmul.f32 %v1668, %v1665
    %v1676 = vmul.f32 %v1668, %v1666
    %s1677 = sld [smem:[#allocation7 + $0x13]]
    %v1678 = vstv %s1677
    %v1679 = vmul.f32 %v1678, %v1659
    %v1680 = vmul.f32 %v1678, %v1660
    %v1681 = vmul.f32 %v1678, %v1661
    %v1682 = vmul.f32 %v1678, %v1662
    %v1683 = vmul.f32 %v1678, %v1663
    %v1684 = vmul.f32 %v1678, %v1664
    %v1685 = vmul.f32 %v1678, %v1665
    %v1686 = vmul.f32 %v1678, %v1666
    %1695 = vrot.lane.b32.xlu0 %v1679, 126
    %v1696 = vpop.permute.xlu0 %1695
    %1697 = vrot.lane.b32.xlu0 %v1680, 126
    %v1698 = vpop.permute.xlu0 %1697
    %1699 = vrot.lane.b32.xlu0 %v1681, 126
    %v1700 = vpop.permute.xlu0 %1699
    %1701 = vrot.lane.b32.xlu0 %v1682, 126
    %v1702 = vpop.permute.xlu0 %1701
    %1703 = vrot.lane.b32.xlu0 %v1683, 126
    %v1704 = vpop.permute.xlu0 %1703
    %1705 = vrot.lane.b32.xlu0 %v1684, 126
    %v1706 = vpop.permute.xlu0 %1705
    %1707 = vrot.lane.b32.xlu0 %v1685, 126
    %v1708 = vpop.permute.xlu0 %1707
    %1709 = vrot.lane.b32.xlu0 %v1686, 126
    %v1710 = vpop.permute.xlu0 %1709
    %v1719 = vadd.f32 %v1669, %v1696
    %v1720 = vadd.f32 %v1670, %v1698
    %v1721 = vadd.f32 %v1671, %v1700
    %v1722 = vadd.f32 %v1672, %v1702
    %v1723 = vadd.f32 %v1673, %v1704
    %v1724 = vadd.f32 %v1674, %v1706
    %v1725 = vadd.f32 %v1675, %v1708
    %v1726 = vadd.f32 %v1676, %v1710
    %s1727 = sld [smem:[#allocation7 + $0x23]]
    %v1728 = vstv %s1727
    %v1729 = vmul.f32 %v1728, %v1659
    %v1730 = vmul.f32 %v1728, %v1660
    %v1731 = vmul.f32 %v1728, %v1661
    %v1732 = vmul.f32 %v1728, %v1662
    %v1733 = vmul.f32 %v1728, %v1663
    %v1734 = vmul.f32 %v1728, %v1664
    %v1735 = vmul.f32 %v1728, %v1665
    %v1736 = vmul.f32 %v1728, %v1666
    %1745 = vrot.lane.b32.xlu0 %v1729, 124
    %v1746 = vpop.permute.xlu0 %1745
    %1747 = vrot.lane.b32.xlu0 %v1730, 124
    %v1748 = vpop.permute.xlu0 %1747
    %1749 = vrot.lane.b32.xlu0 %v1731, 124
    %v1750 = vpop.permute.xlu0 %1749
    %1751 = vrot.lane.b32.xlu0 %v1732, 124
    %v1752 = vpop.permute.xlu0 %1751
    %1753 = vrot.lane.b32.xlu0 %v1733, 124
    %v1754 = vpop.permute.xlu0 %1753
    %1755 = vrot.lane.b32.xlu0 %v1734, 124
    %v1756 = vpop.permute.xlu0 %1755
    %1757 = vrot.lane.b32.xlu0 %v1735, 124
    %v1758 = vpop.permute.xlu0 %1757
    %1759 = vrot.lane.b32.xlu0 %v1736, 124
    %v1760 = vpop.permute.xlu0 %1759
    %v1769 = vadd.f32 %v1719, %v1746
    %v1770 = vadd.f32 %v1720, %v1748
    %v1771 = vadd.f32 %v1721, %v1750
    %v1772 = vadd.f32 %v1722, %v1752
    %v1773 = vadd.f32 %v1723, %v1754
    %v1774 = vadd.f32 %v1724, %v1756
    %v1775 = vadd.f32 %v1725, %v1758
    %v1776 = vadd.f32 %v1726, %v1760
    %v1777 = vld [vmem:[%s229] sm:$0xff]
    %v1778 = vld [vmem:[%s229 + $0x8] sm:$0xff]
    %v1779 = vld [vmem:[%s229 + $0x10] sm:$0xff]
    %v1780 = vld [vmem:[%s229 + $0x18] sm:$0xff]
    %v1781 = vld [vmem:[%s229 + $0x20] sm:$0xff]
    %v1782 = vld [vmem:[%s229 + $0x28] sm:$0xff]
    %v1783 = vld [vmem:[%s229 + $0x30] sm:$0xff]
    %v1784 = vld [vmem:[%s229 + $0x38] sm:$0xff]
    %s1785 = sld [smem:[#allocation7 + $0x7]]
    %v1786 = vstv %s1785
    %v1787 = vmul.f32 %v1786, %v1777
    %v1788 = vmul.f32 %v1786, %v1778
    %v1789 = vmul.f32 %v1786, %v1779
    %v1790 = vmul.f32 %v1786, %v1780
    %v1791 = vmul.f32 %v1786, %v1781
    %v1792 = vmul.f32 %v1786, %v1782
    %v1793 = vmul.f32 %v1786, %v1783
    %v1794 = vmul.f32 %v1786, %v1784
    %v1795 = vadd.f32 %v1769, %v1787
    %v1796 = vadd.f32 %v1770, %v1788
    %v1797 = vadd.f32 %v1771, %v1789
    %v1798 = vadd.f32 %v1772, %v1790
    %v1799 = vadd.f32 %v1773, %v1791
    %v1800 = vadd.f32 %v1774, %v1792
    %v1801 = vadd.f32 %v1775, %v1793
    %v1802 = vadd.f32 %v1776, %v1794
    %s1803 = sld [smem:[#allocation7 + $0x17]]
    %v1804 = vstv %s1803
    %v1805 = vmul.f32 %v1804, %v1777
    %v1806 = vmul.f32 %v1804, %v1778
    %v1807 = vmul.f32 %v1804, %v1779
    %v1808 = vmul.f32 %v1804, %v1780
    %v1809 = vmul.f32 %v1804, %v1781
    %v1810 = vmul.f32 %v1804, %v1782
    %v1811 = vmul.f32 %v1804, %v1783
    %v1812 = vmul.f32 %v1804, %v1784
    %1821 = vrot.lane.b32.xlu0 %v1805, 126
    %v1822 = vpop.permute.xlu0 %1821
    %1823 = vrot.lane.b32.xlu0 %v1806, 126
    %v1824 = vpop.permute.xlu0 %1823
    %1825 = vrot.lane.b32.xlu0 %v1807, 126
    %v1826 = vpop.permute.xlu0 %1825
    %1827 = vrot.lane.b32.xlu0 %v1808, 126
    %v1828 = vpop.permute.xlu0 %1827
    %1829 = vrot.lane.b32.xlu0 %v1809, 126
    %v1830 = vpop.permute.xlu0 %1829
    %1831 = vrot.lane.b32.xlu0 %v1810, 126
    %v1832 = vpop.permute.xlu0 %1831
    %1833 = vrot.lane.b32.xlu0 %v1811, 126
    %v1834 = vpop.permute.xlu0 %1833
    %1835 = vrot.lane.b32.xlu0 %v1812, 126
    %v1836 = vpop.permute.xlu0 %1835
    %v1845 = vadd.f32 %v1795, %v1822
    %v1846 = vadd.f32 %v1796, %v1824
    %v1847 = vadd.f32 %v1797, %v1826
    %v1848 = vadd.f32 %v1798, %v1828
    %v1849 = vadd.f32 %v1799, %v1830
    %v1850 = vadd.f32 %v1800, %v1832
    %v1851 = vadd.f32 %v1801, %v1834
    %v1852 = vadd.f32 %v1802, %v1836
    %s1853 = sld [smem:[#allocation7 + $0x27]]
    %v1854 = vstv %s1853
    %v1855 = vmul.f32 %v1854, %v1777
    %v1856 = vmul.f32 %v1854, %v1778
    %v1857 = vmul.f32 %v1854, %v1779
    %v1858 = vmul.f32 %v1854, %v1780
    %v1859 = vmul.f32 %v1854, %v1781
    %v1860 = vmul.f32 %v1854, %v1782
    %v1861 = vmul.f32 %v1854, %v1783
    %v1862 = vmul.f32 %v1854, %v1784
    %1871 = vrot.lane.b32.xlu0 %v1855, 124
    %v1872 = vpop.permute.xlu0 %1871
    %1873 = vrot.lane.b32.xlu0 %v1856, 124
    %v1874 = vpop.permute.xlu0 %1873
    %1875 = vrot.lane.b32.xlu0 %v1857, 124
    %v1876 = vpop.permute.xlu0 %1875
    %1877 = vrot.lane.b32.xlu0 %v1858, 124
    %v1878 = vpop.permute.xlu0 %1877
    %1879 = vrot.lane.b32.xlu0 %v1859, 124
    %v1880 = vpop.permute.xlu0 %1879
    %1881 = vrot.lane.b32.xlu0 %v1860, 124
    %v1882 = vpop.permute.xlu0 %1881
    %1883 = vrot.lane.b32.xlu0 %v1861, 124
    %v1884 = vpop.permute.xlu0 %1883
    %1885 = vrot.lane.b32.xlu0 %v1862, 124
    %v1886 = vpop.permute.xlu0 %1885
    %v1895 = vadd.f32 %v1845, %v1872
    %v1896 = vadd.f32 %v1846, %v1874
    %v1897 = vadd.f32 %v1847, %v1876
    %v1898 = vadd.f32 %v1848, %v1878
    %v1899 = vadd.f32 %v1849, %v1880
    %v1900 = vadd.f32 %v1850, %v1882
    %v1901 = vadd.f32 %v1851, %v1884
    %v1902 = vadd.f32 %v1852, %v1886
    %v1903 = vld [vmem:[%s356] sm:$0xff]
    %v1904 = vld [vmem:[%s356 + $0x8] sm:$0xff]
    %v1905 = vld [vmem:[%s356 + $0x10] sm:$0xff]
    %v1906 = vld [vmem:[%s356 + $0x18] sm:$0xff]
    %v1907 = vld [vmem:[%s356 + $0x20] sm:$0xff]
    %v1908 = vld [vmem:[%s356 + $0x28] sm:$0xff]
    %v1909 = vld [vmem:[%s356 + $0x30] sm:$0xff]
    %v1910 = vld [vmem:[%s356 + $0x38] sm:$0xff]
    %s1911 = sld [smem:[#allocation7 + $0xb]]
    %v1912 = vstv %s1911
    %v1913 = vmul.f32 %v1912, %v1903
    %v1914 = vmul.f32 %v1912, %v1904
    %v1915 = vmul.f32 %v1912, %v1905
    %v1916 = vmul.f32 %v1912, %v1906
    %v1917 = vmul.f32 %v1912, %v1907
    %v1918 = vmul.f32 %v1912, %v1908
    %v1919 = vmul.f32 %v1912, %v1909
    %v1920 = vmul.f32 %v1912, %v1910
    %v1921 = vadd.f32 %v1895, %v1913
    %v1922 = vadd.f32 %v1896, %v1914
    %v1923 = vadd.f32 %v1897, %v1915
    %v1924 = vadd.f32 %v1898, %v1916
    %v1925 = vadd.f32 %v1899, %v1917
    %v1926 = vadd.f32 %v1900, %v1918
    %v1927 = vadd.f32 %v1901, %v1919
    %v1928 = vadd.f32 %v1902, %v1920
    %s1929 = sld [smem:[#allocation7 + $0x1b]]
    %v1930 = vstv %s1929
    %v1931 = vmul.f32 %v1930, %v1903
    %v1932 = vmul.f32 %v1930, %v1904
    %v1933 = vmul.f32 %v1930, %v1905
    %v1934 = vmul.f32 %v1930, %v1906
    %v1935 = vmul.f32 %v1930, %v1907
    %v1936 = vmul.f32 %v1930, %v1908
    %v1937 = vmul.f32 %v1930, %v1909
    %v1938 = vmul.f32 %v1930, %v1910
    %1947 = vrot.lane.b32.xlu0 %v1931, 126
    %v1948 = vpop.permute.xlu0 %1947
    %1949 = vrot.lane.b32.xlu0 %v1932, 126
    %v1950 = vpop.permute.xlu0 %1949
    %1951 = vrot.lane.b32.xlu0 %v1933, 126
    %v1952 = vpop.permute.xlu0 %1951
    %1953 = vrot.lane.b32.xlu0 %v1934, 126
    %v1954 = vpop.permute.xlu0 %1953
    %1955 = vrot.lane.b32.xlu0 %v1935, 126
    %v1956 = vpop.permute.xlu0 %1955
    %1957 = vrot.lane.b32.xlu0 %v1936, 126
    %v1958 = vpop.permute.xlu0 %1957
    %1959 = vrot.lane.b32.xlu0 %v1937, 126
    %v1960 = vpop.permute.xlu0 %1959
    %1961 = vrot.lane.b32.xlu0 %v1938, 126
    %v1962 = vpop.permute.xlu0 %1961
    %v1971 = vadd.f32 %v1921, %v1948
    %v1972 = vadd.f32 %v1922, %v1950
    %v1973 = vadd.f32 %v1923, %v1952
    %v1974 = vadd.f32 %v1924, %v1954
    %v1975 = vadd.f32 %v1925, %v1956
    %v1976 = vadd.f32 %v1926, %v1958
    %v1977 = vadd.f32 %v1927, %v1960
    %v1978 = vadd.f32 %v1928, %v1962
    %s1979 = sld [smem:[#allocation7 + $0x2b]]
    %v1980 = vstv %s1979
    %v1981 = vmul.f32 %v1980, %v1903
    %v1982 = vmul.f32 %v1980, %v1904
    %v1983 = vmul.f32 %v1980, %v1905
    %v1984 = vmul.f32 %v1980, %v1906
    %v1985 = vmul.f32 %v1980, %v1907
    %v1986 = vmul.f32 %v1980, %v1908
    %v1987 = vmul.f32 %v1980, %v1909
    %v1988 = vmul.f32 %v1980, %v1910
    %1997 = vrot.lane.b32.xlu0 %v1981, 124
    %v1998 = vpop.permute.xlu0 %1997
    %1999 = vrot.lane.b32.xlu0 %v1982, 124
    %v2000 = vpop.permute.xlu0 %1999
    %2001 = vrot.lane.b32.xlu0 %v1983, 124
    %v2002 = vpop.permute.xlu0 %2001
    %2003 = vrot.lane.b32.xlu0 %v1984, 124
    %v2004 = vpop.permute.xlu0 %2003
    %2005 = vrot.lane.b32.xlu0 %v1985, 124
    %v2006 = vpop.permute.xlu0 %2005
    %2007 = vrot.lane.b32.xlu0 %v1986, 124
    %v2008 = vpop.permute.xlu0 %2007
    %2009 = vrot.lane.b32.xlu0 %v1987, 124
    %v2010 = vpop.permute.xlu0 %2009
    %2011 = vrot.lane.b32.xlu0 %v1988, 124
    %v2012 = vpop.permute.xlu0 %2011
    %v2021 = vadd.f32 %v1971, %v1998
    %v2022 = vadd.f32 %v1972, %v2000
    %v2023 = vadd.f32 %v1973, %v2002
    %v2024 = vadd.f32 %v1974, %v2004
    %v2025 = vadd.f32 %v1975, %v2006
    %v2026 = vadd.f32 %v1976, %v2008
    %v2027 = vadd.f32 %v1977, %v2010
    %v2028 = vadd.f32 %v1978, %v2012
    %v2029 = vld [vmem:[%s483] sm:$0xff]
    %v2030 = vld [vmem:[%s483 + $0x8] sm:$0xff]
    %v2031 = vld [vmem:[%s483 + $0x10] sm:$0xff]
    %v2032 = vld [vmem:[%s483 + $0x18] sm:$0xff]
    %v2033 = vld [vmem:[%s483 + $0x20] sm:$0xff]
    %v2034 = vld [vmem:[%s483 + $0x28] sm:$0xff]
    %v2035 = vld [vmem:[%s483 + $0x30] sm:$0xff]
    %v2036 = vld [vmem:[%s483 + $0x38] sm:$0xff]
    %s2037 = sld [smem:[#allocation7 + $0xf]]
    %v2038 = vstv %s2037
    %v2039 = vmul.f32 %v2038, %v2029
    %v2040 = vmul.f32 %v2038, %v2030
    %v2041 = vmul.f32 %v2038, %v2031
    %v2042 = vmul.f32 %v2038, %v2032
    %v2043 = vmul.f32 %v2038, %v2033
    %v2044 = vmul.f32 %v2038, %v2034
    %v2045 = vmul.f32 %v2038, %v2035
    %v2046 = vmul.f32 %v2038, %v2036
    %v2047 = vadd.f32 %v2021, %v2039
    %v2048 = vadd.f32 %v2022, %v2040
    %v2049 = vadd.f32 %v2023, %v2041
    %v2050 = vadd.f32 %v2024, %v2042
    %v2051 = vadd.f32 %v2025, %v2043
    %v2052 = vadd.f32 %v2026, %v2044
    %v2053 = vadd.f32 %v2027, %v2045
    %v2054 = vadd.f32 %v2028, %v2046
    %s2055 = sld [smem:[#allocation7 + $0x1f]]
    %v2056 = vstv %s2055
    %v2057 = vmul.f32 %v2056, %v2029
    %v2058 = vmul.f32 %v2056, %v2030
    %v2059 = vmul.f32 %v2056, %v2031
    %v2060 = vmul.f32 %v2056, %v2032
    %v2061 = vmul.f32 %v2056, %v2033
    %v2062 = vmul.f32 %v2056, %v2034
    %v2063 = vmul.f32 %v2056, %v2035
    %v2064 = vmul.f32 %v2056, %v2036
    %2073 = vrot.lane.b32.xlu0 %v2057, 126
    %v2074 = vpop.permute.xlu0 %2073
    %2075 = vrot.lane.b32.xlu0 %v2058, 126
    %v2076 = vpop.permute.xlu0 %2075
    %2077 = vrot.lane.b32.xlu0 %v2059, 126
    %v2078 = vpop.permute.xlu0 %2077
    %2079 = vrot.lane.b32.xlu0 %v2060, 126
    %v2080 = vpop.permute.xlu0 %2079
    %2081 = vrot.lane.b32.xlu0 %v2061, 126
    %v2082 = vpop.permute.xlu0 %2081
    %2083 = vrot.lane.b32.xlu0 %v2062, 126
    %v2084 = vpop.permute.xlu0 %2083
    %2085 = vrot.lane.b32.xlu0 %v2063, 126
    %v2086 = vpop.permute.xlu0 %2085
    %2087 = vrot.lane.b32.xlu0 %v2064, 126
    %v2088 = vpop.permute.xlu0 %2087
    %v2097 = vadd.f32 %v2047, %v2074
    %v2098 = vadd.f32 %v2048, %v2076
    %v2099 = vadd.f32 %v2049, %v2078
    %v2100 = vadd.f32 %v2050, %v2080
    %v2101 = vadd.f32 %v2051, %v2082
    %v2102 = vadd.f32 %v2052, %v2084
    %v2103 = vadd.f32 %v2053, %v2086
    %v2104 = vadd.f32 %v2054, %v2088
    %s2105 = sld [smem:[#allocation7 + $0x2f]]
    %v2106 = vstv %s2105
    %v2107 = vmul.f32 %v2106, %v2029
    %v2108 = vmul.f32 %v2106, %v2030
    %v2109 = vmul.f32 %v2106, %v2031
    %v2110 = vmul.f32 %v2106, %v2032
    %v2111 = vmul.f32 %v2106, %v2033
    %v2112 = vmul.f32 %v2106, %v2034
    %v2113 = vmul.f32 %v2106, %v2035
    %v2114 = vmul.f32 %v2106, %v2036
    %2123 = vrot.lane.b32.xlu0 %v2107, 124
    %v2124 = vpop.permute.xlu0 %2123
    %2125 = vrot.lane.b32.xlu0 %v2108, 124
    %v2126 = vpop.permute.xlu0 %2125
    %2127 = vrot.lane.b32.xlu0 %v2109, 124
    %v2128 = vpop.permute.xlu0 %2127
    %2129 = vrot.lane.b32.xlu0 %v2110, 124
    %v2130 = vpop.permute.xlu0 %2129
    %2131 = vrot.lane.b32.xlu0 %v2111, 124
    %v2132 = vpop.permute.xlu0 %2131
    %2133 = vrot.lane.b32.xlu0 %v2112, 124
    %v2134 = vpop.permute.xlu0 %2133
    %2135 = vrot.lane.b32.xlu0 %v2113, 124
    %v2136 = vpop.permute.xlu0 %2135
    %2137 = vrot.lane.b32.xlu0 %v2114, 124
    %v2138 = vpop.permute.xlu0 %2137
    %v2147 = vadd.f32 %v2097, %v2124
    %v2148 = vadd.f32 %v2098, %v2126
    %v2149 = vadd.f32 %v2099, %v2128
    %v2150 = vadd.f32 %v2100, %v2130
    %v2151 = vadd.f32 %v2101, %v2132
    %v2152 = vadd.f32 %v2102, %v2134
    %v2153 = vadd.f32 %v2103, %v2136
    %v2154 = vadd.f32 %v2104, %v2138
    %s2155 = sld [smem:[#allocation8 + $0x3]]
    %v2156 = vstv %s2155
    %v2157 = vadd.f32 %v2147, %v2156
    %v2158 = vadd.f32 %v2148, %v2156
    %v2159 = vadd.f32 %v2149, %v2156
    %v2160 = vadd.f32 %v2150, %v2156
    %v2161 = vadd.f32 %v2151, %v2156
    %v2162 = vadd.f32 %v2152, %v2156
    %v2163 = vadd.f32 %v2153, %v2156
    %v2164 = vadd.f32 %v2154, %v2156
    %s2165 = scalar_lea.vmem [#allocation2], 192
    %2166 = vst.msk [vmem:[%s2165] sm:$0xff] %vm620, %v2157
    %2167 = vst.msk [vmem:[%s2165 + $0x8] sm:$0xff] %vm620, %v2158
    %2168 = vst.msk [vmem:[%s2165 + $0x10] sm:$0xff] %vm620, %v2159
    %2169 = vst.msk [vmem:[%s2165 + $0x18] sm:$0xff] %vm620, %v2160
    %2170 = vst.msk [vmem:[%s2165 + $0x20] sm:$0xff] %vm620, %v2161
    %2171 = vst.msk [vmem:[%s2165 + $0x28] sm:$0xff] %vm620, %v2162
    %2172 = vst.msk [vmem:[%s2165 + $0x30] sm:$0xff] %vm620, %v2163
    %2173 = vst.msk [vmem:[%s2165 + $0x38] sm:$0xff] %vm620, %v2164
    %v2174 = vld [vmem:[#allocation2] sm:$0xff]
    %v2175 = vld [vmem:[#allocation2 + $0x8] sm:$0xff]
    %v2176 = vld [vmem:[#allocation2 + $0x10] sm:$0xff]
    %v2177 = vld [vmem:[#allocation2 + $0x18] sm:$0xff]
    %v2178 = vld [vmem:[#allocation2 + $0x20] sm:$0xff]
    %v2179 = vld [vmem:[#allocation2 + $0x28] sm:$0xff]
    %v2180 = vld [vmem:[#allocation2 + $0x30] sm:$0xff]
    %v2181 = vld [vmem:[#allocation2 + $0x38] sm:$0xff]
    %s2182 = sld [smem:[#allocation10]]
    %v2183 = vstv %s2182
    %v2184 = vmul.f32 %v2183, %v2174
    %v2185 = vmul.f32 %v2183, %v2175
    %v2186 = vmul.f32 %v2183, %v2176
    %v2187 = vmul.f32 %v2183, %v2177
    %v2188 = vmul.f32 %v2183, %v2178
    %v2189 = vmul.f32 %v2183, %v2179
    %v2190 = vmul.f32 %v2183, %v2180
    %v2191 = vmul.f32 %v2183, %v2181
    %s2192 = sld [smem:[#allocation10 + $0x10]]
    %v2193 = vstv %s2192
    %v2194 = vmul.f32 %v2193, %v2174
    %v2195 = vmul.f32 %v2193, %v2175
    %v2196 = vmul.f32 %v2193, %v2176
    %v2197 = vmul.f32 %v2193, %v2177
    %v2198 = vmul.f32 %v2193, %v2178
    %v2199 = vmul.f32 %v2193, %v2179
    %v2200 = vmul.f32 %v2193, %v2180
    %v2201 = vmul.f32 %v2193, %v2181
    %v2210 = vrot.slane %v2194, 1
    %v2211 = vrot.slane %v2195, 1
    %v2212 = vrot.slane %v2196, 1
    %v2213 = vrot.slane %v2197, 1
    %v2214 = vrot.slane %v2198, 1
    %v2215 = vrot.slane %v2199, 1
    %v2216 = vrot.slane %v2200, 1
    %v2217 = vrot.slane %v2201, 1
    %v2226 = vadd.f32 %v2184, %v2210
    %v2227 = vadd.f32 %v2185, %v2211
    %v2228 = vadd.f32 %v2186, %v2212
    %v2229 = vadd.f32 %v2187, %v2213
    %v2230 = vadd.f32 %v2188, %v2214
    %v2231 = vadd.f32 %v2189, %v2215
    %v2232 = vadd.f32 %v2190, %v2216
    %v2233 = vadd.f32 %v2191, %v2217
    %s2234 = sld [smem:[#allocation10 + $0x20]]
    %v2235 = vstv %s2234
    %v2236 = vmul.f32 %v2235, %v2174
    %v2237 = vmul.f32 %v2235, %v2175
    %v2238 = vmul.f32 %v2235, %v2176
    %v2239 = vmul.f32 %v2235, %v2177
    %v2240 = vmul.f32 %v2235, %v2178
    %v2241 = vmul.f32 %v2235, %v2179
    %v2242 = vmul.f32 %v2235, %v2180
    %v2243 = vmul.f32 %v2235, %v2181
    %v2252 = vrot.slane %v2236, 2
    %v2253 = vrot.slane %v2237, 2
    %v2254 = vrot.slane %v2238, 2
    %v2255 = vrot.slane %v2239, 2
    %v2256 = vrot.slane %v2240, 2
    %v2257 = vrot.slane %v2241, 2
    %v2258 = vrot.slane %v2242, 2
    %v2259 = vrot.slane %v2243, 2
    %v2268 = vadd.f32 %v2226, %v2252
    %v2269 = vadd.f32 %v2227, %v2253
    %v2270 = vadd.f32 %v2228, %v2254
    %v2271 = vadd.f32 %v2229, %v2255
    %v2272 = vadd.f32 %v2230, %v2256
    %v2273 = vadd.f32 %v2231, %v2257
    %v2274 = vadd.f32 %v2232, %v2258
    %v2275 = vadd.f32 %v2233, %v2259
    %v2276 = vld [vmem:[%s1135] sm:$0xff]
    %v2277 = vld [vmem:[%s1135 + $0x8] sm:$0xff]
    %v2278 = vld [vmem:[%s1135 + $0x10] sm:$0xff]
    %v2279 = vld [vmem:[%s1135 + $0x18] sm:$0xff]
    %v2280 = vld [vmem:[%s1135 + $0x20] sm:$0xff]
    %v2281 = vld [vmem:[%s1135 + $0x28] sm:$0xff]
    %v2282 = vld [vmem:[%s1135 + $0x30] sm:$0xff]
    %v2283 = vld [vmem:[%s1135 + $0x38] sm:$0xff]
    %s2284 = sld [smem:[#allocation10 + $0x4]]
    %v2285 = vstv %s2284
    %v2286 = vmul.f32 %v2285, %v2276
    %v2287 = vmul.f32 %v2285, %v2277
    %v2288 = vmul.f32 %v2285, %v2278
    %v2289 = vmul.f32 %v2285, %v2279
    %v2290 = vmul.f32 %v2285, %v2280
    %v2291 = vmul.f32 %v2285, %v2281
    %v2292 = vmul.f32 %v2285, %v2282
    %v2293 = vmul.f32 %v2285, %v2283
    %v2294 = vadd.f32 %v2268, %v2286
    %v2295 = vadd.f32 %v2269, %v2287
    %v2296 = vadd.f32 %v2270, %v2288
    %v2297 = vadd.f32 %v2271, %v2289
    %v2298 = vadd.f32 %v2272, %v2290
    %v2299 = vadd.f32 %v2273, %v2291
    %v2300 = vadd.f32 %v2274, %v2292
    %v2301 = vadd.f32 %v2275, %v2293
    %s2302 = sld [smem:[#allocation10 + $0x14]]
    %v2303 = vstv %s2302
    %v2304 = vmul.f32 %v2303, %v2276
    %v2305 = vmul.f32 %v2303, %v2277
    %v2306 = vmul.f32 %v2303, %v2278
    %v2307 = vmul.f32 %v2303, %v2279
    %v2308 = vmul.f32 %v2303, %v2280
    %v2309 = vmul.f32 %v2303, %v2281
    %v2310 = vmul.f32 %v2303, %v2282
    %v2311 = vmul.f32 %v2303, %v2283
    %v2320 = vrot.slane %v2304, 1
    %v2321 = vrot.slane %v2305, 1
    %v2322 = vrot.slane %v2306, 1
    %v2323 = vrot.slane %v2307, 1
    %v2324 = vrot.slane %v2308, 1
    %v2325 = vrot.slane %v2309, 1
    %v2326 = vrot.slane %v2310, 1
    %v2327 = vrot.slane %v2311, 1
    %v2336 = vadd.f32 %v2294, %v2320
    %v2337 = vadd.f32 %v2295, %v2321
    %v2338 = vadd.f32 %v2296, %v2322
    %v2339 = vadd.f32 %v2297, %v2323
    %v2340 = vadd.f32 %v2298, %v2324
    %v2341 = vadd.f32 %v2299, %v2325
    %v2342 = vadd.f32 %v2300, %v2326
    %v2343 = vadd.f32 %v2301, %v2327
    %s2344 = sld [smem:[#allocation10 + $0x24]]
    %v2345 = vstv %s2344
    %v2346 = vmul.f32 %v2345, %v2276
    %v2347 = vmul.f32 %v2345, %v2277
    %v2348 = vmul.f32 %v2345, %v2278
    %v2349 = vmul.f32 %v2345, %v2279
    %v2350 = vmul.f32 %v2345, %v2280
    %v2351 = vmul.f32 %v2345, %v2281
    %v2352 = vmul.f32 %v2345, %v2282
    %v2353 = vmul.f32 %v2345, %v2283
    %v2362 = vrot.slane %v2346, 2
    %v2363 = vrot.slane %v2347, 2
    %v2364 = vrot.slane %v2348, 2
    %v2365 = vrot.slane %v2349, 2
    %v2366 = vrot.slane %v2350, 2
    %v2367 = vrot.slane %v2351, 2
    %v2368 = vrot.slane %v2352, 2
    %v2369 = vrot.slane %v2353, 2
    %v2378 = vadd.f32 %v2336, %v2362
    %v2379 = vadd.f32 %v2337, %v2363
    %v2380 = vadd.f32 %v2338, %v2364
    %v2381 = vadd.f32 %v2339, %v2365
    %v2382 = vadd.f32 %v2340, %v2366
    %v2383 = vadd.f32 %v2341, %v2367
    %v2384 = vadd.f32 %v2342, %v2368
    %v2385 = vadd.f32 %v2343, %v2369
    %v2386 = vld [vmem:[%s1650] sm:$0xff]
    %v2387 = vld [vmem:[%s1650 + $0x8] sm:$0xff]
    %v2388 = vld [vmem:[%s1650 + $0x10] sm:$0xff]
    %v2389 = vld [vmem:[%s1650 + $0x18] sm:$0xff]
    %v2390 = vld [vmem:[%s1650 + $0x20] sm:$0xff]
    %v2391 = vld [vmem:[%s1650 + $0x28] sm:$0xff]
    %v2392 = vld [vmem:[%s1650 + $0x30] sm:$0xff]
    %v2393 = vld [vmem:[%s1650 + $0x38] sm:$0xff]
    %s2394 = sld [smem:[#allocation10 + $0x8]]
    %v2395 = vstv %s2394
    %v2396 = vmul.f32 %v2395, %v2386
    %v2397 = vmul.f32 %v2395, %v2387
    %v2398 = vmul.f32 %v2395, %v2388
    %v2399 = vmul.f32 %v2395, %v2389
    %v2400 = vmul.f32 %v2395, %v2390
    %v2401 = vmul.f32 %v2395, %v2391
    %v2402 = vmul.f32 %v2395, %v2392
    %v2403 = vmul.f32 %v2395, %v2393
    %v2404 = vadd.f32 %v2378, %v2396
    %v2405 = vadd.f32 %v2379, %v2397
    %v2406 = vadd.f32 %v2380, %v2398
    %v2407 = vadd.f32 %v2381, %v2399
    %v2408 = vadd.f32 %v2382, %v2400
    %v2409 = vadd.f32 %v2383, %v2401
    %v2410 = vadd.f32 %v2384, %v2402
    %v2411 = vadd.f32 %v2385, %v2403
    %s2412 = sld [smem:[#allocation10 + $0x18]]
    %v2413 = vstv %s2412
    %v2414 = vmul.f32 %v2413, %v2386
    %v2415 = vmul.f32 %v2413, %v2387
    %v2416 = vmul.f32 %v2413, %v2388
    %v2417 = vmul.f32 %v2413, %v2389
    %v2418 = vmul.f32 %v2413, %v2390
    %v2419 = vmul.f32 %v2413, %v2391
    %v2420 = vmul.f32 %v2413, %v2392
    %v2421 = vmul.f32 %v2413, %v2393
    %v2430 = vrot.slane %v2414, 1
    %v2431 = vrot.slane %v2415, 1
    %v2432 = vrot.slane %v2416, 1
    %v2433 = vrot.slane %v2417, 1
    %v2434 = vrot.slane %v2418, 1
    %v2435 = vrot.slane %v2419, 1
    %v2436 = vrot.slane %v2420, 1
    %v2437 = vrot.slane %v2421, 1
    %v2446 = vadd.f32 %v2404, %v2430
    %v2447 = vadd.f32 %v2405, %v2431
    %v2448 = vadd.f32 %v2406, %v2432
    %v2449 = vadd.f32 %v2407, %v2433
    %v2450 = vadd.f32 %v2408, %v2434
    %v2451 = vadd.f32 %v2409, %v2435
    %v2452 = vadd.f32 %v2410, %v2436
    %v2453 = vadd.f32 %v2411, %v2437
    %s2454 = sld [smem:[#allocation10 + $0x28]]
    %v2455 = vstv %s2454
    %v2456 = vmul.f32 %v2455, %v2386
    %v2457 = vmul.f32 %v2455, %v2387
    %v2458 = vmul.f32 %v2455, %v2388
    %v2459 = vmul.f32 %v2455, %v2389
    %v2460 = vmul.f32 %v2455, %v2390
    %v2461 = vmul.f32 %v2455, %v2391
    %v2462 = vmul.f32 %v2455, %v2392
    %v2463 = vmul.f32 %v2455, %v2393
    %v2472 = vrot.slane %v2456, 2
    %v2473 = vrot.slane %v2457, 2
    %v2474 = vrot.slane %v2458, 2
    %v2475 = vrot.slane %v2459, 2
    %v2476 = vrot.slane %v2460, 2
    %v2477 = vrot.slane %v2461, 2
    %v2478 = vrot.slane %v2462, 2
    %v2479 = vrot.slane %v2463, 2
    %v2488 = vadd.f32 %v2446, %v2472
    %v2489 = vadd.f32 %v2447, %v2473
    %v2490 = vadd.f32 %v2448, %v2474
    %v2491 = vadd.f32 %v2449, %v2475
    %v2492 = vadd.f32 %v2450, %v2476
    %v2493 = vadd.f32 %v2451, %v2477
    %v2494 = vadd.f32 %v2452, %v2478
    %v2495 = vadd.f32 %v2453, %v2479
    %v2496 = vld [vmem:[%s2165] sm:$0xff]
    %v2497 = vld [vmem:[%s2165 + $0x8] sm:$0xff]
    %v2498 = vld [vmem:[%s2165 + $0x10] sm:$0xff]
    %v2499 = vld [vmem:[%s2165 + $0x18] sm:$0xff]
    %v2500 = vld [vmem:[%s2165 + $0x20] sm:$0xff]
    %v2501 = vld [vmem:[%s2165 + $0x28] sm:$0xff]
    %v2502 = vld [vmem:[%s2165 + $0x30] sm:$0xff]
    %v2503 = vld [vmem:[%s2165 + $0x38] sm:$0xff]
    %s2504 = sld [smem:[#allocation10 + $0xc]]
    %v2505 = vstv %s2504
    %v2506 = vmul.f32 %v2505, %v2496
    %v2507 = vmul.f32 %v2505, %v2497
    %v2508 = vmul.f32 %v2505, %v2498
    %v2509 = vmul.f32 %v2505, %v2499
    %v2510 = vmul.f32 %v2505, %v2500
    %v2511 = vmul.f32 %v2505, %v2501
    %v2512 = vmul.f32 %v2505, %v2502
    %v2513 = vmul.f32 %v2505, %v2503
    %v2514 = vadd.f32 %v2488, %v2506
    %v2515 = vadd.f32 %v2489, %v2507
    %v2516 = vadd.f32 %v2490, %v2508
    %v2517 = vadd.f32 %v2491, %v2509
    %v2518 = vadd.f32 %v2492, %v2510
    %v2519 = vadd.f32 %v2493, %v2511
    %v2520 = vadd.f32 %v2494, %v2512
    %v2521 = vadd.f32 %v2495, %v2513
    %s2522 = sld [smem:[#allocation10 + $0x1c]]
    %v2523 = vstv %s2522
    %v2524 = vmul.f32 %v2523, %v2496
    %v2525 = vmul.f32 %v2523, %v2497
    %v2526 = vmul.f32 %v2523, %v2498
    %v2527 = vmul.f32 %v2523, %v2499
    %v2528 = vmul.f32 %v2523, %v2500
    %v2529 = vmul.f32 %v2523, %v2501
    %v2530 = vmul.f32 %v2523, %v2502
    %v2531 = vmul.f32 %v2523, %v2503
    %v2540 = vrot.slane %v2524, 1
    %v2541 = vrot.slane %v2525, 1
    %v2542 = vrot.slane %v2526, 1
    %v2543 = vrot.slane %v2527, 1
    %v2544 = vrot.slane %v2528, 1
    %v2545 = vrot.slane %v2529, 1
    %v2546 = vrot.slane %v2530, 1
    %v2547 = vrot.slane %v2531, 1
    %v2556 = vadd.f32 %v2514, %v2540
    %v2557 = vadd.f32 %v2515, %v2541
    %v2558 = vadd.f32 %v2516, %v2542
    %v2559 = vadd.f32 %v2517, %v2543
    %v2560 = vadd.f32 %v2518, %v2544
    %v2561 = vadd.f32 %v2519, %v2545
    %v2562 = vadd.f32 %v2520, %v2546
    %v2563 = vadd.f32 %v2521, %v2547
    %s2564 = sld [smem:[#allocation10 + $0x2c]]
    %v2565 = vstv %s2564
    %v2566 = vmul.f32 %v2565, %v2496
    %v2567 = vmul.f32 %v2565, %v2497
    %v2568 = vmul.f32 %v2565, %v2498
    %v2569 = vmul.f32 %v2565, %v2499
    %v2570 = vmul.f32 %v2565, %v2500
    %v2571 = vmul.f32 %v2565, %v2501
    %v2572 = vmul.f32 %v2565, %v2502
    %v2573 = vmul.f32 %v2565, %v2503
    %v2582 = vrot.slane %v2566, 2
    %v2583 = vrot.slane %v2567, 2
    %v2584 = vrot.slane %v2568, 2
    %v2585 = vrot.slane %v2569, 2
    %v2586 = vrot.slane %v2570, 2
    %v2587 = vrot.slane %v2571, 2
    %v2588 = vrot.slane %v2572, 2
    %v2589 = vrot.slane %v2573, 2
    %v2598 = vadd.f32 %v2556, %v2582
    %v2599 = vadd.f32 %v2557, %v2583
    %v2600 = vadd.f32 %v2558, %v2584
    %v2601 = vadd.f32 %v2559, %v2585
    %v2602 = vadd.f32 %v2560, %v2586
    %v2603 = vadd.f32 %v2561, %v2587
    %v2604 = vadd.f32 %v2562, %v2588
    %v2605 = vadd.f32 %v2563, %v2589
    %s2606 = sld [smem:[#allocation11]]
    %v2607 = vstv %s2606
    %v2608 = vadd.f32 %v2598, %v2607
    %v2609 = vadd.f32 %v2599, %v2607
    %v2610 = vadd.f32 %v2600, %v2607
    %v2611 = vadd.f32 %v2601, %v2607
    %v2612 = vadd.f32 %v2602, %v2607
    %v2613 = vadd.f32 %v2603, %v2607
    %v2614 = vadd.f32 %v2604, %v2607
    %v2615 = vadd.f32 %v2605, %v2607
    %vm2616 = vcmask 95232
    %2617 = vst.msk [vmem:[#allocation3] sm:$0x3f] %vm2616, %v2608
    %2618 = vst.msk [vmem:[#allocation3 + $0x8] sm:$0x3f] %vm2616, %v2609
    %2619 = vst.msk [vmem:[#allocation3 + $0x10] sm:$0x3f] %vm2616, %v2610
    %2620 = vst.msk [vmem:[#allocation3 + $0x18] sm:$0x3f] %vm2616, %v2611
    %2621 = vst.msk [vmem:[#allocation3 + $0x20] sm:$0x3f] %vm2616, %v2612
    %2622 = vst.msk [vmem:[#allocation3 + $0x28] sm:$0x3f] %vm2616, %v2613
    %2623 = vst.msk [vmem:[#allocation3 + $0x30] sm:$0x3f] %vm2616, %v2614
    %2624 = vst.msk [vmem:[#allocation3 + $0x38] sm:$0x3f] %vm2616, %v2615
    %v2625 = vld [vmem:[#allocation2] sm:$0xff]
    %v2626 = vld [vmem:[#allocation2 + $0x8] sm:$0xff]
    %v2627 = vld [vmem:[#allocation2 + $0x10] sm:$0xff]
    %v2628 = vld [vmem:[#allocation2 + $0x18] sm:$0xff]
    %v2629 = vld [vmem:[#allocation2 + $0x20] sm:$0xff]
    %v2630 = vld [vmem:[#allocation2 + $0x28] sm:$0xff]
    %v2631 = vld [vmem:[#allocation2 + $0x30] sm:$0xff]
    %v2632 = vld [vmem:[#allocation2 + $0x38] sm:$0xff]
    %s2633 = sld [smem:[#allocation10 + $0x1]]
    %v2634 = vstv %s2633
    %v2635 = vmul.f32 %v2634, %v2625
    %v2636 = vmul.f32 %v2634, %v2626
    %v2637 = vmul.f32 %v2634, %v2627
    %v2638 = vmul.f32 %v2634, %v2628
    %v2639 = vmul.f32 %v2634, %v2629
    %v2640 = vmul.f32 %v2634, %v2630
    %v2641 = vmul.f32 %v2634, %v2631
    %v2642 = vmul.f32 %v2634, %v2632
    %s2643 = sld [smem:[#allocation10 + $0x11]]
    %v2644 = vstv %s2643
    %v2645 = vmul.f32 %v2644, %v2625
    %v2646 = vmul.f32 %v2644, %v2626
    %v2647 = vmul.f32 %v2644, %v2627
    %v2648 = vmul.f32 %v2644, %v2628
    %v2649 = vmul.f32 %v2644, %v2629
    %v2650 = vmul.f32 %v2644, %v2630
    %v2651 = vmul.f32 %v2644, %v2631
    %v2652 = vmul.f32 %v2644, %v2632
    %v2661 = vrot.slane %v2645, 1
    %v2662 = vrot.slane %v2646, 1
    %v2663 = vrot.slane %v2647, 1
    %v2664 = vrot.slane %v2648, 1
    %v2665 = vrot.slane %v2649, 1
    %v2666 = vrot.slane %v2650, 1
    %v2667 = vrot.slane %v2651, 1
    %v2668 = vrot.slane %v2652, 1
    %v2677 = vadd.f32 %v2635, %v2661
    %v2678 = vadd.f32 %v2636, %v2662
    %v2679 = vadd.f32 %v2637, %v2663
    %v2680 = vadd.f32 %v2638, %v2664
    %v2681 = vadd.f32 %v2639, %v2665
    %v2682 = vadd.f32 %v2640, %v2666
    %v2683 = vadd.f32 %v2641, %v2667
    %v2684 = vadd.f32 %v2642, %v2668
    %s2685 = sld [smem:[#allocation10 + $0x21]]
    %v2686 = vstv %s2685
    %v2687 = vmul.f32 %v2686, %v2625
    %v2688 = vmul.f32 %v2686, %v2626
    %v2689 = vmul.f32 %v2686, %v2627
    %v2690 = vmul.f32 %v2686, %v2628
    %v2691 = vmul.f32 %v2686, %v2629
    %v2692 = vmul.f32 %v2686, %v2630
    %v2693 = vmul.f32 %v2686, %v2631
    %v2694 = vmul.f32 %v2686, %v2632
    %v2703 = vrot.slane %v2687, 2
    %v2704 = vrot.slane %v2688, 2
    %v2705 = vrot.slane %v2689, 2
    %v2706 = vrot.slane %v2690, 2
    %v2707 = vrot.slane %v2691, 2
    %v2708 = vrot.slane %v2692, 2
    %v2709 = vrot.slane %v2693, 2
    %v2710 = vrot.slane %v2694, 2
    %v2719 = vadd.f32 %v2677, %v2703
    %v2720 = vadd.f32 %v2678, %v2704
    %v2721 = vadd.f32 %v2679, %v2705
    %v2722 = vadd.f32 %v2680, %v2706
    %v2723 = vadd.f32 %v2681, %v2707
    %v2724 = vadd.f32 %v2682, %v2708
    %v2725 = vadd.f32 %v2683, %v2709
    %v2726 = vadd.f32 %v2684, %v2710
    %v2727 = vld [vmem:[%s1135] sm:$0xff]
    %v2728 = vld [vmem:[%s1135 + $0x8] sm:$0xff]
    %v2729 = vld [vmem:[%s1135 + $0x10] sm:$0xff]
    %v2730 = vld [vmem:[%s1135 + $0x18] sm:$0xff]
    %v2731 = vld [vmem:[%s1135 + $0x20] sm:$0xff]
    %v2732 = vld [vmem:[%s1135 + $0x28] sm:$0xff]
    %v2733 = vld [vmem:[%s1135 + $0x30] sm:$0xff]
    %v2734 = vld [vmem:[%s1135 + $0x38] sm:$0xff]
    %s2735 = sld [smem:[#allocation10 + $0x5]]
    %v2736 = vstv %s2735
    %v2737 = vmul.f32 %v2736, %v2727
    %v2738 = vmul.f32 %v2736, %v2728
    %v2739 = vmul.f32 %v2736, %v2729
    %v2740 = vmul.f32 %v2736, %v2730
    %v2741 = vmul.f32 %v2736, %v2731
    %v2742 = vmul.f32 %v2736, %v2732
    %v2743 = vmul.f32 %v2736, %v2733
    %v2744 = vmul.f32 %v2736, %v2734
    %v2745 = vadd.f32 %v2719, %v2737
    %v2746 = vadd.f32 %v2720, %v2738
    %v2747 = vadd.f32 %v2721, %v2739
    %v2748 = vadd.f32 %v2722, %v2740
    %v2749 = vadd.f32 %v2723, %v2741
    %v2750 = vadd.f32 %v2724, %v2742
    %v2751 = vadd.f32 %v2725, %v2743
    %v2752 = vadd.f32 %v2726, %v2744
    %s2753 = sld [smem:[#allocation10 + $0x15]]
    %v2754 = vstv %s2753
    %v2755 = vmul.f32 %v2754, %v2727
    %v2756 = vmul.f32 %v2754, %v2728
    %v2757 = vmul.f32 %v2754, %v2729
    %v2758 = vmul.f32 %v2754, %v2730
    %v2759 = vmul.f32 %v2754, %v2731
    %v2760 = vmul.f32 %v2754, %v2732
    %v2761 = vmul.f32 %v2754, %v2733
    %v2762 = vmul.f32 %v2754, %v2734
    %v2771 = vrot.slane %v2755, 1
    %v2772 = vrot.slane %v2756, 1
    %v2773 = vrot.slane %v2757, 1
    %v2774 = vrot.slane %v2758, 1
    %v2775 = vrot.slane %v2759, 1
    %v2776 = vrot.slane %v2760, 1
    %v2777 = vrot.slane %v2761, 1
    %v2778 = vrot.slane %v2762, 1
    %v2787 = vadd.f32 %v2745, %v2771
    %v2788 = vadd.f32 %v2746, %v2772
    %v2789 = vadd.f32 %v2747, %v2773
    %v2790 = vadd.f32 %v2748, %v2774
    %v2791 = vadd.f32 %v2749, %v2775
    %v2792 = vadd.f32 %v2750, %v2776
    %v2793 = vadd.f32 %v2751, %v2777
    %v2794 = vadd.f32 %v2752, %v2778
    %s2795 = sld [smem:[#allocation10 + $0x25]]
    %v2796 = vstv %s2795
    %v2797 = vmul.f32 %v2796, %v2727
    %v2798 = vmul.f32 %v2796, %v2728
    %v2799 = vmul.f32 %v2796, %v2729
    %v2800 = vmul.f32 %v2796, %v2730
    %v2801 = vmul.f32 %v2796, %v2731
    %v2802 = vmul.f32 %v2796, %v2732
    %v2803 = vmul.f32 %v2796, %v2733
    %v2804 = vmul.f32 %v2796, %v2734
    %v2813 = vrot.slane %v2797, 2
    %v2814 = vrot.slane %v2798, 2
    %v2815 = vrot.slane %v2799, 2
    %v2816 = vrot.slane %v2800, 2
    %v2817 = vrot.slane %v2801, 2
    %v2818 = vrot.slane %v2802, 2
    %v2819 = vrot.slane %v2803, 2
    %v2820 = vrot.slane %v2804, 2
    %v2829 = vadd.f32 %v2787, %v2813
    %v2830 = vadd.f32 %v2788, %v2814
    %v2831 = vadd.f32 %v2789, %v2815
    %v2832 = vadd.f32 %v2790, %v2816
    %v2833 = vadd.f32 %v2791, %v2817
    %v2834 = vadd.f32 %v2792, %v2818
    %v2835 = vadd.f32 %v2793, %v2819
    %v2836 = vadd.f32 %v2794, %v2820
    %v2837 = vld [vmem:[%s1650] sm:$0xff]
    %v2838 = vld [vmem:[%s1650 + $0x8] sm:$0xff]
    %v2839 = vld [vmem:[%s1650 + $0x10] sm:$0xff]
    %v2840 = vld [vmem:[%s1650 + $0x18] sm:$0xff]
    %v2841 = vld [vmem:[%s1650 + $0x20] sm:$0xff]
    %v2842 = vld [vmem:[%s1650 + $0x28] sm:$0xff]
    %v2843 = vld [vmem:[%s1650 + $0x30] sm:$0xff]
    %v2844 = vld [vmem:[%s1650 + $0x38] sm:$0xff]
    %s2845 = sld [smem:[#allocation10 + $0x9]]
    %v2846 = vstv %s2845
    %v2847 = vmul.f32 %v2846, %v2837
    %v2848 = vmul.f32 %v2846, %v2838
    %v2849 = vmul.f32 %v2846, %v2839
    %v2850 = vmul.f32 %v2846, %v2840
    %v2851 = vmul.f32 %v2846, %v2841
    %v2852 = vmul.f32 %v2846, %v2842
    %v2853 = vmul.f32 %v2846, %v2843
    %v2854 = vmul.f32 %v2846, %v2844
    %v2855 = vadd.f32 %v2829, %v2847
    %v2856 = vadd.f32 %v2830, %v2848
    %v2857 = vadd.f32 %v2831, %v2849
    %v2858 = vadd.f32 %v2832, %v2850
    %v2859 = vadd.f32 %v2833, %v2851
    %v2860 = vadd.f32 %v2834, %v2852
    %v2861 = vadd.f32 %v2835, %v2853
    %v2862 = vadd.f32 %v2836, %v2854
    %s2863 = sld [smem:[#allocation10 + $0x19]]
    %v2864 = vstv %s2863
    %v2865 = vmul.f32 %v2864, %v2837
    %v2866 = vmul.f32 %v2864, %v2838
    %v2867 = vmul.f32 %v2864, %v2839
    %v2868 = vmul.f32 %v2864, %v2840
    %v2869 = vmul.f32 %v2864, %v2841
    %v2870 = vmul.f32 %v2864, %v2842
    %v2871 = vmul.f32 %v2864, %v2843
    %v2872 = vmul.f32 %v2864, %v2844
    %v2881 = vrot.slane %v2865, 1
    %v2882 = vrot.slane %v2866, 1
    %v2883 = vrot.slane %v2867, 1
    %v2884 = vrot.slane %v2868, 1
    %v2885 = vrot.slane %v2869, 1
    %v2886 = vrot.slane %v2870, 1
    %v2887 = vrot.slane %v2871, 1
    %v2888 = vrot.slane %v2872, 1
    %v2897 = vadd.f32 %v2855, %v2881
    %v2898 = vadd.f32 %v2856, %v2882
    %v2899 = vadd.f32 %v2857, %v2883
    %v2900 = vadd.f32 %v2858, %v2884
    %v2901 = vadd.f32 %v2859, %v2885
    %v2902 = vadd.f32 %v2860, %v2886
    %v2903 = vadd.f32 %v2861, %v2887
    %v2904 = vadd.f32 %v2862, %v2888
    %s2905 = sld [smem:[#allocation10 + $0x29]]
    %v2906 = vstv %s2905
    %v2907 = vmul.f32 %v2906, %v2837
    %v2908 = vmul.f32 %v2906, %v2838
    %v2909 = vmul.f32 %v2906, %v2839
    %v2910 = vmul.f32 %v2906, %v2840
    %v2911 = vmul.f32 %v2906, %v2841
    %v2912 = vmul.f32 %v2906, %v2842
    %v2913 = vmul.f32 %v2906, %v2843
    %v2914 = vmul.f32 %v2906, %v2844
    %v2923 = vrot.slane %v2907, 2
    %v2924 = vrot.slane %v2908, 2
    %v2925 = vrot.slane %v2909, 2
    %v2926 = vrot.slane %v2910, 2
    %v2927 = vrot.slane %v2911, 2
    %v2928 = vrot.slane %v2912, 2
    %v2929 = vrot.slane %v2913, 2
    %v2930 = vrot.slane %v2914, 2
    %v2939 = vadd.f32 %v2897, %v2923
    %v2940 = vadd.f32 %v2898, %v2924
    %v2941 = vadd.f32 %v2899, %v2925
    %v2942 = vadd.f32 %v2900, %v2926
    %v2943 = vadd.f32 %v2901, %v2927
    %v2944 = vadd.f32 %v2902, %v2928
    %v2945 = vadd.f32 %v2903, %v2929
    %v2946 = vadd.f32 %v2904, %v2930
    %v2947 = vld [vmem:[%s2165] sm:$0xff]
    %v2948 = vld [vmem:[%s2165 + $0x8] sm:$0xff]
    %v2949 = vld [vmem:[%s2165 + $0x10] sm:$0xff]
    %v2950 = vld [vmem:[%s2165 + $0x18] sm:$0xff]
    %v2951 = vld [vmem:[%s2165 + $0x20] sm:$0xff]
    %v2952 = vld [vmem:[%s2165 + $0x28] sm:$0xff]
    %v2953 = vld [vmem:[%s2165 + $0x30] sm:$0xff]
    %v2954 = vld [vmem:[%s2165 + $0x38] sm:$0xff]
    %s2955 = sld [smem:[#allocation10 + $0xd]]
    %v2956 = vstv %s2955
    %v2957 = vmul.f32 %v2956, %v2947
    %v2958 = vmul.f32 %v2956, %v2948
    %v2959 = vmul.f32 %v2956, %v2949
    %v2960 = vmul.f32 %v2956, %v2950
    %v2961 = vmul.f32 %v2956, %v2951
    %v2962 = vmul.f32 %v2956, %v2952
    %v2963 = vmul.f32 %v2956, %v2953
    %v2964 = vmul.f32 %v2956, %v2954
    %v2965 = vadd.f32 %v2939, %v2957
    %v2966 = vadd.f32 %v2940, %v2958
    %v2967 = vadd.f32 %v2941, %v2959
    %v2968 = vadd.f32 %v2942, %v2960
    %v2969 = vadd.f32 %v2943, %v2961
    %v2970 = vadd.f32 %v2944, %v2962
    %v2971 = vadd.f32 %v2945, %v2963
    %v2972 = vadd.f32 %v2946, %v2964
    %s2973 = sld [smem:[#allocation10 + $0x1d]]
    %v2974 = vstv %s2973
    %v2975 = vmul.f32 %v2974, %v2947
    %v2976 = vmul.f32 %v2974, %v2948
    %v2977 = vmul.f32 %v2974, %v2949
    %v2978 = vmul.f32 %v2974, %v2950
    %v2979 = vmul.f32 %v2974, %v2951
    %v2980 = vmul.f32 %v2974, %v2952
    %v2981 = vmul.f32 %v2974, %v2953
    %v2982 = vmul.f32 %v2974, %v2954
    %v2991 = vrot.slane %v2975, 1
    %v2992 = vrot.slane %v2976, 1
    %v2993 = vrot.slane %v2977, 1
    %v2994 = vrot.slane %v2978, 1
    %v2995 = vrot.slane %v2979, 1
    %v2996 = vrot.slane %v2980, 1
    %v2997 = vrot.slane %v2981, 1
    %v2998 = vrot.slane %v2982, 1
    %v3007 = vadd.f32 %v2965, %v2991
    %v3008 = vadd.f32 %v2966, %v2992
    %v3009 = vadd.f32 %v2967, %v2993
    %v3010 = vadd.f32 %v2968, %v2994
    %v3011 = vadd.f32 %v2969, %v2995
    %v3012 = vadd.f32 %v2970, %v2996
    %v3013 = vadd.f32 %v2971, %v2997
    %v3014 = vadd.f32 %v2972, %v2998
    %s3015 = sld [smem:[#allocation10 + $0x2d]]
    %v3016 = vstv %s3015
    %v3017 = vmul.f32 %v3016, %v2947
    %v3018 = vmul.f32 %v3016, %v2948
    %v3019 = vmul.f32 %v3016, %v2949
    %v3020 = vmul.f32 %v3016, %v2950
    %v3021 = vmul.f32 %v3016, %v2951
    %v3022 = vmul.f32 %v3016, %v2952
    %v3023 = vmul.f32 %v3016, %v2953
    %v3024 = vmul.f32 %v3016, %v2954
    %v3033 = vrot.slane %v3017, 2
    %v3034 = vrot.slane %v3018, 2
    %v3035 = vrot.slane %v3019, 2
    %v3036 = vrot.slane %v3020, 2
    %v3037 = vrot.slane %v3021, 2
    %v3038 = vrot.slane %v3022, 2
    %v3039 = vrot.slane %v3023, 2
    %v3040 = vrot.slane %v3024, 2
    %v3049 = vadd.f32 %v3007, %v3033
    %v3050 = vadd.f32 %v3008, %v3034
    %v3051 = vadd.f32 %v3009, %v3035
    %v3052 = vadd.f32 %v3010, %v3036
    %v3053 = vadd.f32 %v3011, %v3037
    %v3054 = vadd.f32 %v3012, %v3038
    %v3055 = vadd.f32 %v3013, %v3039
    %v3056 = vadd.f32 %v3014, %v3040
    %s3057 = sld [smem:[#allocation11 + $0x1]]
    %v3058 = vstv %s3057
    %v3059 = vadd.f32 %v3049, %v3058
    %v3060 = vadd.f32 %v3050, %v3058
    %v3061 = vadd.f32 %v3051, %v3058
    %v3062 = vadd.f32 %v3052, %v3058
    %v3063 = vadd.f32 %v3053, %v3058
    %v3064 = vadd.f32 %v3054, %v3058
    %v3065 = vadd.f32 %v3055, %v3058
    %v3066 = vadd.f32 %v3056, %v3058
    %s3067 = scalar_lea.vmem [#allocation3], 64
    %3068 = vst.msk [vmem:[%s3067] sm:$0x3f] %vm2616, %v3059
    %3069 = vst.msk [vmem:[%s3067 + $0x8] sm:$0x3f] %vm2616, %v3060
    %3070 = vst.msk [vmem:[%s3067 + $0x10] sm:$0x3f] %vm2616, %v3061
    %3071 = vst.msk [vmem:[%s3067 + $0x18] sm:$0x3f] %vm2616, %v3062
    %3072 = vst.msk [vmem:[%s3067 + $0x20] sm:$0x3f] %vm2616, %v3063
    %3073 = vst.msk [vmem:[%s3067 + $0x28] sm:$0x3f] %vm2616, %v3064
    %3074 = vst.msk [vmem:[%s3067 + $0x30] sm:$0x3f] %vm2616, %v3065
    %3075 = vst.msk [vmem:[%s3067 + $0x38] sm:$0x3f] %vm2616, %v3066
    %v3076 = vld [vmem:[#allocation2] sm:$0xff]
    %v3077 = vld [vmem:[#allocation2 + $0x8] sm:$0xff]
    %v3078 = vld [vmem:[#allocation2 + $0x10] sm:$0xff]
    %v3079 = vld [vmem:[#allocation2 + $0x18] sm:$0xff]
    %v3080 = vld [vmem:[#allocation2 + $0x20] sm:$0xff]
    %v3081 = vld [vmem:[#allocation2 + $0x28] sm:$0xff]
    %v3082 = vld [vmem:[#allocation2 + $0x30] sm:$0xff]
    %v3083 = vld [vmem:[#allocation2 + $0x38] sm:$0xff]
    %s3084 = sld [smem:[#allocation10 + $0x2]]
    %v3085 = vstv %s3084
    %v3086 = vmul.f32 %v3085, %v3076
    %v3087 = vmul.f32 %v3085, %v3077
    %v3088 = vmul.f32 %v3085, %v3078
    %v3089 = vmul.f32 %v3085, %v3079
    %v3090 = vmul.f32 %v3085, %v3080
    %v3091 = vmul.f32 %v3085, %v3081
    %v3092 = vmul.f32 %v3085, %v3082
    %v3093 = vmul.f32 %v3085, %v3083
    %s3094 = sld [smem:[#allocation10 + $0x12]]
    %v3095 = vstv %s3094
    %v3096 = vmul.f32 %v3095, %v3076
    %v3097 = vmul.f32 %v3095, %v3077
    %v3098 = vmul.f32 %v3095, %v3078
    %v3099 = vmul.f32 %v3095, %v3079
    %v3100 = vmul.f32 %v3095, %v3080
    %v3101 = vmul.f32 %v3095, %v3081
    %v3102 = vmul.f32 %v3095, %v3082
    %v3103 = vmul.f32 %v3095, %v3083
    %v3112 = vrot.slane %v3096, 1
    %v3113 = vrot.slane %v3097, 1
    %v3114 = vrot.slane %v3098, 1
    %v3115 = vrot.slane %v3099, 1
    %v3116 = vrot.slane %v3100, 1
    %v3117 = vrot.slane %v3101, 1
    %v3118 = vrot.slane %v3102, 1
    %v3119 = vrot.slane %v3103, 1
    %v3128 = vadd.f32 %v3086, %v3112
    %v3129 = vadd.f32 %v3087, %v3113
    %v3130 = vadd.f32 %v3088, %v3114
    %v3131 = vadd.f32 %v3089, %v3115
    %v3132 = vadd.f32 %v3090, %v3116
    %v3133 = vadd.f32 %v3091, %v3117
    %v3134 = vadd.f32 %v3092, %v3118
    %v3135 = vadd.f32 %v3093, %v3119
    %s3136 = sld [smem:[#allocation10 + $0x22]]
    %v3137 = vstv %s3136
    %v3138 = vmul.f32 %v3137, %v3076
    %v3139 = vmul.f32 %v3137, %v3077
    %v3140 = vmul.f32 %v3137, %v3078
    %v3141 = vmul.f32 %v3137, %v3079
    %v3142 = vmul.f32 %v3137, %v3080
    %v3143 = vmul.f32 %v3137, %v3081
    %v3144 = vmul.f32 %v3137, %v3082
    %v3145 = vmul.f32 %v3137, %v3083
    %v3154 = vrot.slane %v3138, 2
    %v3155 = vrot.slane %v3139, 2
    %v3156 = vrot.slane %v3140, 2
    %v3157 = vrot.slane %v3141, 2
    %v3158 = vrot.slane %v3142, 2
    %v3159 = vrot.slane %v3143, 2
    %v3160 = vrot.slane %v3144, 2
    %v3161 = vrot.slane %v3145, 2
    %v3170 = vadd.f32 %v3128, %v3154
    %v3171 = vadd.f32 %v3129, %v3155
    %v3172 = vadd.f32 %v3130, %v3156
    %v3173 = vadd.f32 %v3131, %v3157
    %v3174 = vadd.f32 %v3132, %v3158
    %v3175 = vadd.f32 %v3133, %v3159
    %v3176 = vadd.f32 %v3134, %v3160
    %v3177 = vadd.f32 %v3135, %v3161
    %v3178 = vld [vmem:[%s1135] sm:$0xff]
    %v3179 = vld [vmem:[%s1135 + $0x8] sm:$0xff]
    %v3180 = vld [vmem:[%s1135 + $0x10] sm:$0xff]
    %v3181 = vld [vmem:[%s1135 + $0x18] sm:$0xff]
    %v3182 = vld [vmem:[%s1135 + $0x20] sm:$0xff]
    %v3183 = vld [vmem:[%s1135 + $0x28] sm:$0xff]
    %v3184 = vld [vmem:[%s1135 + $0x30] sm:$0xff]
    %v3185 = vld [vmem:[%s1135 + $0x38] sm:$0xff]
    %s3186 = sld [smem:[#allocation10 + $0x6]]
    %v3187 = vstv %s3186
    %v3188 = vmul.f32 %v3187, %v3178
    %v3189 = vmul.f32 %v3187, %v3179
    %v3190 = vmul.f32 %v3187, %v3180
    %v3191 = vmul.f32 %v3187, %v3181
    %v3192 = vmul.f32 %v3187, %v3182
    %v3193 = vmul.f32 %v3187, %v3183
    %v3194 = vmul.f32 %v3187, %v3184
    %v3195 = vmul.f32 %v3187, %v3185
    %v3196 = vadd.f32 %v3170, %v3188
    %v3197 = vadd.f32 %v3171, %v3189
    %v3198 = vadd.f32 %v3172, %v3190
    %v3199 = vadd.f32 %v3173, %v3191
    %v3200 = vadd.f32 %v3174, %v3192
    %v3201 = vadd.f32 %v3175, %v3193
    %v3202 = vadd.f32 %v3176, %v3194
    %v3203 = vadd.f32 %v3177, %v3195
    %s3204 = sld [smem:[#allocation10 + $0x16]]
    %v3205 = vstv %s3204
    %v3206 = vmul.f32 %v3205, %v3178
    %v3207 = vmul.f32 %v3205, %v3179
    %v3208 = vmul.f32 %v3205, %v3180
    %v3209 = vmul.f32 %v3205, %v3181
    %v3210 = vmul.f32 %v3205, %v3182
    %v3211 = vmul.f32 %v3205, %v3183
    %v3212 = vmul.f32 %v3205, %v3184
    %v3213 = vmul.f32 %v3205, %v3185
    %v3222 = vrot.slane %v3206, 1
    %v3223 = vrot.slane %v3207, 1
    %v3224 = vrot.slane %v3208, 1
    %v3225 = vrot.slane %v3209, 1
    %v3226 = vrot.slane %v3210, 1
    %v3227 = vrot.slane %v3211, 1
    %v3228 = vrot.slane %v3212, 1
    %v3229 = vrot.slane %v3213, 1
    %v3238 = vadd.f32 %v3196, %v3222
    %v3239 = vadd.f32 %v3197, %v3223
    %v3240 = vadd.f32 %v3198, %v3224
    %v3241 = vadd.f32 %v3199, %v3225
    %v3242 = vadd.f32 %v3200, %v3226
    %v3243 = vadd.f32 %v3201, %v3227
    %v3244 = vadd.f32 %v3202, %v3228
    %v3245 = vadd.f32 %v3203, %v3229
    %s3246 = sld [smem:[#allocation10 + $0x26]]
    %v3247 = vstv %s3246
    %v3248 = vmul.f32 %v3247, %v3178
    %v3249 = vmul.f32 %v3247, %v3179
    %v3250 = vmul.f32 %v3247, %v3180
    %v3251 = vmul.f32 %v3247, %v3181
    %v3252 = vmul.f32 %v3247, %v3182
    %v3253 = vmul.f32 %v3247, %v3183
    %v3254 = vmul.f32 %v3247, %v3184
    %v3255 = vmul.f32 %v3247, %v3185
    %v3264 = vrot.slane %v3248, 2
    %v3265 = vrot.slane %v3249, 2
    %v3266 = vrot.slane %v3250, 2
    %v3267 = vrot.slane %v3251, 2
    %v3268 = vrot.slane %v3252, 2
    %v3269 = vrot.slane %v3253, 2
    %v3270 = vrot.slane %v3254, 2
    %v3271 = vrot.slane %v3255, 2
    %v3280 = vadd.f32 %v3238, %v3264
    %v3281 = vadd.f32 %v3239, %v3265
    %v3282 = vadd.f32 %v3240, %v3266
    %v3283 = vadd.f32 %v3241, %v3267
    %v3284 = vadd.f32 %v3242, %v3268
    %v3285 = vadd.f32 %v3243, %v3269
    %v3286 = vadd.f32 %v3244, %v3270
    %v3287 = vadd.f32 %v3245, %v3271
    %v3288 = vld [vmem:[%s1650] sm:$0xff]
    %v3289 = vld [vmem:[%s1650 + $0x8] sm:$0xff]
    %v3290 = vld [vmem:[%s1650 + $0x10] sm:$0xff]
    %v3291 = vld [vmem:[%s1650 + $0x18] sm:$0xff]
    %v3292 = vld [vmem:[%s1650 + $0x20] sm:$0xff]
    %v3293 = vld [vmem:[%s1650 + $0x28] sm:$0xff]
    %v3294 = vld [vmem:[%s1650 + $0x30] sm:$0xff]
    %v3295 = vld [vmem:[%s1650 + $0x38] sm:$0xff]
    %s3296 = sld [smem:[#allocation10 + $0xa]]
    %v3297 = vstv %s3296
    %v3298 = vmul.f32 %v3297, %v3288
    %v3299 = vmul.f32 %v3297, %v3289
    %v3300 = vmul.f32 %v3297, %v3290
    %v3301 = vmul.f32 %v3297, %v3291
    %v3302 = vmul.f32 %v3297, %v3292
    %v3303 = vmul.f32 %v3297, %v3293
    %v3304 = vmul.f32 %v3297, %v3294
    %v3305 = vmul.f32 %v3297, %v3295
    %v3306 = vadd.f32 %v3280, %v3298
    %v3307 = vadd.f32 %v3281, %v3299
    %v3308 = vadd.f32 %v3282, %v3300
    %v3309 = vadd.f32 %v3283, %v3301
    %v3310 = vadd.f32 %v3284, %v3302
    %v3311 = vadd.f32 %v3285, %v3303
    %v3312 = vadd.f32 %v3286, %v3304
    %v3313 = vadd.f32 %v3287, %v3305
    %s3314 = sld [smem:[#allocation10 + $0x1a]]
    %v3315 = vstv %s3314
    %v3316 = vmul.f32 %v3315, %v3288
    %v3317 = vmul.f32 %v3315, %v3289
    %v3318 = vmul.f32 %v3315, %v3290
    %v3319 = vmul.f32 %v3315, %v3291
    %v3320 = vmul.f32 %v3315, %v3292
    %v3321 = vmul.f32 %v3315, %v3293
    %v3322 = vmul.f32 %v3315, %v3294
    %v3323 = vmul.f32 %v3315, %v3295
    %v3332 = vrot.slane %v3316, 1
    %v3333 = vrot.slane %v3317, 1
    %v3334 = vrot.slane %v3318, 1
    %v3335 = vrot.slane %v3319, 1
    %v3336 = vrot.slane %v3320, 1
    %v3337 = vrot.slane %v3321, 1
    %v3338 = vrot.slane %v3322, 1
    %v3339 = vrot.slane %v3323, 1
    %v3348 = vadd.f32 %v3306, %v3332
    %v3349 = vadd.f32 %v3307, %v3333
    %v3350 = vadd.f32 %v3308, %v3334
    %v3351 = vadd.f32 %v3309, %v3335
    %v3352 = vadd.f32 %v3310, %v3336
    %v3353 = vadd.f32 %v3311, %v3337
    %v3354 = vadd.f32 %v3312, %v3338
    %v3355 = vadd.f32 %v3313, %v3339
    %s3356 = sld [smem:[#allocation10 + $0x2a]]
    %v3357 = vstv %s3356
    %v3358 = vmul.f32 %v3357, %v3288
    %v3359 = vmul.f32 %v3357, %v3289
    %v3360 = vmul.f32 %v3357, %v3290
    %v3361 = vmul.f32 %v3357, %v3291
    %v3362 = vmul.f32 %v3357, %v3292
    %v3363 = vmul.f32 %v3357, %v3293
    %v3364 = vmul.f32 %v3357, %v3294
    %v3365 = vmul.f32 %v3357, %v3295
    %v3374 = vrot.slane %v3358, 2
    %v3375 = vrot.slane %v3359, 2
    %v3376 = vrot.slane %v3360, 2
    %v3377 = vrot.slane %v3361, 2
    %v3378 = vrot.slane %v3362, 2
    %v3379 = vrot.slane %v3363, 2
    %v3380 = vrot.slane %v3364, 2
    %v3381 = vrot.slane %v3365, 2
    %v3390 = vadd.f32 %v3348, %v3374
    %v3391 = vadd.f32 %v3349, %v3375
    %v3392 = vadd.f32 %v3350, %v3376
    %v3393 = vadd.f32 %v3351, %v3377
    %v3394 = vadd.f32 %v3352, %v3378
    %v3395 = vadd.f32 %v3353, %v3379
    %v3396 = vadd.f32 %v3354, %v3380
    %v3397 = vadd.f32 %v3355, %v3381
    %v3398 = vld [vmem:[%s2165] sm:$0xff]
    %v3399 = vld [vmem:[%s2165 + $0x8] sm:$0xff]
    %v3400 = vld [vmem:[%s2165 + $0x10] sm:$0xff]
    %v3401 = vld [vmem:[%s2165 + $0x18] sm:$0xff]
    %v3402 = vld [vmem:[%s2165 + $0x20] sm:$0xff]
    %v3403 = vld [vmem:[%s2165 + $0x28] sm:$0xff]
    %v3404 = vld [vmem:[%s2165 + $0x30] sm:$0xff]
    %v3405 = vld [vmem:[%s2165 + $0x38] sm:$0xff]
    %s3406 = sld [smem:[#allocation10 + $0xe]]
    %v3407 = vstv %s3406
    %v3408 = vmul.f32 %v3407, %v3398
    %v3409 = vmul.f32 %v3407, %v3399
    %v3410 = vmul.f32 %v3407, %v3400
    %v3411 = vmul.f32 %v3407, %v3401
    %v3412 = vmul.f32 %v3407, %v3402
    %v3413 = vmul.f32 %v3407, %v3403
    %v3414 = vmul.f32 %v3407, %v3404
    %v3415 = vmul.f32 %v3407, %v3405
    %v3416 = vadd.f32 %v3390, %v3408
    %v3417 = vadd.f32 %v3391, %v3409
    %v3418 = vadd.f32 %v3392, %v3410
    %v3419 = vadd.f32 %v3393, %v3411
    %v3420 = vadd.f32 %v3394, %v3412
    %v3421 = vadd.f32 %v3395, %v3413
    %v3422 = vadd.f32 %v3396, %v3414
    %v3423 = vadd.f32 %v3397, %v3415
    %s3424 = sld [smem:[#allocation10 + $0x1e]]
    %v3425 = vstv %s3424
    %v3426 = vmul.f32 %v3425, %v3398
    %v3427 = vmul.f32 %v3425, %v3399
    %v3428 = vmul.f32 %v3425, %v3400
    %v3429 = vmul.f32 %v3425, %v3401
    %v3430 = vmul.f32 %v3425, %v3402
    %v3431 = vmul.f32 %v3425, %v3403
    %v3432 = vmul.f32 %v3425, %v3404
    %v3433 = vmul.f32 %v3425, %v3405
    %v3442 = vrot.slane %v3426, 1
    %v3443 = vrot.slane %v3427, 1
    %v3444 = vrot.slane %v3428, 1
    %v3445 = vrot.slane %v3429, 1
    %v3446 = vrot.slane %v3430, 1
    %v3447 = vrot.slane %v3431, 1
    %v3448 = vrot.slane %v3432, 1
    %v3449 = vrot.slane %v3433, 1
    %v3458 = vadd.f32 %v3416, %v3442
    %v3459 = vadd.f32 %v3417, %v3443
    %v3460 = vadd.f32 %v3418, %v3444
    %v3461 = vadd.f32 %v3419, %v3445
    %v3462 = vadd.f32 %v3420, %v3446
    %v3463 = vadd.f32 %v3421, %v3447
    %v3464 = vadd.f32 %v3422, %v3448
    %v3465 = vadd.f32 %v3423, %v3449
    %s3466 = sld [smem:[#allocation10 + $0x2e]]
    %v3467 = vstv %s3466
    %v3468 = vmul.f32 %v3467, %v3398
    %v3469 = vmul.f32 %v3467, %v3399
    %v3470 = vmul.f32 %v3467, %v3400
    %v3471 = vmul.f32 %v3467, %v3401
    %v3472 = vmul.f32 %v3467, %v3402
    %v3473 = vmul.f32 %v3467, %v3403
    %v3474 = vmul.f32 %v3467, %v3404
    %v3475 = vmul.f32 %v3467, %v3405
    %v3484 = vrot.slane %v3468, 2
    %v3485 = vrot.slane %v3469, 2
    %v3486 = vrot.slane %v3470, 2
    %v3487 = vrot.slane %v3471, 2
    %v3488 = vrot.slane %v3472, 2
    %v3489 = vrot.slane %v3473, 2
    %v3490 = vrot.slane %v3474, 2
    %v3491 = vrot.slane %v3475, 2
    %v3500 = vadd.f32 %v3458, %v3484
    %v3501 = vadd.f32 %v3459, %v3485
    %v3502 = vadd.f32 %v3460, %v3486
    %v3503 = vadd.f32 %v3461, %v3487
    %v3504 = vadd.f32 %v3462, %v3488
    %v3505 = vadd.f32 %v3463, %v3489
    %v3506 = vadd.f32 %v3464, %v3490
    %v3507 = vadd.f32 %v3465, %v3491
    %s3508 = sld [smem:[#allocation11 + $0x2]]
    %v3509 = vstv %s3508
    %v3510 = vadd.f32 %v3500, %v3509
    %v3511 = vadd.f32 %v3501, %v3509
    %v3512 = vadd.f32 %v3502, %v3509
    %v3513 = vadd.f32 %v3503, %v3509
    %v3514 = vadd.f32 %v3504, %v3509
    %v3515 = vadd.f32 %v3505, %v3509
    %v3516 = vadd.f32 %v3506, %v3509
    %v3517 = vadd.f32 %v3507, %v3509
    %s3518 = scalar_lea.vmem [#allocation3], 128
    %3519 = vst.msk [vmem:[%s3518] sm:$0x3f] %vm2616, %v3510
    %3520 = vst.msk [vmem:[%s3518 + $0x8] sm:$0x3f] %vm2616, %v3511
    %3521 = vst.msk [vmem:[%s3518 + $0x10] sm:$0x3f] %vm2616, %v3512
    %3522 = vst.msk [vmem:[%s3518 + $0x18] sm:$0x3f] %vm2616, %v3513
    %3523 = vst.msk [vmem:[%s3518 + $0x20] sm:$0x3f] %vm2616, %v3514
    %3524 = vst.msk [vmem:[%s3518 + $0x28] sm:$0x3f] %vm2616, %v3515
    %3525 = vst.msk [vmem:[%s3518 + $0x30] sm:$0x3f] %vm2616, %v3516
    %3526 = vst.msk [vmem:[%s3518 + $0x38] sm:$0x3f] %vm2616, %v3517
    %v3527 = vld [vmem:[#allocation2] sm:$0xff]
    %v3528 = vld [vmem:[#allocation2 + $0x8] sm:$0xff]
    %v3529 = vld [vmem:[#allocation2 + $0x10] sm:$0xff]
    %v3530 = vld [vmem:[#allocation2 + $0x18] sm:$0xff]
    %v3531 = vld [vmem:[#allocation2 + $0x20] sm:$0xff]
    %v3532 = vld [vmem:[#allocation2 + $0x28] sm:$0xff]
    %v3533 = vld [vmem:[#allocation2 + $0x30] sm:$0xff]
    %v3534 = vld [vmem:[#allocation2 + $0x38] sm:$0xff]
    %s3535 = sld [smem:[#allocation10 + $0x3]]
    %v3536 = vstv %s3535
    %v3537 = vmul.f32 %v3536, %v3527
    %v3538 = vmul.f32 %v3536, %v3528
    %v3539 = vmul.f32 %v3536, %v3529
    %v3540 = vmul.f32 %v3536, %v3530
    %v3541 = vmul.f32 %v3536, %v3531
    %v3542 = vmul.f32 %v3536, %v3532
    %v3543 = vmul.f32 %v3536, %v3533
    %v3544 = vmul.f32 %v3536, %v3534
    %s3545 = sld [smem:[#allocation10 + $0x13]]
    %v3546 = vstv %s3545
    %v3547 = vmul.f32 %v3546, %v3527
    %v3548 = vmul.f32 %v3546, %v3528
    %v3549 = vmul.f32 %v3546, %v3529
    %v3550 = vmul.f32 %v3546, %v3530
    %v3551 = vmul.f32 %v3546, %v3531
    %v3552 = vmul.f32 %v3546, %v3532
    %v3553 = vmul.f32 %v3546, %v3533
    %v3554 = vmul.f32 %v3546, %v3534
    %v3563 = vrot.slane %v3547, 1
    %v3564 = vrot.slane %v3548, 1
    %v3565 = vrot.slane %v3549, 1
    %v3566 = vrot.slane %v3550, 1
    %v3567 = vrot.slane %v3551, 1
    %v3568 = vrot.slane %v3552, 1
    %v3569 = vrot.slane %v3553, 1
    %v3570 = vrot.slane %v3554, 1
    %v3579 = vadd.f32 %v3537, %v3563
    %v3580 = vadd.f32 %v3538, %v3564
    %v3581 = vadd.f32 %v3539, %v3565
    %v3582 = vadd.f32 %v3540, %v3566
    %v3583 = vadd.f32 %v3541, %v3567
    %v3584 = vadd.f32 %v3542, %v3568
    %v3585 = vadd.f32 %v3543, %v3569
    %v3586 = vadd.f32 %v3544, %v3570
    %s3587 = sld [smem:[#allocation10 + $0x23]]
    %v3588 = vstv %s3587
    %v3589 = vmul.f32 %v3588, %v3527
    %v3590 = vmul.f32 %v3588, %v3528
    %v3591 = vmul.f32 %v3588, %v3529
    %v3592 = vmul.f32 %v3588, %v3530
    %v3593 = vmul.f32 %v3588, %v3531
    %v3594 = vmul.f32 %v3588, %v3532
    %v3595 = vmul.f32 %v3588, %v3533
    %v3596 = vmul.f32 %v3588, %v3534
    %v3605 = vrot.slane %v3589, 2
    %v3606 = vrot.slane %v3590, 2
    %v3607 = vrot.slane %v3591, 2
    %v3608 = vrot.slane %v3592, 2
    %v3609 = vrot.slane %v3593, 2
    %v3610 = vrot.slane %v3594, 2
    %v3611 = vrot.slane %v3595, 2
    %v3612 = vrot.slane %v3596, 2
    %v3621 = vadd.f32 %v3579, %v3605
    %v3622 = vadd.f32 %v3580, %v3606
    %v3623 = vadd.f32 %v3581, %v3607
    %v3624 = vadd.f32 %v3582, %v3608
    %v3625 = vadd.f32 %v3583, %v3609
    %v3626 = vadd.f32 %v3584, %v3610
    %v3627 = vadd.f32 %v3585, %v3611
    %v3628 = vadd.f32 %v3586, %v3612
    %v3629 = vld [vmem:[%s1135] sm:$0xff]
    %v3630 = vld [vmem:[%s1135 + $0x8] sm:$0xff]
    %v3631 = vld [vmem:[%s1135 + $0x10] sm:$0xff]
    %v3632 = vld [vmem:[%s1135 + $0x18] sm:$0xff]
    %v3633 = vld [vmem:[%s1135 + $0x20] sm:$0xff]
    %v3634 = vld [vmem:[%s1135 + $0x28] sm:$0xff]
    %v3635 = vld [vmem:[%s1135 + $0x30] sm:$0xff]
    %v3636 = vld [vmem:[%s1135 + $0x38] sm:$0xff]
    %s3637 = sld [smem:[#allocation10 + $0x7]]
    %v3638 = vstv %s3637
    %v3639 = vmul.f32 %v3638, %v3629
    %v3640 = vmul.f32 %v3638, %v3630
    %v3641 = vmul.f32 %v3638, %v3631
    %v3642 = vmul.f32 %v3638, %v3632
    %v3643 = vmul.f32 %v3638, %v3633
    %v3644 = vmul.f32 %v3638, %v3634
    %v3645 = vmul.f32 %v3638, %v3635
    %v3646 = vmul.f32 %v3638, %v3636
    %v3647 = vadd.f32 %v3621, %v3639
    %v3648 = vadd.f32 %v3622, %v3640
    %v3649 = vadd.f32 %v3623, %v3641
    %v3650 = vadd.f32 %v3624, %v3642
    %v3651 = vadd.f32 %v3625, %v3643
    %v3652 = vadd.f32 %v3626, %v3644
    %v3653 = vadd.f32 %v3627, %v3645
    %v3654 = vadd.f32 %v3628, %v3646
    %s3655 = sld [smem:[#allocation10 + $0x17]]
    %v3656 = vstv %s3655
    %v3657 = vmul.f32 %v3656, %v3629
    %v3658 = vmul.f32 %v3656, %v3630
    %v3659 = vmul.f32 %v3656, %v3631
    %v3660 = vmul.f32 %v3656, %v3632
    %v3661 = vmul.f32 %v3656, %v3633
    %v3662 = vmul.f32 %v3656, %v3634
    %v3663 = vmul.f32 %v3656, %v3635
    %v3664 = vmul.f32 %v3656, %v3636
    %v3673 = vrot.slane %v3657, 1
    %v3674 = vrot.slane %v3658, 1
    %v3675 = vrot.slane %v3659, 1
    %v3676 = vrot.slane %v3660, 1
    %v3677 = vrot.slane %v3661, 1
    %v3678 = vrot.slane %v3662, 1
    %v3679 = vrot.slane %v3663, 1
    %v3680 = vrot.slane %v3664, 1
    %v3689 = vadd.f32 %v3647, %v3673
    %v3690 = vadd.f32 %v3648, %v3674
    %v3691 = vadd.f32 %v3649, %v3675
    %v3692 = vadd.f32 %v3650, %v3676
    %v3693 = vadd.f32 %v3651, %v3677
    %v3694 = vadd.f32 %v3652, %v3678
    %v3695 = vadd.f32 %v3653, %v3679
    %v3696 = vadd.f32 %v3654, %v3680
    %s3697 = sld [smem:[#allocation10 + $0x27]]
    %v3698 = vstv %s3697
    %v3699 = vmul.f32 %v3698, %v3629
    %v3700 = vmul.f32 %v3698, %v3630
    %v3701 = vmul.f32 %v3698, %v3631
    %v3702 = vmul.f32 %v3698, %v3632
    %v3703 = vmul.f32 %v3698, %v3633
    %v3704 = vmul.f32 %v3698, %v3634
    %v3705 = vmul.f32 %v3698, %v3635
    %v3706 = vmul.f32 %v3698, %v3636
    %v3715 = vrot.slane %v3699, 2
    %v3716 = vrot.slane %v3700, 2
    %v3717 = vrot.slane %v3701, 2
    %v3718 = vrot.slane %v3702, 2
    %v3719 = vrot.slane %v3703, 2
    %v3720 = vrot.slane %v3704, 2
    %v3721 = vrot.slane %v3705, 2
    %v3722 = vrot.slane %v3706, 2
    %v3731 = vadd.f32 %v3689, %v3715
    %v3732 = vadd.f32 %v3690, %v3716
    %v3733 = vadd.f32 %v3691, %v3717
    %v3734 = vadd.f32 %v3692, %v3718
    %v3735 = vadd.f32 %v3693, %v3719
    %v3736 = vadd.f32 %v3694, %v3720
    %v3737 = vadd.f32 %v3695, %v3721
    %v3738 = vadd.f32 %v3696, %v3722
    %v3739 = vld [vmem:[%s1650] sm:$0xff]
    %v3740 = vld [vmem:[%s1650 + $0x8] sm:$0xff]
    %v3741 = vld [vmem:[%s1650 + $0x10] sm:$0xff]
    %v3742 = vld [vmem:[%s1650 + $0x18] sm:$0xff]
    %v3743 = vld [vmem:[%s1650 + $0x20] sm:$0xff]
    %v3744 = vld [vmem:[%s1650 + $0x28] sm:$0xff]
    %v3745 = vld [vmem:[%s1650 + $0x30] sm:$0xff]
    %v3746 = vld [vmem:[%s1650 + $0x38] sm:$0xff]
    %s3747 = sld [smem:[#allocation10 + $0xb]]
    %v3748 = vstv %s3747
    %v3749 = vmul.f32 %v3748, %v3739
    %v3750 = vmul.f32 %v3748, %v3740
    %v3751 = vmul.f32 %v3748, %v3741
    %v3752 = vmul.f32 %v3748, %v3742
    %v3753 = vmul.f32 %v3748, %v3743
    %v3754 = vmul.f32 %v3748, %v3744
    %v3755 = vmul.f32 %v3748, %v3745
    %v3756 = vmul.f32 %v3748, %v3746
    %v3757 = vadd.f32 %v3731, %v3749
    %v3758 = vadd.f32 %v3732, %v3750
    %v3759 = vadd.f32 %v3733, %v3751
    %v3760 = vadd.f32 %v3734, %v3752
    %v3761 = vadd.f32 %v3735, %v3753
    %v3762 = vadd.f32 %v3736, %v3754
    %v3763 = vadd.f32 %v3737, %v3755
    %v3764 = vadd.f32 %v3738, %v3756
    %s3765 = sld [smem:[#allocation10 + $0x1b]]
    %v3766 = vstv %s3765
    %v3767 = vmul.f32 %v3766, %v3739
    %v3768 = vmul.f32 %v3766, %v3740
    %v3769 = vmul.f32 %v3766, %v3741
    %v3770 = vmul.f32 %v3766, %v3742
    %v3771 = vmul.f32 %v3766, %v3743
    %v3772 = vmul.f32 %v3766, %v3744
    %v3773 = vmul.f32 %v3766, %v3745
    %v3774 = vmul.f32 %v3766, %v3746
    %v3783 = vrot.slane %v3767, 1
    %v3784 = vrot.slane %v3768, 1
    %v3785 = vrot.slane %v3769, 1
    %v3786 = vrot.slane %v3770, 1
    %v3787 = vrot.slane %v3771, 1
    %v3788 = vrot.slane %v3772, 1
    %v3789 = vrot.slane %v3773, 1
    %v3790 = vrot.slane %v3774, 1
    %v3799 = vadd.f32 %v3757, %v3783
    %v3800 = vadd.f32 %v3758, %v3784
    %v3801 = vadd.f32 %v3759, %v3785
    %v3802 = vadd.f32 %v3760, %v3786
    %v3803 = vadd.f32 %v3761, %v3787
    %v3804 = vadd.f32 %v3762, %v3788
    %v3805 = vadd.f32 %v3763, %v3789
    %v3806 = vadd.f32 %v3764, %v3790
    %s3807 = sld [smem:[#allocation10 + $0x2b]]
    %v3808 = vstv %s3807
    %v3809 = vmul.f32 %v3808, %v3739
    %v3810 = vmul.f32 %v3808, %v3740
    %v3811 = vmul.f32 %v3808, %v3741
    %v3812 = vmul.f32 %v3808, %v3742
    %v3813 = vmul.f32 %v3808, %v3743
    %v3814 = vmul.f32 %v3808, %v3744
    %v3815 = vmul.f32 %v3808, %v3745
    %v3816 = vmul.f32 %v3808, %v3746
    %v3825 = vrot.slane %v3809, 2
    %v3826 = vrot.slane %v3810, 2
    %v3827 = vrot.slane %v3811, 2
    %v3828 = vrot.slane %v3812, 2
    %v3829 = vrot.slane %v3813, 2
    %v3830 = vrot.slane %v3814, 2
    %v3831 = vrot.slane %v3815, 2
    %v3832 = vrot.slane %v3816, 2
    %v3841 = vadd.f32 %v3799, %v3825
    %v3842 = vadd.f32 %v3800, %v3826
    %v3843 = vadd.f32 %v3801, %v3827
    %v3844 = vadd.f32 %v3802, %v3828
    %v3845 = vadd.f32 %v3803, %v3829
    %v3846 = vadd.f32 %v3804, %v3830
    %v3847 = vadd.f32 %v3805, %v3831
    %v3848 = vadd.f32 %v3806, %v3832
    %v3849 = vld [vmem:[%s2165] sm:$0xff]
    %v3850 = vld [vmem:[%s2165 + $0x8] sm:$0xff]
    %v3851 = vld [vmem:[%s2165 + $0x10] sm:$0xff]
    %v3852 = vld [vmem:[%s2165 + $0x18] sm:$0xff]
    %v3853 = vld [vmem:[%s2165 + $0x20] sm:$0xff]
    %v3854 = vld [vmem:[%s2165 + $0x28] sm:$0xff]
    %v3855 = vld [vmem:[%s2165 + $0x30] sm:$0xff]
    %v3856 = vld [vmem:[%s2165 + $0x38] sm:$0xff]
    %s3857 = sld [smem:[#allocation10 + $0xf]]
    %v3858 = vstv %s3857
    %v3859 = vmul.f32 %v3858, %v3849
    %v3860 = vmul.f32 %v3858, %v3850
    %v3861 = vmul.f32 %v3858, %v3851
    %v3862 = vmul.f32 %v3858, %v3852
    %v3863 = vmul.f32 %v3858, %v3853
    %v3864 = vmul.f32 %v3858, %v3854
    %v3865 = vmul.f32 %v3858, %v3855
    %v3866 = vmul.f32 %v3858, %v3856
    %v3867 = vadd.f32 %v3841, %v3859
    %v3868 = vadd.f32 %v3842, %v3860
    %v3869 = vadd.f32 %v3843, %v3861
    %v3870 = vadd.f32 %v3844, %v3862
    %v3871 = vadd.f32 %v3845, %v3863
    %v3872 = vadd.f32 %v3846, %v3864
    %v3873 = vadd.f32 %v3847, %v3865
    %v3874 = vadd.f32 %v3848, %v3866
    %s3875 = sld [smem:[#allocation10 + $0x1f]]
    %v3876 = vstv %s3875
    %v3877 = vmul.f32 %v3876, %v3849
    %v3878 = vmul.f32 %v3876, %v3850
    %v3879 = vmul.f32 %v3876, %v3851
    %v3880 = vmul.f32 %v3876, %v3852
    %v3881 = vmul.f32 %v3876, %v3853
    %v3882 = vmul.f32 %v3876, %v3854
    %v3883 = vmul.f32 %v3876, %v3855
    %v3884 = vmul.f32 %v3876, %v3856
    %v3893 = vrot.slane %v3877, 1
    %v3894 = vrot.slane %v3878, 1
    %v3895 = vrot.slane %v3879, 1
    %v3896 = vrot.slane %v3880, 1
    %v3897 = vrot.slane %v3881, 1
    %v3898 = vrot.slane %v3882, 1
    %v3899 = vrot.slane %v3883, 1
    %v3900 = vrot.slane %v3884, 1
    %v3909 = vadd.f32 %v3867, %v3893
    %v3910 = vadd.f32 %v3868, %v3894
    %v3911 = vadd.f32 %v3869, %v3895
    %v3912 = vadd.f32 %v3870, %v3896
    %v3913 = vadd.f32 %v3871, %v3897
    %v3914 = vadd.f32 %v3872, %v3898
    %v3915 = vadd.f32 %v3873, %v3899
    %v3916 = vadd.f32 %v3874, %v3900
    %s3917 = sld [smem:[#allocation10 + $0x2f]]
    %v3918 = vstv %s3917
    %v3919 = vmul.f32 %v3918, %v3849
    %v3920 = vmul.f32 %v3918, %v3850
    %v3921 = vmul.f32 %v3918, %v3851
    %v3922 = vmul.f32 %v3918, %v3852
    %v3923 = vmul.f32 %v3918, %v3853
    %v3924 = vmul.f32 %v3918, %v3854
    %v3925 = vmul.f32 %v3918, %v3855
    %v3926 = vmul.f32 %v3918, %v3856
    %v3935 = vrot.slane %v3919, 2
    %v3936 = vrot.slane %v3920, 2
    %v3937 = vrot.slane %v3921, 2
    %v3938 = vrot.slane %v3922, 2
    %v3939 = vrot.slane %v3923, 2
    %v3940 = vrot.slane %v3924, 2
    %v3941 = vrot.slane %v3925, 2
    %v3942 = vrot.slane %v3926, 2
    %v3951 = vadd.f32 %v3909, %v3935
    %v3952 = vadd.f32 %v3910, %v3936
    %v3953 = vadd.f32 %v3911, %v3937
    %v3954 = vadd.f32 %v3912, %v3938
    %v3955 = vadd.f32 %v3913, %v3939
    %v3956 = vadd.f32 %v3914, %v3940
    %v3957 = vadd.f32 %v3915, %v3941
    %v3958 = vadd.f32 %v3916, %v3942
    %s3959 = sld [smem:[#allocation11 + $0x3]]
    %v3960 = vstv %s3959
    %v3961 = vadd.f32 %v3951, %v3960
    %v3962 = vadd.f32 %v3952, %v3960
    %v3963 = vadd.f32 %v3953, %v3960
    %v3964 = vadd.f32 %v3954, %v3960
    %v3965 = vadd.f32 %v3955, %v3960
    %v3966 = vadd.f32 %v3956, %v3960
    %v3967 = vadd.f32 %v3957, %v3960
    %v3968 = vadd.f32 %v3958, %v3960
    %s3969 = scalar_lea.vmem [#allocation3], 192
    %3970 = vst.msk [vmem:[%s3969] sm:$0x3f] %vm2616, %v3961
    %3971 = vst.msk [vmem:[%s3969 + $0x8] sm:$0x3f] %vm2616, %v3962
    %3972 = vst.msk [vmem:[%s3969 + $0x10] sm:$0x3f] %vm2616, %v3963
    %3973 = vst.msk [vmem:[%s3969 + $0x18] sm:$0x3f] %vm2616, %v3964
    %3974 = vst.msk [vmem:[%s3969 + $0x20] sm:$0x3f] %vm2616, %v3965
    %3975 = vst.msk [vmem:[%s3969 + $0x28] sm:$0x3f] %vm2616, %v3966
    %3976 = vst.msk [vmem:[%s3969 + $0x30] sm:$0x3f] %vm2616, %v3967
    %3977 = vst.msk [vmem:[%s3969 + $0x38] sm:$0x3f] %vm2616, %v3968
    %v3978 = vld [vmem:[#allocation3] sm:$0x3f]
    %v3979 = vld [vmem:[#allocation3 + $0x8] sm:$0x3f]
    %v3980 = vld [vmem:[#allocation3 + $0x10] sm:$0x3f]
    %v3981 = vld [vmem:[#allocation3 + $0x18] sm:$0x3f]
    %v3982 = vld [vmem:[#allocation3 + $0x20] sm:$0x3f]
    %v3983 = vld [vmem:[#allocation3 + $0x28] sm:$0x3f]
    %v3984 = vld [vmem:[#allocation3 + $0x30] sm:$0x3f]
    %v3985 = vld [vmem:[#allocation3 + $0x38] sm:$0x3f]
    %s3986 = sld [smem:[#allocation13]]
    %v3987 = vstv %s3986
    %v3988 = vmul.f32 %v3987, %v3978
    %v3989 = vmul.f32 %v3987, %v3979
    %v3990 = vmul.f32 %v3987, %v3980
    %v3991 = vmul.f32 %v3987, %v3981
    %v3992 = vmul.f32 %v3987, %v3982
    %v3993 = vmul.f32 %v3987, %v3983
    %s3994 = sld [smem:[#allocation13 + $0x20]]
    %v3995 = vstv %s3994
    %v3996 = vmul.f32 %v3995, %v3979
    %v3997 = vmul.f32 %v3995, %v3980
    %v3998 = vmul.f32 %v3995, %v3981
    %v3999 = vmul.f32 %v3995, %v3982
    %v4000 = vmul.f32 %v3995, %v3983
    %v4001 = vmul.f32 %v3995, %v3984
    %v4002 = vadd.f32 %v3988, %v3996
    %v4003 = vadd.f32 %v3989, %v3997
    %v4004 = vadd.f32 %v3990, %v3998
    %v4005 = vadd.f32 %v3991, %v3999
    %v4006 = vadd.f32 %v3992, %v4000
    %v4007 = vadd.f32 %v3993, %v4001
    %s4008 = sld [smem:[#allocation13 + $0x40]]
    %v4009 = vstv %s4008
    %v4010 = vmul.f32 %v4009, %v3980
    %v4011 = vmul.f32 %v4009, %v3981
    %v4012 = vmul.f32 %v4009, %v3982
    %v4013 = vmul.f32 %v4009, %v3983
    %v4014 = vmul.f32 %v4009, %v3984
    %v4015 = vmul.f32 %v4009, %v3985
    %v4016 = vadd.f32 %v4002, %v4010
    %v4017 = vadd.f32 %v4003, %v4011
    %v4018 = vadd.f32 %v4004, %v4012
    %v4019 = vadd.f32 %v4005, %v4013
    %v4020 = vadd.f32 %v4006, %v4014
    %v4021 = vadd.f32 %v4007, %v4015
    %v4022 = vld [vmem:[%s3067] sm:$0x3f]
    %v4023 = vld [vmem:[%s3067 + $0x8] sm:$0x3f]
    %v4024 = vld [vmem:[%s3067 + $0x10] sm:$0x3f]
    %v4025 = vld [vmem:[%s3067 + $0x18] sm:$0x3f]
    %v4026 = vld [vmem:[%s3067 + $0x20] sm:$0x3f]
    %v4027 = vld [vmem:[%s3067 + $0x28] sm:$0x3f]
    %v4028 = vld [vmem:[%s3067 + $0x30] sm:$0x3f]
    %v4029 = vld [vmem:[%s3067 + $0x38] sm:$0x3f]
    %s4030 = sld [smem:[#allocation13 + $0x8]]
    %v4031 = vstv %s4030
    %v4032 = vmul.f32 %v4031, %v4022
    %v4033 = vmul.f32 %v4031, %v4023
    %v4034 = vmul.f32 %v4031, %v4024
    %v4035 = vmul.f32 %v4031, %v4025
    %v4036 = vmul.f32 %v4031, %v4026
    %v4037 = vmul.f32 %v4031, %v4027
    %v4038 = vadd.f32 %v4016, %v4032
    %v4039 = vadd.f32 %v4017, %v4033
    %v4040 = vadd.f32 %v4018, %v4034
    %v4041 = vadd.f32 %v4019, %v4035
    %v4042 = vadd.f32 %v4020, %v4036
    %v4043 = vadd.f32 %v4021, %v4037
    %s4044 = sld [smem:[#allocation13 + $0x28]]
    %v4045 = vstv %s4044
    %v4046 = vmul.f32 %v4045, %v4023
    %v4047 = vmul.f32 %v4045, %v4024
    %v4048 = vmul.f32 %v4045, %v4025
    %v4049 = vmul.f32 %v4045, %v4026
    %v4050 = vmul.f32 %v4045, %v4027
    %v4051 = vmul.f32 %v4045, %v4028
    %v4052 = vadd.f32 %v4038, %v4046
    %v4053 = vadd.f32 %v4039, %v4047
    %v4054 = vadd.f32 %v4040, %v4048
    %v4055 = vadd.f32 %v4041, %v4049
    %v4056 = vadd.f32 %v4042, %v4050
    %v4057 = vadd.f32 %v4043, %v4051
    %s4058 = sld [smem:[#allocation13 + $0x48]]
    %v4059 = vstv %s4058
    %v4060 = vmul.f32 %v4059, %v4024
    %v4061 = vmul.f32 %v4059, %v4025
    %v4062 = vmul.f32 %v4059, %v4026
    %v4063 = vmul.f32 %v4059, %v4027
    %v4064 = vmul.f32 %v4059, %v4028
    %v4065 = vmul.f32 %v4059, %v4029
    %v4066 = vadd.f32 %v4052, %v4060
    %v4067 = vadd.f32 %v4053, %v4061
    %v4068 = vadd.f32 %v4054, %v4062
    %v4069 = vadd.f32 %v4055, %v4063
    %v4070 = vadd.f32 %v4056, %v4064
    %v4071 = vadd.f32 %v4057, %v4065
    %v4072 = vld [vmem:[%s3518] sm:$0x3f]
    %v4073 = vld [vmem:[%s3518 + $0x8] sm:$0x3f]
    %v4074 = vld [vmem:[%s3518 + $0x10] sm:$0x3f]
    %v4075 = vld [vmem:[%s3518 + $0x18] sm:$0x3f]
    %v4076 = vld [vmem:[%s3518 + $0x20] sm:$0x3f]
    %v4077 = vld [vmem:[%s3518 + $0x28] sm:$0x3f]
    %v4078 = vld [vmem:[%s3518 + $0x30] sm:$0x3f]
    %v4079 = vld [vmem:[%s3518 + $0x38] sm:$0x3f]
    %s4080 = sld [smem:[#allocation13 + $0x10]]
    %v4081 = vstv %s4080
    %v4082 = vmul.f32 %v4081, %v4072
    %v4083 = vmul.f32 %v4081, %v4073
    %v4084 = vmul.f32 %v4081, %v4074
    %v4085 = vmul.f32 %v4081, %v4075
    %v4086 = vmul.f32 %v4081, %v4076
    %v4087 = vmul.f32 %v4081, %v4077
    %v4088 = vadd.f32 %v4066, %v4082
    %v4089 = vadd.f32 %v4067, %v4083
    %v4090 = vadd.f32 %v4068, %v4084
    %v4091 = vadd.f32 %v4069, %v4085
    %v4092 = vadd.f32 %v4070, %v4086
    %v4093 = vadd.f32 %v4071, %v4087
    %s4094 = sld [smem:[#allocation13 + $0x30]]
    %v4095 = vstv %s4094
    %v4096 = vmul.f32 %v4095, %v4073
    %v4097 = vmul.f32 %v4095, %v4074
    %v4098 = vmul.f32 %v4095, %v4075
    %v4099 = vmul.f32 %v4095, %v4076
    %v4100 = vmul.f32 %v4095, %v4077
    %v4101 = vmul.f32 %v4095, %v4078
    %v4102 = vadd.f32 %v4088, %v4096
    %v4103 = vadd.f32 %v4089, %v4097
    %v4104 = vadd.f32 %v4090, %v4098
    %v4105 = vadd.f32 %v4091, %v4099
    %v4106 = vadd.f32 %v4092, %v4100
    %v4107 = vadd.f32 %v4093, %v4101
    %s4108 = sld [smem:[#allocation13 + $0x50]]
    %v4109 = vstv %s4108
    %v4110 = vmul.f32 %v4109, %v4074
    %v4111 = vmul.f32 %v4109, %v4075
    %v4112 = vmul.f32 %v4109, %v4076
    %v4113 = vmul.f32 %v4109, %v4077
    %v4114 = vmul.f32 %v4109, %v4078
    %v4115 = vmul.f32 %v4109, %v4079
    %v4116 = vadd.f32 %v4102, %v4110
    %v4117 = vadd.f32 %v4103, %v4111
    %v4118 = vadd.f32 %v4104, %v4112
    %v4119 = vadd.f32 %v4105, %v4113
    %v4120 = vadd.f32 %v4106, %v4114
    %v4121 = vadd.f32 %v4107, %v4115
    %v4122 = vld [vmem:[%s3969] sm:$0x3f]
    %v4123 = vld [vmem:[%s3969 + $0x8] sm:$0x3f]
    %v4124 = vld [vmem:[%s3969 + $0x10] sm:$0x3f]
    %v4125 = vld [vmem:[%s3969 + $0x18] sm:$0x3f]
    %v4126 = vld [vmem:[%s3969 + $0x20] sm:$0x3f]
    %v4127 = vld [vmem:[%s3969 + $0x28] sm:$0x3f]
    %v4128 = vld [vmem:[%s3969 + $0x30] sm:$0x3f]
    %v4129 = vld [vmem:[%s3969 + $0x38] sm:$0x3f]
    %s4130 = sld [smem:[#allocation13 + $0x18]]
    %v4131 = vstv %s4130
    %v4132 = vmul.f32 %v4131, %v4122
    %v4133 = vmul.f32 %v4131, %v4123
    %v4134 = vmul.f32 %v4131, %v4124
    %v4135 = vmul.f32 %v4131, %v4125
    %v4136 = vmul.f32 %v4131, %v4126
    %v4137 = vmul.f32 %v4131, %v4127
    %v4138 = vadd.f32 %v4116, %v4132
    %v4139 = vadd.f32 %v4117, %v4133
    %v4140 = vadd.f32 %v4118, %v4134
    %v4141 = vadd.f32 %v4119, %v4135
    %v4142 = vadd.f32 %v4120, %v4136
    %v4143 = vadd.f32 %v4121, %v4137
    %s4144 = sld [smem:[#allocation13 + $0x38]]
    %v4145 = vstv %s4144
    %v4146 = vmul.f32 %v4145, %v4123
    %v4147 = vmul.f32 %v4145, %v4124
    %v4148 = vmul.f32 %v4145, %v4125
    %v4149 = vmul.f32 %v4145, %v4126
    %v4150 = vmul.f32 %v4145, %v4127
    %v4151 = vmul.f32 %v4145, %v4128
    %v4152 = vadd.f32 %v4138, %v4146
    %v4153 = vadd.f32 %v4139, %v4147
    %v4154 = vadd.f32 %v4140, %v4148
    %v4155 = vadd.f32 %v4141, %v4149
    %v4156 = vadd.f32 %v4142, %v4150
    %v4157 = vadd.f32 %v4143, %v4151
    %s4158 = sld [smem:[#allocation13 + $0x58]]
    %v4159 = vstv %s4158
    %v4160 = vmul.f32 %v4159, %v4124
    %v4161 = vmul.f32 %v4159, %v4125
    %v4162 = vmul.f32 %v4159, %v4126
    %v4163 = vmul.f32 %v4159, %v4127
    %v4164 = vmul.f32 %v4159, %v4128
    %v4165 = vmul.f32 %v4159, %v4129
    %v4166 = vadd.f32 %v4152, %v4160
    %v4167 = vadd.f32 %v4153, %v4161
    %v4168 = vadd.f32 %v4154, %v4162
    %v4169 = vadd.f32 %v4155, %v4163
    %v4170 = vadd.f32 %v4156, %v4164
    %v4171 = vadd.f32 %v4157, %v4165
    %s4172 = sld [smem:[#allocation14]]
    %v4173 = vstv %s4172
    %v4174 = vadd.f32 %v4166, %v4173
    %v4175 = vadd.f32 %v4167, %v4173
    %v4176 = vadd.f32 %v4168, %v4173
    %v4177 = vadd.f32 %v4169, %v4173
    %v4178 = vadd.f32 %v4170, %v4173
    %v4179 = vadd.f32 %v4171, %v4173
    %4180 = vst.msk [vmem:[%s7] sm:$0x3f] %vm2616, %v4174
    %4181 = vst.msk [vmem:[%s7 + $0x8] sm:$0x3f] %vm2616, %v4175
    %4182 = vst.msk [vmem:[%s7 + $0x10] sm:$0x3f] %vm2616, %v4176
    %4183 = vst.msk [vmem:[%s7 + $0x18] sm:$0x3f] %vm2616, %v4177
    %4184 = vst.msk [vmem:[%s7 + $0x20] sm:$0x3f] %vm2616, %v4178
    %4185 = vst.msk [vmem:[%s7 + $0x28] sm:$0x3f] %vm2616, %v4179
    %v4186 = vld [vmem:[#allocation3] sm:$0x3f]
    %v4187 = vld [vmem:[#allocation3 + $0x8] sm:$0x3f]
    %v4188 = vld [vmem:[#allocation3 + $0x10] sm:$0x3f]
    %v4189 = vld [vmem:[#allocation3 + $0x18] sm:$0x3f]
    %v4190 = vld [vmem:[#allocation3 + $0x20] sm:$0x3f]
    %v4191 = vld [vmem:[#allocation3 + $0x28] sm:$0x3f]
    %v4192 = vld [vmem:[#allocation3 + $0x30] sm:$0x3f]
    %v4193 = vld [vmem:[#allocation3 + $0x38] sm:$0x3f]
    %s4194 = sld [smem:[#allocation13 + $0x1]]
    %v4195 = vstv %s4194
    %v4196 = vmul.f32 %v4195, %v4186
    %v4197 = vmul.f32 %v4195, %v4187
    %v4198 = vmul.f32 %v4195, %v4188
    %v4199 = vmul.f32 %v4195, %v4189
    %v4200 = vmul.f32 %v4195, %v4190
    %v4201 = vmul.f32 %v4195, %v4191
    %s4202 = sld [smem:[#allocation13 + $0x21]]
    %v4203 = vstv %s4202
    %v4204 = vmul.f32 %v4203, %v4187
    %v4205 = vmul.f32 %v4203, %v4188
    %v4206 = vmul.f32 %v4203, %v4189
    %v4207 = vmul.f32 %v4203, %v4190
    %v4208 = vmul.f32 %v4203, %v4191
    %v4209 = vmul.f32 %v4203, %v4192
    %v4210 = vadd.f32 %v4196, %v4204
    %v4211 = vadd.f32 %v4197, %v4205
    %v4212 = vadd.f32 %v4198, %v4206
    %v4213 = vadd.f32 %v4199, %v4207
    %v4214 = vadd.f32 %v4200, %v4208
    %v4215 = vadd.f32 %v4201, %v4209
    %s4216 = sld [smem:[#allocation13 + $0x41]]
    %v4217 = vstv %s4216
    %v4218 = vmul.f32 %v4217, %v4188
    %v4219 = vmul.f32 %v4217, %v4189
    %v4220 = vmul.f32 %v4217, %v4190
    %v4221 = vmul.f32 %v4217, %v4191
    %v4222 = vmul.f32 %v4217, %v4192
    %v4223 = vmul.f32 %v4217, %v4193
    %v4224 = vadd.f32 %v4210, %v4218
    %v4225 = vadd.f32 %v4211, %v4219
    %v4226 = vadd.f32 %v4212, %v4220
    %v4227 = vadd.f32 %v4213, %v4221
    %v4228 = vadd.f32 %v4214, %v4222
    %v4229 = vadd.f32 %v4215, %v4223
    %v4230 = vld [vmem:[%s3067] sm:$0x3f]
    %v4231 = vld [vmem:[%s3067 + $0x8] sm:$0x3f]
    %v4232 = vld [vmem:[%s3067 + $0x10] sm:$0x3f]
    %v4233 = vld [vmem:[%s3067 + $0x18] sm:$0x3f]
    %v4234 = vld [vmem:[%s3067 + $0x20] sm:$0x3f]
    %v4235 = vld [vmem:[%s3067 + $0x28] sm:$0x3f]
    %v4236 = vld [vmem:[%s3067 + $0x30] sm:$0x3f]
    %v4237 = vld [vmem:[%s3067 + $0x38] sm:$0x3f]
    %s4238 = sld [smem:[#allocation13 + $0x9]]
    %v4239 = vstv %s4238
    %v4240 = vmul.f32 %v4239, %v4230
    %v4241 = vmul.f32 %v4239, %v4231
    %v4242 = vmul.f32 %v4239, %v4232
    %v4243 = vmul.f32 %v4239, %v4233
    %v4244 = vmul.f32 %v4239, %v4234
    %v4245 = vmul.f32 %v4239, %v4235
    %v4246 = vadd.f32 %v4224, %v4240
    %v4247 = vadd.f32 %v4225, %v4241
    %v4248 = vadd.f32 %v4226, %v4242
    %v4249 = vadd.f32 %v4227, %v4243
    %v4250 = vadd.f32 %v4228, %v4244
    %v4251 = vadd.f32 %v4229, %v4245
    %s4252 = sld [smem:[#allocation13 + $0x29]]
    %v4253 = vstv %s4252
    %v4254 = vmul.f32 %v4253, %v4231
    %v4255 = vmul.f32 %v4253, %v4232
    %v4256 = vmul.f32 %v4253, %v4233
    %v4257 = vmul.f32 %v4253, %v4234
    %v4258 = vmul.f32 %v4253, %v4235
    %v4259 = vmul.f32 %v4253, %v4236
    %v4260 = vadd.f32 %v4246, %v4254
    %v4261 = vadd.f32 %v4247, %v4255
    %v4262 = vadd.f32 %v4248, %v4256
    %v4263 = vadd.f32 %v4249, %v4257
    %v4264 = vadd.f32 %v4250, %v4258
    %v4265 = vadd.f32 %v4251, %v4259
    %s4266 = sld [smem:[#allocation13 + $0x49]]
    %v4267 = vstv %s4266
    %v4268 = vmul.f32 %v4267, %v4232
    %v4269 = vmul.f32 %v4267, %v4233
    %v4270 = vmul.f32 %v4267, %v4234
    %v4271 = vmul.f32 %v4267, %v4235
    %v4272 = vmul.f32 %v4267, %v4236
    %v4273 = vmul.f32 %v4267, %v4237
    %v4274 = vadd.f32 %v4260, %v4268
    %v4275 = vadd.f32 %v4261, %v4269
    %v4276 = vadd.f32 %v4262, %v4270
    %v4277 = vadd.f32 %v4263, %v4271
    %v4278 = vadd.f32 %v4264, %v4272
    %v4279 = vadd.f32 %v4265, %v4273
    %v4280 = vld [vmem:[%s3518] sm:$0x3f]
    %v4281 = vld [vmem:[%s3518 + $0x8] sm:$0x3f]
    %v4282 = vld [vmem:[%s3518 + $0x10] sm:$0x3f]
    %v4283 = vld [vmem:[%s3518 + $0x18] sm:$0x3f]
    %v4284 = vld [vmem:[%s3518 + $0x20] sm:$0x3f]
    %v4285 = vld [vmem:[%s3518 + $0x28] sm:$0x3f]
    %v4286 = vld [vmem:[%s3518 + $0x30] sm:$0x3f]
    %v4287 = vld [vmem:[%s3518 + $0x38] sm:$0x3f]
    %s4288 = sld [smem:[#allocation13 + $0x11]]
    %v4289 = vstv %s4288
    %v4290 = vmul.f32 %v4289, %v4280
    %v4291 = vmul.f32 %v4289, %v4281
    %v4292 = vmul.f32 %v4289, %v4282
    %v4293 = vmul.f32 %v4289, %v4283
    %v4294 = vmul.f32 %v4289, %v4284
    %v4295 = vmul.f32 %v4289, %v4285
    %v4296 = vadd.f32 %v4274, %v4290
    %v4297 = vadd.f32 %v4275, %v4291
    %v4298 = vadd.f32 %v4276, %v4292
    %v4299 = vadd.f32 %v4277, %v4293
    %v4300 = vadd.f32 %v4278, %v4294
    %v4301 = vadd.f32 %v4279, %v4295
    %s4302 = sld [smem:[#allocation13 + $0x31]]
    %v4303 = vstv %s4302
    %v4304 = vmul.f32 %v4303, %v4281
    %v4305 = vmul.f32 %v4303, %v4282
    %v4306 = vmul.f32 %v4303, %v4283
    %v4307 = vmul.f32 %v4303, %v4284
    %v4308 = vmul.f32 %v4303, %v4285
    %v4309 = vmul.f32 %v4303, %v4286
    %v4310 = vadd.f32 %v4296, %v4304
    %v4311 = vadd.f32 %v4297, %v4305
    %v4312 = vadd.f32 %v4298, %v4306
    %v4313 = vadd.f32 %v4299, %v4307
    %v4314 = vadd.f32 %v4300, %v4308
    %v4315 = vadd.f32 %v4301, %v4309
    %s4316 = sld [smem:[#allocation13 + $0x51]]
    %v4317 = vstv %s4316
    %v4318 = vmul.f32 %v4317, %v4282
    %v4319 = vmul.f32 %v4317, %v4283
    %v4320 = vmul.f32 %v4317, %v4284
    %v4321 = vmul.f32 %v4317, %v4285
    %v4322 = vmul.f32 %v4317, %v4286
    %v4323 = vmul.f32 %v4317, %v4287
    %v4324 = vadd.f32 %v4310, %v4318
    %v4325 = vadd.f32 %v4311, %v4319
    %v4326 = vadd.f32 %v4312, %v4320
    %v4327 = vadd.f32 %v4313, %v4321
    %v4328 = vadd.f32 %v4314, %v4322
    %v4329 = vadd.f32 %v4315, %v4323
    %v4330 = vld [vmem:[%s3969] sm:$0x3f]
    %v4331 = vld [vmem:[%s3969 + $0x8] sm:$0x3f]
    %v4332 = vld [vmem:[%s3969 + $0x10] sm:$0x3f]
    %v4333 = vld [vmem:[%s3969 + $0x18] sm:$0x3f]
    %v4334 = vld [vmem:[%s3969 + $0x20] sm:$0x3f]
    %v4335 = vld [vmem:[%s3969 + $0x28] sm:$0x3f]
    %v4336 = vld [vmem:[%s3969 + $0x30] sm:$0x3f]
    %v4337 = vld [vmem:[%s3969 + $0x38] sm:$0x3f]
    %s4338 = sld [smem:[#allocation13 + $0x19]]
    %v4339 = vstv %s4338
    %v4340 = vmul.f32 %v4339, %v4330
    %v4341 = vmul.f32 %v4339, %v4331
    %v4342 = vmul.f32 %v4339, %v4332
    %v4343 = vmul.f32 %v4339, %v4333
    %v4344 = vmul.f32 %v4339, %v4334
    %v4345 = vmul.f32 %v4339, %v4335
    %v4346 = vadd.f32 %v4324, %v4340
    %v4347 = vadd.f32 %v4325, %v4341
    %v4348 = vadd.f32 %v4326, %v4342
    %v4349 = vadd.f32 %v4327, %v4343
    %v4350 = vadd.f32 %v4328, %v4344
    %v4351 = vadd.f32 %v4329, %v4345
    %s4352 = sld [smem:[#allocation13 + $0x39]]
    %v4353 = vstv %s4352
    %v4354 = vmul.f32 %v4353, %v4331
    %v4355 = vmul.f32 %v4353, %v4332
    %v4356 = vmul.f32 %v4353, %v4333
    %v4357 = vmul.f32 %v4353, %v4334
    %v4358 = vmul.f32 %v4353, %v4335
    %v4359 = vmul.f32 %v4353, %v4336
    %v4360 = vadd.f32 %v4346, %v4354
    %v4361 = vadd.f32 %v4347, %v4355
    %v4362 = vadd.f32 %v4348, %v4356
    %v4363 = vadd.f32 %v4349, %v4357
    %v4364 = vadd.f32 %v4350, %v4358
    %v4365 = vadd.f32 %v4351, %v4359
    %s4366 = sld [smem:[#allocation13 + $0x59]]
    %v4367 = vstv %s4366
    %v4368 = vmul.f32 %v4367, %v4332
    %v4369 = vmul.f32 %v4367, %v4333
    %v4370 = vmul.f32 %v4367, %v4334
    %v4371 = vmul.f32 %v4367, %v4335
    %v4372 = vmul.f32 %v4367, %v4336
    %v4373 = vmul.f32 %v4367, %v4337
    %v4374 = vadd.f32 %v4360, %v4368
    %v4375 = vadd.f32 %v4361, %v4369
    %v4376 = vadd.f32 %v4362, %v4370
    %v4377 = vadd.f32 %v4363, %v4371
    %v4378 = vadd.f32 %v4364, %v4372
    %v4379 = vadd.f32 %v4365, %v4373
    %s4380 = sld [smem:[#allocation14 + $0x1]]
    %v4381 = vstv %s4380
    %v4382 = vadd.f32 %v4374, %v4381
    %v4383 = vadd.f32 %v4375, %v4381
    %v4384 = vadd.f32 %v4376, %v4381
    %v4385 = vadd.f32 %v4377, %v4381
    %v4386 = vadd.f32 %v4378, %v4381
    %v4387 = vadd.f32 %v4379, %v4381
    %s4388 = scalar_lea.vmem %s7, 48
    %4389 = vst.msk [vmem:[%s4388] sm:$0x3f] %vm2616, %v4382
    %4390 = vst.msk [vmem:[%s4388 + $0x8] sm:$0x3f] %vm2616, %v4383
    %4391 = vst.msk [vmem:[%s4388 + $0x10] sm:$0x3f] %vm2616, %v4384
    %4392 = vst.msk [vmem:[%s4388 + $0x18] sm:$0x3f] %vm2616, %v4385
    %4393 = vst.msk [vmem:[%s4388 + $0x20] sm:$0x3f] %vm2616, %v4386
    %4394 = vst.msk [vmem:[%s4388 + $0x28] sm:$0x3f] %vm2616, %v4387
    %v4395 = vld [vmem:[#allocation3] sm:$0x3f]
    %v4396 = vld [vmem:[#allocation3 + $0x8] sm:$0x3f]
    %v4397 = vld [vmem:[#allocation3 + $0x10] sm:$0x3f]
    %v4398 = vld [vmem:[#allocation3 + $0x18] sm:$0x3f]
    %v4399 = vld [vmem:[#allocation3 + $0x20] sm:$0x3f]
    %v4400 = vld [vmem:[#allocation3 + $0x28] sm:$0x3f]
    %v4401 = vld [vmem:[#allocation3 + $0x30] sm:$0x3f]
    %v4402 = vld [vmem:[#allocation3 + $0x38] sm:$0x3f]
    %s4403 = sld [smem:[#allocation13 + $0x2]]
    %v4404 = vstv %s4403
    %v4405 = vmul.f32 %v4404, %v4395
    %v4406 = vmul.f32 %v4404, %v4396
    %v4407 = vmul.f32 %v4404, %v4397
    %v4408 = vmul.f32 %v4404, %v4398
    %v4409 = vmul.f32 %v4404, %v4399
    %v4410 = vmul.f32 %v4404, %v4400
    %s4411 = sld [smem:[#allocation13 + $0x22]]
    %v4412 = vstv %s4411
    %v4413 = vmul.f32 %v4412, %v4396
    %v4414 = vmul.f32 %v4412, %v4397
    %v4415 = vmul.f32 %v4412, %v4398
    %v4416 = vmul.f32 %v4412, %v4399
    %v4417 = vmul.f32 %v4412, %v4400
    %v4418 = vmul.f32 %v4412, %v4401
    %v4419 = vadd.f32 %v4405, %v4413
    %v4420 = vadd.f32 %v4406, %v4414
    %v4421 = vadd.f32 %v4407, %v4415
    %v4422 = vadd.f32 %v4408, %v4416
    %v4423 = vadd.f32 %v4409, %v4417
    %v4424 = vadd.f32 %v4410, %v4418
    %s4425 = sld [smem:[#allocation13 + $0x42]]
    %v4426 = vstv %s4425
    %v4427 = vmul.f32 %v4426, %v4397
    %v4428 = vmul.f32 %v4426, %v4398
    %v4429 = vmul.f32 %v4426, %v4399
    %v4430 = vmul.f32 %v4426, %v4400
    %v4431 = vmul.f32 %v4426, %v4401
    %v4432 = vmul.f32 %v4426, %v4402
    %v4433 = vadd.f32 %v4419, %v4427
    %v4434 = vadd.f32 %v4420, %v4428
    %v4435 = vadd.f32 %v4421, %v4429
    %v4436 = vadd.f32 %v4422, %v4430
    %v4437 = vadd.f32 %v4423, %v4431
    %v4438 = vadd.f32 %v4424, %v4432
    %v4439 = vld [vmem:[%s3067] sm:$0x3f]
    %v4440 = vld [vmem:[%s3067 + $0x8] sm:$0x3f]
    %v4441 = vld [vmem:[%s3067 + $0x10] sm:$0x3f]
    %v4442 = vld [vmem:[%s3067 + $0x18] sm:$0x3f]
    %v4443 = vld [vmem:[%s3067 + $0x20] sm:$0x3f]
    %v4444 = vld [vmem:[%s3067 + $0x28] sm:$0x3f]
    %v4445 = vld [vmem:[%s3067 + $0x30] sm:$0x3f]
    %v4446 = vld [vmem:[%s3067 + $0x38] sm:$0x3f]
    %s4447 = sld [smem:[#allocation13 + $0xa]]
    %v4448 = vstv %s4447
    %v4449 = vmul.f32 %v4448, %v4439
    %v4450 = vmul.f32 %v4448, %v4440
    %v4451 = vmul.f32 %v4448, %v4441
    %v4452 = vmul.f32 %v4448, %v4442
    %v4453 = vmul.f32 %v4448, %v4443
    %v4454 = vmul.f32 %v4448, %v4444
    %v4455 = vadd.f32 %v4433, %v4449
    %v4456 = vadd.f32 %v4434, %v4450
    %v4457 = vadd.f32 %v4435, %v4451
    %v4458 = vadd.f32 %v4436, %v4452
    %v4459 = vadd.f32 %v4437, %v4453
    %v4460 = vadd.f32 %v4438, %v4454
    %s4461 = sld [smem:[#allocation13 + $0x2a]]
    %v4462 = vstv %s4461
    %v4463 = vmul.f32 %v4462, %v4440
    %v4464 = vmul.f32 %v4462, %v4441
    %v4465 = vmul.f32 %v4462, %v4442
    %v4466 = vmul.f32 %v4462, %v4443
    %v4467 = vmul.f32 %v4462, %v4444
    %v4468 = vmul.f32 %v4462, %v4445
    %v4469 = vadd.f32 %v4455, %v4463
    %v4470 = vadd.f32 %v4456, %v4464
    %v4471 = vadd.f32 %v4457, %v4465
    %v4472 = vadd.f32 %v4458, %v4466
    %v4473 = vadd.f32 %v4459, %v4467
    %v4474 = vadd.f32 %v4460, %v4468
    %s4475 = sld [smem:[#allocation13 + $0x4a]]
    %v4476 = vstv %s4475
    %v4477 = vmul.f32 %v4476, %v4441
    %v4478 = vmul.f32 %v4476, %v4442
    %v4479 = vmul.f32 %v4476, %v4443
    %v4480 = vmul.f32 %v4476, %v4444
    %v4481 = vmul.f32 %v4476, %v4445
    %v4482 = vmul.f32 %v4476, %v4446
    %v4483 = vadd.f32 %v4469, %v4477
    %v4484 = vadd.f32 %v4470, %v4478
    %v4485 = vadd.f32 %v4471, %v4479
    %v4486 = vadd.f32 %v4472, %v4480
    %v4487 = vadd.f32 %v4473, %v4481
    %v4488 = vadd.f32 %v4474, %v4482
    %v4489 = vld [vmem:[%s3518] sm:$0x3f]
    %v4490 = vld [vmem:[%s3518 + $0x8] sm:$0x3f]
    %v4491 = vld [vmem:[%s3518 + $0x10] sm:$0x3f]
    %v4492 = vld [vmem:[%s3518 + $0x18] sm:$0x3f]
    %v4493 = vld [vmem:[%s3518 + $0x20] sm:$0x3f]
    %v4494 = vld [vmem:[%s3518 + $0x28] sm:$0x3f]
    %v4495 = vld [vmem:[%s3518 + $0x30] sm:$0x3f]
    %v4496 = vld [vmem:[%s3518 + $0x38] sm:$0x3f]
    %s4497 = sld [smem:[#allocation13 + $0x12]]
    %v4498 = vstv %s4497
    %v4499 = vmul.f32 %v4498, %v4489
    %v4500 = vmul.f32 %v4498, %v4490
    %v4501 = vmul.f32 %v4498, %v4491
    %v4502 = vmul.f32 %v4498, %v4492
    %v4503 = vmul.f32 %v4498, %v4493
    %v4504 = vmul.f32 %v4498, %v4494
    %v4505 = vadd.f32 %v4483, %v4499
    %v4506 = vadd.f32 %v4484, %v4500
    %v4507 = vadd.f32 %v4485, %v4501
    %v4508 = vadd.f32 %v4486, %v4502
    %v4509 = vadd.f32 %v4487, %v4503
    %v4510 = vadd.f32 %v4488, %v4504
    %s4511 = sld [smem:[#allocation13 + $0x32]]
    %v4512 = vstv %s4511
    %v4513 = vmul.f32 %v4512, %v4490
    %v4514 = vmul.f32 %v4512, %v4491
    %v4515 = vmul.f32 %v4512, %v4492
    %v4516 = vmul.f32 %v4512, %v4493
    %v4517 = vmul.f32 %v4512, %v4494
    %v4518 = vmul.f32 %v4512, %v4495
    %v4519 = vadd.f32 %v4505, %v4513
    %v4520 = vadd.f32 %v4506, %v4514
    %v4521 = vadd.f32 %v4507, %v4515
    %v4522 = vadd.f32 %v4508, %v4516
    %v4523 = vadd.f32 %v4509, %v4517
    %v4524 = vadd.f32 %v4510, %v4518
    %s4525 = sld [smem:[#allocation13 + $0x52]]
    %v4526 = vstv %s4525
    %v4527 = vmul.f32 %v4526, %v4491
    %v4528 = vmul.f32 %v4526, %v4492
    %v4529 = vmul.f32 %v4526, %v4493
    %v4530 = vmul.f32 %v4526, %v4494
    %v4531 = vmul.f32 %v4526, %v4495
    %v4532 = vmul.f32 %v4526, %v4496
    %v4533 = vadd.f32 %v4519, %v4527
    %v4534 = vadd.f32 %v4520, %v4528
    %v4535 = vadd.f32 %v4521, %v4529
    %v4536 = vadd.f32 %v4522, %v4530
    %v4537 = vadd.f32 %v4523, %v4531
    %v4538 = vadd.f32 %v4524, %v4532
    %v4539 = vld [vmem:[%s3969] sm:$0x3f]
    %v4540 = vld [vmem:[%s3969 + $0x8] sm:$0x3f]
    %v4541 = vld [vmem:[%s3969 + $0x10] sm:$0x3f]
    %v4542 = vld [vmem:[%s3969 + $0x18] sm:$0x3f]
    %v4543 = vld [vmem:[%s3969 + $0x20] sm:$0x3f]
    %v4544 = vld [vmem:[%s3969 + $0x28] sm:$0x3f]
    %v4545 = vld [vmem:[%s3969 + $0x30] sm:$0x3f]
    %v4546 = vld [vmem:[%s3969 + $0x38] sm:$0x3f]
    %s4547 = sld [smem:[#allocation13 + $0x1a]]
    %v4548 = vstv %s4547
    %v4549 = vmul.f32 %v4548, %v4539
    %v4550 = vmul.f32 %v4548, %v4540
    %v4551 = vmul.f32 %v4548, %v4541
    %v4552 = vmul.f32 %v4548, %v4542
    %v4553 = vmul.f32 %v4548, %v4543
    %v4554 = vmul.f32 %v4548, %v4544
    %v4555 = vadd.f32 %v4533, %v4549
    %v4556 = vadd.f32 %v4534, %v4550
    %v4557 = vadd.f32 %v4535, %v4551
    %v4558 = vadd.f32 %v4536, %v4552
    %v4559 = vadd.f32 %v4537, %v4553
    %v4560 = vadd.f32 %v4538, %v4554
    %s4561 = sld [smem:[#allocation13 + $0x3a]]
    %v4562 = vstv %s4561
    %v4563 = vmul.f32 %v4562, %v4540
    %v4564 = vmul.f32 %v4562, %v4541
    %v4565 = vmul.f32 %v4562, %v4542
    %v4566 = vmul.f32 %v4562, %v4543
    %v4567 = vmul.f32 %v4562, %v4544
    %v4568 = vmul.f32 %v4562, %v4545
    %v4569 = vadd.f32 %v4555, %v4563
    %v4570 = vadd.f32 %v4556, %v4564
    %v4571 = vadd.f32 %v4557, %v4565
    %v4572 = vadd.f32 %v4558, %v4566
    %v4573 = vadd.f32 %v4559, %v4567
    %v4574 = vadd.f32 %v4560, %v4568
    %s4575 = sld [smem:[#allocation13 + $0x5a]]
    %v4576 = vstv %s4575
    %v4577 = vmul.f32 %v4576, %v4541
    %v4578 = vmul.f32 %v4576, %v4542
    %v4579 = vmul.f32 %v4576, %v4543
    %v4580 = vmul.f32 %v4576, %v4544
    %v4581 = vmul.f32 %v4576, %v4545
    %v4582 = vmul.f32 %v4576, %v4546
    %v4583 = vadd.f32 %v4569, %v4577
    %v4584 = vadd.f32 %v4570, %v4578
    %v4585 = vadd.f32 %v4571, %v4579
    %v4586 = vadd.f32 %v4572, %v4580
    %v4587 = vadd.f32 %v4573, %v4581
    %v4588 = vadd.f32 %v4574, %v4582
    %s4589 = sld [smem:[#allocation14 + $0x2]]
    %v4590 = vstv %s4589
    %v4591 = vadd.f32 %v4583, %v4590
    %v4592 = vadd.f32 %v4584, %v4590
    %v4593 = vadd.f32 %v4585, %v4590
    %v4594 = vadd.f32 %v4586, %v4590
    %v4595 = vadd.f32 %v4587, %v4590
    %v4596 = vadd.f32 %v4588, %v4590
    %s4597 = scalar_lea.vmem %s7, 96
    %4598 = vst.msk [vmem:[%s4597] sm:$0x3f] %vm2616, %v4591
    %4599 = vst.msk [vmem:[%s4597 + $0x8] sm:$0x3f] %vm2616, %v4592
    %4600 = vst.msk [vmem:[%s4597 + $0x10] sm:$0x3f] %vm2616, %v4593
    %4601 = vst.msk [vmem:[%s4597 + $0x18] sm:$0x3f] %vm2616, %v4594
    %4602 = vst.msk [vmem:[%s4597 + $0x20] sm:$0x3f] %vm2616, %v4595
    %4603 = vst.msk [vmem:[%s4597 + $0x28] sm:$0x3f] %vm2616, %v4596
    %v4604 = vld [vmem:[#allocation3] sm:$0x3f]
    %v4605 = vld [vmem:[#allocation3 + $0x8] sm:$0x3f]
    %v4606 = vld [vmem:[#allocation3 + $0x10] sm:$0x3f]
    %v4607 = vld [vmem:[#allocation3 + $0x18] sm:$0x3f]
    %v4608 = vld [vmem:[#allocation3 + $0x20] sm:$0x3f]
    %v4609 = vld [vmem:[#allocation3 + $0x28] sm:$0x3f]
    %v4610 = vld [vmem:[#allocation3 + $0x30] sm:$0x3f]
    %v4611 = vld [vmem:[#allocation3 + $0x38] sm:$0x3f]
    %s4612 = sld [smem:[#allocation13 + $0x3]]
    %v4613 = vstv %s4612
    %v4614 = vmul.f32 %v4613, %v4604
    %v4615 = vmul.f32 %v4613, %v4605
    %v4616 = vmul.f32 %v4613, %v4606
    %v4617 = vmul.f32 %v4613, %v4607
    %v4618 = vmul.f32 %v4613, %v4608
    %v4619 = vmul.f32 %v4613, %v4609
    %s4620 = sld [smem:[#allocation13 + $0x23]]
    %v4621 = vstv %s4620
    %v4622 = vmul.f32 %v4621, %v4605
    %v4623 = vmul.f32 %v4621, %v4606
    %v4624 = vmul.f32 %v4621, %v4607
    %v4625 = vmul.f32 %v4621, %v4608
    %v4626 = vmul.f32 %v4621, %v4609
    %v4627 = vmul.f32 %v4621, %v4610
    %v4628 = vadd.f32 %v4614, %v4622
    %v4629 = vadd.f32 %v4615, %v4623
    %v4630 = vadd.f32 %v4616, %v4624
    %v4631 = vadd.f32 %v4617, %v4625
    %v4632 = vadd.f32 %v4618, %v4626
    %v4633 = vadd.f32 %v4619, %v4627
    %s4634 = sld [smem:[#allocation13 + $0x43]]
    %v4635 = vstv %s4634
    %v4636 = vmul.f32 %v4635, %v4606
    %v4637 = vmul.f32 %v4635, %v4607
    %v4638 = vmul.f32 %v4635, %v4608
    %v4639 = vmul.f32 %v4635, %v4609
    %v4640 = vmul.f32 %v4635, %v4610
    %v4641 = vmul.f32 %v4635, %v4611
    %v4642 = vadd.f32 %v4628, %v4636
    %v4643 = vadd.f32 %v4629, %v4637
    %v4644 = vadd.f32 %v4630, %v4638
    %v4645 = vadd.f32 %v4631, %v4639
    %v4646 = vadd.f32 %v4632, %v4640
    %v4647 = vadd.f32 %v4633, %v4641
    %v4648 = vld [vmem:[%s3067] sm:$0x3f]
    %v4649 = vld [vmem:[%s3067 + $0x8] sm:$0x3f]
    %v4650 = vld [vmem:[%s3067 + $0x10] sm:$0x3f]
    %v4651 = vld [vmem:[%s3067 + $0x18] sm:$0x3f]
    %v4652 = vld [vmem:[%s3067 + $0x20] sm:$0x3f]
    %v4653 = vld [vmem:[%s3067 + $0x28] sm:$0x3f]
    %v4654 = vld [vmem:[%s3067 + $0x30] sm:$0x3f]
    %v4655 = vld [vmem:[%s3067 + $0x38] sm:$0x3f]
    %s4656 = sld [smem:[#allocation13 + $0xb]]
    %v4657 = vstv %s4656
    %v4658 = vmul.f32 %v4657, %v4648
    %v4659 = vmul.f32 %v4657, %v4649
    %v4660 = vmul.f32 %v4657, %v4650
    %v4661 = vmul.f32 %v4657, %v4651
    %v4662 = vmul.f32 %v4657, %v4652
    %v4663 = vmul.f32 %v4657, %v4653
    %v4664 = vadd.f32 %v4642, %v4658
    %v4665 = vadd.f32 %v4643, %v4659
    %v4666 = vadd.f32 %v4644, %v4660
    %v4667 = vadd.f32 %v4645, %v4661
    %v4668 = vadd.f32 %v4646, %v4662
    %v4669 = vadd.f32 %v4647, %v4663
    %s4670 = sld [smem:[#allocation13 + $0x2b]]
    %v4671 = vstv %s4670
    %v4672 = vmul.f32 %v4671, %v4649
    %v4673 = vmul.f32 %v4671, %v4650
    %v4674 = vmul.f32 %v4671, %v4651
    %v4675 = vmul.f32 %v4671, %v4652
    %v4676 = vmul.f32 %v4671, %v4653
    %v4677 = vmul.f32 %v4671, %v4654
    %v4678 = vadd.f32 %v4664, %v4672
    %v4679 = vadd.f32 %v4665, %v4673
    %v4680 = vadd.f32 %v4666, %v4674
    %v4681 = vadd.f32 %v4667, %v4675
    %v4682 = vadd.f32 %v4668, %v4676
    %v4683 = vadd.f32 %v4669, %v4677
    %s4684 = sld [smem:[#allocation13 + $0x4b]]
    %v4685 = vstv %s4684
    %v4686 = vmul.f32 %v4685, %v4650
    %v4687 = vmul.f32 %v4685, %v4651
    %v4688 = vmul.f32 %v4685, %v4652
    %v4689 = vmul.f32 %v4685, %v4653
    %v4690 = vmul.f32 %v4685, %v4654
    %v4691 = vmul.f32 %v4685, %v4655
    %v4692 = vadd.f32 %v4678, %v4686
    %v4693 = vadd.f32 %v4679, %v4687
    %v4694 = vadd.f32 %v4680, %v4688
    %v4695 = vadd.f32 %v4681, %v4689
    %v4696 = vadd.f32 %v4682, %v4690
    %v4697 = vadd.f32 %v4683, %v4691
    %v4698 = vld [vmem:[%s3518] sm:$0x3f]
    %v4699 = vld [vmem:[%s3518 + $0x8] sm:$0x3f]
    %v4700 = vld [vmem:[%s3518 + $0x10] sm:$0x3f]
    %v4701 = vld [vmem:[%s3518 + $0x18] sm:$0x3f]
    %v4702 = vld [vmem:[%s3518 + $0x20] sm:$0x3f]
    %v4703 = vld [vmem:[%s3518 + $0x28] sm:$0x3f]
    %v4704 = vld [vmem:[%s3518 + $0x30] sm:$0x3f]
    %v4705 = vld [vmem:[%s3518 + $0x38] sm:$0x3f]
    %s4706 = sld [smem:[#allocation13 + $0x13]]
    %v4707 = vstv %s4706
    %v4708 = vmul.f32 %v4707, %v4698
    %v4709 = vmul.f32 %v4707, %v4699
    %v4710 = vmul.f32 %v4707, %v4700
    %v4711 = vmul.f32 %v4707, %v4701
    %v4712 = vmul.f32 %v4707, %v4702
    %v4713 = vmul.f32 %v4707, %v4703
    %v4714 = vadd.f32 %v4692, %v4708
    %v4715 = vadd.f32 %v4693, %v4709
    %v4716 = vadd.f32 %v4694, %v4710
    %v4717 = vadd.f32 %v4695, %v4711
    %v4718 = vadd.f32 %v4696, %v4712
    %v4719 = vadd.f32 %v4697, %v4713
    %s4720 = sld [smem:[#allocation13 + $0x33]]
    %v4721 = vstv %s4720
    %v4722 = vmul.f32 %v4721, %v4699
    %v4723 = vmul.f32 %v4721, %v4700
    %v4724 = vmul.f32 %v4721, %v4701
    %v4725 = vmul.f32 %v4721, %v4702
    %v4726 = vmul.f32 %v4721, %v4703
    %v4727 = vmul.f32 %v4721, %v4704
    %v4728 = vadd.f32 %v4714, %v4722
    %v4729 = vadd.f32 %v4715, %v4723
    %v4730 = vadd.f32 %v4716, %v4724
    %v4731 = vadd.f32 %v4717, %v4725
    %v4732 = vadd.f32 %v4718, %v4726
    %v4733 = vadd.f32 %v4719, %v4727
    %s4734 = sld [smem:[#allocation13 + $0x53]]
    %v4735 = vstv %s4734
    %v4736 = vmul.f32 %v4735, %v4700
    %v4737 = vmul.f32 %v4735, %v4701
    %v4738 = vmul.f32 %v4735, %v4702
    %v4739 = vmul.f32 %v4735, %v4703
    %v4740 = vmul.f32 %v4735, %v4704
    %v4741 = vmul.f32 %v4735, %v4705
    %v4742 = vadd.f32 %v4728, %v4736
    %v4743 = vadd.f32 %v4729, %v4737
    %v4744 = vadd.f32 %v4730, %v4738
    %v4745 = vadd.f32 %v4731, %v4739
    %v4746 = vadd.f32 %v4732, %v4740
    %v4747 = vadd.f32 %v4733, %v4741
    %v4748 = vld [vmem:[%s3969] sm:$0x3f]
    %v4749 = vld [vmem:[%s3969 + $0x8] sm:$0x3f]
    %v4750 = vld [vmem:[%s3969 + $0x10] sm:$0x3f]
    %v4751 = vld [vmem:[%s3969 + $0x18] sm:$0x3f]
    %v4752 = vld [vmem:[%s3969 + $0x20] sm:$0x3f]
    %v4753 = vld [vmem:[%s3969 + $0x28] sm:$0x3f]
    %v4754 = vld [vmem:[%s3969 + $0x30] sm:$0x3f]
    %v4755 = vld [vmem:[%s3969 + $0x38] sm:$0x3f]
    %s4756 = sld [smem:[#allocation13 + $0x1b]]
    %v4757 = vstv %s4756
    %v4758 = vmul.f32 %v4757, %v4748
    %v4759 = vmul.f32 %v4757, %v4749
    %v4760 = vmul.f32 %v4757, %v4750
    %v4761 = vmul.f32 %v4757, %v4751
    %v4762 = vmul.f32 %v4757, %v4752
    %v4763 = vmul.f32 %v4757, %v4753
    %v4764 = vadd.f32 %v4742, %v4758
    %v4765 = vadd.f32 %v4743, %v4759
    %v4766 = vadd.f32 %v4744, %v4760
    %v4767 = vadd.f32 %v4745, %v4761
    %v4768 = vadd.f32 %v4746, %v4762
    %v4769 = vadd.f32 %v4747, %v4763
    %s4770 = sld [smem:[#allocation13 + $0x3b]]
    %v4771 = vstv %s4770
    %v4772 = vmul.f32 %v4771, %v4749
    %v4773 = vmul.f32 %v4771, %v4750
    %v4774 = vmul.f32 %v4771, %v4751
    %v4775 = vmul.f32 %v4771, %v4752
    %v4776 = vmul.f32 %v4771, %v4753
    %v4777 = vmul.f32 %v4771, %v4754
    %v4778 = vadd.f32 %v4764, %v4772
    %v4779 = vadd.f32 %v4765, %v4773
    %v4780 = vadd.f32 %v4766, %v4774
    %v4781 = vadd.f32 %v4767, %v4775
    %v4782 = vadd.f32 %v4768, %v4776
    %v4783 = vadd.f32 %v4769, %v4777
    %s4784 = sld [smem:[#allocation13 + $0x5b]]
    %v4785 = vstv %s4784
    %v4786 = vmul.f32 %v4785, %v4750
    %v4787 = vmul.f32 %v4785, %v4751
    %v4788 = vmul.f32 %v4785, %v4752
    %v4789 = vmul.f32 %v4785, %v4753
    %v4790 = vmul.f32 %v4785, %v4754
    %v4791 = vmul.f32 %v4785, %v4755
    %v4792 = vadd.f32 %v4778, %v4786
    %v4793 = vadd.f32 %v4779, %v4787
    %v4794 = vadd.f32 %v4780, %v4788
    %v4795 = vadd.f32 %v4781, %v4789
    %v4796 = vadd.f32 %v4782, %v4790
    %v4797 = vadd.f32 %v4783, %v4791
    %s4798 = sld [smem:[#allocation14 + $0x3]]
    %v4799 = vstv %s4798
    %v4800 = vadd.f32 %v4792, %v4799
    %v4801 = vadd.f32 %v4793, %v4799
    %v4802 = vadd.f32 %v4794, %v4799
    %v4803 = vadd.f32 %v4795, %v4799
    %v4804 = vadd.f32 %v4796, %v4799
    %v4805 = vadd.f32 %v4797, %v4799
    %s4806 = scalar_lea.vmem %s7, 144
    %4807 = vst.msk [vmem:[%s4806] sm:$0x3f] %vm2616, %v4800
    %4808 = vst.msk [vmem:[%s4806 + $0x8] sm:$0x3f] %vm2616, %v4801
    %4809 = vst.msk [vmem:[%s4806 + $0x10] sm:$0x3f] %vm2616, %v4802
    %4810 = vst.msk [vmem:[%s4806 + $0x18] sm:$0x3f] %vm2616, %v4803
    %4811 = vst.msk [vmem:[%s4806 + $0x20] sm:$0x3f] %vm2616, %v4804
    %4812 = vst.msk [vmem:[%s4806 + $0x28] sm:$0x3f] %vm2616, %v4805
    %v4813 = vld [vmem:[#allocation3] sm:$0x3f]
    %v4814 = vld [vmem:[#allocation3 + $0x8] sm:$0x3f]
    %v4815 = vld [vmem:[#allocation3 + $0x10] sm:$0x3f]
    %v4816 = vld [vmem:[#allocation3 + $0x18] sm:$0x3f]
    %v4817 = vld [vmem:[#allocation3 + $0x20] sm:$0x3f]
    %v4818 = vld [vmem:[#allocation3 + $0x28] sm:$0x3f]
    %v4819 = vld [vmem:[#allocation3 + $0x30] sm:$0x3f]
    %v4820 = vld [vmem:[#allocation3 + $0x38] sm:$0x3f]
    %s4821 = sld [smem:[#allocation13 + $0x4]]
    %v4822 = vstv %s4821
    %v4823 = vmul.f32 %v4822, %v4813
    %v4824 = vmul.f32 %v4822, %v4814
    %v4825 = vmul.f32 %v4822, %v4815
    %v4826 = vmul.f32 %v4822, %v4816
    %v4827 = vmul.f32 %v4822, %v4817
    %v4828 = vmul.f32 %v4822, %v4818
    %s4829 = sld [smem:[#allocation13 + $0x24]]
    %v4830 = vstv %s4829
    %v4831 = vmul.f32 %v4830, %v4814
    %v4832 = vmul.f32 %v4830, %v4815
    %v4833 = vmul.f32 %v4830, %v4816
    %v4834 = vmul.f32 %v4830, %v4817
    %v4835 = vmul.f32 %v4830, %v4818
    %v4836 = vmul.f32 %v4830, %v4819
    %v4837 = vadd.f32 %v4823, %v4831
    %v4838 = vadd.f32 %v4824, %v4832
    %v4839 = vadd.f32 %v4825, %v4833
    %v4840 = vadd.f32 %v4826, %v4834
    %v4841 = vadd.f32 %v4827, %v4835
    %v4842 = vadd.f32 %v4828, %v4836
    %s4843 = sld [smem:[#allocation13 + $0x44]]
    %v4844 = vstv %s4843
    %v4845 = vmul.f32 %v4844, %v4815
    %v4846 = vmul.f32 %v4844, %v4816
    %v4847 = vmul.f32 %v4844, %v4817
    %v4848 = vmul.f32 %v4844, %v4818
    %v4849 = vmul.f32 %v4844, %v4819
    %v4850 = vmul.f32 %v4844, %v4820
    %v4851 = vadd.f32 %v4837, %v4845
    %v4852 = vadd.f32 %v4838, %v4846
    %v4853 = vadd.f32 %v4839, %v4847
    %v4854 = vadd.f32 %v4840, %v4848
    %v4855 = vadd.f32 %v4841, %v4849
    %v4856 = vadd.f32 %v4842, %v4850
    %v4857 = vld [vmem:[%s3067] sm:$0x3f]
    %v4858 = vld [vmem:[%s3067 + $0x8] sm:$0x3f]
    %v4859 = vld [vmem:[%s3067 + $0x10] sm:$0x3f]
    %v4860 = vld [vmem:[%s3067 + $0x18] sm:$0x3f]
    %v4861 = vld [vmem:[%s3067 + $0x20] sm:$0x3f]
    %v4862 = vld [vmem:[%s3067 + $0x28] sm:$0x3f]
    %v4863 = vld [vmem:[%s3067 + $0x30] sm:$0x3f]
    %v4864 = vld [vmem:[%s3067 + $0x38] sm:$0x3f]
    %s4865 = sld [smem:[#allocation13 + $0xc]]
    %v4866 = vstv %s4865
    %v4867 = vmul.f32 %v4866, %v4857
    %v4868 = vmul.f32 %v4866, %v4858
    %v4869 = vmul.f32 %v4866, %v4859
    %v4870 = vmul.f32 %v4866, %v4860
    %v4871 = vmul.f32 %v4866, %v4861
    %v4872 = vmul.f32 %v4866, %v4862
    %v4873 = vadd.f32 %v4851, %v4867
    %v4874 = vadd.f32 %v4852, %v4868
    %v4875 = vadd.f32 %v4853, %v4869
    %v4876 = vadd.f32 %v4854, %v4870
    %v4877 = vadd.f32 %v4855, %v4871
    %v4878 = vadd.f32 %v4856, %v4872
    %s4879 = sld [smem:[#allocation13 + $0x2c]]
    %v4880 = vstv %s4879
    %v4881 = vmul.f32 %v4880, %v4858
    %v4882 = vmul.f32 %v4880, %v4859
    %v4883 = vmul.f32 %v4880, %v4860
    %v4884 = vmul.f32 %v4880, %v4861
    %v4885 = vmul.f32 %v4880, %v4862
    %v4886 = vmul.f32 %v4880, %v4863
    %v4887 = vadd.f32 %v4873, %v4881
    %v4888 = vadd.f32 %v4874, %v4882
    %v4889 = vadd.f32 %v4875, %v4883
    %v4890 = vadd.f32 %v4876, %v4884
    %v4891 = vadd.f32 %v4877, %v4885
    %v4892 = vadd.f32 %v4878, %v4886
    %s4893 = sld [smem:[#allocation13 + $0x4c]]
    %v4894 = vstv %s4893
    %v4895 = vmul.f32 %v4894, %v4859
    %v4896 = vmul.f32 %v4894, %v4860
    %v4897 = vmul.f32 %v4894, %v4861
    %v4898 = vmul.f32 %v4894, %v4862
    %v4899 = vmul.f32 %v4894, %v4863
    %v4900 = vmul.f32 %v4894, %v4864
    %v4901 = vadd.f32 %v4887, %v4895
    %v4902 = vadd.f32 %v4888, %v4896
    %v4903 = vadd.f32 %v4889, %v4897
    %v4904 = vadd.f32 %v4890, %v4898
    %v4905 = vadd.f32 %v4891, %v4899
    %v4906 = vadd.f32 %v4892, %v4900
    %v4907 = vld [vmem:[%s3518] sm:$0x3f]
    %v4908 = vld [vmem:[%s3518 + $0x8] sm:$0x3f]
    %v4909 = vld [vmem:[%s3518 + $0x10] sm:$0x3f]
    %v4910 = vld [vmem:[%s3518 + $0x18] sm:$0x3f]
    %v4911 = vld [vmem:[%s3518 + $0x20] sm:$0x3f]
    %v4912 = vld [vmem:[%s3518 + $0x28] sm:$0x3f]
    %v4913 = vld [vmem:[%s3518 + $0x30] sm:$0x3f]
    %v4914 = vld [vmem:[%s3518 + $0x38] sm:$0x3f]
    %s4915 = sld [smem:[#allocation13 + $0x14]]
    %v4916 = vstv %s4915
    %v4917 = vmul.f32 %v4916, %v4907
    %v4918 = vmul.f32 %v4916, %v4908
    %v4919 = vmul.f32 %v4916, %v4909
    %v4920 = vmul.f32 %v4916, %v4910
    %v4921 = vmul.f32 %v4916, %v4911
    %v4922 = vmul.f32 %v4916, %v4912
    %v4923 = vadd.f32 %v4901, %v4917
    %v4924 = vadd.f32 %v4902, %v4918
    %v4925 = vadd.f32 %v4903, %v4919
    %v4926 = vadd.f32 %v4904, %v4920
    %v4927 = vadd.f32 %v4905, %v4921
    %v4928 = vadd.f32 %v4906, %v4922
    %s4929 = sld [smem:[#allocation13 + $0x34]]
    %v4930 = vstv %s4929
    %v4931 = vmul.f32 %v4930, %v4908
    %v4932 = vmul.f32 %v4930, %v4909
    %v4933 = vmul.f32 %v4930, %v4910
    %v4934 = vmul.f32 %v4930, %v4911
    %v4935 = vmul.f32 %v4930, %v4912
    %v4936 = vmul.f32 %v4930, %v4913
    %v4937 = vadd.f32 %v4923, %v4931
    %v4938 = vadd.f32 %v4924, %v4932
    %v4939 = vadd.f32 %v4925, %v4933
    %v4940 = vadd.f32 %v4926, %v4934
    %v4941 = vadd.f32 %v4927, %v4935
    %v4942 = vadd.f32 %v4928, %v4936
    %s4943 = sld [smem:[#allocation13 + $0x54]]
    %v4944 = vstv %s4943
    %v4945 = vmul.f32 %v4944, %v4909
    %v4946 = vmul.f32 %v4944, %v4910
    %v4947 = vmul.f32 %v4944, %v4911
    %v4948 = vmul.f32 %v4944, %v4912
    %v4949 = vmul.f32 %v4944, %v4913
    %v4950 = vmul.f32 %v4944, %v4914
    %v4951 = vadd.f32 %v4937, %v4945
    %v4952 = vadd.f32 %v4938, %v4946
    %v4953 = vadd.f32 %v4939, %v4947
    %v4954 = vadd.f32 %v4940, %v4948
    %v4955 = vadd.f32 %v4941, %v4949
    %v4956 = vadd.f32 %v4942, %v4950
    %v4957 = vld [vmem:[%s3969] sm:$0x3f]
    %v4958 = vld [vmem:[%s3969 + $0x8] sm:$0x3f]
    %v4959 = vld [vmem:[%s3969 + $0x10] sm:$0x3f]
    %v4960 = vld [vmem:[%s3969 + $0x18] sm:$0x3f]
    %v4961 = vld [vmem:[%s3969 + $0x20] sm:$0x3f]
    %v4962 = vld [vmem:[%s3969 + $0x28] sm:$0x3f]
    %v4963 = vld [vmem:[%s3969 + $0x30] sm:$0x3f]
    %v4964 = vld [vmem:[%s3969 + $0x38] sm:$0x3f]
    %s4965 = sld [smem:[#allocation13 + $0x1c]]
    %v4966 = vstv %s4965
    %v4967 = vmul.f32 %v4966, %v4957
    %v4968 = vmul.f32 %v4966, %v4958
    %v4969 = vmul.f32 %v4966, %v4959
    %v4970 = vmul.f32 %v4966, %v4960
    %v4971 = vmul.f32 %v4966, %v4961
    %v4972 = vmul.f32 %v4966, %v4962
    %v4973 = vadd.f32 %v4951, %v4967
    %v4974 = vadd.f32 %v4952, %v4968
    %v4975 = vadd.f32 %v4953, %v4969
    %v4976 = vadd.f32 %v4954, %v4970
    %v4977 = vadd.f32 %v4955, %v4971
    %v4978 = vadd.f32 %v4956, %v4972
    %s4979 = sld [smem:[#allocation13 + $0x3c]]
    %v4980 = vstv %s4979
    %v4981 = vmul.f32 %v4980, %v4958
    %v4982 = vmul.f32 %v4980, %v4959
    %v4983 = vmul.f32 %v4980, %v4960
    %v4984 = vmul.f32 %v4980, %v4961
    %v4985 = vmul.f32 %v4980, %v4962
    %v4986 = vmul.f32 %v4980, %v4963
    %v4987 = vadd.f32 %v4973, %v4981
    %v4988 = vadd.f32 %v4974, %v4982
    %v4989 = vadd.f32 %v4975, %v4983
    %v4990 = vadd.f32 %v4976, %v4984
    %v4991 = vadd.f32 %v4977, %v4985
    %v4992 = vadd.f32 %v4978, %v4986
    %s4993 = sld [smem:[#allocation13 + $0x5c]]
    %v4994 = vstv %s4993
    %v4995 = vmul.f32 %v4994, %v4959
    %v4996 = vmul.f32 %v4994, %v4960
    %v4997 = vmul.f32 %v4994, %v4961
    %v4998 = vmul.f32 %v4994, %v4962
    %v4999 = vmul.f32 %v4994, %v4963
    %v5000 = vmul.f32 %v4994, %v4964
    %v5001 = vadd.f32 %v4987, %v4995
    %v5002 = vadd.f32 %v4988, %v4996
    %v5003 = vadd.f32 %v4989, %v4997
    %v5004 = vadd.f32 %v4990, %v4998
    %v5005 = vadd.f32 %v4991, %v4999
    %v5006 = vadd.f32 %v4992, %v5000
    %s5007 = sld [smem:[#allocation14 + $0x4]]
    %v5008 = vstv %s5007
    %v5009 = vadd.f32 %v5001, %v5008
    %v5010 = vadd.f32 %v5002, %v5008
    %v5011 = vadd.f32 %v5003, %v5008
    %v5012 = vadd.f32 %v5004, %v5008
    %v5013 = vadd.f32 %v5005, %v5008
    %v5014 = vadd.f32 %v5006, %v5008
    %s5015 = scalar_lea.vmem %s7, 192
    %5016 = vst.msk [vmem:[%s5015] sm:$0x3f] %vm2616, %v5009
    %5017 = vst.msk [vmem:[%s5015 + $0x8] sm:$0x3f] %vm2616, %v5010
    %5018 = vst.msk [vmem:[%s5015 + $0x10] sm:$0x3f] %vm2616, %v5011
    %5019 = vst.msk [vmem:[%s5015 + $0x18] sm:$0x3f] %vm2616, %v5012
    %5020 = vst.msk [vmem:[%s5015 + $0x20] sm:$0x3f] %vm2616, %v5013
    %5021 = vst.msk [vmem:[%s5015 + $0x28] sm:$0x3f] %vm2616, %v5014
    %v5022 = vld [vmem:[#allocation3] sm:$0x3f]
    %v5023 = vld [vmem:[#allocation3 + $0x8] sm:$0x3f]
    %v5024 = vld [vmem:[#allocation3 + $0x10] sm:$0x3f]
    %v5025 = vld [vmem:[#allocation3 + $0x18] sm:$0x3f]
    %v5026 = vld [vmem:[#allocation3 + $0x20] sm:$0x3f]
    %v5027 = vld [vmem:[#allocation3 + $0x28] sm:$0x3f]
    %v5028 = vld [vmem:[#allocation3 + $0x30] sm:$0x3f]
    %v5029 = vld [vmem:[#allocation3 + $0x38] sm:$0x3f]
    %s5030 = sld [smem:[#allocation13 + $0x5]]
    %v5031 = vstv %s5030
    %v5032 = vmul.f32 %v5031, %v5022
    %v5033 = vmul.f32 %v5031, %v5023
    %v5034 = vmul.f32 %v5031, %v5024
    %v5035 = vmul.f32 %v5031, %v5025
    %v5036 = vmul.f32 %v5031, %v5026
    %v5037 = vmul.f32 %v5031, %v5027
    %s5038 = sld [smem:[#allocation13 + $0x25]]
    %v5039 = vstv %s5038
    %v5040 = vmul.f32 %v5039, %v5023
    %v5041 = vmul.f32 %v5039, %v5024
    %v5042 = vmul.f32 %v5039, %v5025
    %v5043 = vmul.f32 %v5039, %v5026
    %v5044 = vmul.f32 %v5039, %v5027
    %v5045 = vmul.f32 %v5039, %v5028
    %v5046 = vadd.f32 %v5032, %v5040
    %v5047 = vadd.f32 %v5033, %v5041
    %v5048 = vadd.f32 %v5034, %v5042
    %v5049 = vadd.f32 %v5035, %v5043
    %v5050 = vadd.f32 %v5036, %v5044
    %v5051 = vadd.f32 %v5037, %v5045
    %s5052 = sld [smem:[#allocation13 + $0x45]]
    %v5053 = vstv %s5052
    %v5054 = vmul.f32 %v5053, %v5024
    %v5055 = vmul.f32 %v5053, %v5025
    %v5056 = vmul.f32 %v5053, %v5026
    %v5057 = vmul.f32 %v5053, %v5027
    %v5058 = vmul.f32 %v5053, %v5028
    %v5059 = vmul.f32 %v5053, %v5029
    %v5060 = vadd.f32 %v5046, %v5054
    %v5061 = vadd.f32 %v5047, %v5055
    %v5062 = vadd.f32 %v5048, %v5056
    %v5063 = vadd.f32 %v5049, %v5057
    %v5064 = vadd.f32 %v5050, %v5058
    %v5065 = vadd.f32 %v5051, %v5059
    %v5066 = vld [vmem:[%s3067] sm:$0x3f]
    %v5067 = vld [vmem:[%s3067 + $0x8] sm:$0x3f]
    %v5068 = vld [vmem:[%s3067 + $0x10] sm:$0x3f]
    %v5069 = vld [vmem:[%s3067 + $0x18] sm:$0x3f]
    %v5070 = vld [vmem:[%s3067 + $0x20] sm:$0x3f]
    %v5071 = vld [vmem:[%s3067 + $0x28] sm:$0x3f]
    %v5072 = vld [vmem:[%s3067 + $0x30] sm:$0x3f]
    %v5073 = vld [vmem:[%s3067 + $0x38] sm:$0x3f]
    %s5074 = sld [smem:[#allocation13 + $0xd]]
    %v5075 = vstv %s5074
    %v5076 = vmul.f32 %v5075, %v5066
    %v5077 = vmul.f32 %v5075, %v5067
    %v5078 = vmul.f32 %v5075, %v5068
    %v5079 = vmul.f32 %v5075, %v5069
    %v5080 = vmul.f32 %v5075, %v5070
    %v5081 = vmul.f32 %v5075, %v5071
    %v5082 = vadd.f32 %v5060, %v5076
    %v5083 = vadd.f32 %v5061, %v5077
    %v5084 = vadd.f32 %v5062, %v5078
    %v5085 = vadd.f32 %v5063, %v5079
    %v5086 = vadd.f32 %v5064, %v5080
    %v5087 = vadd.f32 %v5065, %v5081
    %s5088 = sld [smem:[#allocation13 + $0x2d]]
    %v5089 = vstv %s5088
    %v5090 = vmul.f32 %v5089, %v5067
    %v5091 = vmul.f32 %v5089, %v5068
    %v5092 = vmul.f32 %v5089, %v5069
    %v5093 = vmul.f32 %v5089, %v5070
    %v5094 = vmul.f32 %v5089, %v5071
    %v5095 = vmul.f32 %v5089, %v5072
    %v5096 = vadd.f32 %v5082, %v5090
    %v5097 = vadd.f32 %v5083, %v5091
    %v5098 = vadd.f32 %v5084, %v5092
    %v5099 = vadd.f32 %v5085, %v5093
    %v5100 = vadd.f32 %v5086, %v5094
    %v5101 = vadd.f32 %v5087, %v5095
    %s5102 = sld [smem:[#allocation13 + $0x4d]]
    %v5103 = vstv %s5102
    %v5104 = vmul.f32 %v5103, %v5068
    %v5105 = vmul.f32 %v5103, %v5069
    %v5106 = vmul.f32 %v5103, %v5070
    %v5107 = vmul.f32 %v5103, %v5071
    %v5108 = vmul.f32 %v5103, %v5072
    %v5109 = vmul.f32 %v5103, %v5073
    %v5110 = vadd.f32 %v5096, %v5104
    %v5111 = vadd.f32 %v5097, %v5105
    %v5112 = vadd.f32 %v5098, %v5106
    %v5113 = vadd.f32 %v5099, %v5107
    %v5114 = vadd.f32 %v5100, %v5108
    %v5115 = vadd.f32 %v5101, %v5109
    %v5116 = vld [vmem:[%s3518] sm:$0x3f]
    %v5117 = vld [vmem:[%s3518 + $0x8] sm:$0x3f]
    %v5118 = vld [vmem:[%s3518 + $0x10] sm:$0x3f]
    %v5119 = vld [vmem:[%s3518 + $0x18] sm:$0x3f]
    %v5120 = vld [vmem:[%s3518 + $0x20] sm:$0x3f]
    %v5121 = vld [vmem:[%s3518 + $0x28] sm:$0x3f]
    %v5122 = vld [vmem:[%s3518 + $0x30] sm:$0x3f]
    %v5123 = vld [vmem:[%s3518 + $0x38] sm:$0x3f]
    %s5124 = sld [smem:[#allocation13 + $0x15]]
    %v5125 = vstv %s5124
    %v5126 = vmul.f32 %v5125, %v5116
    %v5127 = vmul.f32 %v5125, %v5117
    %v5128 = vmul.f32 %v5125, %v5118
    %v5129 = vmul.f32 %v5125, %v5119
    %v5130 = vmul.f32 %v5125, %v5120
    %v5131 = vmul.f32 %v5125, %v5121
    %v5132 = vadd.f32 %v5110, %v5126
    %v5133 = vadd.f32 %v5111, %v5127
    %v5134 = vadd.f32 %v5112, %v5128
    %v5135 = vadd.f32 %v5113, %v5129
    %v5136 = vadd.f32 %v5114, %v5130
    %v5137 = vadd.f32 %v5115, %v5131
    %s5138 = sld [smem:[#allocation13 + $0x35]]
    %v5139 = vstv %s5138
    %v5140 = vmul.f32 %v5139, %v5117
    %v5141 = vmul.f32 %v5139, %v5118
    %v5142 = vmul.f32 %v5139, %v5119
    %v5143 = vmul.f32 %v5139, %v5120
    %v5144 = vmul.f32 %v5139, %v5121
    %v5145 = vmul.f32 %v5139, %v5122
    %v5146 = vadd.f32 %v5132, %v5140
    %v5147 = vadd.f32 %v5133, %v5141
    %v5148 = vadd.f32 %v5134, %v5142
    %v5149 = vadd.f32 %v5135, %v5143
    %v5150 = vadd.f32 %v5136, %v5144
    %v5151 = vadd.f32 %v5137, %v5145
    %s5152 = sld [smem:[#allocation13 + $0x55]]
    %v5153 = vstv %s5152
    %v5154 = vmul.f32 %v5153, %v5118
    %v5155 = vmul.f32 %v5153, %v5119
    %v5156 = vmul.f32 %v5153, %v5120
    %v5157 = vmul.f32 %v5153, %v5121
    %v5158 = vmul.f32 %v5153, %v5122
    %v5159 = vmul.f32 %v5153, %v5123
    %v5160 = vadd.f32 %v5146, %v5154
    %v5161 = vadd.f32 %v5147, %v5155
    %v5162 = vadd.f32 %v5148, %v5156
    %v5163 = vadd.f32 %v5149, %v5157
    %v5164 = vadd.f32 %v5150, %v5158
    %v5165 = vadd.f32 %v5151, %v5159
    %v5166 = vld [vmem:[%s3969] sm:$0x3f]
    %v5167 = vld [vmem:[%s3969 + $0x8] sm:$0x3f]
    %v5168 = vld [vmem:[%s3969 + $0x10] sm:$0x3f]
    %v5169 = vld [vmem:[%s3969 + $0x18] sm:$0x3f]
    %v5170 = vld [vmem:[%s3969 + $0x20] sm:$0x3f]
    %v5171 = vld [vmem:[%s3969 + $0x28] sm:$0x3f]
    %v5172 = vld [vmem:[%s3969 + $0x30] sm:$0x3f]
    %v5173 = vld [vmem:[%s3969 + $0x38] sm:$0x3f]
    %s5174 = sld [smem:[#allocation13 + $0x1d]]
    %v5175 = vstv %s5174
    %v5176 = vmul.f32 %v5175, %v5166
    %v5177 = vmul.f32 %v5175, %v5167
    %v5178 = vmul.f32 %v5175, %v5168
    %v5179 = vmul.f32 %v5175, %v5169
    %v5180 = vmul.f32 %v5175, %v5170
    %v5181 = vmul.f32 %v5175, %v5171
    %v5182 = vadd.f32 %v5160, %v5176
    %v5183 = vadd.f32 %v5161, %v5177
    %v5184 = vadd.f32 %v5162, %v5178
    %v5185 = vadd.f32 %v5163, %v5179
    %v5186 = vadd.f32 %v5164, %v5180
    %v5187 = vadd.f32 %v5165, %v5181
    %s5188 = sld [smem:[#allocation13 + $0x3d]]
    %v5189 = vstv %s5188
    %v5190 = vmul.f32 %v5189, %v5167
    %v5191 = vmul.f32 %v5189, %v5168
    %v5192 = vmul.f32 %v5189, %v5169
    %v5193 = vmul.f32 %v5189, %v5170
    %v5194 = vmul.f32 %v5189, %v5171
    %v5195 = vmul.f32 %v5189, %v5172
    %v5196 = vadd.f32 %v5182, %v5190
    %v5197 = vadd.f32 %v5183, %v5191
    %v5198 = vadd.f32 %v5184, %v5192
    %v5199 = vadd.f32 %v5185, %v5193
    %v5200 = vadd.f32 %v5186, %v5194
    %v5201 = vadd.f32 %v5187, %v5195
    %s5202 = sld [smem:[#allocation13 + $0x5d]]
    %v5203 = vstv %s5202
    %v5204 = vmul.f32 %v5203, %v5168
    %v5205 = vmul.f32 %v5203, %v5169
    %v5206 = vmul.f32 %v5203, %v5170
    %v5207 = vmul.f32 %v5203, %v5171
    %v5208 = vmul.f32 %v5203, %v5172
    %v5209 = vmul.f32 %v5203, %v5173
    %v5210 = vadd.f32 %v5196, %v5204
    %v5211 = vadd.f32 %v5197, %v5205
    %v5212 = vadd.f32 %v5198, %v5206
    %v5213 = vadd.f32 %v5199, %v5207
    %v5214 = vadd.f32 %v5200, %v5208
    %v5215 = vadd.f32 %v5201, %v5209
    %s5216 = sld [smem:[#allocation14 + $0x5]]
    %v5217 = vstv %s5216
    %v5218 = vadd.f32 %v5210, %v5217
    %v5219 = vadd.f32 %v5211, %v5217
    %v5220 = vadd.f32 %v5212, %v5217
    %v5221 = vadd.f32 %v5213, %v5217
    %v5222 = vadd.f32 %v5214, %v5217
    %v5223 = vadd.f32 %v5215, %v5217
    %s5224 = scalar_lea.vmem %s7, 240
    %5225 = vst.msk [vmem:[%s5224] sm:$0x3f] %vm2616, %v5218
    %5226 = vst.msk [vmem:[%s5224 + $0x8] sm:$0x3f] %vm2616, %v5219
    %5227 = vst.msk [vmem:[%s5224 + $0x10] sm:$0x3f] %vm2616, %v5220
    %5228 = vst.msk [vmem:[%s5224 + $0x18] sm:$0x3f] %vm2616, %v5221
    %5229 = vst.msk [vmem:[%s5224 + $0x20] sm:$0x3f] %vm2616, %v5222
    %5230 = vst.msk [vmem:[%s5224 + $0x28] sm:$0x3f] %vm2616, %v5223
    %v5231 = vld [vmem:[#allocation3] sm:$0x3f]
    %v5232 = vld [vmem:[#allocation3 + $0x8] sm:$0x3f]
    %v5233 = vld [vmem:[#allocation3 + $0x10] sm:$0x3f]
    %v5234 = vld [vmem:[#allocation3 + $0x18] sm:$0x3f]
    %v5235 = vld [vmem:[#allocation3 + $0x20] sm:$0x3f]
    %v5236 = vld [vmem:[#allocation3 + $0x28] sm:$0x3f]
    %v5237 = vld [vmem:[#allocation3 + $0x30] sm:$0x3f]
    %v5238 = vld [vmem:[#allocation3 + $0x38] sm:$0x3f]
    %s5239 = sld [smem:[#allocation13 + $0x6]]
    %v5240 = vstv %s5239
    %v5241 = vmul.f32 %v5240, %v5231
    %v5242 = vmul.f32 %v5240, %v5232
    %v5243 = vmul.f32 %v5240, %v5233
    %v5244 = vmul.f32 %v5240, %v5234
    %v5245 = vmul.f32 %v5240, %v5235
    %v5246 = vmul.f32 %v5240, %v5236
    %s5247 = sld [smem:[#allocation13 + $0x26]]
    %v5248 = vstv %s5247
    %v5249 = vmul.f32 %v5248, %v5232
    %v5250 = vmul.f32 %v5248, %v5233
    %v5251 = vmul.f32 %v5248, %v5234
    %v5252 = vmul.f32 %v5248, %v5235
    %v5253 = vmul.f32 %v5248, %v5236
    %v5254 = vmul.f32 %v5248, %v5237
    %v5255 = vadd.f32 %v5241, %v5249
    %v5256 = vadd.f32 %v5242, %v5250
    %v5257 = vadd.f32 %v5243, %v5251
    %v5258 = vadd.f32 %v5244, %v5252
    %v5259 = vadd.f32 %v5245, %v5253
    %v5260 = vadd.f32 %v5246, %v5254
    %s5261 = sld [smem:[#allocation13 + $0x46]]
    %v5262 = vstv %s5261
    %v5263 = vmul.f32 %v5262, %v5233
    %v5264 = vmul.f32 %v5262, %v5234
    %v5265 = vmul.f32 %v5262, %v5235
    %v5266 = vmul.f32 %v5262, %v5236
    %v5267 = vmul.f32 %v5262, %v5237
    %v5268 = vmul.f32 %v5262, %v5238
    %v5269 = vadd.f32 %v5255, %v5263
    %v5270 = vadd.f32 %v5256, %v5264
    %v5271 = vadd.f32 %v5257, %v5265
    %v5272 = vadd.f32 %v5258, %v5266
    %v5273 = vadd.f32 %v5259, %v5267
    %v5274 = vadd.f32 %v5260, %v5268
    %v5275 = vld [vmem:[%s3067] sm:$0x3f]
    %v5276 = vld [vmem:[%s3067 + $0x8] sm:$0x3f]
    %v5277 = vld [vmem:[%s3067 + $0x10] sm:$0x3f]
    %v5278 = vld [vmem:[%s3067 + $0x18] sm:$0x3f]
    %v5279 = vld [vmem:[%s3067 + $0x20] sm:$0x3f]
    %v5280 = vld [vmem:[%s3067 + $0x28] sm:$0x3f]
    %v5281 = vld [vmem:[%s3067 + $0x30] sm:$0x3f]
    %v5282 = vld [vmem:[%s3067 + $0x38] sm:$0x3f]
    %s5283 = sld [smem:[#allocation13 + $0xe]]
    %v5284 = vstv %s5283
    %v5285 = vmul.f32 %v5284, %v5275
    %v5286 = vmul.f32 %v5284, %v5276
    %v5287 = vmul.f32 %v5284, %v5277
    %v5288 = vmul.f32 %v5284, %v5278
    %v5289 = vmul.f32 %v5284, %v5279
    %v5290 = vmul.f32 %v5284, %v5280
    %v5291 = vadd.f32 %v5269, %v5285
    %v5292 = vadd.f32 %v5270, %v5286
    %v5293 = vadd.f32 %v5271, %v5287
    %v5294 = vadd.f32 %v5272, %v5288
    %v5295 = vadd.f32 %v5273, %v5289
    %v5296 = vadd.f32 %v5274, %v5290
    %s5297 = sld [smem:[#allocation13 + $0x2e]]
    %v5298 = vstv %s5297
    %v5299 = vmul.f32 %v5298, %v5276
    %v5300 = vmul.f32 %v5298, %v5277
    %v5301 = vmul.f32 %v5298, %v5278
    %v5302 = vmul.f32 %v5298, %v5279
    %v5303 = vmul.f32 %v5298, %v5280
    %v5304 = vmul.f32 %v5298, %v5281
    %v5305 = vadd.f32 %v5291, %v5299
    %v5306 = vadd.f32 %v5292, %v5300
    %v5307 = vadd.f32 %v5293, %v5301
    %v5308 = vadd.f32 %v5294, %v5302
    %v5309 = vadd.f32 %v5295, %v5303
    %v5310 = vadd.f32 %v5296, %v5304
    %s5311 = sld [smem:[#allocation13 + $0x4e]]
    %v5312 = vstv %s5311
    %v5313 = vmul.f32 %v5312, %v5277
    %v5314 = vmul.f32 %v5312, %v5278
    %v5315 = vmul.f32 %v5312, %v5279
    %v5316 = vmul.f32 %v5312, %v5280
    %v5317 = vmul.f32 %v5312, %v5281
    %v5318 = vmul.f32 %v5312, %v5282
    %v5319 = vadd.f32 %v5305, %v5313
    %v5320 = vadd.f32 %v5306, %v5314
    %v5321 = vadd.f32 %v5307, %v5315
    %v5322 = vadd.f32 %v5308, %v5316
    %v5323 = vadd.f32 %v5309, %v5317
    %v5324 = vadd.f32 %v5310, %v5318
    %v5325 = vld [vmem:[%s3518] sm:$0x3f]
    %v5326 = vld [vmem:[%s3518 + $0x8] sm:$0x3f]
    %v5327 = vld [vmem:[%s3518 + $0x10] sm:$0x3f]
    %v5328 = vld [vmem:[%s3518 + $0x18] sm:$0x3f]
    %v5329 = vld [vmem:[%s3518 + $0x20] sm:$0x3f]
    %v5330 = vld [vmem:[%s3518 + $0x28] sm:$0x3f]
    %v5331 = vld [vmem:[%s3518 + $0x30] sm:$0x3f]
    %v5332 = vld [vmem:[%s3518 + $0x38] sm:$0x3f]
    %s5333 = sld [smem:[#allocation13 + $0x16]]
    %v5334 = vstv %s5333
    %v5335 = vmul.f32 %v5334, %v5325
    %v5336 = vmul.f32 %v5334, %v5326
    %v5337 = vmul.f32 %v5334, %v5327
    %v5338 = vmul.f32 %v5334, %v5328
    %v5339 = vmul.f32 %v5334, %v5329
    %v5340 = vmul.f32 %v5334, %v5330
    %v5341 = vadd.f32 %v5319, %v5335
    %v5342 = vadd.f32 %v5320, %v5336
    %v5343 = vadd.f32 %v5321, %v5337
    %v5344 = vadd.f32 %v5322, %v5338
    %v5345 = vadd.f32 %v5323, %v5339
    %v5346 = vadd.f32 %v5324, %v5340
    %s5347 = sld [smem:[#allocation13 + $0x36]]
    %v5348 = vstv %s5347
    %v5349 = vmul.f32 %v5348, %v5326
    %v5350 = vmul.f32 %v5348, %v5327
    %v5351 = vmul.f32 %v5348, %v5328
    %v5352 = vmul.f32 %v5348, %v5329
    %v5353 = vmul.f32 %v5348, %v5330
    %v5354 = vmul.f32 %v5348, %v5331
    %v5355 = vadd.f32 %v5341, %v5349
    %v5356 = vadd.f32 %v5342, %v5350
    %v5357 = vadd.f32 %v5343, %v5351
    %v5358 = vadd.f32 %v5344, %v5352
    %v5359 = vadd.f32 %v5345, %v5353
    %v5360 = vadd.f32 %v5346, %v5354
    %s5361 = sld [smem:[#allocation13 + $0x56]]
    %v5362 = vstv %s5361
    %v5363 = vmul.f32 %v5362, %v5327
    %v5364 = vmul.f32 %v5362, %v5328
    %v5365 = vmul.f32 %v5362, %v5329
    %v5366 = vmul.f32 %v5362, %v5330
    %v5367 = vmul.f32 %v5362, %v5331
    %v5368 = vmul.f32 %v5362, %v5332
    %v5369 = vadd.f32 %v5355, %v5363
    %v5370 = vadd.f32 %v5356, %v5364
    %v5371 = vadd.f32 %v5357, %v5365
    %v5372 = vadd.f32 %v5358, %v5366
    %v5373 = vadd.f32 %v5359, %v5367
    %v5374 = vadd.f32 %v5360, %v5368
    %v5375 = vld [vmem:[%s3969] sm:$0x3f]
    %v5376 = vld [vmem:[%s3969 + $0x8] sm:$0x3f]
    %v5377 = vld [vmem:[%s3969 + $0x10] sm:$0x3f]
    %v5378 = vld [vmem:[%s3969 + $0x18] sm:$0x3f]
    %v5379 = vld [vmem:[%s3969 + $0x20] sm:$0x3f]
    %v5380 = vld [vmem:[%s3969 + $0x28] sm:$0x3f]
    %v5381 = vld [vmem:[%s3969 + $0x30] sm:$0x3f]
    %v5382 = vld [vmem:[%s3969 + $0x38] sm:$0x3f]
    %s5383 = sld [smem:[#allocation13 + $0x1e]]
    %v5384 = vstv %s5383
    %v5385 = vmul.f32 %v5384, %v5375
    %v5386 = vmul.f32 %v5384, %v5376
    %v5387 = vmul.f32 %v5384, %v5377
    %v5388 = vmul.f32 %v5384, %v5378
    %v5389 = vmul.f32 %v5384, %v5379
    %v5390 = vmul.f32 %v5384, %v5380
    %v5391 = vadd.f32 %v5369, %v5385
    %v5392 = vadd.f32 %v5370, %v5386
    %v5393 = vadd.f32 %v5371, %v5387
    %v5394 = vadd.f32 %v5372, %v5388
    %v5395 = vadd.f32 %v5373, %v5389
    %v5396 = vadd.f32 %v5374, %v5390
    %s5397 = sld [smem:[#allocation13 + $0x3e]]
    %v5398 = vstv %s5397
    %v5399 = vmul.f32 %v5398, %v5376
    %v5400 = vmul.f32 %v5398, %v5377
    %v5401 = vmul.f32 %v5398, %v5378
    %v5402 = vmul.f32 %v5398, %v5379
    %v5403 = vmul.f32 %v5398, %v5380
    %v5404 = vmul.f32 %v5398, %v5381
    %v5405 = vadd.f32 %v5391, %v5399
    %v5406 = vadd.f32 %v5392, %v5400
    %v5407 = vadd.f32 %v5393, %v5401
    %v5408 = vadd.f32 %v5394, %v5402
    %v5409 = vadd.f32 %v5395, %v5403
    %v5410 = vadd.f32 %v5396, %v5404
    %s5411 = sld [smem:[#allocation13 + $0x5e]]
    %v5412 = vstv %s5411
    %v5413 = vmul.f32 %v5412, %v5377
    %v5414 = vmul.f32 %v5412, %v5378
    %v5415 = vmul.f32 %v5412, %v5379
    %v5416 = vmul.f32 %v5412, %v5380
    %v5417 = vmul.f32 %v5412, %v5381
    %v5418 = vmul.f32 %v5412, %v5382
    %v5419 = vadd.f32 %v5405, %v5413
    %v5420 = vadd.f32 %v5406, %v5414
    %v5421 = vadd.f32 %v5407, %v5415
    %v5422 = vadd.f32 %v5408, %v5416
    %v5423 = vadd.f32 %v5409, %v5417
    %v5424 = vadd.f32 %v5410, %v5418
    %s5425 = sld [smem:[#allocation14 + $0x6]]
    %v5426 = vstv %s5425
    %v5427 = vadd.f32 %v5419, %v5426
    %v5428 = vadd.f32 %v5420, %v5426
    %v5429 = vadd.f32 %v5421, %v5426
    %v5430 = vadd.f32 %v5422, %v5426
    %v5431 = vadd.f32 %v5423, %v5426
    %v5432 = vadd.f32 %v5424, %v5426
    %s5433 = scalar_lea.vmem %s7, 288
    %5434 = vst.msk [vmem:[%s5433] sm:$0x3f] %vm2616, %v5427
    %5435 = vst.msk [vmem:[%s5433 + $0x8] sm:$0x3f] %vm2616, %v5428
    %5436 = vst.msk [vmem:[%s5433 + $0x10] sm:$0x3f] %vm2616, %v5429
    %5437 = vst.msk [vmem:[%s5433 + $0x18] sm:$0x3f] %vm2616, %v5430
    %5438 = vst.msk [vmem:[%s5433 + $0x20] sm:$0x3f] %vm2616, %v5431
    %5439 = vst.msk [vmem:[%s5433 + $0x28] sm:$0x3f] %vm2616, %v5432
    %v5440 = vld [vmem:[#allocation3] sm:$0x3f]
    %v5441 = vld [vmem:[#allocation3 + $0x8] sm:$0x3f]
    %v5442 = vld [vmem:[#allocation3 + $0x10] sm:$0x3f]
    %v5443 = vld [vmem:[#allocation3 + $0x18] sm:$0x3f]
    %v5444 = vld [vmem:[#allocation3 + $0x20] sm:$0x3f]
    %v5445 = vld [vmem:[#allocation3 + $0x28] sm:$0x3f]
    %v5446 = vld [vmem:[#allocation3 + $0x30] sm:$0x3f]
    %v5447 = vld [vmem:[#allocation3 + $0x38] sm:$0x3f]
    %s5448 = sld [smem:[#allocation13 + $0x7]]
    %v5449 = vstv %s5448
    %v5450 = vmul.f32 %v5449, %v5440
    %v5451 = vmul.f32 %v5449, %v5441
    %v5452 = vmul.f32 %v5449, %v5442
    %v5453 = vmul.f32 %v5449, %v5443
    %v5454 = vmul.f32 %v5449, %v5444
    %v5455 = vmul.f32 %v5449, %v5445
    %s5456 = sld [smem:[#allocation13 + $0x27]]
    %v5457 = vstv %s5456
    %v5458 = vmul.f32 %v5457, %v5441
    %v5459 = vmul.f32 %v5457, %v5442
    %v5460 = vmul.f32 %v5457, %v5443
    %v5461 = vmul.f32 %v5457, %v5444
    %v5462 = vmul.f32 %v5457, %v5445
    %v5463 = vmul.f32 %v5457, %v5446
    %v5464 = vadd.f32 %v5450, %v5458
    %v5465 = vadd.f32 %v5451, %v5459
    %v5466 = vadd.f32 %v5452, %v5460
    %v5467 = vadd.f32 %v5453, %v5461
    %v5468 = vadd.f32 %v5454, %v5462
    %v5469 = vadd.f32 %v5455, %v5463
    %s5470 = sld [smem:[#allocation13 + $0x47]]
    %v5471 = vstv %s5470
    %v5472 = vmul.f32 %v5471, %v5442
    %v5473 = vmul.f32 %v5471, %v5443
    %v5474 = vmul.f32 %v5471, %v5444
    %v5475 = vmul.f32 %v5471, %v5445
    %v5476 = vmul.f32 %v5471, %v5446
    %v5477 = vmul.f32 %v5471, %v5447
    %v5478 = vadd.f32 %v5464, %v5472
    %v5479 = vadd.f32 %v5465, %v5473
    %v5480 = vadd.f32 %v5466, %v5474
    %v5481 = vadd.f32 %v5467, %v5475
    %v5482 = vadd.f32 %v5468, %v5476
    %v5483 = vadd.f32 %v5469, %v5477
    %v5484 = vld [vmem:[%s3067] sm:$0x3f]
    %v5485 = vld [vmem:[%s3067 + $0x8] sm:$0x3f]
    %v5486 = vld [vmem:[%s3067 + $0x10] sm:$0x3f]
    %v5487 = vld [vmem:[%s3067 + $0x18] sm:$0x3f]
    %v5488 = vld [vmem:[%s3067 + $0x20] sm:$0x3f]
    %v5489 = vld [vmem:[%s3067 + $0x28] sm:$0x3f]
    %v5490 = vld [vmem:[%s3067 + $0x30] sm:$0x3f]
    %v5491 = vld [vmem:[%s3067 + $0x38] sm:$0x3f]
    %s5492 = sld [smem:[#allocation13 + $0xf]]
    %v5493 = vstv %s5492
    %v5494 = vmul.f32 %v5493, %v5484
    %v5495 = vmul.f32 %v5493, %v5485
    %v5496 = vmul.f32 %v5493, %v5486
    %v5497 = vmul.f32 %v5493, %v5487
    %v5498 = vmul.f32 %v5493, %v5488
    %v5499 = vmul.f32 %v5493, %v5489
    %v5500 = vadd.f32 %v5478, %v5494
    %v5501 = vadd.f32 %v5479, %v5495
    %v5502 = vadd.f32 %v5480, %v5496
    %v5503 = vadd.f32 %v5481, %v5497
    %v5504 = vadd.f32 %v5482, %v5498
    %v5505 = vadd.f32 %v5483, %v5499
    %s5506 = sld [smem:[#allocation13 + $0x2f]]
    %v5507 = vstv %s5506
    %v5508 = vmul.f32 %v5507, %v5485
    %v5509 = vmul.f32 %v5507, %v5486
    %v5510 = vmul.f32 %v5507, %v5487
    %v5511 = vmul.f32 %v5507, %v5488
    %v5512 = vmul.f32 %v5507, %v5489
    %v5513 = vmul.f32 %v5507, %v5490
    %v5514 = vadd.f32 %v5500, %v5508
    %v5515 = vadd.f32 %v5501, %v5509
    %v5516 = vadd.f32 %v5502, %v5510
    %v5517 = vadd.f32 %v5503, %v5511
    %v5518 = vadd.f32 %v5504, %v5512
    %v5519 = vadd.f32 %v5505, %v5513
    %s5520 = sld [smem:[#allocation13 + $0x4f]]
    %v5521 = vstv %s5520
    %v5522 = vmul.f32 %v5521, %v5486
    %v5523 = vmul.f32 %v5521, %v5487
    %v5524 = vmul.f32 %v5521, %v5488
    %v5525 = vmul.f32 %v5521, %v5489
    %v5526 = vmul.f32 %v5521, %v5490
    %v5527 = vmul.f32 %v5521, %v5491
    %v5528 = vadd.f32 %v5514, %v5522
    %v5529 = vadd.f32 %v5515, %v5523
    %v5530 = vadd.f32 %v5516, %v5524
    %v5531 = vadd.f32 %v5517, %v5525
    %v5532 = vadd.f32 %v5518, %v5526
    %v5533 = vadd.f32 %v5519, %v5527
    %v5534 = vld [vmem:[%s3518] sm:$0x3f]
    %v5535 = vld [vmem:[%s3518 + $0x8] sm:$0x3f]
    %v5536 = vld [vmem:[%s3518 + $0x10] sm:$0x3f]
    %v5537 = vld [vmem:[%s3518 + $0x18] sm:$0x3f]
    %v5538 = vld [vmem:[%s3518 + $0x20] sm:$0x3f]
    %v5539 = vld [vmem:[%s3518 + $0x28] sm:$0x3f]
    %v5540 = vld [vmem:[%s3518 + $0x30] sm:$0x3f]
    %v5541 = vld [vmem:[%s3518 + $0x38] sm:$0x3f]
    %s5542 = sld [smem:[#allocation13 + $0x17]]
    %v5543 = vstv %s5542
    %v5544 = vmul.f32 %v5543, %v5534
    %v5545 = vmul.f32 %v5543, %v5535
    %v5546 = vmul.f32 %v5543, %v5536
    %v5547 = vmul.f32 %v5543, %v5537
    %v5548 = vmul.f32 %v5543, %v5538
    %v5549 = vmul.f32 %v5543, %v5539
    %v5550 = vadd.f32 %v5528, %v5544
    %v5551 = vadd.f32 %v5529, %v5545
    %v5552 = vadd.f32 %v5530, %v5546
    %v5553 = vadd.f32 %v5531, %v5547
    %v5554 = vadd.f32 %v5532, %v5548
    %v5555 = vadd.f32 %v5533, %v5549
    %s5556 = sld [smem:[#allocation13 + $0x37]]
    %v5557 = vstv %s5556
    %v5558 = vmul.f32 %v5557, %v5535
    %v5559 = vmul.f32 %v5557, %v5536
    %v5560 = vmul.f32 %v5557, %v5537
    %v5561 = vmul.f32 %v5557, %v5538
    %v5562 = vmul.f32 %v5557, %v5539
    %v5563 = vmul.f32 %v5557, %v5540
    %v5564 = vadd.f32 %v5550, %v5558
    %v5565 = vadd.f32 %v5551, %v5559
    %v5566 = vadd.f32 %v5552, %v5560
    %v5567 = vadd.f32 %v5553, %v5561
    %v5568 = vadd.f32 %v5554, %v5562
    %v5569 = vadd.f32 %v5555, %v5563
    %s5570 = sld [smem:[#allocation13 + $0x57]]
    %v5571 = vstv %s5570
    %v5572 = vmul.f32 %v5571, %v5536
    %v5573 = vmul.f32 %v5571, %v5537
    %v5574 = vmul.f32 %v5571, %v5538
    %v5575 = vmul.f32 %v5571, %v5539
    %v5576 = vmul.f32 %v5571, %v5540
    %v5577 = vmul.f32 %v5571, %v5541
    %v5578 = vadd.f32 %v5564, %v5572
    %v5579 = vadd.f32 %v5565, %v5573
    %v5580 = vadd.f32 %v5566, %v5574
    %v5581 = vadd.f32 %v5567, %v5575
    %v5582 = vadd.f32 %v5568, %v5576
    %v5583 = vadd.f32 %v5569, %v5577
    %v5584 = vld [vmem:[%s3969] sm:$0x3f]
    %v5585 = vld [vmem:[%s3969 + $0x8] sm:$0x3f]
    %v5586 = vld [vmem:[%s3969 + $0x10] sm:$0x3f]
    %v5587 = vld [vmem:[%s3969 + $0x18] sm:$0x3f]
    %v5588 = vld [vmem:[%s3969 + $0x20] sm:$0x3f]
    %v5589 = vld [vmem:[%s3969 + $0x28] sm:$0x3f]
    %v5590 = vld [vmem:[%s3969 + $0x30] sm:$0x3f]
    %v5591 = vld [vmem:[%s3969 + $0x38] sm:$0x3f]
    %s5592 = sld [smem:[#allocation13 + $0x1f]]
    %v5593 = vstv %s5592
    %v5594 = vmul.f32 %v5593, %v5584
    %v5595 = vmul.f32 %v5593, %v5585
    %v5596 = vmul.f32 %v5593, %v5586
    %v5597 = vmul.f32 %v5593, %v5587
    %v5598 = vmul.f32 %v5593, %v5588
    %v5599 = vmul.f32 %v5593, %v5589
    %v5600 = vadd.f32 %v5578, %v5594
    %v5601 = vadd.f32 %v5579, %v5595
    %v5602 = vadd.f32 %v5580, %v5596
    %v5603 = vadd.f32 %v5581, %v5597
    %v5604 = vadd.f32 %v5582, %v5598
    %v5605 = vadd.f32 %v5583, %v5599
    %s5606 = sld [smem:[#allocation13 + $0x3f]]
    %v5607 = vstv %s5606
    %v5608 = vmul.f32 %v5607, %v5585
    %v5609 = vmul.f32 %v5607, %v5586
    %v5610 = vmul.f32 %v5607, %v5587
    %v5611 = vmul.f32 %v5607, %v5588
    %v5612 = vmul.f32 %v5607, %v5589
    %v5613 = vmul.f32 %v5607, %v5590
    %v5614 = vadd.f32 %v5600, %v5608
    %v5615 = vadd.f32 %v5601, %v5609
    %v5616 = vadd.f32 %v5602, %v5610
    %v5617 = vadd.f32 %v5603, %v5611
    %v5618 = vadd.f32 %v5604, %v5612
    %v5619 = vadd.f32 %v5605, %v5613
    %s5620 = sld [smem:[#allocation13 + $0x5f]]
    %v5621 = vstv %s5620
    %v5622 = vmul.f32 %v5621, %v5586
    %v5623 = vmul.f32 %v5621, %v5587
    %v5624 = vmul.f32 %v5621, %v5588
    %v5625 = vmul.f32 %v5621, %v5589
    %v5626 = vmul.f32 %v5621, %v5590
    %v5627 = vmul.f32 %v5621, %v5591
    %v5628 = vadd.f32 %v5614, %v5622
    %v5629 = vadd.f32 %v5615, %v5623
    %v5630 = vadd.f32 %v5616, %v5624
    %v5631 = vadd.f32 %v5617, %v5625
    %v5632 = vadd.f32 %v5618, %v5626
    %v5633 = vadd.f32 %v5619, %v5627
    %s5634 = sld [smem:[#allocation14 + $0x7]]
    %v5635 = vstv %s5634
    %v5636 = vadd.f32 %v5628, %v5635
    %v5637 = vadd.f32 %v5629, %v5635
    %v5638 = vadd.f32 %v5630, %v5635
    %v5639 = vadd.f32 %v5631, %v5635
    %v5640 = vadd.f32 %v5632, %v5635
    %v5641 = vadd.f32 %v5633, %v5635
    %s5642 = scalar_lea.vmem %s7, 336
    %5643 = vst.msk [vmem:[%s5642] sm:$0x3f] %vm2616, %v5636
    %5644 = vst.msk [vmem:[%s5642 + $0x8] sm:$0x3f] %vm2616, %v5637
    %5645 = vst.msk [vmem:[%s5642 + $0x10] sm:$0x3f] %vm2616, %v5638
    %5646 = vst.msk [vmem:[%s5642 + $0x18] sm:$0x3f] %vm2616, %v5639
    %5647 = vst.msk [vmem:[%s5642 + $0x20] sm:$0x3f] %vm2616, %v5640
    %5648 = vst.msk [vmem:[%s5642 + $0x28] sm:$0x3f] %vm2616, %v5641
    // Predicated region
    $region58: #{tpu_custom_call.1} parent=1 // pred_check
      _
    $region59: #{tpu_custom_call.1} parent=1 // pred_check_branch
      %5650 = sbr.rel (0) target = $region61
    $region60: #{tpu_custom_call.1} parent=1 // pred_region
      _
    $region61: #{tpu_custom_call.1} parent=1 // pred_fallthru
      _
    // Predicated region
    $region62: #{tpu_custom_call.1} parent=1 // pred_check
      _
    $region63: #{tpu_custom_call.1} parent=1 // pred_check_branch
      %5652 = sbr.rel (0) target = $region65
    $region64: #{tpu_custom_call.1} parent=1 // pred_region
      _
    $region65: #{tpu_custom_call.1} parent=1 // pred_fallthru
      _
    %5653 = vsyncpa [#allocation5], 1
    %5654 = vsyncpa [#allocation6], 1
    %5655 = vsyncpa [#allocation9], 1
    %5656 = vsyncpa [#allocation12], 1
    %5657 = vsyncpa [#allocation15], 1

</llo_original>
